<compile_context>
chip_gen: v5e
topology: v5e:2x2
jax: 0.10.0
libtpu: 0.0.40
codegen_flags: <defaults>
</compile_context>

<pallas_src>
import functools
import numpy as np

import jax
import jax.numpy as jnp
from jax.experimental import pallas as pl
from jax.experimental.pallas import tpu as pltpu


MASK_VALUE = -0.7 * float(np.finfo(np.float32).max)


# ----------------------------------------------------------------------------
# Fused MHA kernel: QKV proj + attention + output proj, one grid step per
# (batch, query-row-tile).  K/V projections live in VMEM scratch across tiles.
# ----------------------------------------------------------------------------
def _mha_kernel(xq_ref, xk_ref, xv_ref, wq_ref, wk_ref, wv_ref, wo_ref, bo_ref,
                o_ref, k_s, v_s, *, n_head, d_k, d_v, scale, causal):
    tq = xq_ref.shape[1]          # query rows in this tile
    kv_len = xk_ref.shape[1]      # full key/value length
    dim_out = wo_ref.shape[1]

    # ---- K/V projection: once per batch element, stashed in scratch ----
    @pl.when(pl.program_id(1) == 0)
    def _():
        xk = xk_ref[0].astype(jnp.bfloat16)          # in-kernel f32 -> bf16 cast
        xv = xv_ref[0].astype(jnp.bfloat16)
        for h in range(n_head):                      # static unroll over heads
            wk_h = wk_ref[:, h * d_k:(h + 1) * d_k].astype(jnp.bfloat16)
            wv_h = wv_ref[:, h * d_v:(h + 1) * d_v].astype(jnp.bfloat16)
            k_s[h] = jnp.dot(xk, wk_h,
                             preferred_element_type=jnp.float32).astype(jnp.bfloat16)
            v_s[h] = jnp.dot(xv, wv_h,
                             preferred_element_type=jnp.float32).astype(jnp.bfloat16)

    xq = xq_ref[0].astype(jnp.bfloat16)              # (tq, C_q) bf16

    # ---- additive causal bias, built once and reused by all heads ----
    if causal:
        q_idx = (jax.lax.broadcasted_iota(jnp.int32, (tq, kv_len), 0)
                 + pl.program_id(1) * tq)
        k_idx = jax.lax.broadcasted_iota(jnp.int32, (tq, kv_len), 1)
        bias = jnp.where(q_idx >= k_idx, 0.0, MASK_VALUE).astype(jnp.float32)

    # ---- per-head attention; head-concat + fc folded into a sum over heads ----
    acc = jnp.zeros((tq, dim_out), jnp.float32)
    for h in range(n_head):                          # static unroll over heads
        # per-head q projection via *weight ref* slice (no 32-lane value slicing);
        # fold 1/sqrt(d_k) into the small (tq, d_k) tile.
        wq_h = wq_ref[:, h * d_k:(h + 1) * d_k].astype(jnp.bfloat16)
        q_h = (jnp.dot(xq, wq_h, preferred_element_type=jnp.float32)
               * scale).astype(jnp.bfloat16)         # (tq, d_k)

        k_h = k_s[h]                                 # (L, d_k) bf16
        v_h = v_s[h]                                 # (L, d_v) bf16

        s = jax.lax.dot_general(q_h, k_h, (((1,), (1,)), ((), ())),
                                preferred_element_type=jnp.float32)   # (tq, L)
        if causal:
            s = s + bias
        s = s - jnp.max(s, axis=-1, keepdims=True)
        p = jnp.exp(s)
        inv_l = pl.reciprocal(jnp.sum(p, axis=-1, keepdims=True), approx=True)

        o_h = jnp.dot(p.astype(jnp.bfloat16), v_h,
                      preferred_element_type=jnp.float32)             # (tq, d_v)
        o_h = (o_h * inv_l).astype(jnp.bfloat16)     # normalize post-PV (tq x d_v)

        # fc contribution of this head: slice fc weight rows via the ref.
        wo_h = wo_ref[h * d_v:(h + 1) * d_v, :].astype(jnp.bfloat16)  # (d_v, dim_q)
        acc = acc + jnp.dot(o_h, wo_h, preferred_element_type=jnp.float32)

    out = acc + bo_ref[...]                          # bias broadcast (1, dim_q)
    o_ref[...] = out[None].astype(o_ref.dtype)       # bf16 HBM write


# ----------------------------------------------------------------------------
# Wrapper: flatten [B, d1..dn, C] -> [B, L, C], launch fused kernel, un-flatten.
# ----------------------------------------------------------------------------
def mha_forward(params, q, k, v, *, n_head, causal=False):
    B = q.shape[0]
    spatial = q.shape[1:-1]
    L = int(np.prod(spatial))
    c_q = q.shape[-1]
    c_kv = k.shape[-1]
    hdk = params["wq"].shape[1]
    hdv = params["wv"].shape[1]
    d_k = hdk // n_head
    d_v = hdv // n_head
    dim_q = params["wo"].shape[1]
    scale = 1.0 / float(np.sqrt(d_k))

    # No wrapper-side casts: kernel reads f32 once from HBM and casts in VMEM.
    xq = q.reshape(B, L, c_q)
    xk = k.reshape(B, L, c_kv)
    xv = v.reshape(B, L, c_kv)
    bo = params["bo"].reshape(1, dim_q)

    # Query tile: capped at 256 rows so the per-head (tq, L) score tile stays well
    # inside v7x's 64 MiB VMEM even for longer sequences.
    tq = L if L <= 256 else 256
    assert L % tq == 0 and tq % 8 == 0, (L, tq)
    grid = (B, L // tq)

    out = pl.pallas_call(
        functools.partial(_mha_kernel, n_head=n_head, d_k=d_k, d_v=d_v,
                          scale=scale, causal=causal),
        out_shape=jax.ShapeDtypeStruct((B, L, dim_q), jnp.bfloat16),
        grid=grid,
        in_specs=[
            pl.BlockSpec((1, tq, c_q), lambda b, i: (b, i, 0)),
            pl.BlockSpec((1, L, c_kv), lambda b, i: (b, 0, 0)),
            pl.BlockSpec((1, L, c_kv), lambda b, i: (b, 0, 0)),
            pl.BlockSpec((c_q, hdk), lambda b, i: (0, 0)),
            pl.BlockSpec((c_kv, hdk), lambda b, i: (0, 0)),
            pl.BlockSpec((c_kv, hdv), lambda b, i: (0, 0)),
            pl.BlockSpec((hdv, dim_q), lambda b, i: (0, 0)),
            pl.BlockSpec((1, dim_q), lambda b, i: (0, 0)),
        ],
        out_specs=pl.BlockSpec((1, tq, dim_q), lambda b, i: (b, i, 0)),
        scratch_shapes=[
            pltpu.VMEM((n_head, L, d_k), jnp.bfloat16),   # K projection cache
            pltpu.VMEM((n_head, L, d_v), jnp.bfloat16),   # V projection cache
        ],
        compiler_params=pltpu.CompilerParams(
            # batch axis parallel (megacore); query-tile axis must be arbitrary so
            # the i==0 K/V-projection init is always seen before i>0 tiles.
            dimension_semantics=("parallel", "arbitrary")),
    )(xq, xk, xv, params["wq"], params["wk"], params["wv"], params["wo"], bo)

    return out.reshape((B,) + spatial + (dim_q,))


# ----------------------------------------------------------------------------
# Pure-JAX f32 reference (mirrors the PyTorch module forward, eval mode)
# ----------------------------------------------------------------------------
def mha_reference(params, q, k, v, *, n_head, causal=False):
    B = q.shape[0]
    spatial = q.shape[1:-1]
    L = int(np.prod(spatial))
    d_k = params["wq"].shape[1] // n_head
    d_v = params["wv"].shape[1] // n_head
    qf = q.reshape(B, L, -1) @ params["wq"]
    kf = k.reshape(B, L, -1) @ params["wk"]
    vf = v.reshape(B, L, -1) @ params["wv"]
    qh = qf.reshape(B, L, n_head, d_k).transpose(0, 2, 1, 3)
    kh = kf.reshape(B, L, n_head, d_k).transpose(0, 2, 1, 3)
    vh = vf.reshape(B, L, n_head, d_v).transpose(0, 2, 1, 3)
    s = jnp.einsum("bhqd,bhkd->bhqk", qh, kh) / np.sqrt(d_k)
    if causal:
        tri = jnp.tril(jnp.ones((L, L), dtype=bool))
        s = jnp.where(tri, s, -jnp.inf)
    p = jax.nn.softmax(s, axis=-1)
    a = jnp.einsum("bhqk,bhkd->bhqd", p, vh)
    a = a.transpose(0, 2, 1, 3).reshape(B, L, n_head * d_v)
    out = a @ params["wo"] + params["bo"]
    return out.reshape((B,) + spatial + (out.shape[-1],))


# ----------------------------------------------------------------------------
if __name__ == "__main__":
    key = jax.random.PRNGKey(0)
    kq, kk, kv, kwq, kwk, kwv, kwo = jax.random.split(key, 7)

    B = 2
    shape = (4, 8, 8)            # (t, h, w) token grid -> seq_len = 256
    dim_q = dim_kv = 128
    n_head = 4
    n_layer = 8
    causal = True                # exercises the FullAttention tril mask

    d_k = dim_q // n_head
    d_v = dim_kv // n_head

    q = jax.random.normal(kq, (B,) + shape + (dim_q,), jnp.float32)
    k = jax.random.normal(kk, (B,) + shape + (dim_kv,), jnp.float32)
    v = jax.random.normal(kv, (B,) + shape + (dim_kv,), jnp.float32)

    # nn.Linear stores (out, in); we keep (in, out) = W^T so y = x @ w.
    # Init std matches the module: 1/sqrt(dim_q|dim_kv), fc: 1/sqrt(dim_q*n_layer).
    params = dict(
        wq=jax.random.normal(kwq, (dim_q, n_head * d_k), jnp.float32) / np.sqrt(dim_q),
        wk=jax.random.normal(kwk, (dim_kv, n_head * d_k), jnp.float32) / np.sqrt(dim_kv),
        wv=jax.random.normal(kwv, (dim_kv, n_head * d_v), jnp.float32) / np.sqrt(dim_kv),
        wo=jax.random.normal(kwo, (n_head * d_v, dim_q), jnp.float32) / np.sqrt(dim_q * n_layer),
        bo=jnp.zeros((dim_q,), jnp.float32),
    )

    fwd = jax.jit(functools.partial(mha_forward, n_head=n_head, causal=causal))
    out = jax.block_until_ready(fwd(params, q, k, v))

    assert out.shape == (B,) + shape + (dim_q,), out.shape
    assert out.dtype == jnp.bfloat16, out.dtype
    assert bool(jnp.all(jnp.isfinite(out.astype(jnp.float32))))

    ref = mha_reference(params, q, k, v, n_head=n_head, causal=causal)
    err = float(jnp.max(jnp.abs(out.astype(jnp.float32) - ref)))
    assert err < 0.1, f"max abs err vs f32 reference too large: {err}"

    print("KERNEL_OK")
</pallas_src>

<mosaic_0001>
module attributes {stable_mosaic.version = 11 : i64} {
  func.func @_mha_kernel(%arg0: i32, %arg1: i32, %arg2: memref<1x256x128xf32, #tpu.memory_space<vmem>>, %arg3: memref<1x256x128xf32, #tpu.memory_space<vmem>>, %arg4: memref<1x256x128xf32, #tpu.memory_space<vmem>>, %arg5: memref<128x128xf32, #tpu.memory_space<vmem>>, %arg6: memref<128x128xf32, #tpu.memory_space<vmem>>, %arg7: memref<128x128xf32, #tpu.memory_space<vmem>>, %arg8: memref<128x128xf32, #tpu.memory_space<vmem>>, %arg9: memref<1x128xf32, #tpu.memory_space<vmem>>, %arg10: memref<1x256x128xbf16, #tpu.memory_space<vmem>>, %arg11: memref<4x256x32xbf16, #tpu.memory_space<vmem>>, %arg12: memref<4x256x32xbf16, #tpu.memory_space<vmem>>) attributes {dimension_semantics = [#tpu.dimension_semantics<parallel>, #tpu.dimension_semantics<arbitrary>], iteration_bounds = array<i64: 2, 1>, scalar_prefetch = 0 : i64, scratch_operands = 2 : i64, tpu.core_type = #tpu.core_type<tc>, window_params = [{transform_indices = @transform_0, window_bounds = array<i64: 1, 256, 128>}, {transform_indices = @transform_1, window_bounds = array<i64: 1, 256, 128>}, {transform_indices = @transform_2, window_bounds = array<i64: 1, 256, 128>}, {pipeline_mode = #tpu.pipeline_mode<synchronous>, transform_indices = @transform_3, window_bounds = array<i64: 128, 128>}, {pipeline_mode = #tpu.pipeline_mode<synchronous>, transform_indices = @transform_4, window_bounds = array<i64: 128, 128>}, {pipeline_mode = #tpu.pipeline_mode<synchronous>, transform_indices = @transform_5, window_bounds = array<i64: 128, 128>}, {pipeline_mode = #tpu.pipeline_mode<synchronous>, transform_indices = @transform_6, window_bounds = array<i64: 128, 128>}, {pipeline_mode = #tpu.pipeline_mode<synchronous>, transform_indices = @transform_7, window_bounds = array<i64: 1, 128>}, {transform_indices = @transform_8, window_bounds = array<i64: 1, 256, 128>}]} {
    %c0_i32 = arith.constant 0 : i32
    %0 = arith.cmpi eq, %arg1, %c0_i32 : i32
    %1 = arith.extui %0 : i1 to i32
    %c0_i32_0 = arith.constant 0 : i32
    %2 = arith.cmpi ne, %1, %c0_i32_0 : i32
    scf.if %2 {
      %c0_72 = arith.constant 0 : index
      %c0_73 = arith.constant 0 : index
      %c0_74 = arith.constant 0 : index
      %138 = vector.load %arg3[%c0_72, %c0_73, %c0_74] : memref<1x256x128xf32, #tpu.memory_space<vmem>>, vector<1x256x128xf32>
      %139 = vector.shape_cast %138 : vector<1x256x128xf32> to vector<256x128xf32>
      %140 = arith.truncf %139 : vector<256x128xf32> to vector<256x128xbf16>
      %c0_75 = arith.constant 0 : index
      %c0_76 = arith.constant 0 : index
      %c0_77 = arith.constant 0 : index
      %141 = vector.load %arg4[%c0_75, %c0_76, %c0_77] : memref<1x256x128xf32, #tpu.memory_space<vmem>>, vector<1x256x128xf32>
      %142 = vector.shape_cast %141 : vector<1x256x128xf32> to vector<256x128xf32>
      %143 = arith.truncf %142 : vector<256x128xf32> to vector<256x128xbf16>
      %c0_78 = arith.constant 0 : index
      %c0_79 = arith.constant 0 : index
      %144 = vector.load %arg6[%c0_78, %c0_79] : memref<128x128xf32, #tpu.memory_space<vmem>>, vector<128x32xf32>
      %145 = arith.truncf %144 : vector<128x32xf32> to vector<128x32xbf16>
      %c0_80 = arith.constant 0 : index
      %c0_81 = arith.constant 0 : index
      %146 = vector.load %arg7[%c0_80, %c0_81] : memref<128x128xf32, #tpu.memory_space<vmem>>, vector<128x32xf32>
      %147 = arith.truncf %146 : vector<128x32xf32> to vector<128x32xbf16>
      %cst_82 = arith.constant dense<0.000000e+00> : vector<256x32xf32>
      %148 = tpu.matmul %140, %145, %cst_82 {dimension_numbers = #tpu.dot_dimension_numbers<[1], [0], [0], [1], [0, 0, 1, 1], [], []>} : vector<256x128xbf16>, vector<128x32xbf16>, vector<256x32xf32> -> vector<256x32xf32>
      %149 = arith.truncf %148 : vector<256x32xf32> to vector<256x32xbf16>
      %c0_83 = arith.constant 0 : index
      %c0_84 = arith.constant 0 : index
      %c0_85 = arith.constant 0 : index
      %150 = vector.load %arg11[%c0_83, %c0_84, %c0_85] : memref<4x256x32xbf16, #tpu.memory_space<vmem>>, vector<1x256x32xbf16>
      %151 = vector.shape_cast %150 : vector<1x256x32xbf16> to vector<256x32xbf16>
      %152 = vector.shape_cast %149 : vector<256x32xbf16> to vector<1x256x32xbf16>
      tpu.vector_store %arg11[%c0_83, %c0_84, %c0_85], %152 {strides = array<i32>} : memref<4x256x32xbf16, #tpu.memory_space<vmem>>, vector<1x256x32xbf16>,
      %cst_86 = arith.constant dense<0.000000e+00> : vector<256x32xf32>
      %153 = tpu.matmul %143, %147, %cst_86 {dimension_numbers = #tpu.dot_dimension_numbers<[1], [0], [0], [1], [0, 0, 1, 1], [], []>} : vector<256x128xbf16>, vector<128x32xbf16>, vector<256x32xf32> -> vector<256x32xf32>
      %154 = arith.truncf %153 : vector<256x32xf32> to vector<256x32xbf16>
      %c0_87 = arith.constant 0 : index
      %c0_88 = arith.constant 0 : index
      %c0_89 = arith.constant 0 : index
      %155 = vector.load %arg12[%c0_87, %c0_88, %c0_89] : memref<4x256x32xbf16, #tpu.memory_space<vmem>>, vector<1x256x32xbf16>
      %156 = vector.shape_cast %155 : vector<1x256x32xbf16> to vector<256x32xbf16>
      %157 = vector.shape_cast %154 : vector<256x32xbf16> to vector<1x256x32xbf16>
      tpu.vector_store %arg12[%c0_87, %c0_88, %c0_89], %157 {strides = array<i32>} : memref<4x256x32xbf16, #tpu.memory_space<vmem>>, vector<1x256x32xbf16>,
      %c0_90 = arith.constant 0 : index
      %c32_91 = arith.constant 32 : index
      %158 = vector.load %arg6[%c0_90, %c32_91] : memref<128x128xf32, #tpu.memory_space<vmem>>, vector<128x32xf32>
      %159 = arith.truncf %158 : vector<128x32xf32> to vector<128x32xbf16>
      %c0_92 = arith.constant 0 : index
      %c32_93 = arith.constant 32 : index
      %160 = vector.load %arg7[%c0_92, %c32_93] : memref<128x128xf32, #tpu.memory_space<vmem>>, vector<128x32xf32>
      %161 = arith.truncf %160 : vector<128x32xf32> to vector<128x32xbf16>
      %cst_94 = arith.constant dense<0.000000e+00> : vector<256x32xf32>
      %162 = tpu.matmul %140, %159, %cst_94 {dimension_numbers = #tpu.dot_dimension_numbers<[1], [0], [0], [1], [0, 0, 1, 1], [], []>} : vector<256x128xbf16>, vector<128x32xbf16>, vector<256x32xf32> -> vector<256x32xf32>
      %163 = arith.truncf %162 : vector<256x32xf32> to vector<256x32xbf16>
      %c1_95 = arith.constant 1 : index
      %c0_96 = arith.constant 0 : index
      %c0_97 = arith.constant 0 : index
      %164 = vector.load %arg11[%c1_95, %c0_96, %c0_97] : memref<4x256x32xbf16, #tpu.memory_space<vmem>>, vector<1x256x32xbf16>
      %165 = vector.shape_cast %164 : vector<1x256x32xbf16> to vector<256x32xbf16>
      %166 = vector.shape_cast %163 : vector<256x32xbf16> to vector<1x256x32xbf16>
      tpu.vector_store %arg11[%c1_95, %c0_96, %c0_97], %166 {strides = array<i32>} : memref<4x256x32xbf16, #tpu.memory_space<vmem>>, vector<1x256x32xbf16>,
      %cst_98 = arith.constant dense<0.000000e+00> : vector<256x32xf32>
      %167 = tpu.matmul %143, %161, %cst_98 {dimension_numbers = #tpu.dot_dimension_numbers<[1], [0], [0], [1], [0, 0, 1, 1], [], []>} : vector<256x128xbf16>, vector<128x32xbf16>, vector<256x32xf32> -> vector<256x32xf32>
      %168 = arith.truncf %167 : vector<256x32xf32> to vector<256x32xbf16>
      %c1_99 = arith.constant 1 : index
      %c0_100 = arith.constant 0 : index
      %c0_101 = arith.constant 0 : index
      %169 = vector.load %arg12[%c1_99, %c0_100, %c0_101] : memref<4x256x32xbf16, #tpu.memory_space<vmem>>, vector<1x256x32xbf16>
      %170 = vector.shape_cast %169 : vector<1x256x32xbf16> to vector<256x32xbf16>
      %171 = vector.shape_cast %168 : vector<256x32xbf16> to vector<1x256x32xbf16>
      tpu.vector_store %arg12[%c1_99, %c0_100, %c0_101], %171 {strides = array<i32>} : memref<4x256x32xbf16, #tpu.memory_space<vmem>>, vector<1x256x32xbf16>,
      %c0_102 = arith.constant 0 : index
      %c64_103 = arith.constant 64 : index
      %172 = vector.load %arg6[%c0_102, %c64_103] : memref<128x128xf32, #tpu.memory_space<vmem>>, vector<128x32xf32>
      %173 = arith.truncf %172 : vector<128x32xf32> to vector<128x32xbf16>
      %c0_104 = arith.constant 0 : index
      %c64_105 = arith.constant 64 : index
      %174 = vector.load %arg7[%c0_104, %c64_105] : memref<128x128xf32, #tpu.memory_space<vmem>>, vector<128x32xf32>
      %175 = arith.truncf %174 : vector<128x32xf32> to vector<128x32xbf16>
      %cst_106 = arith.constant dense<0.000000e+00> : vector<256x32xf32>
      %176 = tpu.matmul %140, %173, %cst_106 {dimension_numbers = #tpu.dot_dimension_numbers<[1], [0], [0], [1], [0, 0, 1, 1], [], []>} : vector<256x128xbf16>, vector<128x32xbf16>, vector<256x32xf32> -> vector<256x32xf32>
      %177 = arith.truncf %176 : vector<256x32xf32> to vector<256x32xbf16>
      %c2_107 = arith.constant 2 : index
      %c0_108 = arith.constant 0 : index
      %c0_109 = arith.constant 0 : index
      %178 = vector.load %arg11[%c2_107, %c0_108, %c0_109] : memref<4x256x32xbf16, #tpu.memory_space<vmem>>, vector<1x256x32xbf16>
      %179 = vector.shape_cast %178 : vector<1x256x32xbf16> to vector<256x32xbf16>
      %180 = vector.shape_cast %177 : vector<256x32xbf16> to vector<1x256x32xbf16>
      tpu.vector_store %arg11[%c2_107, %c0_108, %c0_109], %180 {strides = array<i32>} : memref<4x256x32xbf16, #tpu.memory_space<vmem>>, vector<1x256x32xbf16>,
      %cst_110 = arith.constant dense<0.000000e+00> : vector<256x32xf32>
      %181 = tpu.matmul %143, %175, %cst_110 {dimension_numbers = #tpu.dot_dimension_numbers<[1], [0], [0], [1], [0, 0, 1, 1], [], []>} : vector<256x128xbf16>, vector<128x32xbf16>, vector<256x32xf32> -> vector<256x32xf32>
      %182 = arith.truncf %181 : vector<256x32xf32> to vector<256x32xbf16>
      %c2_111 = arith.constant 2 : index
      %c0_112 = arith.constant 0 : index
      %c0_113 = arith.constant 0 : index
      %183 = vector.load %arg12[%c2_111, %c0_112, %c0_113] : memref<4x256x32xbf16, #tpu.memory_space<vmem>>, vector<1x256x32xbf16>
      %184 = vector.shape_cast %183 : vector<1x256x32xbf16> to vector<256x32xbf16>
      %185 = vector.shape_cast %182 : vector<256x32xbf16> to vector<1x256x32xbf16>
      tpu.vector_store %arg12[%c2_111, %c0_112, %c0_113], %185 {strides = array<i32>} : memref<4x256x32xbf16, #tpu.memory_space<vmem>>, vector<1x256x32xbf16>,
      %c0_114 = arith.constant 0 : index
      %c96_115 = arith.constant 96 : index
      %186 = vector.load %arg6[%c0_114, %c96_115] : memref<128x128xf32, #tpu.memory_space<vmem>>, vector<128x32xf32>
      %187 = arith.truncf %186 : vector<128x32xf32> to vector<128x32xbf16>
      %c0_116 = arith.constant 0 : index
      %c96_117 = arith.constant 96 : index
      %188 = vector.load %arg7[%c0_116, %c96_117] : memref<128x128xf32, #tpu.memory_space<vmem>>, vector<128x32xf32>
      %189 = arith.truncf %188 : vector<128x32xf32> to vector<128x32xbf16>
      %cst_118 = arith.constant dense<0.000000e+00> : vector<256x32xf32>
      %190 = tpu.matmul %140, %187, %cst_118 {dimension_numbers = #tpu.dot_dimension_numbers<[1], [0], [0], [1], [0, 0, 1, 1], [], []>} : vector<256x128xbf16>, vector<128x32xbf16>, vector<256x32xf32> -> vector<256x32xf32>
      %191 = arith.truncf %190 : vector<256x32xf32> to vector<256x32xbf16>
      %c3_119 = arith.constant 3 : index
      %c0_120 = arith.constant 0 : index
      %c0_121 = arith.constant 0 : index
      %192 = vector.load %arg11[%c3_119, %c0_120, %c0_121] : memref<4x256x32xbf16, #tpu.memory_space<vmem>>, vector<1x256x32xbf16>
      %193 = vector.shape_cast %192 : vector<1x256x32xbf16> to vector<256x32xbf16>
      %194 = vector.shape_cast %191 : vector<256x32xbf16> to vector<1x256x32xbf16>
      tpu.vector_store %arg11[%c3_119, %c0_120, %c0_121], %194 {strides = array<i32>} : memref<4x256x32xbf16, #tpu.memory_space<vmem>>, vector<1x256x32xbf16>,
      %cst_122 = arith.constant dense<0.000000e+00> : vector<256x32xf32>
      %195 = tpu.matmul %143, %189, %cst_122 {dimension_numbers = #tpu.dot_dimension_numbers<[1], [0], [0], [1], [0, 0, 1, 1], [], []>} : vector<256x128xbf16>, vector<128x32xbf16>, vector<256x32xf32> -> vector<256x32xf32>
      %196 = arith.truncf %195 : vector<256x32xf32> to vector<256x32xbf16>
      %c3_123 = arith.constant 3 : index
      %c0_124 = arith.constant 0 : index
      %c0_125 = arith.constant 0 : index
      %197 = vector.load %arg12[%c3_123, %c0_124, %c0_125] : memref<4x256x32xbf16, #tpu.memory_space<vmem>>, vector<1x256x32xbf16>
      %198 = vector.shape_cast %197 : vector<1x256x32xbf16> to vector<256x32xbf16>
      %199 = vector.shape_cast %196 : vector<256x32xbf16> to vector<1x256x32xbf16>
      tpu.vector_store %arg12[%c3_123, %c0_124, %c0_125], %199 {strides = array<i32>} : memref<4x256x32xbf16, #tpu.memory_space<vmem>>, vector<1x256x32xbf16>,
    } else {
    }
    %c0 = arith.constant 0 : index
    %c0_1 = arith.constant 0 : index
    %c0_2 = arith.constant 0 : index
    %3 = vector.load %arg2[%c0, %c0_1, %c0_2] : memref<1x256x128xf32, #tpu.memory_space<vmem>>, vector<1x256x128xf32>
    %4 = vector.shape_cast %3 : vector<1x256x128xf32> to vector<256x128xf32>
    %5 = arith.truncf %4 : vector<256x128xf32> to vector<256x128xbf16>
    %6 = tpu.iota {dimensions = array<i32: 0>} : vector<256x256xi32>
    %c256_i32 = arith.constant 256 : i32
    %7 = arith.muli %arg1, %c256_i32 : i32
    %8 = vector.broadcast %7 : i32 to vector<256x256xi32>
    %9 = arith.addi %6, %8 : vector<256x256xi32>
    %10 = tpu.iota {dimensions = array<i32: 1>} : vector<256x256xi32>
    %11 = arith.cmpi sge, %9, %10 : vector<256x256xi32>
    %cst = arith.constant 0.000000e+00 : f32
    %cst_3 = arith.constant -2.38197633E+38 : f32
    %12 = vector.broadcast %cst : f32 to vector<256x256xf32>
    %13 = vector.broadcast %cst_3 : f32 to vector<256x256xf32>
    %14 = arith.select %11, %12, %13 : vector<256x256xi1>, vector<256x256xf32>
    %cst_4 = arith.constant 0.000000e+00 : f32
    %15 = vector.broadcast %cst_4 : f32 to vector<256x128xf32>
    %c0_5 = arith.constant 0 : index
    %c0_6 = arith.constant 0 : index
    %16 = vector.load %arg5[%c0_5, %c0_6] : memref<128x128xf32, #tpu.memory_space<vmem>>, vector<128x32xf32>
    %17 = arith.truncf %16 : vector<128x32xf32> to vector<128x32xbf16>
    %cst_7 = arith.constant dense<0.000000e+00> : vector<256x32xf32>
    %18 = tpu.matmul %5, %17, %cst_7 {dimension_numbers = #tpu.dot_dimension_numbers<[1], [0], [0], [1], [0, 0, 1, 1], [], []>} : vector<256x128xbf16>, vector<128x32xbf16>, vector<256x32xf32> -> vector<256x32xf32>
    %cst_8 = arith.constant 0.176776692 : f32
    %19 = vector.broadcast %cst_8 : f32 to vector<256x32xf32>
    %20 = arith.mulf %18, %19 : vector<256x32xf32>
    %21 = arith.truncf %20 : vector<256x32xf32> to vector<256x32xbf16>
    %c0_9 = arith.constant 0 : index
    %c0_10 = arith.constant 0 : index
    %c0_11 = arith.constant 0 : index
    %22 = vector.load %arg11[%c0_9, %c0_10, %c0_11] : memref<4x256x32xbf16, #tpu.memory_space<vmem>>, vector<1x256x32xbf16>
    %23 = vector.shape_cast %22 : vector<1x256x32xbf16> to vector<256x32xbf16>
    %c0_12 = arith.constant 0 : index
    %c0_13 = arith.constant 0 : index
    %c0_14 = arith.constant 0 : index
    %24 = vector.load %arg12[%c0_12, %c0_13, %c0_14] : memref<4x256x32xbf16, #tpu.memory_space<vmem>>, vector<1x256x32xbf16>
    %25 = vector.shape_cast %24 : vector<1x256x32xbf16> to vector<256x32xbf16>
    %cst_15 = arith.constant dense<0.000000e+00> : vector<256x256xf32>
    %26 = tpu.matmul %21, %23, %cst_15 {dimension_numbers = #tpu.dot_dimension_numbers<[1], [1], [0], [0], [0, 0, 1, 0], [], []>} : vector<256x32xbf16>, vector<256x32xbf16>, vector<256x256xf32> -> vector<256x256xf32>
    %27 = arith.addf %26, %14 : vector<256x256xf32>
    %cst_16 = arith.constant dense<0xFF800000> : vector<256xf32>
    %28 = vector.multi_reduction <maximumf>, %27, %cst_16 [1] : vector<256x256xf32> to vector<256xf32>
    %29 = vector.shape_cast %28 : vector<256xf32> to vector<256x1xf32>
    %30 = vector.broadcast %29 : vector<256x1xf32> to vector<256x256xf32>
    %31 = arith.subf %27, %30 : vector<256x256xf32>
    %32 = math.exp %31 : vector<256x256xf32>
    %cst_17 = arith.constant dense<0.000000e+00> : vector<256xf32>
    %33 = vector.multi_reduction <add>, %32, %cst_17 [1] : vector<256x256xf32> to vector<256xf32>
    %34 = vector.shape_cast %33 : vector<256xf32> to vector<256x1xf32>
    %35 = tpu.reciprocal %34 {approx = true} : vector<256x1xf32> -> vector<256x1xf32>
    %36 = arith.truncf %32 : vector<256x256xf32> to vector<256x256xbf16>
    %cst_18 = arith.constant dense<0.000000e+00> : vector<256x32xf32>
    %37 = tpu.matmul %36, %25, %cst_18 {dimension_numbers = #tpu.dot_dimension_numbers<[1], [0], [0], [1], [0, 0, 1, 1], [], []>} : vector<256x256xbf16>, vector<256x32xbf16>, vector<256x32xf32> -> vector<256x32xf32>
    %38 = vector.broadcast %35 : vector<256x1xf32> to vector<256x32xf32>
    %39 = arith.mulf %37, %38 : vector<256x32xf32>
    %40 = arith.truncf %39 : vector<256x32xf32> to vector<256x32xbf16>
    %c0_19 = arith.constant 0 : index
    %c0_20 = arith.constant 0 : index
    %41 = vector.load %arg8[%c0_19, %c0_20] : memref<128x128xf32, #tpu.memory_space<vmem>>, vector<32x128xf32>
    %42 = arith.truncf %41 : vector<32x128xf32> to vector<32x128xbf16>
    %cst_21 = arith.constant dense<0.000000e+00> : vector<256x128xf32>
    %43 = tpu.matmul %40, %42, %cst_21 {dimension_numbers = #tpu.dot_dimension_numbers<[1], [0], [0], [1], [0, 0, 1, 1], [], []>} : vector<256x32xbf16>, vector<32x128xbf16>, vector<256x128xf32> -> vector<256x128xf32>
    %44 = arith.addf %15, %43 : vector<256x128xf32>
    %c0_22 = arith.constant 0 : index
    %c32 = arith.constant 32 : index
    %45 = vector.load %arg5[%c0_22, %c32] : memref<128x128xf32, #tpu.memory_space<vmem>>, vector<128x32xf32>
    %46 = arith.truncf %45 : vector<128x32xf32> to vector<128x32xbf16>
    %cst_23 = arith.constant dense<0.000000e+00> : vector<256x32xf32>
    %47 = tpu.matmul %5, %46, %cst_23 {dimension_numbers = #tpu.dot_dimension_numbers<[1], [0], [0], [1], [0, 0, 1, 1], [], []>} : vector<256x128xbf16>, vector<128x32xbf16>, vector<256x32xf32> -> vector<256x32xf32>
    %cst_24 = arith.constant 0.176776692 : f32
    %48 = vector.broadcast %cst_24 : f32 to vector<256x32xf32>
    %49 = arith.mulf %47, %48 : vector<256x32xf32>
    %50 = arith.truncf %49 : vector<256x32xf32> to vector<256x32xbf16>
    %c1 = arith.constant 1 : index
    %c0_25 = arith.constant 0 : index
    %c0_26 = arith.constant 0 : index
    %51 = vector.load %arg11[%c1, %c0_25, %c0_26] : memref<4x256x32xbf16, #tpu.memory_space<vmem>>, vector<1x256x32xbf16>
    %52 = vector.shape_cast %51 : vector<1x256x32xbf16> to vector<256x32xbf16>
    %c1_27 = arith.constant 1 : index
    %c0_28 = arith.constant 0 : index
    %c0_29 = arith.constant 0 : index
    %53 = vector.load %arg12[%c1_27, %c0_28, %c0_29] : memref<4x256x32xbf16, #tpu.memory_space<vmem>>, vector<1x256x32xbf16>
    %54 = vector.shape_cast %53 : vector<1x256x32xbf16> to vector<256x32xbf16>
    %cst_30 = arith.constant dense<0.000000e+00> : vector<256x256xf32>
    %55 = tpu.matmul %50, %52, %cst_30 {dimension_numbers = #tpu.dot_dimension_numbers<[1], [1], [0], [0], [0, 0, 1, 0], [], []>} : vector<256x32xbf16>, vector<256x32xbf16>, vector<256x256xf32> -> vector<256x256xf32>
    %56 = arith.addf %55, %14 : vector<256x256xf32>
    %cst_31 = arith.constant dense<0xFF800000> : vector<256xf32>
    %57 = vector.multi_reduction <maximumf>, %56, %cst_31 [1] : vector<256x256xf32> to vector<256xf32>
    %58 = vector.shape_cast %57 : vector<256xf32> to vector<256x1xf32>
    %59 = vector.broadcast %58 : vector<256x1xf32> to vector<256x256xf32>
    %60 = arith.subf %56, %59 : vector<256x256xf32>
    %61 = math.exp %60 : vector<256x256xf32>
    %cst_32 = arith.constant dense<0.000000e+00> : vector<256xf32>
    %62 = vector.multi_reduction <add>, %61, %cst_32 [1] : vector<256x256xf32> to vector<256xf32>
    %63 = vector.shape_cast %62 : vector<256xf32> to vector<256x1xf32>
    %64 = tpu.reciprocal %63 {approx = true} : vector<256x1xf32> -> vector<256x1xf32>
    %65 = arith.truncf %61 : vector<256x256xf32> to vector<256x256xbf16>
    %cst_33 = arith.constant dense<0.000000e+00> : vector<256x32xf32>
    %66 = tpu.matmul %65, %54, %cst_33 {dimension_numbers = #tpu.dot_dimension_numbers<[1], [0], [0], [1], [0, 0, 1, 1], [], []>} : vector<256x256xbf16>, vector<256x32xbf16>, vector<256x32xf32> -> vector<256x32xf32>
    %67 = vector.broadcast %64 : vector<256x1xf32> to vector<256x32xf32>
    %68 = arith.mulf %66, %67 : vector<256x32xf32>
    %69 = arith.truncf %68 : vector<256x32xf32> to vector<256x32xbf16>
    %c32_34 = arith.constant 32 : index
    %c0_35 = arith.constant 0 : index
    %70 = vector.load %arg8[%c32_34, %c0_35] : memref<128x128xf32, #tpu.memory_space<vmem>>, vector<32x128xf32>
    %71 = arith.truncf %70 : vector<32x128xf32> to vector<32x128xbf16>
    %cst_36 = arith.constant dense<0.000000e+00> : vector<256x128xf32>
    %72 = tpu.matmul %69, %71, %cst_36 {dimension_numbers = #tpu.dot_dimension_numbers<[1], [0], [0], [1], [0, 0, 1, 1], [], []>} : vector<256x32xbf16>, vector<32x128xbf16>, vector<256x128xf32> -> vector<256x128xf32>
    %73 = arith.addf %44, %72 : vector<256x128xf32>
    %c0_37 = arith.constant 0 : index
    %c64 = arith.constant 64 : index
    %74 = vector.load %arg5[%c0_37, %c64] : memref<128x128xf32, #tpu.memory_space<vmem>>, vector<128x32xf32>
    %75 = arith.truncf %74 : vector<128x32xf32> to vector<128x32xbf16>
    %cst_38 = arith.constant dense<0.000000e+00> : vector<256x32xf32>
    %76 = tpu.matmul %5, %75, %cst_38 {dimension_numbers = #tpu.dot_dimension_numbers<[1], [0], [0], [1], [0, 0, 1, 1], [], []>} : vector<256x128xbf16>, vector<128x32xbf16>, vector<256x32xf32> -> vector<256x32xf32>
    %cst_39 = arith.constant 0.176776692 : f32
    %77 = vector.broadcast %cst_39 : f32 to vector<256x32xf32>
    %78 = arith.mulf %76, %77 : vector<256x32xf32>
    %79 = arith.truncf %78 : vector<256x32xf32> to vector<256x32xbf16>
    %c2 = arith.constant 2 : index
    %c0_40 = arith.constant 0 : index
    %c0_41 = arith.constant 0 : index
    %80 = vector.load %arg11[%c2, %c0_40, %c0_41] : memref<4x256x32xbf16, #tpu.memory_space<vmem>>, vector<1x256x32xbf16>
    %81 = vector.shape_cast %80 : vector<1x256x32xbf16> to vector<256x32xbf16>
    %c2_42 = arith.constant 2 : index
    %c0_43 = arith.constant 0 : index
    %c0_44 = arith.constant 0 : index
    %82 = vector.load %arg12[%c2_42, %c0_43, %c0_44] : memref<4x256x32xbf16, #tpu.memory_space<vmem>>, vector<1x256x32xbf16>
    %83 = vector.shape_cast %82 : vector<1x256x32xbf16> to vector<256x32xbf16>
    %cst_45 = arith.constant dense<0.000000e+00> : vector<256x256xf32>
    %84 = tpu.matmul %79, %81, %cst_45 {dimension_numbers = #tpu.dot_dimension_numbers<[1], [1], [0], [0], [0, 0, 1, 0], [], []>} : vector<256x32xbf16>, vector<256x32xbf16>, vector<256x256xf32> -> vector<256x256xf32>
    %85 = arith.addf %84, %14 : vector<256x256xf32>
    %cst_46 = arith.constant dense<0xFF800000> : vector<256xf32>
    %86 = vector.multi_reduction <maximumf>, %85, %cst_46 [1] : vector<256x256xf32> to vector<256xf32>
    %87 = vector.shape_cast %86 : vector<256xf32> to vector<256x1xf32>
    %88 = vector.broadcast %87 : vector<256x1xf32> to vector<256x256xf32>
    %89 = arith.subf %85, %88 : vector<256x256xf32>
    %90 = math.exp %89 : vector<256x256xf32>
    %cst_47 = arith.constant dense<0.000000e+00> : vector<256xf32>
    %91 = vector.multi_reduction <add>, %90, %cst_47 [1] : vector<256x256xf32> to vector<256xf32>
    %92 = vector.shape_cast %91 : vector<256xf32> to vector<256x1xf32>
    %93 = tpu.reciprocal %92 {approx = true} : vector<256x1xf32> -> vector<256x1xf32>
    %94 = arith.truncf %90 : vector<256x256xf32> to vector<256x256xbf16>
    %cst_48 = arith.constant dense<0.000000e+00> : vector<256x32xf32>
    %95 = tpu.matmul %94, %83, %cst_48 {dimension_numbers = #tpu.dot_dimension_numbers<[1], [0], [0], [1], [0, 0, 1, 1], [], []>} : vector<256x256xbf16>, vector<256x32xbf16>, vector<256x32xf32> -> vector<256x32xf32>
    %96 = vector.broadcast %93 : vector<256x1xf32> to vector<256x32xf32>
    %97 = arith.mulf %95, %96 : vector<256x32xf32>
    %98 = arith.truncf %97 : vector<256x32xf32> to vector<256x32xbf16>
    %c64_49 = arith.constant 64 : index
    %c0_50 = arith.constant 0 : index
    %99 = vector.load %arg8[%c64_49, %c0_50] : memref<128x128xf32, #tpu.memory_space<vmem>>, vector<32x128xf32>
    %100 = arith.truncf %99 : vector<32x128xf32> to vector<32x128xbf16>
    %cst_51 = arith.constant dense<0.000000e+00> : vector<256x128xf32>
    %101 = tpu.matmul %98, %100, %cst_51 {dimension_numbers = #tpu.dot_dimension_numbers<[1], [0], [0], [1], [0, 0, 1, 1], [], []>} : vector<256x32xbf16>, vector<32x128xbf16>, vector<256x128xf32> -> vector<256x128xf32>
    %102 = arith.addf %73, %101 : vector<256x128xf32>
    %c0_52 = arith.constant 0 : index
    %c96 = arith.constant 96 : index
    %103 = vector.load %arg5[%c0_52, %c96] : memref<128x128xf32, #tpu.memory_space<vmem>>, vector<128x32xf32>
    %104 = arith.truncf %103 : vector<128x32xf32> to vector<128x32xbf16>
    %cst_53 = arith.constant dense<0.000000e+00> : vector<256x32xf32>
    %105 = tpu.matmul %5, %104, %cst_53 {dimension_numbers = #tpu.dot_dimension_numbers<[1], [0], [0], [1], [0, 0, 1, 1], [], []>} : vector<256x128xbf16>, vector<128x32xbf16>, vector<256x32xf32> -> vector<256x32xf32>
    %cst_54 = arith.constant 0.176776692 : f32
    %106 = vector.broadcast %cst_54 : f32 to vector<256x32xf32>
    %107 = arith.mulf %105, %106 : vector<256x32xf32>
    %108 = arith.truncf %107 : vector<256x32xf32> to vector<256x32xbf16>
    %c3 = arith.constant 3 : index
    %c0_55 = arith.constant 0 : index
    %c0_56 = arith.constant 0 : index
    %109 = vector.load %arg11[%c3, %c0_55, %c0_56] : memref<4x256x32xbf16, #tpu.memory_space<vmem>>, vector<1x256x32xbf16>
    %110 = vector.shape_cast %109 : vector<1x256x32xbf16> to vector<256x32xbf16>
    %c3_57 = arith.constant 3 : index
    %c0_58 = arith.constant 0 : index
    %c0_59 = arith.constant 0 : index
    %111 = vector.load %arg12[%c3_57, %c0_58, %c0_59] : memref<4x256x32xbf16, #tpu.memory_space<vmem>>, vector<1x256x32xbf16>
    %112 = vector.shape_cast %111 : vector<1x256x32xbf16> to vector<256x32xbf16>
    %cst_60 = arith.constant dense<0.000000e+00> : vector<256x256xf32>
    %113 = tpu.matmul %108, %110, %cst_60 {dimension_numbers = #tpu.dot_dimension_numbers<[1], [1], [0], [0], [0, 0, 1, 0], [], []>} : vector<256x32xbf16>, vector<256x32xbf16>, vector<256x256xf32> -> vector<256x256xf32>
    %114 = arith.addf %113, %14 : vector<256x256xf32>
    %cst_61 = arith.constant dense<0xFF800000> : vector<256xf32>
    %115 = vector.multi_reduction <maximumf>, %114, %cst_61 [1] : vector<256x256xf32> to vector<256xf32>
    %116 = vector.shape_cast %115 : vector<256xf32> to vector<256x1xf32>
    %117 = vector.broadcast %116 : vector<256x1xf32> to vector<256x256xf32>
    %118 = arith.subf %114, %117 : vector<256x256xf32>
    %119 = math.exp %118 : vector<256x256xf32>
    %cst_62 = arith.constant dense<0.000000e+00> : vector<256xf32>
    %120 = vector.multi_reduction <add>, %119, %cst_62 [1] : vector<256x256xf32> to vector<256xf32>
    %121 = vector.shape_cast %120 : vector<256xf32> to vector<256x1xf32>
    %122 = tpu.reciprocal %121 {approx = true} : vector<256x1xf32> -> vector<256x1xf32>
    %123 = arith.truncf %119 : vector<256x256xf32> to vector<256x256xbf16>
    %cst_63 = arith.constant dense<0.000000e+00> : vector<256x32xf32>
    %124 = tpu.matmul %123, %112, %cst_63 {dimension_numbers = #tpu.dot_dimension_numbers<[1], [0], [0], [1], [0, 0, 1, 1], [], []>} : vector<256x256xbf16>, vector<256x32xbf16>, vector<256x32xf32> -> vector<256x32xf32>
    %125 = vector.broadcast %122 : vector<256x1xf32> to vector<256x32xf32>
    %126 = arith.mulf %124, %125 : vector<256x32xf32>
    %127 = arith.truncf %126 : vector<256x32xf32> to vector<256x32xbf16>
    %c96_64 = arith.constant 96 : index
    %c0_65 = arith.constant 0 : index
    %128 = vector.load %arg8[%c96_64, %c0_65] : memref<128x128xf32, #tpu.memory_space<vmem>>, vector<32x128xf32>
    %129 = arith.truncf %128 : vector<32x128xf32> to vector<32x128xbf16>
    %cst_66 = arith.constant dense<0.000000e+00> : vector<256x128xf32>
    %130 = tpu.matmul %127, %129, %cst_66 {dimension_numbers = #tpu.dot_dimension_numbers<[1], [0], [0], [1], [0, 0, 1, 1], [], []>} : vector<256x32xbf16>, vector<32x128xbf16>, vector<256x128xf32> -> vector<256x128xf32>
    %131 = arith.addf %102, %130 : vector<256x128xf32>
    %c0_67 = arith.constant 0 : index
    %c0_68 = arith.constant 0 : index
    %132 = vector.load %arg9[%c0_67, %c0_68] : memref<1x128xf32, #tpu.memory_space<vmem>>, vector<1x128xf32>
    %133 = vector.broadcast %132 : vector<1x128xf32> to vector<256x128xf32>
    %134 = arith.addf %131, %133 : vector<256x128xf32>
    %135 = vector.shape_cast %134 : vector<256x128xf32> to vector<1x256x128xf32>
    %136 = arith.truncf %135 : vector<1x256x128xf32> to vector<1x256x128xbf16>
    %c0_69 = arith.constant 0 : index
    %c0_70 = arith.constant 0 : index
    %c0_71 = arith.constant 0 : index
    %137 = vector.load %arg10[%c0_69, %c0_70, %c0_71] : memref<1x256x128xbf16, #tpu.memory_space<vmem>>, vector<1x256x128xbf16>
    tpu.vector_store %arg10[%c0_69, %c0_70, %c0_71], %136 {strides = array<i32>} : memref<1x256x128xbf16, #tpu.memory_space<vmem>>, vector<1x256x128xbf16>,
    return
  }
  func.func @transform_0(%arg0: i32, %arg1: i32) -> (i32, i32, i32) {
    %c0_i32 = arith.constant 0 : i32
    %c0_i32_0 = arith.constant 0 : i32
    return %arg0, %arg1, %c0_i32 : i32, i32, i32
  }
  func.func @transform_1(%arg0: i32, %arg1: i32) -> (i32, i32, i32) {
    %c0_i32 = arith.constant 0 : i32
    %c0_i32_0 = arith.constant 0 : i32
    %c0_i32_1 = arith.constant 0 : i32
    return %arg0, %c0_i32, %c0_i32_0 : i32, i32, i32
  }
  func.func @transform_2(%arg0: i32, %arg1: i32) -> (i32, i32, i32) {
    %c0_i32 = arith.constant 0 : i32
    %c0_i32_0 = arith.constant 0 : i32
    %c0_i32_1 = arith.constant 0 : i32
    return %arg0, %c0_i32, %c0_i32_0 : i32, i32, i32
  }
  func.func @transform_3(%arg0: i32, %arg1: i32) -> (i32, i32) {
    %c0_i32 = arith.constant 0 : i32
    %c0_i32_0 = arith.constant 0 : i32
    %c0_i32_1 = arith.constant 0 : i32
    return %c0_i32, %c0_i32_0 : i32, i32
  }
  func.func @transform_4(%arg0: i32, %arg1: i32) -> (i32, i32) {
    %c0_i32 = arith.constant 0 : i32
    %c0_i32_0 = arith.constant 0 : i32
    %c0_i32_1 = arith.constant 0 : i32
    return %c0_i32, %c0_i32_0 : i32, i32
  }
  func.func @transform_5(%arg0: i32, %arg1: i32) -> (i32, i32) {
    %c0_i32 = arith.constant 0 : i32
    %c0_i32_0 = arith.constant 0 : i32
    %c0_i32_1 = arith.constant 0 : i32
    return %c0_i32, %c0_i32_0 : i32, i32
  }
  func.func @transform_6(%arg0: i32, %arg1: i32) -> (i32, i32) {
    %c0_i32 = arith.constant 0 : i32
    %c0_i32_0 = arith.constant 0 : i32
    %c0_i32_1 = arith.constant 0 : i32
    return %c0_i32, %c0_i32_0 : i32, i32
  }
  func.func @transform_7(%arg0: i32, %arg1: i32) -> (i32, i32) {
    %c0_i32 = arith.constant 0 : i32
    %c0_i32_0 = arith.constant 0 : i32
    %c0_i32_1 = arith.constant 0 : i32
    return %c0_i32, %c0_i32_0 : i32, i32
  }
  func.func @transform_8(%arg0: i32, %arg1: i32) -> (i32, i32, i32) {
    %c0_i32 = arith.constant 0 : i32
    %c0_i32_0 = arith.constant 0 : i32
    return %arg0, %arg1, %c0_i32 : i32, i32, i32
  }
}

</mosaic_0001>

<llo_original>
// kernel: mha_forward.1
$region0: #{mha_forward.1}
  #allocation0 [shape = 'u32[]', space=smem, size = 0x4, offset = 0x4, fixed_abs, tag = 'smem constant byte address 0x4 - core index']
  #allocation1 [shape = 'u32[72,128]{1,0:T(1,128)}', space=vmem, size = 0x9000, scoped, tag = 'internal scratch']
  #allocation2 [shape = 'bf16[4,256,32]{2,1,0:T(8,128)(2,1)}', space=vmem, size = 0x40000, scoped, tag = 'scratch operand']
  #allocation3 [shape = 'bf16[4,256,32]{2,1,0:T(8,128)(2,1)}', space=vmem, size = 0x40000, scoped, tag = 'scratch operand']
  %s0 = inlined_call_operand.hbm [shape: f32[2,256,128], index: 0, kind: input, shape index: {}]
  %s1 = inlined_call_operand.hbm [shape: f32[2,256,128], index: 1, kind: input, shape index: {}]
  %s2 = inlined_call_operand.hbm [shape: f32[2,256,128], index: 2, kind: input, shape index: {}]
  %s3 = inlined_call_operand.hbm [shape: f32[128,128], index: 3, kind: input, shape index: {}]
  %s4 = inlined_call_operand.hbm [shape: f32[128,128], index: 4, kind: input, shape index: {}]
  %s5 = inlined_call_operand.hbm [shape: f32[128,128], index: 5, kind: input, shape index: {}]
  %s6 = inlined_call_operand.hbm [shape: f32[128,128], index: 6, kind: input, shape index: {}]
  %s7 = inlined_call_operand.vmem [shape: f32[1,128], index: 7, kind: input, shape index: {}]
  %s8 = inlined_call_operand.hbm [shape: bf16[2,256,128], index: 8, kind: output, shape index: {}]
  %s9 = sld [smem:[#allocation0]]
  $region97: #{mha_forward.1} parent=0
    _
  %s11 = ssub.s32 1, %s9
  %s12 = scalar_select 0, %s11, %s9
  $region1: #{mha_forward.1} parent=0
    #allocation4 [shape = 'u8[262144]{0}', space=vmem, size = 0x40000, scoped, tag = 'input window, operand 0']
    #allocation5 [shape = 's32[2]{0}', space=sflag, size = 0x8, scoped, tag = 'scoped memory for mha_forward.1']
    #allocation6 [shape = 's32[2]{0}', space=sflag, size = 0x8, scoped, tag = 'scoped memory for mha_forward.1']
    #allocation7 [shape = 'u8[262144]{0}', space=vmem, size = 0x40000, scoped, tag = 'input window, operand 1']
    #allocation8 [shape = 's32[2]{0}', space=sflag, size = 0x8, scoped, tag = 'scoped memory for mha_forward.1']
    #allocation9 [shape = 'u8[262144]{0}', space=vmem, size = 0x40000, scoped, tag = 'input window, operand 2']
    #allocation10 [shape = 'u8[65536]{0}', space=vmem, size = 0x10000, scoped, tag = 'input window, operand 3, single buffered']
    #allocation11 [shape = 's32[1]{0}', space=sflag, size = 0x4, scoped, tag = 'scoped memory for mha_forward.1']
    #allocation12 [shape = 'u8[65536]{0}', space=vmem, size = 0x10000, scoped, tag = 'input window, operand 4, single buffered']
    #allocation13 [shape = 'u8[65536]{0}', space=vmem, size = 0x10000, scoped, tag = 'input window, operand 5, single buffered']
    #allocation14 [shape = 's32[1]{0}', space=sflag, size = 0x4, scoped, tag = 'scoped memory for mha_forward.1']
    #allocation15 [shape = 'u8[65536]{0}', space=vmem, size = 0x10000, scoped, tag = 'input window, operand 6, single buffered']
    #allocation16 [shape = 'u8[131072]{0}', space=vmem, size = 0x20000, scoped, tag = 'output window, operand 0']
    %13 = vsyncpa [#allocation5], 0
    %s14 = scalar_lea.sflag [#allocation5], 1
    %15 = vsyncpa %s14, 0
    %16 = vsyncpa [#allocation8], 0
    %s17 = scalar_lea.sflag [#allocation8], 1
    %18 = vsyncpa %s17, 0
    %19 = vsyncpa [#allocation11], 0
    %20 = vsyncpa [#allocation14], 0
    %21 = vsyncpa [#allocation6], 0
    %s22 = scalar_lea.sflag [#allocation6], 1
    %23 = vsyncpa %s22, 0
    loop: start=0, step=1, limit=4
    $region2: #{mha_forward.1} parent=1 // loop_pre_header
      _
    $region3: #{mha_forward.1} parent=1 // loop_header
      %s25 = sphi 0, %s29
      %p26 = scmp.ge.s32.totalorder %s25, 4
      %s32 = sphi 0, %s44
      %s33 = sphi 0, %s40
      %s34 = sphi 0, %s32
      %s35 = sphi 0, %s33
      %s36 = sphi 0, %s34
      %s37 = sphi 0, %s35
      %s49 = sphi 0, %s51
      %s52 = sphi 0, %s49
      %s53 = sphi 0, %s52
      %s69 = sphi 0, %s53
      %s75 = sphi 0, %s77
      %s78 = sphi 0, %s75
      %s79 = sphi 0, %s78
      %s95 = sphi 0, %s79
      %s101 = sphi 0, %s103
      %s104 = sphi 0, %s101
      %s105 = sphi 0, %s104
      %s121 = sphi 0, %s105
      %s125 = sphi 0, %s125
      %s127 = sphi 0, %s125
      %s128 = sphi 0, %s127
      %s142 = sphi 0, %s128
      %s146 = sphi 0, %s146
      %s148 = sphi 0, %s146
      %s149 = sphi 0, %s148
      %s163 = sphi 0, %s149
      %s167 = sphi 0, %s167
      %s169 = sphi 0, %s167
      %s170 = sphi 0, %s169
      %s184 = sphi 0, %s170
      %s188 = sphi 0, %s188
      %s190 = sphi 0, %s188
      %s191 = sphi 0, %s190
      %s205 = sphi 0, %s191
      %s209 = sphi 0, %s209
      %s211 = sphi 0, %s209
      %s212 = sphi 0, %s211
      %s226 = sphi 0, %s212
      %s234 = sphi 0, %s236
      %s237 = sphi 0, %s234
      %s238 = sphi 0, %s237
      %s254 = sphi 0, %s238
    $region4: #{mha_forward.1} parent=1 // loop_header_branch
      %28 = sbr.rel (%p26) target = $region8
    $region5: #{mha_forward.1} parent=1 // loop_body
      %s30 = ssub.s32 %s25, 1
      %s31 = ssub.s32 %s25, 2
      %s38 = sadd.s32 1, %s33
      %p39 = scmp.ge.s32.totalorder %s38, 1
      %s40 = scalar_select %p39, 0, %s38
      %s41 = sadd.s32 1, %s32
      %s42 = scalar_select %p39, %s41, %s32
      %p43 = scmp.ge.s32.totalorder %s42, 2
      %s44 = scalar_select %p43, 0, %s42
      %s45 = ssub.s32 %s32, %s44
      %s46 = ssub.s32 %s33, %s40
      %s47 = sor.u32 %s45, %s46
      %p48 = scmp.eq.s32.totalorder %s47, 0
      %s50 = sadd.s32 %s49, 1
      %s51 = scalar_select %p48, %s49, %s50
      %p54 = pneg %p48
      %p55 = scmp.eq.s32.totalorder %s25, 1
      %p56 = por %p54, %p55
      %p57 = scmp.ne.s32.totalorder %s49, %s52
      %p58 = scmp.eq.s32.totalorder %s25, 0
      %p59 = por %p57, %p58
      %p60 = scmp.ne.s32.totalorder %s49, %s52
      %p61 = scmp.eq.s32.totalorder %s30, 1
      %p62 = por %p60, %p61
      %p63 = scmp.ne.s32.totalorder %s52, %s53
      %p64 = scmp.eq.s32.totalorder %s30, 0
      %p65 = por %p63, %p64
      %p66 = scmp.ne.s32.totalorder %s52, %s53
      %p67 = scmp.eq.s32.totalorder %s31, 1
      %p68 = por %p66, %p67
      %p70 = scmp.ne.s32.totalorder %s53, %s69
      %p71 = scmp.eq.s32.totalorder %s31, 0
      %p72 = por %p70, %p71
      %s73 = ssub.s32 %s32, %s44
      %p74 = scmp.eq.s32.totalorder %s73, 0
      %s76 = sadd.s32 %s75, 1
      %s77 = scalar_select %p74, %s75, %s76
      %p80 = pneg %p74
      %p81 = scmp.eq.s32.totalorder %s25, 1
      %p82 = por %p80, %p81
      %p83 = scmp.ne.s32.totalorder %s75, %s78
      %p84 = scmp.eq.s32.totalorder %s25, 0
      %p85 = por %p83, %p84
      %p86 = scmp.ne.s32.totalorder %s75, %s78
      %p87 = scmp.eq.s32.totalorder %s30, 1
      %p88 = por %p86, %p87
      %p89 = scmp.ne.s32.totalorder %s78, %s79
      %p90 = scmp.eq.s32.totalorder %s30, 0
      %p91 = por %p89, %p90
      %p92 = scmp.ne.s32.totalorder %s78, %s79
      %p93 = scmp.eq.s32.totalorder %s31, 1
      %p94 = por %p92, %p93
      %p96 = scmp.ne.s32.totalorder %s79, %s95
      %p97 = scmp.eq.s32.totalorder %s31, 0
      %p98 = por %p96, %p97
      %s99 = ssub.s32 %s32, %s44
      %p100 = scmp.eq.s32.totalorder %s99, 0
      %s102 = sadd.s32 %s101, 1
      %s103 = scalar_select %p100, %s101, %s102
      %p106 = pneg %p100
      %p107 = scmp.eq.s32.totalorder %s25, 1
      %p108 = por %p106, %p107
      %p109 = scmp.ne.s32.totalorder %s101, %s104
      %p110 = scmp.eq.s32.totalorder %s25, 0
      %p111 = por %p109, %p110
      %p112 = scmp.ne.s32.totalorder %s101, %s104
      %p113 = scmp.eq.s32.totalorder %s30, 1
      %p114 = por %p112, %p113
      %p115 = scmp.ne.s32.totalorder %s104, %s105
      %p116 = scmp.eq.s32.totalorder %s30, 0
      %p117 = por %p115, %p116
      %p118 = scmp.ne.s32.totalorder %s104, %s105
      %p119 = scmp.eq.s32.totalorder %s31, 1
      %p120 = por %p118, %p119
      %p122 = scmp.ne.s32.totalorder %s105, %s121
      %p123 = scmp.eq.s32.totalorder %s31, 0
      %p124 = por %p122, %p123
      %s126 = sadd.s32 %s125, 1
      %p129 = scmp.eq.s32.totalorder %s25, 1
      %p130 = scmp.ne.s32.totalorder %s125, %s127
      %p131 = scmp.eq.s32.totalorder %s25, 0
      %p132 = por %p130, %p131
      %p133 = scmp.ne.s32.totalorder %s125, %s127
      %p134 = scmp.eq.s32.totalorder %s30, 1
      %p135 = por %p133, %p134
      %p136 = scmp.ne.s32.totalorder %s127, %s128
      %p137 = scmp.eq.s32.totalorder %s30, 0
      %p138 = por %p136, %p137
      %p139 = scmp.ne.s32.totalorder %s127, %s128
      %p140 = scmp.eq.s32.totalorder %s31, 1
      %p141 = por %p139, %p140
      %p143 = scmp.ne.s32.totalorder %s128, %s142
      %p144 = scmp.eq.s32.totalorder %s31, 0
      %p145 = por %p143, %p144
      %s147 = sadd.s32 %s146, 1
      %p150 = scmp.eq.s32.totalorder %s25, 1
      %p151 = scmp.ne.s32.totalorder %s146, %s148
      %p152 = scmp.eq.s32.totalorder %s25, 0
      %p153 = por %p151, %p152
      %p154 = scmp.ne.s32.totalorder %s146, %s148
      %p155 = scmp.eq.s32.totalorder %s30, 1
      %p156 = por %p154, %p155
      %p157 = scmp.ne.s32.totalorder %s148, %s149
      %p158 = scmp.eq.s32.totalorder %s30, 0
      %p159 = por %p157, %p158
      %p160 = scmp.ne.s32.totalorder %s148, %s149
      %p161 = scmp.eq.s32.totalorder %s31, 1
      %p162 = por %p160, %p161
      %p164 = scmp.ne.s32.totalorder %s149, %s163
      %p165 = scmp.eq.s32.totalorder %s31, 0
      %p166 = por %p164, %p165
      %s168 = sadd.s32 %s167, 1
      %p171 = scmp.eq.s32.totalorder %s25, 1
      %p172 = scmp.ne.s32.totalorder %s167, %s169
      %p173 = scmp.eq.s32.totalorder %s25, 0
      %p174 = por %p172, %p173
      %p175 = scmp.ne.s32.totalorder %s167, %s169
      %p176 = scmp.eq.s32.totalorder %s30, 1
      %p177 = por %p175, %p176
      %p178 = scmp.ne.s32.totalorder %s169, %s170
      %p179 = scmp.eq.s32.totalorder %s30, 0
      %p180 = por %p178, %p179
      %p181 = scmp.ne.s32.totalorder %s169, %s170
      %p182 = scmp.eq.s32.totalorder %s31, 1
      %p183 = por %p181, %p182
      %p185 = scmp.ne.s32.totalorder %s170, %s184
      %p186 = scmp.eq.s32.totalorder %s31, 0
      %p187 = por %p185, %p186
      %s189 = sadd.s32 %s188, 1
      %p192 = scmp.eq.s32.totalorder %s25, 1
      %p193 = scmp.ne.s32.totalorder %s188, %s190
      %p194 = scmp.eq.s32.totalorder %s25, 0
      %p195 = por %p193, %p194
      %p196 = scmp.ne.s32.totalorder %s188, %s190
      %p197 = scmp.eq.s32.totalorder %s30, 1
      %p198 = por %p196, %p197
      %p199 = scmp.ne.s32.totalorder %s190, %s191
      %p200 = scmp.eq.s32.totalorder %s30, 0
      %p201 = por %p199, %p200
      %p202 = scmp.ne.s32.totalorder %s190, %s191
      %p203 = scmp.eq.s32.totalorder %s31, 1
      %p204 = por %p202, %p203
      %p206 = scmp.ne.s32.totalorder %s191, %s205
      %p207 = scmp.eq.s32.totalorder %s31, 0
      %p208 = por %p206, %p207
      %s210 = sadd.s32 %s209, 1
      %p213 = scmp.eq.s32.totalorder %s25, 1
      %p214 = scmp.ne.s32.totalorder %s209, %s211
      %p215 = scmp.eq.s32.totalorder %s25, 0
      %p216 = por %p214, %p215
      %p217 = scmp.ne.s32.totalorder %s209, %s211
      %p218 = scmp.eq.s32.totalorder %s30, 1
      %p219 = por %p217, %p218
      %p220 = scmp.ne.s32.totalorder %s211, %s212
      %p221 = scmp.eq.s32.totalorder %s30, 0
      %p222 = por %p220, %p221
      %p223 = scmp.ne.s32.totalorder %s211, %s212
      %p224 = scmp.eq.s32.totalorder %s31, 1
      %p225 = por %p223, %p224
      %p227 = scmp.ne.s32.totalorder %s212, %s226
      %p228 = scmp.eq.s32.totalorder %s31, 0
      %p229 = por %p227, %p228
      %s230 = ssub.s32 %s32, %s44
      %s231 = ssub.s32 %s33, %s40
      %s232 = sor.u32 %s230, %s231
      %p233 = scmp.eq.s32.totalorder %s232, 0
      %s235 = sadd.s32 %s234, 1
      %s236 = scalar_select %p233, %s234, %s235
      %p239 = pneg %p233
      %p240 = scmp.eq.s32.totalorder %s25, 1
      %p241 = por %p239, %p240
      %p242 = scmp.ne.s32.totalorder %s234, %s237
      %p243 = scmp.eq.s32.totalorder %s25, 0
      %p244 = por %p242, %p243
      %p245 = scmp.ne.s32.totalorder %s234, %s237
      %p246 = scmp.eq.s32.totalorder %s30, 1
      %p247 = por %p245, %p246
      %p248 = scmp.ne.s32.totalorder %s237, %s238
      %p249 = scmp.eq.s32.totalorder %s30, 0
      %p250 = por %p248, %p249
      %p251 = scmp.ne.s32.totalorder %s237, %s238
      %p252 = scmp.eq.s32.totalorder %s31, 1
      %p253 = por %p251, %p252
      %p255 = scmp.ne.s32.totalorder %s238, %s254
      %p256 = scmp.eq.s32.totalorder %s31, 0
      %p257 = por %p255, %p256
      %p258 = scmp.le.s32.totalorder 1, %s25
      %p259 = scmp.lt.s32.totalorder %s25, 3
      %p260 = pnand %p258, %p259
      %p261 = pneg %p260
      // Predicated region
      $region9: #{mha_forward.1} parent=5 // pred_check
        _
      $region10: #{mha_forward.1} parent=5 // pred_check_branch
        %263 = sbr.rel (%p260) target = $region12
      $region11: #{mha_forward.1} parent=5 // pred_region
        %s264 = ssub.s32 %s25, 1
        // Predicated region
        $region13: #{mha_forward.1} parent=11 // pred_check
          %p265 = pneg %p138
        $region14: #{mha_forward.1} parent=11 // pred_check_branch
          %267 = sbr.rel (%p265) target = $region16
        $region15: #{mha_forward.1} parent=11 // pred_region
          %269 = vsyncadd [#allocation11], 0
          %s270 = sshll.u32 %s3, 4
          %s271 = int_to_ptr.hbm [resolvable:$true] %s270
          %s272 = sshll.u32 [#allocation10], 4
          %s273 = int_to_ptr.vmem [resolvable:$true] %s272
          %278 = dma.hbm_to_vmem [thread:$0]  %s271, 2048, %s273, [#allocation11], 128, 128, 8
        $region16: #{mha_forward.1} parent=11 // pred_fallthru
          _
        // Predicated region
        $region17: #{mha_forward.1} parent=11 // pred_check
          %p279 = pneg %p159
        $region18: #{mha_forward.1} parent=11 // pred_check_branch
          %281 = sbr.rel (%p279) target = $region20
        $region19: #{mha_forward.1} parent=11 // pred_region
          %283 = vsyncadd [#allocation11], 0
          %s284 = sshll.u32 %s4, 4
          %s285 = int_to_ptr.hbm [resolvable:$true] %s284
          %s286 = sshll.u32 [#allocation12], 4
          %s287 = int_to_ptr.vmem [resolvable:$true] %s286
          %292 = dma.hbm_to_vmem [thread:$0]  %s285, 2048, %s287, [#allocation11], 128, 128, 8
        $region20: #{mha_forward.1} parent=11 // pred_fallthru
          _
        // Predicated region
        $region21: #{mha_forward.1} parent=11 // pred_check
          %p293 = pneg %p180
        $region22: #{mha_forward.1} parent=11 // pred_check_branch
          %295 = sbr.rel (%p293) target = $region24
        $region23: #{mha_forward.1} parent=11 // pred_region
          %297 = vsyncadd [#allocation14], 0
          %s298 = sshll.u32 %s5, 4
          %s299 = int_to_ptr.hbm [resolvable:$true] %s298
          %s300 = sshll.u32 [#allocation13], 4
          %s301 = int_to_ptr.vmem [resolvable:$true] %s300
          %306 = dma.hbm_to_vmem [thread:$0]  %s299, 2048, %s301, [#allocation14], 128, 128, 8
        $region24: #{mha_forward.1} parent=11 // pred_fallthru
          _
        // Predicated region
        $region25: #{mha_forward.1} parent=11 // pred_check
          %p307 = pneg %p201
        $region26: #{mha_forward.1} parent=11 // pred_check_branch
          %309 = sbr.rel (%p307) target = $region28
        $region27: #{mha_forward.1} parent=11 // pred_region
          %311 = vsyncadd [#allocation14], 0
          %s312 = sshll.u32 %s6, 4
          %s313 = int_to_ptr.hbm [resolvable:$true] %s312
          %s314 = sshll.u32 [#allocation15], 4
          %s315 = int_to_ptr.vmem [resolvable:$true] %s314
          %320 = dma.hbm_to_vmem [thread:$0]  %s313, 2048, %s315, [#allocation14], 128, 128, 8
        $region28: #{mha_forward.1} parent=11 // pred_fallthru
          _
        // Predicated region
        $region29: #{mha_forward.1} parent=11 // pred_check
          %p321 = pneg %p222
        $region30: #{mha_forward.1} parent=11 // pred_check_branch
          %323 = sbr.rel (%p321) target = $region32
        $region31: #{mha_forward.1} parent=11 // pred_region
          _
        $region32: #{mha_forward.1} parent=11 // pred_fallthru
          _
      $region12: #{mha_forward.1} parent=5 // pred_fallthru
        _
      %p324 = scmp.lt.s32.totalorder %s25, 2
      // Predicated region
      $region33: #{mha_forward.1} parent=5 // pred_check
        %p325 = pneg %p324
      $region34: #{mha_forward.1} parent=5 // pred_check_branch
        %327 = sbr.rel (%p325) target = $region36
      $region35: #{mha_forward.1} parent=5 // pred_region
        // Predicated region
        $region37: #{mha_forward.1} parent=35 // pred_check
          %p328 = pneg %p59
        $region38: #{mha_forward.1} parent=35 // pred_check_branch
          %330 = sbr.rel (%p328) target = $region40
        $region39: #{mha_forward.1} parent=35 // pred_region
          %s331 = sand.u32 %s49, 1
          %s332 = scalar_lea.sflag [#allocation5], %s331
          %s333 = sand.u32 %s49, 1
          %s334 = smul.addr %s333, 256
          %s335 = scalar_lea.vmem [#allocation4], %s334
          %s336 = smul.u32 32, %s33
          %338 = vsyncadd %s332, 0
          %s339 = smul.addr %s32, 32
          %s340 = sadd.s32 %s336, %s339
          %s341 = smul.addr %s340, 8
          %s342 = scalar_lea.hbm %s0, %s341
          %s343 = sshll.u32 %s342, 4
          %s344 = int_to_ptr.hbm [resolvable:$true] %s343
          %s345 = sshll.u32 %s335, 4
          %s346 = int_to_ptr.vmem [resolvable:$true] %s345
          %351 = dma.hbm_to_vmem [thread:$0]  %s344, 4096, %s346, %s332, 128, 128, 8
        $region40: #{mha_forward.1} parent=35 // pred_fallthru
          _
        // Predicated region
        $region41: #{mha_forward.1} parent=35 // pred_check
          %p352 = pneg %p85
        $region42: #{mha_forward.1} parent=35 // pred_check_branch
          %354 = sbr.rel (%p352) target = $region44
        $region43: #{mha_forward.1} parent=35 // pred_region
          %s355 = sand.u32 %s25, 1
          %s356 = scalar_lea.sflag [#allocation8], %s355
          %s357 = sand.u32 %s75, 1
          %s358 = smul.addr %s357, 256
          %s359 = scalar_lea.vmem [#allocation7], %s358
          %361 = vsyncadd %s356, 0
          %s362 = smul.addr %s32, 32
          %s363 = smul.addr %s362, 8
          %s364 = scalar_lea.hbm %s1, %s363
          %s365 = sshll.u32 %s364, 4
          %s366 = int_to_ptr.hbm [resolvable:$true] %s365
          %s367 = sshll.u32 %s359, 4
          %s368 = int_to_ptr.vmem [resolvable:$true] %s367
          %373 = dma.hbm_to_vmem [thread:$0]  %s366, 4096, %s368, %s356, 128, 128, 8
        $region44: #{mha_forward.1} parent=35 // pred_fallthru
          _
        // Predicated region
        $region45: #{mha_forward.1} parent=35 // pred_check
          %p374 = pneg %p111
        $region46: #{mha_forward.1} parent=35 // pred_check_branch
          %376 = sbr.rel (%p374) target = $region48
        $region47: #{mha_forward.1} parent=35 // pred_region
          %s377 = sand.u32 %s25, 1
          %s378 = scalar_lea.sflag [#allocation8], %s377
          %s379 = sand.u32 %s101, 1
          %s380 = smul.addr %s379, 256
          %s381 = scalar_lea.vmem [#allocation9], %s380
          %383 = vsyncadd %s378, 0
          %s384 = smul.addr %s32, 32
          %s385 = smul.addr %s384, 8
          %s386 = scalar_lea.hbm %s2, %s385
          %s387 = sshll.u32 %s386, 4
          %s388 = int_to_ptr.hbm [resolvable:$true] %s387
          %s389 = sshll.u32 %s381, 4
          %s390 = int_to_ptr.vmem [resolvable:$true] %s389
          %395 = dma.hbm_to_vmem [thread:$0]  %s388, 4096, %s390, %s378, 128, 128, 8
        $region48: #{mha_forward.1} parent=35 // pred_fallthru
          _
      $region36: #{mha_forward.1} parent=5 // pred_fallthru
        _
      %p396 = scmp.le.s32.totalorder 1, %s25
      %p397 = scmp.lt.s32.totalorder %s25, 3
      %p398 = pnand %p396, %p397
      %p399 = pneg %p398
      // Predicated region
      $region49: #{mha_forward.1} parent=5 // pred_check
        _
      $region50: #{mha_forward.1} parent=5 // pred_check_branch
        %401 = sbr.rel (%p398) target = $region52
      $region51: #{mha_forward.1} parent=5 // pred_region
        %s402 = ssub.s32 %s25, 1
        %s403 = sand.u32 %s52, 1
        %s404 = scalar_lea.sflag [#allocation5], %s403
        %s405 = sand.u32 %s52, 1
        %s406 = smul.addr %s405, 256
        %s407 = scalar_lea.vmem [#allocation4], %s406
        // Predicated region
        $region53: #{mha_forward.1} parent=51 // pred_check
          %p408 = pneg %p65
        $region54: #{mha_forward.1} parent=51 // pred_check_branch
          %410 = sbr.rel (%p408) target = $region56
        $region55: #{mha_forward.1} parent=51 // pred_region
          %412 = dma.done %s404, 4096
        $region56: #{mha_forward.1} parent=51 // pred_fallthru
          _
        %s413 = sand.u32 %s30, 1
        %s414 = scalar_lea.sflag [#allocation8], %s413
        %s415 = sand.u32 %s78, 1
        %s416 = smul.addr %s415, 256
        %s417 = scalar_lea.vmem [#allocation7], %s416
        // Predicated region
        $region57: #{mha_forward.1} parent=51 // pred_check
          %p418 = pneg %p91
        $region58: #{mha_forward.1} parent=51 // pred_check_branch
          %420 = sbr.rel (%p418) target = $region60
        $region59: #{mha_forward.1} parent=51 // pred_region
          %422 = dma.done %s414, 4096
        $region60: #{mha_forward.1} parent=51 // pred_fallthru
          _
        %s423 = sand.u32 %s30, 1
        %s424 = scalar_lea.sflag [#allocation8], %s423
        %s425 = sand.u32 %s104, 1
        %s426 = smul.addr %s425, 256
        %s427 = scalar_lea.vmem [#allocation9], %s426
        // Predicated region
        $region61: #{mha_forward.1} parent=51 // pred_check
          %p428 = pneg %p117
        $region62: #{mha_forward.1} parent=51 // pred_check_branch
          %430 = sbr.rel (%p428) target = $region64
        $region63: #{mha_forward.1} parent=51 // pred_region
          %432 = dma.done %s424, 4096
        $region64: #{mha_forward.1} parent=51 // pred_fallthru
          _
        // Predicated region
        $region65: #{mha_forward.1} parent=51 // pred_check
          %p433 = pneg %p138
        $region66: #{mha_forward.1} parent=51 // pred_check_branch
          %435 = sbr.rel (%p433) target = $region68
        $region67: #{mha_forward.1} parent=51 // pred_region
          %437 = dma.done [#allocation11], 2048
        $region68: #{mha_forward.1} parent=51 // pred_fallthru
          _
        // Predicated region
        $region69: #{mha_forward.1} parent=51 // pred_check
          %p438 = pneg %p159
        $region70: #{mha_forward.1} parent=51 // pred_check_branch
          %440 = sbr.rel (%p438) target = $region72
        $region71: #{mha_forward.1} parent=51 // pred_region
          %442 = dma.done [#allocation11], 2048
        $region72: #{mha_forward.1} parent=51 // pred_fallthru
          _
        // Predicated region
        $region73: #{mha_forward.1} parent=51 // pred_check
          %p443 = pneg %p180
        $region74: #{mha_forward.1} parent=51 // pred_check_branch
          %445 = sbr.rel (%p443) target = $region76
        $region75: #{mha_forward.1} parent=51 // pred_region
          %447 = dma.done [#allocation14], 2048
        $region76: #{mha_forward.1} parent=51 // pred_fallthru
          _
        // Predicated region
        $region77: #{mha_forward.1} parent=51 // pred_check
          %p448 = pneg %p201
        $region78: #{mha_forward.1} parent=51 // pred_check_branch
          %450 = sbr.rel (%p448) target = $region80
        $region79: #{mha_forward.1} parent=51 // pred_region
          %452 = dma.done [#allocation14], 2048
        $region80: #{mha_forward.1} parent=51 // pred_fallthru
          _
        %s453 = sand.u32 %s52, 1
        %s454 = scalar_lea.sflag [#allocation5], %s453
        %s455 = sand.u32 %s52, 1
        %s456 = smul.addr %s455, 256
        %s457 = scalar_lea.vmem [#allocation4], %s456
        %p458 = pneg %p65
        %p459 = pneg %p62
        %s460 = sand.u32 %s30, 1
        %s461 = scalar_lea.sflag [#allocation8], %s460
        %s462 = sand.u32 %s78, 1
        %s463 = smul.addr %s462, 256
        %s464 = scalar_lea.vmem [#allocation7], %s463
        %p465 = pneg %p91
        %p466 = pneg %p88
        %s467 = sand.u32 %s30, 1
        %s468 = scalar_lea.sflag [#allocation8], %s467
        %s469 = sand.u32 %s104, 1
        %s470 = smul.addr %s469, 256
        %s471 = scalar_lea.vmem [#allocation9], %s470
        %p472 = pneg %p117
        %p473 = pneg %p114
        %p474 = pneg %p138
        %p475 = pneg %p135
        %p476 = pneg %p159
        %p477 = pneg %p156
        %p478 = pneg %p180
        %p479 = pneg %p177
        %p480 = pneg %p201
        %p481 = pneg %p198
        %p482 = pneg %p222
        %p483 = pneg %p219
        %p484 = pneg %p250
        %p485 = pneg %p247
        %s486 = sand.u32 %s237, 1
        %s487 = scalar_lea.sflag [#allocation6], %s486
        %s488 = sand.u32 %s237, 1
        %s489 = smul.addr %s488, 128
        %s490 = scalar_lea.vmem [#allocation16], %s489
        %s491 = smul.u32 32, %s35
        %s492 = smul.u32 32, %s35
        %p494 = scmp.eq.s32.totalorder %s35, 0
        // Predicated region
        $region81: #{mha_forward.1} parent=51 // pred_check
          %p495 = pneg %p494
        $region82: #{mha_forward.1} parent=51 // pred_check_branch
          %497 = sbr.rel (%p495) target = $region84
        $region83: #{mha_forward.1} parent=51 // pred_region
          %v498 = vld [vmem:[%s417] sm:$0xff]
          %v499 = vld [vmem:[%s417 + $0x8] sm:$0xff]
          %v500 = vld [vmem:[%s417 + $0x10] sm:$0xff]
          %v501 = vld [vmem:[%s417 + $0x18] sm:$0xff]
          %v502 = vld [vmem:[%s417 + $0x20] sm:$0xff]
          %v503 = vld [vmem:[%s417 + $0x28] sm:$0xff]
          %v504 = vld [vmem:[%s417 + $0x30] sm:$0xff]
          %v505 = vld [vmem:[%s417 + $0x38] sm:$0xff]
          %v506 = vld [vmem:[%s417 + $0x40] sm:$0xff]
          %v507 = vld [vmem:[%s417 + $0x48] sm:$0xff]
          %v508 = vld [vmem:[%s417 + $0x50] sm:$0xff]
          %v509 = vld [vmem:[%s417 + $0x58] sm:$0xff]
          %v510 = vld [vmem:[%s417 + $0x60] sm:$0xff]
          %v511 = vld [vmem:[%s417 + $0x68] sm:$0xff]
          %v512 = vld [vmem:[%s417 + $0x70] sm:$0xff]
          %v513 = vld [vmem:[%s417 + $0x78] sm:$0xff]
          %v514 = vld [vmem:[%s417 + $0x80] sm:$0xff]
          %v515 = vld [vmem:[%s417 + $0x88] sm:$0xff]
          %v516 = vld [vmem:[%s417 + $0x90] sm:$0xff]
          %v517 = vld [vmem:[%s417 + $0x98] sm:$0xff]
          %v518 = vld [vmem:[%s417 + $0xa0] sm:$0xff]
          %v519 = vld [vmem:[%s417 + $0xa8] sm:$0xff]
          %v520 = vld [vmem:[%s417 + $0xb0] sm:$0xff]
          %v521 = vld [vmem:[%s417 + $0xb8] sm:$0xff]
          %v522 = vld [vmem:[%s417 + $0xc0] sm:$0xff]
          %v523 = vld [vmem:[%s417 + $0xc8] sm:$0xff]
          %v524 = vld [vmem:[%s417 + $0xd0] sm:$0xff]
          %v525 = vld [vmem:[%s417 + $0xd8] sm:$0xff]
          %v526 = vld [vmem:[%s417 + $0xe0] sm:$0xff]
          %v527 = vld [vmem:[%s417 + $0xe8] sm:$0xff]
          %v528 = vld [vmem:[%s417 + $0xf0] sm:$0xff]
          %v529 = vld [vmem:[%s417 + $0xf8] sm:$0xff]
          %v530 = vpack.c.bf16 %v499, %v498
          %v531 = vpack.c.bf16 %v501, %v500
          %v532 = vpack.c.bf16 %v503, %v502
          %v533 = vpack.c.bf16 %v505, %v504
          %v534 = vpack.c.bf16 %v507, %v506
          %v535 = vpack.c.bf16 %v509, %v508
          %v536 = vpack.c.bf16 %v511, %v510
          %v537 = vpack.c.bf16 %v513, %v512
          %v538 = vpack.c.bf16 %v515, %v514
          %v539 = vpack.c.bf16 %v517, %v516
          %v540 = vpack.c.bf16 %v519, %v518
          %v541 = vpack.c.bf16 %v521, %v520
          %v542 = vpack.c.bf16 %v523, %v522
          %v543 = vpack.c.bf16 %v525, %v524
          %v544 = vpack.c.bf16 %v527, %v526
          %v545 = vpack.c.bf16 %v529, %v528
          %v546 = vld [vmem:[%s427] sm:$0xff]
          %v547 = vld [vmem:[%s427 + $0x8] sm:$0xff]
          %v548 = vld [vmem:[%s427 + $0x10] sm:$0xff]
          %v549 = vld [vmem:[%s427 + $0x18] sm:$0xff]
          %v550 = vld [vmem:[%s427 + $0x20] sm:$0xff]
          %v551 = vld [vmem:[%s427 + $0x28] sm:$0xff]
          %v552 = vld [vmem:[%s427 + $0x30] sm:$0xff]
          %v553 = vld [vmem:[%s427 + $0x38] sm:$0xff]
          %v554 = vld [vmem:[%s427 + $0x40] sm:$0xff]
          %v555 = vld [vmem:[%s427 + $0x48] sm:$0xff]
          %v556 = vld [vmem:[%s427 + $0x50] sm:$0xff]
          %v557 = vld [vmem:[%s427 + $0x58] sm:$0xff]
          %v558 = vld [vmem:[%s427 + $0x60] sm:$0xff]
          %v559 = vld [vmem:[%s427 + $0x68] sm:$0xff]
          %v560 = vld [vmem:[%s427 + $0x70] sm:$0xff]
          %v561 = vld [vmem:[%s427 + $0x78] sm:$0xff]
          %v562 = vld [vmem:[%s427 + $0x80] sm:$0xff]
          %v563 = vld [vmem:[%s427 + $0x88] sm:$0xff]
          %v564 = vld [vmem:[%s427 + $0x90] sm:$0xff]
          %v565 = vld [vmem:[%s427 + $0x98] sm:$0xff]
          %v566 = vld [vmem:[%s427 + $0xa0] sm:$0xff]
          %v567 = vld [vmem:[%s427 + $0xa8] sm:$0xff]
          %v568 = vld [vmem:[%s427 + $0xb0] sm:$0xff]
          %v569 = vld [vmem:[%s427 + $0xb8] sm:$0xff]
          %v570 = vld [vmem:[%s427 + $0xc0] sm:$0xff]
          %v571 = vld [vmem:[%s427 + $0xc8] sm:$0xff]
          %v572 = vld [vmem:[%s427 + $0xd0] sm:$0xff]
          %v573 = vld [vmem:[%s427 + $0xd8] sm:$0xff]
          %v574 = vld [vmem:[%s427 + $0xe0] sm:$0xff]
          %v575 = vld [vmem:[%s427 + $0xe8] sm:$0xff]
          %v576 = vld [vmem:[%s427 + $0xf0] sm:$0xff]
          %v577 = vld [vmem:[%s427 + $0xf8] sm:$0xff]
          %v578 = vpack.c.bf16 %v547, %v546
          %v579 = vpack.c.bf16 %v549, %v548
          %v580 = vpack.c.bf16 %v551, %v550
          %v581 = vpack.c.bf16 %v553, %v552
          %v582 = vpack.c.bf16 %v555, %v554
          %v583 = vpack.c.bf16 %v557, %v556
          %v584 = vpack.c.bf16 %v559, %v558
          %v585 = vpack.c.bf16 %v561, %v560
          %v586 = vpack.c.bf16 %v563, %v562
          %v587 = vpack.c.bf16 %v565, %v564
          %v588 = vpack.c.bf16 %v567, %v566
          %v589 = vpack.c.bf16 %v569, %v568
          %v590 = vpack.c.bf16 %v571, %v570
          %v591 = vpack.c.bf16 %v573, %v572
          %v592 = vpack.c.bf16 %v575, %v574
          %v593 = vpack.c.bf16 %v577, %v576
          %v594 = vld [vmem:[#allocation12] sm:$0xff]
          %v595 = vld [vmem:[#allocation12 + $0x8] sm:$0xff]
          %v596 = vld [vmem:[#allocation12 + $0x10] sm:$0xff]
          %v597 = vld [vmem:[#allocation12 + $0x18] sm:$0xff]
          %v598 = vld [vmem:[#allocation12 + $0x20] sm:$0xff]
          %v599 = vld [vmem:[#allocation12 + $0x28] sm:$0xff]
          %v600 = vld [vmem:[#allocation12 + $0x30] sm:$0xff]
          %v601 = vld [vmem:[#allocation12 + $0x38] sm:$0xff]
          %v602 = vld [vmem:[#allocation12 + $0x40] sm:$0xff]
          %v603 = vld [vmem:[#allocation12 + $0x48] sm:$0xff]
          %v604 = vld [vmem:[#allocation12 + $0x50] sm:$0xff]
          %v605 = vld [vmem:[#allocation12 + $0x58] sm:$0xff]
          %v606 = vld [vmem:[#allocation12 + $0x60] sm:$0xff]
          %v607 = vld [vmem:[#allocation12 + $0x68] sm:$0xff]
          %v608 = vld [vmem:[#allocation12 + $0x70] sm:$0xff]
          %v609 = vld [vmem:[#allocation12 + $0x78] sm:$0xff]
          %v610 = vpack.c.bf16 %v595, %v594
          %v611 = vpack.c.bf16 %v597, %v596
          %v612 = vpack.c.bf16 %v599, %v598
          %v613 = vpack.c.bf16 %v601, %v600
          %v614 = vpack.c.bf16 %v603, %v602
          %v615 = vpack.c.bf16 %v605, %v604
          %v616 = vpack.c.bf16 %v607, %v606
          %v617 = vpack.c.bf16 %v609, %v608
          %v618 = vld [vmem:[#allocation13] sm:$0xff]
          %v619 = vld [vmem:[#allocation13 + $0x8] sm:$0xff]
          %v620 = vld [vmem:[#allocation13 + $0x10] sm:$0xff]
          %v621 = vld [vmem:[#allocation13 + $0x18] sm:$0xff]
          %v622 = vld [vmem:[#allocation13 + $0x20] sm:$0xff]
          %v623 = vld [vmem:[#allocation13 + $0x28] sm:$0xff]
          %v624 = vld [vmem:[#allocation13 + $0x30] sm:$0xff]
          %v625 = vld [vmem:[#allocation13 + $0x38] sm:$0xff]
          %v626 = vld [vmem:[#allocation13 + $0x40] sm:$0xff]
          %v627 = vld [vmem:[#allocation13 + $0x48] sm:$0xff]
          %v628 = vld [vmem:[#allocation13 + $0x50] sm:$0xff]
          %v629 = vld [vmem:[#allocation13 + $0x58] sm:$0xff]
          %v630 = vld [vmem:[#allocation13 + $0x60] sm:$0xff]
          %v631 = vld [vmem:[#allocation13 + $0x68] sm:$0xff]
          %v632 = vld [vmem:[#allocation13 + $0x70] sm:$0xff]
          %v633 = vld [vmem:[#allocation13 + $0x78] sm:$0xff]
          %v634 = vpack.c.bf16 %v619, %v618
          %v635 = vpack.c.bf16 %v621, %v620
          %v636 = vpack.c.bf16 %v623, %v622
          %v637 = vpack.c.bf16 %v625, %v624
          %v638 = vpack.c.bf16 %v627, %v626
          %v639 = vpack.c.bf16 %v629, %v628
          %v640 = vpack.c.bf16 %v631, %v630
          %v641 = vpack.c.bf16 %v633, %v632
          %642 = vmatpush.bf16.msra.mxu0 %v617
          %643 = vmatpush.bf16.msra.mxu0 %v616
          %644 = vmatpush.bf16.msra.mxu0 %v615
          %645 = vmatpush.bf16.msra.mxu0 %v614
          %646 = vmatpush.bf16.msra.mxu0 %v613
          %647 = vmatpush.bf16.msra.mxu0 %v612
          %648 = vmatpush.bf16.msra.mxu0 %v611
          %649 = vmatpush.bf16.msra.mxu0 %v610
          %650 = vmatmul.bf16.gmra.mxu0 %v530
          %v651 = vpop.f32.mrf.mxu0
          %v652 = vadd.f32 0.0, %v651
          %v653 = vpop.f32.mrf.mxu0
          %v654 = vadd.f32 0.0, %v653
          %655 = vmatmul.bf16.gmra.mxu0 %v531
          %v656 = vpop.f32.mrf.mxu0
          %v657 = vadd.f32 0.0, %v656
          %v658 = vpop.f32.mrf.mxu0
          %v659 = vadd.f32 0.0, %v658
          %660 = vmatmul.bf16.gmra.mxu0 %v532
          %v661 = vpop.f32.mrf.mxu0
          %v662 = vadd.f32 0.0, %v661
          %v663 = vpop.f32.mrf.mxu0
          %v664 = vadd.f32 0.0, %v663
          %665 = vmatmul.bf16.gmra.mxu0 %v533
          %v666 = vpop.f32.mrf.mxu0
          %v667 = vadd.f32 0.0, %v666
          %v668 = vpop.f32.mrf.mxu0
          %v669 = vadd.f32 0.0, %v668
          %670 = vmatmul.bf16.gmra.mxu0 %v534
          %v671 = vpop.f32.mrf.mxu0
          %v672 = vadd.f32 0.0, %v671
          %v673 = vpop.f32.mrf.mxu0
          %v674 = vadd.f32 0.0, %v673
          %675 = vmatmul.bf16.gmra.mxu0 %v535
          %v676 = vpop.f32.mrf.mxu0
          %v677 = vadd.f32 0.0, %v676
          %v678 = vpop.f32.mrf.mxu0
          %v679 = vadd.f32 0.0, %v678
          %680 = vmatmul.bf16.gmra.mxu0 %v536
          %v681 = vpop.f32.mrf.mxu0
          %v682 = vadd.f32 0.0, %v681
          %v683 = vpop.f32.mrf.mxu0
          %v684 = vadd.f32 0.0, %v683
          %685 = vmatmul.bf16.gmra.mxu0 %v537
          %v686 = vpop.f32.mrf.mxu0
          %v687 = vadd.f32 0.0, %v686
          %v688 = vpop.f32.mrf.mxu0
          %v689 = vadd.f32 0.0, %v688
          %690 = vmatmul.bf16.gmra.mxu0 %v538
          %v691 = vpop.f32.mrf.mxu0
          %v692 = vadd.f32 0.0, %v691
          %v693 = vpop.f32.mrf.mxu0
          %v694 = vadd.f32 0.0, %v693
          %695 = vmatmul.bf16.gmra.mxu0 %v539
          %v696 = vpop.f32.mrf.mxu0
          %v697 = vadd.f32 0.0, %v696
          %v698 = vpop.f32.mrf.mxu0
          %v699 = vadd.f32 0.0, %v698
          %700 = vmatmul.bf16.gmra.mxu0 %v540
          %v701 = vpop.f32.mrf.mxu0
          %v702 = vadd.f32 0.0, %v701
          %v703 = vpop.f32.mrf.mxu0
          %v704 = vadd.f32 0.0, %v703
          %705 = vmatmul.bf16.gmra.mxu0 %v541
          %v706 = vpop.f32.mrf.mxu0
          %v707 = vadd.f32 0.0, %v706
          %v708 = vpop.f32.mrf.mxu0
          %v709 = vadd.f32 0.0, %v708
          %710 = vmatmul.bf16.gmra.mxu0 %v542
          %v711 = vpop.f32.mrf.mxu0
          %v712 = vadd.f32 0.0, %v711
          %v713 = vpop.f32.mrf.mxu0
          %v714 = vadd.f32 0.0, %v713
          %715 = vmatmul.bf16.gmra.mxu0 %v543
          %v716 = vpop.f32.mrf.mxu0
          %v717 = vadd.f32 0.0, %v716
          %v718 = vpop.f32.mrf.mxu0
          %v719 = vadd.f32 0.0, %v718
          %720 = vmatmul.bf16.gmra.mxu0 %v544
          %v721 = vpop.f32.mrf.mxu0
          %v722 = vadd.f32 0.0, %v721
          %v723 = vpop.f32.mrf.mxu0
          %v724 = vadd.f32 0.0, %v723
          %725 = vmatmul.bf16.gmra.mxu0 %v545
          %v726 = vpop.f32.mrf.mxu0
          %v727 = vadd.f32 0.0, %v726
          %v728 = vpop.f32.mrf.mxu0
          %v729 = vadd.f32 0.0, %v728
          %730 = vdwg.mxu0
          %v731 = vpack.c.bf16 %v652, %v652
          %v732 = vpack.c.bf16 %v654, %v654
          %v733 = vpack.c.bf16 %v657, %v657
          %v734 = vpack.c.bf16 %v659, %v659
          %v735 = vpack.c.bf16 %v662, %v662
          %v736 = vpack.c.bf16 %v664, %v664
          %v737 = vpack.c.bf16 %v667, %v667
          %v738 = vpack.c.bf16 %v669, %v669
          %v739 = vpack.c.bf16 %v672, %v672
          %v740 = vpack.c.bf16 %v674, %v674
          %v741 = vpack.c.bf16 %v677, %v677
          %v742 = vpack.c.bf16 %v679, %v679
          %v743 = vpack.c.bf16 %v682, %v682
          %v744 = vpack.c.bf16 %v684, %v684
          %v745 = vpack.c.bf16 %v687, %v687
          %v746 = vpack.c.bf16 %v689, %v689
          %v747 = vpack.c.bf16 %v692, %v692
          %v748 = vpack.c.bf16 %v694, %v694
          %v749 = vpack.c.bf16 %v697, %v697
          %v750 = vpack.c.bf16 %v699, %v699
          %v751 = vpack.c.bf16 %v702, %v702
          %v752 = vpack.c.bf16 %v704, %v704
          %v753 = vpack.c.bf16 %v707, %v707
          %v754 = vpack.c.bf16 %v709, %v709
          %v755 = vpack.c.bf16 %v712, %v712
          %v756 = vpack.c.bf16 %v714, %v714
          %v757 = vpack.c.bf16 %v717, %v717
          %v758 = vpack.c.bf16 %v719, %v719
          %v759 = vpack.c.bf16 %v722, %v722
          %v760 = vpack.c.bf16 %v724, %v724
          %v761 = vpack.c.bf16 %v727, %v727
          %v762 = vpack.c.bf16 %v729, %v729
          %vm763 = vcmask 257024
          %764 = vst.msk [vmem:[#allocation2] sm:$0xf] %vm763, %v731
          %765 = vst.msk [vmem:[#allocation2 + $0x4] sm:$0xf] %vm763, %v732
          %766 = vst.msk [vmem:[#allocation2 + $0x8] sm:$0xf] %vm763, %v733
          %767 = vst.msk [vmem:[#allocation2 + $0xc] sm:$0xf] %vm763, %v734
          %768 = vst.msk [vmem:[#allocation2 + $0x10] sm:$0xf] %vm763, %v735
          %769 = vst.msk [vmem:[#allocation2 + $0x14] sm:$0xf] %vm763, %v736
          %770 = vst.msk [vmem:[#allocation2 + $0x18] sm:$0xf] %vm763, %v737
          %771 = vst.msk [vmem:[#allocation2 + $0x1c] sm:$0xf] %vm763, %v738
          %772 = vst.msk [vmem:[#allocation2 + $0x20] sm:$0xf] %vm763, %v739
          %773 = vst.msk [vmem:[#allocation2 + $0x24] sm:$0xf] %vm763, %v740
          %774 = vst.msk [vmem:[#allocation2 + $0x28] sm:$0xf] %vm763, %v741
          %775 = vst.msk [vmem:[#allocation2 + $0x2c] sm:$0xf] %vm763, %v742
          %776 = vst.msk [vmem:[#allocation2 + $0x30] sm:$0xf] %vm763, %v743
          %777 = vst.msk [vmem:[#allocation2 + $0x34] sm:$0xf] %vm763, %v744
          %778 = vst.msk [vmem:[#allocation2 + $0x38] sm:$0xf] %vm763, %v745
          %779 = vst.msk [vmem:[#allocation2 + $0x3c] sm:$0xf] %vm763, %v746
          %780 = vst.msk [vmem:[#allocation2 + $0x40] sm:$0xf] %vm763, %v747
          %781 = vst.msk [vmem:[#allocation2 + $0x44] sm:$0xf] %vm763, %v748
          %782 = vst.msk [vmem:[#allocation2 + $0x48] sm:$0xf] %vm763, %v749
          %783 = vst.msk [vmem:[#allocation2 + $0x4c] sm:$0xf] %vm763, %v750
          %784 = vst.msk [vmem:[#allocation2 + $0x50] sm:$0xf] %vm763, %v751
          %785 = vst.msk [vmem:[#allocation2 + $0x54] sm:$0xf] %vm763, %v752
          %786 = vst.msk [vmem:[#allocation2 + $0x58] sm:$0xf] %vm763, %v753
          %787 = vst.msk [vmem:[#allocation2 + $0x5c] sm:$0xf] %vm763, %v754
          %788 = vst.msk [vmem:[#allocation2 + $0x60] sm:$0xf] %vm763, %v755
          %789 = vst.msk [vmem:[#allocation2 + $0x64] sm:$0xf] %vm763, %v756
          %790 = vst.msk [vmem:[#allocation2 + $0x68] sm:$0xf] %vm763, %v757
          %791 = vst.msk [vmem:[#allocation2 + $0x6c] sm:$0xf] %vm763, %v758
          %792 = vst.msk [vmem:[#allocation2 + $0x70] sm:$0xf] %vm763, %v759
          %793 = vst.msk [vmem:[#allocation2 + $0x74] sm:$0xf] %vm763, %v760
          %794 = vst.msk [vmem:[#allocation2 + $0x78] sm:$0xf] %vm763, %v761
          %795 = vst.msk [vmem:[#allocation2 + $0x7c] sm:$0xf] %vm763, %v762
          %796 = vmatpush.bf16.msra.mxu0 %v641
          %797 = vmatpush.bf16.msra.mxu0 %v640
          %798 = vmatpush.bf16.msra.mxu0 %v639
          %799 = vmatpush.bf16.msra.mxu0 %v638
          %800 = vmatpush.bf16.msra.mxu0 %v637
          %801 = vmatpush.bf16.msra.mxu0 %v636
          %802 = vmatpush.bf16.msra.mxu0 %v635
          %803 = vmatpush.bf16.msra.mxu0 %v634
          %804 = vmatmul.bf16.gmra.mxu0 %v578
          %v805 = vpop.f32.mrf.mxu0
          %v806 = vadd.f32 0.0, %v805
          %v807 = vpop.f32.mrf.mxu0
          %v808 = vadd.f32 0.0, %v807
          %809 = vmatmul.bf16.gmra.mxu0 %v579
          %v810 = vpop.f32.mrf.mxu0
          %v811 = vadd.f32 0.0, %v810
          %v812 = vpop.f32.mrf.mxu0
          %v813 = vadd.f32 0.0, %v812
          %814 = vmatmul.bf16.gmra.mxu0 %v580
          %v815 = vpop.f32.mrf.mxu0
          %v816 = vadd.f32 0.0, %v815
          %v817 = vpop.f32.mrf.mxu0
          %v818 = vadd.f32 0.0, %v817
          %819 = vmatmul.bf16.gmra.mxu0 %v581
          %v820 = vpop.f32.mrf.mxu0
          %v821 = vadd.f32 0.0, %v820
          %v822 = vpop.f32.mrf.mxu0
          %v823 = vadd.f32 0.0, %v822
          %824 = vmatmul.bf16.gmra.mxu0 %v582
          %v825 = vpop.f32.mrf.mxu0
          %v826 = vadd.f32 0.0, %v825
          %v827 = vpop.f32.mrf.mxu0
          %v828 = vadd.f32 0.0, %v827
          %829 = vmatmul.bf16.gmra.mxu0 %v583
          %v830 = vpop.f32.mrf.mxu0
          %v831 = vadd.f32 0.0, %v830
          %v832 = vpop.f32.mrf.mxu0
          %v833 = vadd.f32 0.0, %v832
          %834 = vmatmul.bf16.gmra.mxu0 %v584
          %v835 = vpop.f32.mrf.mxu0
          %v836 = vadd.f32 0.0, %v835
          %v837 = vpop.f32.mrf.mxu0
          %v838 = vadd.f32 0.0, %v837
          %839 = vmatmul.bf16.gmra.mxu0 %v585
          %v840 = vpop.f32.mrf.mxu0
          %v841 = vadd.f32 0.0, %v840
          %v842 = vpop.f32.mrf.mxu0
          %v843 = vadd.f32 0.0, %v842
          %844 = vmatmul.bf16.gmra.mxu0 %v586
          %v845 = vpop.f32.mrf.mxu0
          %v846 = vadd.f32 0.0, %v845
          %v847 = vpop.f32.mrf.mxu0
          %v848 = vadd.f32 0.0, %v847
          %849 = vmatmul.bf16.gmra.mxu0 %v587
          %v850 = vpop.f32.mrf.mxu0
          %v851 = vadd.f32 0.0, %v850
          %v852 = vpop.f32.mrf.mxu0
          %v853 = vadd.f32 0.0, %v852
          %854 = vmatmul.bf16.gmra.mxu0 %v588
          %v855 = vpop.f32.mrf.mxu0
          %v856 = vadd.f32 0.0, %v855
          %v857 = vpop.f32.mrf.mxu0
          %v858 = vadd.f32 0.0, %v857
          %859 = vmatmul.bf16.gmra.mxu0 %v589
          %v860 = vpop.f32.mrf.mxu0
          %v861 = vadd.f32 0.0, %v860
          %v862 = vpop.f32.mrf.mxu0
          %v863 = vadd.f32 0.0, %v862
          %864 = vmatmul.bf16.gmra.mxu0 %v590
          %v865 = vpop.f32.mrf.mxu0
          %v866 = vadd.f32 0.0, %v865
          %v867 = vpop.f32.mrf.mxu0
          %v868 = vadd.f32 0.0, %v867
          %869 = vmatmul.bf16.gmra.mxu0 %v591
          %v870 = vpop.f32.mrf.mxu0
          %v871 = vadd.f32 0.0, %v870
          %v872 = vpop.f32.mrf.mxu0
          %v873 = vadd.f32 0.0, %v872
          %874 = vmatmul.bf16.gmra.mxu0 %v592
          %v875 = vpop.f32.mrf.mxu0
          %v876 = vadd.f32 0.0, %v875
          %v877 = vpop.f32.mrf.mxu0
          %v878 = vadd.f32 0.0, %v877
          %879 = vmatmul.bf16.gmra.mxu0 %v593
          %v880 = vpop.f32.mrf.mxu0
          %v881 = vadd.f32 0.0, %v880
          %v882 = vpop.f32.mrf.mxu0
          %v883 = vadd.f32 0.0, %v882
          %884 = vdwg.mxu0
          %v885 = vpack.c.bf16 %v806, %v806
          %v886 = vpack.c.bf16 %v808, %v808
          %v887 = vpack.c.bf16 %v811, %v811
          %v888 = vpack.c.bf16 %v813, %v813
          %v889 = vpack.c.bf16 %v816, %v816
          %v890 = vpack.c.bf16 %v818, %v818
          %v891 = vpack.c.bf16 %v821, %v821
          %v892 = vpack.c.bf16 %v823, %v823
          %v893 = vpack.c.bf16 %v826, %v826
          %v894 = vpack.c.bf16 %v828, %v828
          %v895 = vpack.c.bf16 %v831, %v831
          %v896 = vpack.c.bf16 %v833, %v833
          %v897 = vpack.c.bf16 %v836, %v836
          %v898 = vpack.c.bf16 %v838, %v838
          %v899 = vpack.c.bf16 %v841, %v841
          %v900 = vpack.c.bf16 %v843, %v843
          %v901 = vpack.c.bf16 %v846, %v846
          %v902 = vpack.c.bf16 %v848, %v848
          %v903 = vpack.c.bf16 %v851, %v851
          %v904 = vpack.c.bf16 %v853, %v853
          %v905 = vpack.c.bf16 %v856, %v856
          %v906 = vpack.c.bf16 %v858, %v858
          %v907 = vpack.c.bf16 %v861, %v861
          %v908 = vpack.c.bf16 %v863, %v863
          %v909 = vpack.c.bf16 %v866, %v866
          %v910 = vpack.c.bf16 %v868, %v868
          %v911 = vpack.c.bf16 %v871, %v871
          %v912 = vpack.c.bf16 %v873, %v873
          %v913 = vpack.c.bf16 %v876, %v876
          %v914 = vpack.c.bf16 %v878, %v878
          %v915 = vpack.c.bf16 %v881, %v881
          %v916 = vpack.c.bf16 %v883, %v883
          %917 = vst.msk [vmem:[#allocation3] sm:$0xf] %vm763, %v885
          %918 = vst.msk [vmem:[#allocation3 + $0x4] sm:$0xf] %vm763, %v886
          %919 = vst.msk [vmem:[#allocation3 + $0x8] sm:$0xf] %vm763, %v887
          %920 = vst.msk [vmem:[#allocation3 + $0xc] sm:$0xf] %vm763, %v888
          %921 = vst.msk [vmem:[#allocation3 + $0x10] sm:$0xf] %vm763, %v889
          %922 = vst.msk [vmem:[#allocation3 + $0x14] sm:$0xf] %vm763, %v890
          %923 = vst.msk [vmem:[#allocation3 + $0x18] sm:$0xf] %vm763, %v891
          %924 = vst.msk [vmem:[#allocation3 + $0x1c] sm:$0xf] %vm763, %v892
          %925 = vst.msk [vmem:[#allocation3 + $0x20] sm:$0xf] %vm763, %v893
          %926 = vst.msk [vmem:[#allocation3 + $0x24] sm:$0xf] %vm763, %v894
          %927 = vst.msk [vmem:[#allocation3 + $0x28] sm:$0xf] %vm763, %v895
          %928 = vst.msk [vmem:[#allocation3 + $0x2c] sm:$0xf] %vm763, %v896
          %929 = vst.msk [vmem:[#allocation3 + $0x30] sm:$0xf] %vm763, %v897
          %930 = vst.msk [vmem:[#allocation3 + $0x34] sm:$0xf] %vm763, %v898
          %931 = vst.msk [vmem:[#allocation3 + $0x38] sm:$0xf] %vm763, %v899
          %932 = vst.msk [vmem:[#allocation3 + $0x3c] sm:$0xf] %vm763, %v900
          %933 = vst.msk [vmem:[#allocation3 + $0x40] sm:$0xf] %vm763, %v901
          %934 = vst.msk [vmem:[#allocation3 + $0x44] sm:$0xf] %vm763, %v902
          %935 = vst.msk [vmem:[#allocation3 + $0x48] sm:$0xf] %vm763, %v903
          %936 = vst.msk [vmem:[#allocation3 + $0x4c] sm:$0xf] %vm763, %v904
          %937 = vst.msk [vmem:[#allocation3 + $0x50] sm:$0xf] %vm763, %v905
          %938 = vst.msk [vmem:[#allocation3 + $0x54] sm:$0xf] %vm763, %v906
          %939 = vst.msk [vmem:[#allocation3 + $0x58] sm:$0xf] %vm763, %v907
          %940 = vst.msk [vmem:[#allocation3 + $0x5c] sm:$0xf] %vm763, %v908
          %941 = vst.msk [vmem:[#allocation3 + $0x60] sm:$0xf] %vm763, %v909
          %942 = vst.msk [vmem:[#allocation3 + $0x64] sm:$0xf] %vm763, %v910
          %943 = vst.msk [vmem:[#allocation3 + $0x68] sm:$0xf] %vm763, %v911
          %944 = vst.msk [vmem:[#allocation3 + $0x6c] sm:$0xf] %vm763, %v912
          %945 = vst.msk [vmem:[#allocation3 + $0x70] sm:$0xf] %vm763, %v913
          %946 = vst.msk [vmem:[#allocation3 + $0x74] sm:$0xf] %vm763, %v914
          %947 = vst.msk [vmem:[#allocation3 + $0x78] sm:$0xf] %vm763, %v915
          %948 = vst.msk [vmem:[#allocation3 + $0x7c] sm:$0xf] %vm763, %v916
          %v949 = vld [vmem:[#allocation12] sm:$0xff]
          %v950 = vld [vmem:[#allocation12 + $0x8] sm:$0xff]
          %v951 = vld [vmem:[#allocation12 + $0x10] sm:$0xff]
          %v952 = vld [vmem:[#allocation12 + $0x18] sm:$0xff]
          %v953 = vld [vmem:[#allocation12 + $0x20] sm:$0xff]
          %v954 = vld [vmem:[#allocation12 + $0x28] sm:$0xff]
          %v955 = vld [vmem:[#allocation12 + $0x30] sm:$0xff]
          %v956 = vld [vmem:[#allocation12 + $0x38] sm:$0xff]
          %v957 = vld [vmem:[#allocation12 + $0x40] sm:$0xff]
          %v958 = vld [vmem:[#allocation12 + $0x48] sm:$0xff]
          %v959 = vld [vmem:[#allocation12 + $0x50] sm:$0xff]
          %v960 = vld [vmem:[#allocation12 + $0x58] sm:$0xff]
          %v961 = vld [vmem:[#allocation12 + $0x60] sm:$0xff]
          %v962 = vld [vmem:[#allocation12 + $0x68] sm:$0xff]
          %v963 = vld [vmem:[#allocation12 + $0x70] sm:$0xff]
          %v964 = vld [vmem:[#allocation12 + $0x78] sm:$0xff]
          %v965 = vpack.c.bf16 %v950, %v949
          %v966 = vpack.c.bf16 %v952, %v951
          %v967 = vpack.c.bf16 %v954, %v953
          %v968 = vpack.c.bf16 %v956, %v955
          %v969 = vpack.c.bf16 %v958, %v957
          %v970 = vpack.c.bf16 %v960, %v959
          %v971 = vpack.c.bf16 %v962, %v961
          %v972 = vpack.c.bf16 %v964, %v963
          %v973 = vld [vmem:[#allocation13] sm:$0xff]
          %v974 = vld [vmem:[#allocation13 + $0x8] sm:$0xff]
          %v975 = vld [vmem:[#allocation13 + $0x10] sm:$0xff]
          %v976 = vld [vmem:[#allocation13 + $0x18] sm:$0xff]
          %v977 = vld [vmem:[#allocation13 + $0x20] sm:$0xff]
          %v978 = vld [vmem:[#allocation13 + $0x28] sm:$0xff]
          %v979 = vld [vmem:[#allocation13 + $0x30] sm:$0xff]
          %v980 = vld [vmem:[#allocation13 + $0x38] sm:$0xff]
          %v981 = vld [vmem:[#allocation13 + $0x40] sm:$0xff]
          %v982 = vld [vmem:[#allocation13 + $0x48] sm:$0xff]
          %v983 = vld [vmem:[#allocation13 + $0x50] sm:$0xff]
          %v984 = vld [vmem:[#allocation13 + $0x58] sm:$0xff]
          %v985 = vld [vmem:[#allocation13 + $0x60] sm:$0xff]
          %v986 = vld [vmem:[#allocation13 + $0x68] sm:$0xff]
          %v987 = vld [vmem:[#allocation13 + $0x70] sm:$0xff]
          %v988 = vld [vmem:[#allocation13 + $0x78] sm:$0xff]
          %v989 = vpack.c.bf16 %v974, %v973
          %v990 = vpack.c.bf16 %v976, %v975
          %v991 = vpack.c.bf16 %v978, %v977
          %v992 = vpack.c.bf16 %v980, %v979
          %v993 = vpack.c.bf16 %v982, %v981
          %v994 = vpack.c.bf16 %v984, %v983
          %v995 = vpack.c.bf16 %v986, %v985
          %v996 = vpack.c.bf16 %v988, %v987
          %1005 = vrot.lane.b32.xlu0 %v965, 96
          %v1006 = vpop.permute.xlu0 %1005
          %1007 = vrot.lane.b32.xlu0 %v966, 96
          %v1008 = vpop.permute.xlu0 %1007
          %1009 = vrot.lane.b32.xlu0 %v967, 96
          %v1010 = vpop.permute.xlu0 %1009
          %1011 = vrot.lane.b32.xlu0 %v968, 96
          %v1012 = vpop.permute.xlu0 %1011
          %1013 = vrot.lane.b32.xlu0 %v969, 96
          %v1014 = vpop.permute.xlu0 %1013
          %1015 = vrot.lane.b32.xlu0 %v970, 96
          %v1016 = vpop.permute.xlu0 %1015
          %1017 = vrot.lane.b32.xlu0 %v971, 96
          %v1018 = vpop.permute.xlu0 %1017
          %1019 = vrot.lane.b32.xlu0 %v972, 96
          %v1020 = vpop.permute.xlu0 %1019
          %1029 = vmatpush.bf16.msra.mxu0 %v1020
          %1030 = vmatpush.bf16.msra.mxu0 %v1018
          %1031 = vmatpush.bf16.msra.mxu0 %v1016
          %1032 = vmatpush.bf16.msra.mxu0 %v1014
          %1033 = vmatpush.bf16.msra.mxu0 %v1012
          %1034 = vmatpush.bf16.msra.mxu0 %v1010
          %1035 = vmatpush.bf16.msra.mxu0 %v1008
          %1036 = vmatpush.bf16.msra.mxu0 %v1006
          %1037 = vmatmul.bf16.gmra.mxu0 %v530
          %v1038 = vpop.f32.mrf.mxu0
          %v1039 = vadd.f32 0.0, %v1038
          %v1040 = vpop.f32.mrf.mxu0
          %v1041 = vadd.f32 0.0, %v1040
          %1042 = vmatmul.bf16.gmra.mxu0 %v531
          %v1043 = vpop.f32.mrf.mxu0
          %v1044 = vadd.f32 0.0, %v1043
          %v1045 = vpop.f32.mrf.mxu0
          %v1046 = vadd.f32 0.0, %v1045
          %1047 = vmatmul.bf16.gmra.mxu0 %v532
          %v1048 = vpop.f32.mrf.mxu0
          %v1049 = vadd.f32 0.0, %v1048
          %v1050 = vpop.f32.mrf.mxu0
          %v1051 = vadd.f32 0.0, %v1050
          %1052 = vmatmul.bf16.gmra.mxu0 %v533
          %v1053 = vpop.f32.mrf.mxu0
          %v1054 = vadd.f32 0.0, %v1053
          %v1055 = vpop.f32.mrf.mxu0
          %v1056 = vadd.f32 0.0, %v1055
          %1057 = vmatmul.bf16.gmra.mxu0 %v534
          %v1058 = vpop.f32.mrf.mxu0
          %v1059 = vadd.f32 0.0, %v1058
          %v1060 = vpop.f32.mrf.mxu0
          %v1061 = vadd.f32 0.0, %v1060
          %1062 = vmatmul.bf16.gmra.mxu0 %v535
          %v1063 = vpop.f32.mrf.mxu0
          %v1064 = vadd.f32 0.0, %v1063
          %v1065 = vpop.f32.mrf.mxu0
          %v1066 = vadd.f32 0.0, %v1065
          %1067 = vmatmul.bf16.gmra.mxu0 %v536
          %v1068 = vpop.f32.mrf.mxu0
          %v1069 = vadd.f32 0.0, %v1068
          %v1070 = vpop.f32.mrf.mxu0
          %v1071 = vadd.f32 0.0, %v1070
          %1072 = vmatmul.bf16.gmra.mxu0 %v537
          %v1073 = vpop.f32.mrf.mxu0
          %v1074 = vadd.f32 0.0, %v1073
          %v1075 = vpop.f32.mrf.mxu0
          %v1076 = vadd.f32 0.0, %v1075
          %1077 = vmatmul.bf16.gmra.mxu0 %v538
          %v1078 = vpop.f32.mrf.mxu0
          %v1079 = vadd.f32 0.0, %v1078
          %v1080 = vpop.f32.mrf.mxu0
          %v1081 = vadd.f32 0.0, %v1080
          %1082 = vmatmul.bf16.gmra.mxu0 %v539
          %v1083 = vpop.f32.mrf.mxu0
          %v1084 = vadd.f32 0.0, %v1083
          %v1085 = vpop.f32.mrf.mxu0
          %v1086 = vadd.f32 0.0, %v1085
          %1087 = vmatmul.bf16.gmra.mxu0 %v540
          %v1088 = vpop.f32.mrf.mxu0
          %v1089 = vadd.f32 0.0, %v1088
          %v1090 = vpop.f32.mrf.mxu0
          %v1091 = vadd.f32 0.0, %v1090
          %1092 = vmatmul.bf16.gmra.mxu0 %v541
          %v1093 = vpop.f32.mrf.mxu0
          %v1094 = vadd.f32 0.0, %v1093
          %v1095 = vpop.f32.mrf.mxu0
          %v1096 = vadd.f32 0.0, %v1095
          %1097 = vmatmul.bf16.gmra.mxu0 %v542
          %v1098 = vpop.f32.mrf.mxu0
          %v1099 = vadd.f32 0.0, %v1098
          %v1100 = vpop.f32.mrf.mxu0
          %v1101 = vadd.f32 0.0, %v1100
          %1102 = vmatmul.bf16.gmra.mxu0 %v543
          %v1103 = vpop.f32.mrf.mxu0
          %v1104 = vadd.f32 0.0, %v1103
          %v1105 = vpop.f32.mrf.mxu0
          %v1106 = vadd.f32 0.0, %v1105
          %1107 = vmatmul.bf16.gmra.mxu0 %v544
          %v1108 = vpop.f32.mrf.mxu0
          %v1109 = vadd.f32 0.0, %v1108
          %v1110 = vpop.f32.mrf.mxu0
          %v1111 = vadd.f32 0.0, %v1110
          %1112 = vmatmul.bf16.gmra.mxu0 %v545
          %v1113 = vpop.f32.mrf.mxu0
          %v1114 = vadd.f32 0.0, %v1113
          %v1115 = vpop.f32.mrf.mxu0
          %v1116 = vadd.f32 0.0, %v1115
          %1117 = vdwg.mxu0
          %v1118 = vpack.c.bf16 %v1039, %v1039
          %v1119 = vpack.c.bf16 %v1041, %v1041
          %v1120 = vpack.c.bf16 %v1044, %v1044
          %v1121 = vpack.c.bf16 %v1046, %v1046
          %v1122 = vpack.c.bf16 %v1049, %v1049
          %v1123 = vpack.c.bf16 %v1051, %v1051
          %v1124 = vpack.c.bf16 %v1054, %v1054
          %v1125 = vpack.c.bf16 %v1056, %v1056
          %v1126 = vpack.c.bf16 %v1059, %v1059
          %v1127 = vpack.c.bf16 %v1061, %v1061
          %v1128 = vpack.c.bf16 %v1064, %v1064
          %v1129 = vpack.c.bf16 %v1066, %v1066
          %v1130 = vpack.c.bf16 %v1069, %v1069
          %v1131 = vpack.c.bf16 %v1071, %v1071
          %v1132 = vpack.c.bf16 %v1074, %v1074
          %v1133 = vpack.c.bf16 %v1076, %v1076
          %v1134 = vpack.c.bf16 %v1079, %v1079
          %v1135 = vpack.c.bf16 %v1081, %v1081
          %v1136 = vpack.c.bf16 %v1084, %v1084
          %v1137 = vpack.c.bf16 %v1086, %v1086
          %v1138 = vpack.c.bf16 %v1089, %v1089
          %v1139 = vpack.c.bf16 %v1091, %v1091
          %v1140 = vpack.c.bf16 %v1094, %v1094
          %v1141 = vpack.c.bf16 %v1096, %v1096
          %v1142 = vpack.c.bf16 %v1099, %v1099
          %v1143 = vpack.c.bf16 %v1101, %v1101
          %v1144 = vpack.c.bf16 %v1104, %v1104
          %v1145 = vpack.c.bf16 %v1106, %v1106
          %v1146 = vpack.c.bf16 %v1109, %v1109
          %v1147 = vpack.c.bf16 %v1111, %v1111
          %v1148 = vpack.c.bf16 %v1114, %v1114
          %v1149 = vpack.c.bf16 %v1116, %v1116
          %s1150 = scalar_lea.vmem [#allocation2], 128
          %1151 = vst.msk [vmem:[%s1150] sm:$0xf] %vm763, %v1118
          %1152 = vst.msk [vmem:[%s1150 + $0x4] sm:$0xf] %vm763, %v1119
          %1153 = vst.msk [vmem:[%s1150 + $0x8] sm:$0xf] %vm763, %v1120
          %1154 = vst.msk [vmem:[%s1150 + $0xc] sm:$0xf] %vm763, %v1121
          %1155 = vst.msk [vmem:[%s1150 + $0x10] sm:$0xf] %vm763, %v1122
          %1156 = vst.msk [vmem:[%s1150 + $0x14] sm:$0xf] %vm763, %v1123
          %1157 = vst.msk [vmem:[%s1150 + $0x18] sm:$0xf] %vm763, %v1124
          %1158 = vst.msk [vmem:[%s1150 + $0x1c] sm:$0xf] %vm763, %v1125
          %1159 = vst.msk [vmem:[%s1150 + $0x20] sm:$0xf] %vm763, %v1126
          %1160 = vst.msk [vmem:[%s1150 + $0x24] sm:$0xf] %vm763, %v1127
          %1161 = vst.msk [vmem:[%s1150 + $0x28] sm:$0xf] %vm763, %v1128
          %1162 = vst.msk [vmem:[%s1150 + $0x2c] sm:$0xf] %vm763, %v1129
          %1163 = vst.msk [vmem:[%s1150 + $0x30] sm:$0xf] %vm763, %v1130
          %1164 = vst.msk [vmem:[%s1150 + $0x34] sm:$0xf] %vm763, %v1131
          %1165 = vst.msk [vmem:[%s1150 + $0x38] sm:$0xf] %vm763, %v1132
          %1166 = vst.msk [vmem:[%s1150 + $0x3c] sm:$0xf] %vm763, %v1133
          %1167 = vst.msk [vmem:[%s1150 + $0x40] sm:$0xf] %vm763, %v1134
          %1168 = vst.msk [vmem:[%s1150 + $0x44] sm:$0xf] %vm763, %v1135
          %1169 = vst.msk [vmem:[%s1150 + $0x48] sm:$0xf] %vm763, %v1136
          %1170 = vst.msk [vmem:[%s1150 + $0x4c] sm:$0xf] %vm763, %v1137
          %1171 = vst.msk [vmem:[%s1150 + $0x50] sm:$0xf] %vm763, %v1138
          %1172 = vst.msk [vmem:[%s1150 + $0x54] sm:$0xf] %vm763, %v1139
          %1173 = vst.msk [vmem:[%s1150 + $0x58] sm:$0xf] %vm763, %v1140
          %1174 = vst.msk [vmem:[%s1150 + $0x5c] sm:$0xf] %vm763, %v1141
          %1175 = vst.msk [vmem:[%s1150 + $0x60] sm:$0xf] %vm763, %v1142
          %1176 = vst.msk [vmem:[%s1150 + $0x64] sm:$0xf] %vm763, %v1143
          %1177 = vst.msk [vmem:[%s1150 + $0x68] sm:$0xf] %vm763, %v1144
          %1178 = vst.msk [vmem:[%s1150 + $0x6c] sm:$0xf] %vm763, %v1145
          %1179 = vst.msk [vmem:[%s1150 + $0x70] sm:$0xf] %vm763, %v1146
          %1180 = vst.msk [vmem:[%s1150 + $0x74] sm:$0xf] %vm763, %v1147
          %1181 = vst.msk [vmem:[%s1150 + $0x78] sm:$0xf] %vm763, %v1148
          %1182 = vst.msk [vmem:[%s1150 + $0x7c] sm:$0xf] %vm763, %v1149
          %1191 = vrot.lane.b32.xlu0 %v989, 96
          %v1192 = vpop.permute.xlu0 %1191
          %1193 = vrot.lane.b32.xlu0 %v990, 96
          %v1194 = vpop.permute.xlu0 %1193
          %1195 = vrot.lane.b32.xlu0 %v991, 96
          %v1196 = vpop.permute.xlu0 %1195
          %1197 = vrot.lane.b32.xlu0 %v992, 96
          %v1198 = vpop.permute.xlu0 %1197
          %1199 = vrot.lane.b32.xlu0 %v993, 96
          %v1200 = vpop.permute.xlu0 %1199
          %1201 = vrot.lane.b32.xlu0 %v994, 96
          %v1202 = vpop.permute.xlu0 %1201
          %1203 = vrot.lane.b32.xlu0 %v995, 96
          %v1204 = vpop.permute.xlu0 %1203
          %1205 = vrot.lane.b32.xlu0 %v996, 96
          %v1206 = vpop.permute.xlu0 %1205
          %1215 = vmatpush.bf16.msra.mxu0 %v1206
          %1216 = vmatpush.bf16.msra.mxu0 %v1204
          %1217 = vmatpush.bf16.msra.mxu0 %v1202
          %1218 = vmatpush.bf16.msra.mxu0 %v1200
          %1219 = vmatpush.bf16.msra.mxu0 %v1198
          %1220 = vmatpush.bf16.msra.mxu0 %v1196
          %1221 = vmatpush.bf16.msra.mxu0 %v1194
          %1222 = vmatpush.bf16.msra.mxu0 %v1192
          %1223 = vmatmul.bf16.gmra.mxu0 %v578
          %v1224 = vpop.f32.mrf.mxu0
          %v1225 = vadd.f32 0.0, %v1224
          %v1226 = vpop.f32.mrf.mxu0
          %v1227 = vadd.f32 0.0, %v1226
          %1228 = vmatmul.bf16.gmra.mxu0 %v579
          %v1229 = vpop.f32.mrf.mxu0
          %v1230 = vadd.f32 0.0, %v1229
          %v1231 = vpop.f32.mrf.mxu0
          %v1232 = vadd.f32 0.0, %v1231
          %1233 = vmatmul.bf16.gmra.mxu0 %v580
          %v1234 = vpop.f32.mrf.mxu0
          %v1235 = vadd.f32 0.0, %v1234
          %v1236 = vpop.f32.mrf.mxu0
          %v1237 = vadd.f32 0.0, %v1236
          %1238 = vmatmul.bf16.gmra.mxu0 %v581
          %v1239 = vpop.f32.mrf.mxu0
          %v1240 = vadd.f32 0.0, %v1239
          %v1241 = vpop.f32.mrf.mxu0
          %v1242 = vadd.f32 0.0, %v1241
          %1243 = vmatmul.bf16.gmra.mxu0 %v582
          %v1244 = vpop.f32.mrf.mxu0
          %v1245 = vadd.f32 0.0, %v1244
          %v1246 = vpop.f32.mrf.mxu0
          %v1247 = vadd.f32 0.0, %v1246
          %1248 = vmatmul.bf16.gmra.mxu0 %v583
          %v1249 = vpop.f32.mrf.mxu0
          %v1250 = vadd.f32 0.0, %v1249
          %v1251 = vpop.f32.mrf.mxu0
          %v1252 = vadd.f32 0.0, %v1251
          %1253 = vmatmul.bf16.gmra.mxu0 %v584
          %v1254 = vpop.f32.mrf.mxu0
          %v1255 = vadd.f32 0.0, %v1254
          %v1256 = vpop.f32.mrf.mxu0
          %v1257 = vadd.f32 0.0, %v1256
          %1258 = vmatmul.bf16.gmra.mxu0 %v585
          %v1259 = vpop.f32.mrf.mxu0
          %v1260 = vadd.f32 0.0, %v1259
          %v1261 = vpop.f32.mrf.mxu0
          %v1262 = vadd.f32 0.0, %v1261
          %1263 = vmatmul.bf16.gmra.mxu0 %v586
          %v1264 = vpop.f32.mrf.mxu0
          %v1265 = vadd.f32 0.0, %v1264
          %v1266 = vpop.f32.mrf.mxu0
          %v1267 = vadd.f32 0.0, %v1266
          %1268 = vmatmul.bf16.gmra.mxu0 %v587
          %v1269 = vpop.f32.mrf.mxu0
          %v1270 = vadd.f32 0.0, %v1269
          %v1271 = vpop.f32.mrf.mxu0
          %v1272 = vadd.f32 0.0, %v1271
          %1273 = vmatmul.bf16.gmra.mxu0 %v588
          %v1274 = vpop.f32.mrf.mxu0
          %v1275 = vadd.f32 0.0, %v1274
          %v1276 = vpop.f32.mrf.mxu0
          %v1277 = vadd.f32 0.0, %v1276
          %1278 = vmatmul.bf16.gmra.mxu0 %v589
          %v1279 = vpop.f32.mrf.mxu0
          %v1280 = vadd.f32 0.0, %v1279
          %v1281 = vpop.f32.mrf.mxu0
          %v1282 = vadd.f32 0.0, %v1281
          %1283 = vmatmul.bf16.gmra.mxu0 %v590
          %v1284 = vpop.f32.mrf.mxu0
          %v1285 = vadd.f32 0.0, %v1284
          %v1286 = vpop.f32.mrf.mxu0
          %v1287 = vadd.f32 0.0, %v1286
          %1288 = vmatmul.bf16.gmra.mxu0 %v591
          %v1289 = vpop.f32.mrf.mxu0
          %v1290 = vadd.f32 0.0, %v1289
          %v1291 = vpop.f32.mrf.mxu0
          %v1292 = vadd.f32 0.0, %v1291
          %1293 = vmatmul.bf16.gmra.mxu0 %v592
          %v1294 = vpop.f32.mrf.mxu0
          %v1295 = vadd.f32 0.0, %v1294
          %v1296 = vpop.f32.mrf.mxu0
          %v1297 = vadd.f32 0.0, %v1296
          %1298 = vmatmul.bf16.gmra.mxu0 %v593
          %v1299 = vpop.f32.mrf.mxu0
          %v1300 = vadd.f32 0.0, %v1299
          %v1301 = vpop.f32.mrf.mxu0
          %v1302 = vadd.f32 0.0, %v1301
          %1303 = vdwg.mxu0
          %v1304 = vpack.c.bf16 %v1225, %v1225
          %v1305 = vpack.c.bf16 %v1227, %v1227
          %v1306 = vpack.c.bf16 %v1230, %v1230
          %v1307 = vpack.c.bf16 %v1232, %v1232
          %v1308 = vpack.c.bf16 %v1235, %v1235
          %v1309 = vpack.c.bf16 %v1237, %v1237
          %v1310 = vpack.c.bf16 %v1240, %v1240
          %v1311 = vpack.c.bf16 %v1242, %v1242
          %v1312 = vpack.c.bf16 %v1245, %v1245
          %v1313 = vpack.c.bf16 %v1247, %v1247
          %v1314 = vpack.c.bf16 %v1250, %v1250
          %v1315 = vpack.c.bf16 %v1252, %v1252
          %v1316 = vpack.c.bf16 %v1255, %v1255
          %v1317 = vpack.c.bf16 %v1257, %v1257
          %v1318 = vpack.c.bf16 %v1260, %v1260
          %v1319 = vpack.c.bf16 %v1262, %v1262
          %v1320 = vpack.c.bf16 %v1265, %v1265
          %v1321 = vpack.c.bf16 %v1267, %v1267
          %v1322 = vpack.c.bf16 %v1270, %v1270
          %v1323 = vpack.c.bf16 %v1272, %v1272
          %v1324 = vpack.c.bf16 %v1275, %v1275
          %v1325 = vpack.c.bf16 %v1277, %v1277
          %v1326 = vpack.c.bf16 %v1280, %v1280
          %v1327 = vpack.c.bf16 %v1282, %v1282
          %v1328 = vpack.c.bf16 %v1285, %v1285
          %v1329 = vpack.c.bf16 %v1287, %v1287
          %v1330 = vpack.c.bf16 %v1290, %v1290
          %v1331 = vpack.c.bf16 %v1292, %v1292
          %v1332 = vpack.c.bf16 %v1295, %v1295
          %v1333 = vpack.c.bf16 %v1297, %v1297
          %v1334 = vpack.c.bf16 %v1300, %v1300
          %v1335 = vpack.c.bf16 %v1302, %v1302
          %s1336 = scalar_lea.vmem [#allocation3], 128
          %1337 = vst.msk [vmem:[%s1336] sm:$0xf] %vm763, %v1304
          %1338 = vst.msk [vmem:[%s1336 + $0x4] sm:$0xf] %vm763, %v1305
          %1339 = vst.msk [vmem:[%s1336 + $0x8] sm:$0xf] %vm763, %v1306
          %1340 = vst.msk [vmem:[%s1336 + $0xc] sm:$0xf] %vm763, %v1307
          %1341 = vst.msk [vmem:[%s1336 + $0x10] sm:$0xf] %vm763, %v1308
          %1342 = vst.msk [vmem:[%s1336 + $0x14] sm:$0xf] %vm763, %v1309
          %1343 = vst.msk [vmem:[%s1336 + $0x18] sm:$0xf] %vm763, %v1310
          %1344 = vst.msk [vmem:[%s1336 + $0x1c] sm:$0xf] %vm763, %v1311
          %1345 = vst.msk [vmem:[%s1336 + $0x20] sm:$0xf] %vm763, %v1312
          %1346 = vst.msk [vmem:[%s1336 + $0x24] sm:$0xf] %vm763, %v1313
          %1347 = vst.msk [vmem:[%s1336 + $0x28] sm:$0xf] %vm763, %v1314
          %1348 = vst.msk [vmem:[%s1336 + $0x2c] sm:$0xf] %vm763, %v1315
          %1349 = vst.msk [vmem:[%s1336 + $0x30] sm:$0xf] %vm763, %v1316
          %1350 = vst.msk [vmem:[%s1336 + $0x34] sm:$0xf] %vm763, %v1317
          %1351 = vst.msk [vmem:[%s1336 + $0x38] sm:$0xf] %vm763, %v1318
          %1352 = vst.msk [vmem:[%s1336 + $0x3c] sm:$0xf] %vm763, %v1319
          %1353 = vst.msk [vmem:[%s1336 + $0x40] sm:$0xf] %vm763, %v1320
          %1354 = vst.msk [vmem:[%s1336 + $0x44] sm:$0xf] %vm763, %v1321
          %1355 = vst.msk [vmem:[%s1336 + $0x48] sm:$0xf] %vm763, %v1322
          %1356 = vst.msk [vmem:[%s1336 + $0x4c] sm:$0xf] %vm763, %v1323
          %1357 = vst.msk [vmem:[%s1336 + $0x50] sm:$0xf] %vm763, %v1324
          %1358 = vst.msk [vmem:[%s1336 + $0x54] sm:$0xf] %vm763, %v1325
          %1359 = vst.msk [vmem:[%s1336 + $0x58] sm:$0xf] %vm763, %v1326
          %1360 = vst.msk [vmem:[%s1336 + $0x5c] sm:$0xf] %vm763, %v1327
          %1361 = vst.msk [vmem:[%s1336 + $0x60] sm:$0xf] %vm763, %v1328
          %1362 = vst.msk [vmem:[%s1336 + $0x64] sm:$0xf] %vm763, %v1329
          %1363 = vst.msk [vmem:[%s1336 + $0x68] sm:$0xf] %vm763, %v1330
          %1364 = vst.msk [vmem:[%s1336 + $0x6c] sm:$0xf] %vm763, %v1331
          %1365 = vst.msk [vmem:[%s1336 + $0x70] sm:$0xf] %vm763, %v1332
          %1366 = vst.msk [vmem:[%s1336 + $0x74] sm:$0xf] %vm763, %v1333
          %1367 = vst.msk [vmem:[%s1336 + $0x78] sm:$0xf] %vm763, %v1334
          %1368 = vst.msk [vmem:[%s1336 + $0x7c] sm:$0xf] %vm763, %v1335
          %v1369 = vld [vmem:[#allocation12] sm:$0xff]
          %v1370 = vld [vmem:[#allocation12 + $0x8] sm:$0xff]
          %v1371 = vld [vmem:[#allocation12 + $0x10] sm:$0xff]
          %v1372 = vld [vmem:[#allocation12 + $0x18] sm:$0xff]
          %v1373 = vld [vmem:[#allocation12 + $0x20] sm:$0xff]
          %v1374 = vld [vmem:[#allocation12 + $0x28] sm:$0xff]
          %v1375 = vld [vmem:[#allocation12 + $0x30] sm:$0xff]
          %v1376 = vld [vmem:[#allocation12 + $0x38] sm:$0xff]
          %v1377 = vld [vmem:[#allocation12 + $0x40] sm:$0xff]
          %v1378 = vld [vmem:[#allocation12 + $0x48] sm:$0xff]
          %v1379 = vld [vmem:[#allocation12 + $0x50] sm:$0xff]
          %v1380 = vld [vmem:[#allocation12 + $0x58] sm:$0xff]
          %v1381 = vld [vmem:[#allocation12 + $0x60] sm:$0xff]
          %v1382 = vld [vmem:[#allocation12 + $0x68] sm:$0xff]
          %v1383 = vld [vmem:[#allocation12 + $0x70] sm:$0xff]
          %v1384 = vld [vmem:[#allocation12 + $0x78] sm:$0xff]
          %v1385 = vpack.c.bf16 %v1370, %v1369
          %v1386 = vpack.c.bf16 %v1372, %v1371
          %v1387 = vpack.c.bf16 %v1374, %v1373
          %v1388 = vpack.c.bf16 %v1376, %v1375
          %v1389 = vpack.c.bf16 %v1378, %v1377
          %v1390 = vpack.c.bf16 %v1380, %v1379
          %v1391 = vpack.c.bf16 %v1382, %v1381
          %v1392 = vpack.c.bf16 %v1384, %v1383
          %v1393 = vld [vmem:[#allocation13] sm:$0xff]
          %v1394 = vld [vmem:[#allocation13 + $0x8] sm:$0xff]
          %v1395 = vld [vmem:[#allocation13 + $0x10] sm:$0xff]
          %v1396 = vld [vmem:[#allocation13 + $0x18] sm:$0xff]
          %v1397 = vld [vmem:[#allocation13 + $0x20] sm:$0xff]
          %v1398 = vld [vmem:[#allocation13 + $0x28] sm:$0xff]
          %v1399 = vld [vmem:[#allocation13 + $0x30] sm:$0xff]
          %v1400 = vld [vmem:[#allocation13 + $0x38] sm:$0xff]
          %v1401 = vld [vmem:[#allocation13 + $0x40] sm:$0xff]
          %v1402 = vld [vmem:[#allocation13 + $0x48] sm:$0xff]
          %v1403 = vld [vmem:[#allocation13 + $0x50] sm:$0xff]
          %v1404 = vld [vmem:[#allocation13 + $0x58] sm:$0xff]
          %v1405 = vld [vmem:[#allocation13 + $0x60] sm:$0xff]
          %v1406 = vld [vmem:[#allocation13 + $0x68] sm:$0xff]
          %v1407 = vld [vmem:[#allocation13 + $0x70] sm:$0xff]
          %v1408 = vld [vmem:[#allocation13 + $0x78] sm:$0xff]
          %v1409 = vpack.c.bf16 %v1394, %v1393
          %v1410 = vpack.c.bf16 %v1396, %v1395
          %v1411 = vpack.c.bf16 %v1398, %v1397
          %v1412 = vpack.c.bf16 %v1400, %v1399
          %v1413 = vpack.c.bf16 %v1402, %v1401
          %v1414 = vpack.c.bf16 %v1404, %v1403
          %v1415 = vpack.c.bf16 %v1406, %v1405
          %v1416 = vpack.c.bf16 %v1408, %v1407
          %1425 = vrot.lane.b32.xlu0 %v1385, 64
          %v1426 = vpop.permute.xlu0 %1425
          %1427 = vrot.lane.b32.xlu0 %v1386, 64
          %v1428 = vpop.permute.xlu0 %1427
          %1429 = vrot.lane.b32.xlu0 %v1387, 64
          %v1430 = vpop.permute.xlu0 %1429
          %1431 = vrot.lane.b32.xlu0 %v1388, 64
          %v1432 = vpop.permute.xlu0 %1431
          %1433 = vrot.lane.b32.xlu0 %v1389, 64
          %v1434 = vpop.permute.xlu0 %1433
          %1435 = vrot.lane.b32.xlu0 %v1390, 64
          %v1436 = vpop.permute.xlu0 %1435
          %1437 = vrot.lane.b32.xlu0 %v1391, 64
          %v1438 = vpop.permute.xlu0 %1437
          %1439 = vrot.lane.b32.xlu0 %v1392, 64
          %v1440 = vpop.permute.xlu0 %1439
          %1449 = vmatpush.bf16.msra.mxu0 %v1440
          %1450 = vmatpush.bf16.msra.mxu0 %v1438
          %1451 = vmatpush.bf16.msra.mxu0 %v1436
          %1452 = vmatpush.bf16.msra.mxu0 %v1434
          %1453 = vmatpush.bf16.msra.mxu0 %v1432
          %1454 = vmatpush.bf16.msra.mxu0 %v1430
          %1455 = vmatpush.bf16.msra.mxu0 %v1428
          %1456 = vmatpush.bf16.msra.mxu0 %v1426
          %1457 = vmatmul.bf16.gmra.mxu0 %v530
          %v1458 = vpop.f32.mrf.mxu0
          %v1459 = vadd.f32 0.0, %v1458
          %v1460 = vpop.f32.mrf.mxu0
          %v1461 = vadd.f32 0.0, %v1460
          %1462 = vmatmul.bf16.gmra.mxu0 %v531
          %v1463 = vpop.f32.mrf.mxu0
          %v1464 = vadd.f32 0.0, %v1463
          %v1465 = vpop.f32.mrf.mxu0
          %v1466 = vadd.f32 0.0, %v1465
          %1467 = vmatmul.bf16.gmra.mxu0 %v532
          %v1468 = vpop.f32.mrf.mxu0
          %v1469 = vadd.f32 0.0, %v1468
          %v1470 = vpop.f32.mrf.mxu0
          %v1471 = vadd.f32 0.0, %v1470
          %1472 = vmatmul.bf16.gmra.mxu0 %v533
          %v1473 = vpop.f32.mrf.mxu0
          %v1474 = vadd.f32 0.0, %v1473
          %v1475 = vpop.f32.mrf.mxu0
          %v1476 = vadd.f32 0.0, %v1475
          %1477 = vmatmul.bf16.gmra.mxu0 %v534
          %v1478 = vpop.f32.mrf.mxu0
          %v1479 = vadd.f32 0.0, %v1478
          %v1480 = vpop.f32.mrf.mxu0
          %v1481 = vadd.f32 0.0, %v1480
          %1482 = vmatmul.bf16.gmra.mxu0 %v535
          %v1483 = vpop.f32.mrf.mxu0
          %v1484 = vadd.f32 0.0, %v1483
          %v1485 = vpop.f32.mrf.mxu0
          %v1486 = vadd.f32 0.0, %v1485
          %1487 = vmatmul.bf16.gmra.mxu0 %v536
          %v1488 = vpop.f32.mrf.mxu0
          %v1489 = vadd.f32 0.0, %v1488
          %v1490 = vpop.f32.mrf.mxu0
          %v1491 = vadd.f32 0.0, %v1490
          %1492 = vmatmul.bf16.gmra.mxu0 %v537
          %v1493 = vpop.f32.mrf.mxu0
          %v1494 = vadd.f32 0.0, %v1493
          %v1495 = vpop.f32.mrf.mxu0
          %v1496 = vadd.f32 0.0, %v1495
          %1497 = vmatmul.bf16.gmra.mxu0 %v538
          %v1498 = vpop.f32.mrf.mxu0
          %v1499 = vadd.f32 0.0, %v1498
          %v1500 = vpop.f32.mrf.mxu0
          %v1501 = vadd.f32 0.0, %v1500
          %1502 = vmatmul.bf16.gmra.mxu0 %v539
          %v1503 = vpop.f32.mrf.mxu0
          %v1504 = vadd.f32 0.0, %v1503
          %v1505 = vpop.f32.mrf.mxu0
          %v1506 = vadd.f32 0.0, %v1505
          %1507 = vmatmul.bf16.gmra.mxu0 %v540
          %v1508 = vpop.f32.mrf.mxu0
          %v1509 = vadd.f32 0.0, %v1508
          %v1510 = vpop.f32.mrf.mxu0
          %v1511 = vadd.f32 0.0, %v1510
          %1512 = vmatmul.bf16.gmra.mxu0 %v541
          %v1513 = vpop.f32.mrf.mxu0
          %v1514 = vadd.f32 0.0, %v1513
          %v1515 = vpop.f32.mrf.mxu0
          %v1516 = vadd.f32 0.0, %v1515
          %1517 = vmatmul.bf16.gmra.mxu0 %v542
          %v1518 = vpop.f32.mrf.mxu0
          %v1519 = vadd.f32 0.0, %v1518
          %v1520 = vpop.f32.mrf.mxu0
          %v1521 = vadd.f32 0.0, %v1520
          %1522 = vmatmul.bf16.gmra.mxu0 %v543
          %v1523 = vpop.f32.mrf.mxu0
          %v1524 = vadd.f32 0.0, %v1523
          %v1525 = vpop.f32.mrf.mxu0
          %v1526 = vadd.f32 0.0, %v1525
          %1527 = vmatmul.bf16.gmra.mxu0 %v544
          %v1528 = vpop.f32.mrf.mxu0
          %v1529 = vadd.f32 0.0, %v1528
          %v1530 = vpop.f32.mrf.mxu0
          %v1531 = vadd.f32 0.0, %v1530
          %1532 = vmatmul.bf16.gmra.mxu0 %v545
          %v1533 = vpop.f32.mrf.mxu0
          %v1534 = vadd.f32 0.0, %v1533
          %v1535 = vpop.f32.mrf.mxu0
          %v1536 = vadd.f32 0.0, %v1535
          %1537 = vdwg.mxu0
          %v1538 = vpack.c.bf16 %v1459, %v1459
          %v1539 = vpack.c.bf16 %v1461, %v1461
          %v1540 = vpack.c.bf16 %v1464, %v1464
          %v1541 = vpack.c.bf16 %v1466, %v1466
          %v1542 = vpack.c.bf16 %v1469, %v1469
          %v1543 = vpack.c.bf16 %v1471, %v1471
          %v1544 = vpack.c.bf16 %v1474, %v1474
          %v1545 = vpack.c.bf16 %v1476, %v1476
          %v1546 = vpack.c.bf16 %v1479, %v1479
          %v1547 = vpack.c.bf16 %v1481, %v1481
          %v1548 = vpack.c.bf16 %v1484, %v1484
          %v1549 = vpack.c.bf16 %v1486, %v1486
          %v1550 = vpack.c.bf16 %v1489, %v1489
          %v1551 = vpack.c.bf16 %v1491, %v1491
          %v1552 = vpack.c.bf16 %v1494, %v1494
          %v1553 = vpack.c.bf16 %v1496, %v1496
          %v1554 = vpack.c.bf16 %v1499, %v1499
          %v1555 = vpack.c.bf16 %v1501, %v1501
          %v1556 = vpack.c.bf16 %v1504, %v1504
          %v1557 = vpack.c.bf16 %v1506, %v1506
          %v1558 = vpack.c.bf16 %v1509, %v1509
          %v1559 = vpack.c.bf16 %v1511, %v1511
          %v1560 = vpack.c.bf16 %v1514, %v1514
          %v1561 = vpack.c.bf16 %v1516, %v1516
          %v1562 = vpack.c.bf16 %v1519, %v1519
          %v1563 = vpack.c.bf16 %v1521, %v1521
          %v1564 = vpack.c.bf16 %v1524, %v1524
          %v1565 = vpack.c.bf16 %v1526, %v1526
          %v1566 = vpack.c.bf16 %v1529, %v1529
          %v1567 = vpack.c.bf16 %v1531, %v1531
          %v1568 = vpack.c.bf16 %v1534, %v1534
          %v1569 = vpack.c.bf16 %v1536, %v1536
          %s1570 = scalar_lea.vmem [#allocation2], 256
          %1571 = vst.msk [vmem:[%s1570] sm:$0xf] %vm763, %v1538
          %1572 = vst.msk [vmem:[%s1570 + $0x4] sm:$0xf] %vm763, %v1539
          %1573 = vst.msk [vmem:[%s1570 + $0x8] sm:$0xf] %vm763, %v1540
          %1574 = vst.msk [vmem:[%s1570 + $0xc] sm:$0xf] %vm763, %v1541
          %1575 = vst.msk [vmem:[%s1570 + $0x10] sm:$0xf] %vm763, %v1542
          %1576 = vst.msk [vmem:[%s1570 + $0x14] sm:$0xf] %vm763, %v1543
          %1577 = vst.msk [vmem:[%s1570 + $0x18] sm:$0xf] %vm763, %v1544
          %1578 = vst.msk [vmem:[%s1570 + $0x1c] sm:$0xf] %vm763, %v1545
          %1579 = vst.msk [vmem:[%s1570 + $0x20] sm:$0xf] %vm763, %v1546
          %1580 = vst.msk [vmem:[%s1570 + $0x24] sm:$0xf] %vm763, %v1547
          %1581 = vst.msk [vmem:[%s1570 + $0x28] sm:$0xf] %vm763, %v1548
          %1582 = vst.msk [vmem:[%s1570 + $0x2c] sm:$0xf] %vm763, %v1549
          %1583 = vst.msk [vmem:[%s1570 + $0x30] sm:$0xf] %vm763, %v1550
          %1584 = vst.msk [vmem:[%s1570 + $0x34] sm:$0xf] %vm763, %v1551
          %1585 = vst.msk [vmem:[%s1570 + $0x38] sm:$0xf] %vm763, %v1552
          %1586 = vst.msk [vmem:[%s1570 + $0x3c] sm:$0xf] %vm763, %v1553
          %1587 = vst.msk [vmem:[%s1570 + $0x40] sm:$0xf] %vm763, %v1554
          %1588 = vst.msk [vmem:[%s1570 + $0x44] sm:$0xf] %vm763, %v1555
          %1589 = vst.msk [vmem:[%s1570 + $0x48] sm:$0xf] %vm763, %v1556
          %1590 = vst.msk [vmem:[%s1570 + $0x4c] sm:$0xf] %vm763, %v1557
          %1591 = vst.msk [vmem:[%s1570 + $0x50] sm:$0xf] %vm763, %v1558
          %1592 = vst.msk [vmem:[%s1570 + $0x54] sm:$0xf] %vm763, %v1559
          %1593 = vst.msk [vmem:[%s1570 + $0x58] sm:$0xf] %vm763, %v1560
          %1594 = vst.msk [vmem:[%s1570 + $0x5c] sm:$0xf] %vm763, %v1561
          %1595 = vst.msk [vmem:[%s1570 + $0x60] sm:$0xf] %vm763, %v1562
          %1596 = vst.msk [vmem:[%s1570 + $0x64] sm:$0xf] %vm763, %v1563
          %1597 = vst.msk [vmem:[%s1570 + $0x68] sm:$0xf] %vm763, %v1564
          %1598 = vst.msk [vmem:[%s1570 + $0x6c] sm:$0xf] %vm763, %v1565
          %1599 = vst.msk [vmem:[%s1570 + $0x70] sm:$0xf] %vm763, %v1566
          %1600 = vst.msk [vmem:[%s1570 + $0x74] sm:$0xf] %vm763, %v1567
          %1601 = vst.msk [vmem:[%s1570 + $0x78] sm:$0xf] %vm763, %v1568
          %1602 = vst.msk [vmem:[%s1570 + $0x7c] sm:$0xf] %vm763, %v1569
          %1611 = vrot.lane.b32.xlu0 %v1409, 64
          %v1612 = vpop.permute.xlu0 %1611
          %1613 = vrot.lane.b32.xlu0 %v1410, 64
          %v1614 = vpop.permute.xlu0 %1613
          %1615 = vrot.lane.b32.xlu0 %v1411, 64
          %v1616 = vpop.permute.xlu0 %1615
          %1617 = vrot.lane.b32.xlu0 %v1412, 64
          %v1618 = vpop.permute.xlu0 %1617
          %1619 = vrot.lane.b32.xlu0 %v1413, 64
          %v1620 = vpop.permute.xlu0 %1619
          %1621 = vrot.lane.b32.xlu0 %v1414, 64
          %v1622 = vpop.permute.xlu0 %1621
          %1623 = vrot.lane.b32.xlu0 %v1415, 64
          %v1624 = vpop.permute.xlu0 %1623
          %1625 = vrot.lane.b32.xlu0 %v1416, 64
          %v1626 = vpop.permute.xlu0 %1625
          %1635 = vmatpush.bf16.msra.mxu0 %v1626
          %1636 = vmatpush.bf16.msra.mxu0 %v1624
          %1637 = vmatpush.bf16.msra.mxu0 %v1622
          %1638 = vmatpush.bf16.msra.mxu0 %v1620
          %1639 = vmatpush.bf16.msra.mxu0 %v1618
          %1640 = vmatpush.bf16.msra.mxu0 %v1616
          %1641 = vmatpush.bf16.msra.mxu0 %v1614
          %1642 = vmatpush.bf16.msra.mxu0 %v1612
          %1643 = vmatmul.bf16.gmra.mxu0 %v578
          %v1644 = vpop.f32.mrf.mxu0
          %v1645 = vadd.f32 0.0, %v1644
          %v1646 = vpop.f32.mrf.mxu0
          %v1647 = vadd.f32 0.0, %v1646
          %1648 = vmatmul.bf16.gmra.mxu0 %v579
          %v1649 = vpop.f32.mrf.mxu0
          %v1650 = vadd.f32 0.0, %v1649
          %v1651 = vpop.f32.mrf.mxu0
          %v1652 = vadd.f32 0.0, %v1651
          %1653 = vmatmul.bf16.gmra.mxu0 %v580
          %v1654 = vpop.f32.mrf.mxu0
          %v1655 = vadd.f32 0.0, %v1654
          %v1656 = vpop.f32.mrf.mxu0
          %v1657 = vadd.f32 0.0, %v1656
          %1658 = vmatmul.bf16.gmra.mxu0 %v581
          %v1659 = vpop.f32.mrf.mxu0
          %v1660 = vadd.f32 0.0, %v1659
          %v1661 = vpop.f32.mrf.mxu0
          %v1662 = vadd.f32 0.0, %v1661
          %1663 = vmatmul.bf16.gmra.mxu0 %v582
          %v1664 = vpop.f32.mrf.mxu0
          %v1665 = vadd.f32 0.0, %v1664
          %v1666 = vpop.f32.mrf.mxu0
          %v1667 = vadd.f32 0.0, %v1666
          %1668 = vmatmul.bf16.gmra.mxu0 %v583
          %v1669 = vpop.f32.mrf.mxu0
          %v1670 = vadd.f32 0.0, %v1669
          %v1671 = vpop.f32.mrf.mxu0
          %v1672 = vadd.f32 0.0, %v1671
          %1673 = vmatmul.bf16.gmra.mxu0 %v584
          %v1674 = vpop.f32.mrf.mxu0
          %v1675 = vadd.f32 0.0, %v1674
          %v1676 = vpop.f32.mrf.mxu0
          %v1677 = vadd.f32 0.0, %v1676
          %1678 = vmatmul.bf16.gmra.mxu0 %v585
          %v1679 = vpop.f32.mrf.mxu0
          %v1680 = vadd.f32 0.0, %v1679
          %v1681 = vpop.f32.mrf.mxu0
          %v1682 = vadd.f32 0.0, %v1681
          %1683 = vmatmul.bf16.gmra.mxu0 %v586
          %v1684 = vpop.f32.mrf.mxu0
          %v1685 = vadd.f32 0.0, %v1684
          %v1686 = vpop.f32.mrf.mxu0
          %v1687 = vadd.f32 0.0, %v1686
          %1688 = vmatmul.bf16.gmra.mxu0 %v587
          %v1689 = vpop.f32.mrf.mxu0
          %v1690 = vadd.f32 0.0, %v1689
          %v1691 = vpop.f32.mrf.mxu0
          %v1692 = vadd.f32 0.0, %v1691
          %1693 = vmatmul.bf16.gmra.mxu0 %v588
          %v1694 = vpop.f32.mrf.mxu0
          %v1695 = vadd.f32 0.0, %v1694
          %v1696 = vpop.f32.mrf.mxu0
          %v1697 = vadd.f32 0.0, %v1696
          %1698 = vmatmul.bf16.gmra.mxu0 %v589
          %v1699 = vpop.f32.mrf.mxu0
          %v1700 = vadd.f32 0.0, %v1699
          %v1701 = vpop.f32.mrf.mxu0
          %v1702 = vadd.f32 0.0, %v1701
          %1703 = vmatmul.bf16.gmra.mxu0 %v590
          %v1704 = vpop.f32.mrf.mxu0
          %v1705 = vadd.f32 0.0, %v1704
          %v1706 = vpop.f32.mrf.mxu0
          %v1707 = vadd.f32 0.0, %v1706
          %1708 = vmatmul.bf16.gmra.mxu0 %v591
          %v1709 = vpop.f32.mrf.mxu0
          %v1710 = vadd.f32 0.0, %v1709
          %v1711 = vpop.f32.mrf.mxu0
          %v1712 = vadd.f32 0.0, %v1711
          %1713 = vmatmul.bf16.gmra.mxu0 %v592
          %v1714 = vpop.f32.mrf.mxu0
          %v1715 = vadd.f32 0.0, %v1714
          %v1716 = vpop.f32.mrf.mxu0
          %v1717 = vadd.f32 0.0, %v1716
          %1718 = vmatmul.bf16.gmra.mxu0 %v593
          %v1719 = vpop.f32.mrf.mxu0
          %v1720 = vadd.f32 0.0, %v1719
          %v1721 = vpop.f32.mrf.mxu0
          %v1722 = vadd.f32 0.0, %v1721
          %1723 = vdwg.mxu0
          %v1724 = vpack.c.bf16 %v1645, %v1645
          %v1725 = vpack.c.bf16 %v1647, %v1647
          %v1726 = vpack.c.bf16 %v1650, %v1650
          %v1727 = vpack.c.bf16 %v1652, %v1652
          %v1728 = vpack.c.bf16 %v1655, %v1655
          %v1729 = vpack.c.bf16 %v1657, %v1657
          %v1730 = vpack.c.bf16 %v1660, %v1660
          %v1731 = vpack.c.bf16 %v1662, %v1662
          %v1732 = vpack.c.bf16 %v1665, %v1665
          %v1733 = vpack.c.bf16 %v1667, %v1667
          %v1734 = vpack.c.bf16 %v1670, %v1670
          %v1735 = vpack.c.bf16 %v1672, %v1672
          %v1736 = vpack.c.bf16 %v1675, %v1675
          %v1737 = vpack.c.bf16 %v1677, %v1677
          %v1738 = vpack.c.bf16 %v1680, %v1680
          %v1739 = vpack.c.bf16 %v1682, %v1682
          %v1740 = vpack.c.bf16 %v1685, %v1685
          %v1741 = vpack.c.bf16 %v1687, %v1687
          %v1742 = vpack.c.bf16 %v1690, %v1690
          %v1743 = vpack.c.bf16 %v1692, %v1692
          %v1744 = vpack.c.bf16 %v1695, %v1695
          %v1745 = vpack.c.bf16 %v1697, %v1697
          %v1746 = vpack.c.bf16 %v1700, %v1700
          %v1747 = vpack.c.bf16 %v1702, %v1702
          %v1748 = vpack.c.bf16 %v1705, %v1705
          %v1749 = vpack.c.bf16 %v1707, %v1707
          %v1750 = vpack.c.bf16 %v1710, %v1710
          %v1751 = vpack.c.bf16 %v1712, %v1712
          %v1752 = vpack.c.bf16 %v1715, %v1715
          %v1753 = vpack.c.bf16 %v1717, %v1717
          %v1754 = vpack.c.bf16 %v1720, %v1720
          %v1755 = vpack.c.bf16 %v1722, %v1722
          %s1756 = scalar_lea.vmem [#allocation3], 256
          %1757 = vst.msk [vmem:[%s1756] sm:$0xf] %vm763, %v1724
          %1758 = vst.msk [vmem:[%s1756 + $0x4] sm:$0xf] %vm763, %v1725
          %1759 = vst.msk [vmem:[%s1756 + $0x8] sm:$0xf] %vm763, %v1726
          %1760 = vst.msk [vmem:[%s1756 + $0xc] sm:$0xf] %vm763, %v1727
          %1761 = vst.msk [vmem:[%s1756 + $0x10] sm:$0xf] %vm763, %v1728
          %1762 = vst.msk [vmem:[%s1756 + $0x14] sm:$0xf] %vm763, %v1729
          %1763 = vst.msk [vmem:[%s1756 + $0x18] sm:$0xf] %vm763, %v1730
          %1764 = vst.msk [vmem:[%s1756 + $0x1c] sm:$0xf] %vm763, %v1731
          %1765 = vst.msk [vmem:[%s1756 + $0x20] sm:$0xf] %vm763, %v1732
          %1766 = vst.msk [vmem:[%s1756 + $0x24] sm:$0xf] %vm763, %v1733
          %1767 = vst.msk [vmem:[%s1756 + $0x28] sm:$0xf] %vm763, %v1734
          %1768 = vst.msk [vmem:[%s1756 + $0x2c] sm:$0xf] %vm763, %v1735
          %1769 = vst.msk [vmem:[%s1756 + $0x30] sm:$0xf] %vm763, %v1736
          %1770 = vst.msk [vmem:[%s1756 + $0x34] sm:$0xf] %vm763, %v1737
          %1771 = vst.msk [vmem:[%s1756 + $0x38] sm:$0xf] %vm763, %v1738
          %1772 = vst.msk [vmem:[%s1756 + $0x3c] sm:$0xf] %vm763, %v1739
          %1773 = vst.msk [vmem:[%s1756 + $0x40] sm:$0xf] %vm763, %v1740
          %1774 = vst.msk [vmem:[%s1756 + $0x44] sm:$0xf] %vm763, %v1741
          %1775 = vst.msk [vmem:[%s1756 + $0x48] sm:$0xf] %vm763, %v1742
          %1776 = vst.msk [vmem:[%s1756 + $0x4c] sm:$0xf] %vm763, %v1743
          %1777 = vst.msk [vmem:[%s1756 + $0x50] sm:$0xf] %vm763, %v1744
          %1778 = vst.msk [vmem:[%s1756 + $0x54] sm:$0xf] %vm763, %v1745
          %1779 = vst.msk [vmem:[%s1756 + $0x58] sm:$0xf] %vm763, %v1746
          %1780 = vst.msk [vmem:[%s1756 + $0x5c] sm:$0xf] %vm763, %v1747
          %1781 = vst.msk [vmem:[%s1756 + $0x60] sm:$0xf] %vm763, %v1748
          %1782 = vst.msk [vmem:[%s1756 + $0x64] sm:$0xf] %vm763, %v1749
          %1783 = vst.msk [vmem:[%s1756 + $0x68] sm:$0xf] %vm763, %v1750
          %1784 = vst.msk [vmem:[%s1756 + $0x6c] sm:$0xf] %vm763, %v1751
          %1785 = vst.msk [vmem:[%s1756 + $0x70] sm:$0xf] %vm763, %v1752
          %1786 = vst.msk [vmem:[%s1756 + $0x74] sm:$0xf] %vm763, %v1753
          %1787 = vst.msk [vmem:[%s1756 + $0x78] sm:$0xf] %vm763, %v1754
          %1788 = vst.msk [vmem:[%s1756 + $0x7c] sm:$0xf] %vm763, %v1755
          %v1789 = vld [vmem:[#allocation12] sm:$0xff]
          %v1790 = vld [vmem:[#allocation12 + $0x8] sm:$0xff]
          %v1791 = vld [vmem:[#allocation12 + $0x10] sm:$0xff]
          %v1792 = vld [vmem:[#allocation12 + $0x18] sm:$0xff]
          %v1793 = vld [vmem:[#allocation12 + $0x20] sm:$0xff]
          %v1794 = vld [vmem:[#allocation12 + $0x28] sm:$0xff]
          %v1795 = vld [vmem:[#allocation12 + $0x30] sm:$0xff]
          %v1796 = vld [vmem:[#allocation12 + $0x38] sm:$0xff]
          %v1797 = vld [vmem:[#allocation12 + $0x40] sm:$0xff]
          %v1798 = vld [vmem:[#allocation12 + $0x48] sm:$0xff]
          %v1799 = vld [vmem:[#allocation12 + $0x50] sm:$0xff]
          %v1800 = vld [vmem:[#allocation12 + $0x58] sm:$0xff]
          %v1801 = vld [vmem:[#allocation12 + $0x60] sm:$0xff]
          %v1802 = vld [vmem:[#allocation12 + $0x68] sm:$0xff]
          %v1803 = vld [vmem:[#allocation12 + $0x70] sm:$0xff]
          %v1804 = vld [vmem:[#allocation12 + $0x78] sm:$0xff]
          %v1805 = vpack.c.bf16 %v1790, %v1789
          %v1806 = vpack.c.bf16 %v1792, %v1791
          %v1807 = vpack.c.bf16 %v1794, %v1793
          %v1808 = vpack.c.bf16 %v1796, %v1795
          %v1809 = vpack.c.bf16 %v1798, %v1797
          %v1810 = vpack.c.bf16 %v1800, %v1799
          %v1811 = vpack.c.bf16 %v1802, %v1801
          %v1812 = vpack.c.bf16 %v1804, %v1803
          %v1813 = vld [vmem:[#allocation13] sm:$0xff]
          %v1814 = vld [vmem:[#allocation13 + $0x8] sm:$0xff]
          %v1815 = vld [vmem:[#allocation13 + $0x10] sm:$0xff]
          %v1816 = vld [vmem:[#allocation13 + $0x18] sm:$0xff]
          %v1817 = vld [vmem:[#allocation13 + $0x20] sm:$0xff]
          %v1818 = vld [vmem:[#allocation13 + $0x28] sm:$0xff]
          %v1819 = vld [vmem:[#allocation13 + $0x30] sm:$0xff]
          %v1820 = vld [vmem:[#allocation13 + $0x38] sm:$0xff]
          %v1821 = vld [vmem:[#allocation13 + $0x40] sm:$0xff]
          %v1822 = vld [vmem:[#allocation13 + $0x48] sm:$0xff]
          %v1823 = vld [vmem:[#allocation13 + $0x50] sm:$0xff]
          %v1824 = vld [vmem:[#allocation13 + $0x58] sm:$0xff]
          %v1825 = vld [vmem:[#allocation13 + $0x60] sm:$0xff]
          %v1826 = vld [vmem:[#allocation13 + $0x68] sm:$0xff]
          %v1827 = vld [vmem:[#allocation13 + $0x70] sm:$0xff]
          %v1828 = vld [vmem:[#allocation13 + $0x78] sm:$0xff]
          %v1829 = vpack.c.bf16 %v1814, %v1813
          %v1830 = vpack.c.bf16 %v1816, %v1815
          %v1831 = vpack.c.bf16 %v1818, %v1817
          %v1832 = vpack.c.bf16 %v1820, %v1819
          %v1833 = vpack.c.bf16 %v1822, %v1821
          %v1834 = vpack.c.bf16 %v1824, %v1823
          %v1835 = vpack.c.bf16 %v1826, %v1825
          %v1836 = vpack.c.bf16 %v1828, %v1827
          %1845 = vrot.lane.b32.xlu0 %v1805, 32
          %v1846 = vpop.permute.xlu0 %1845
          %1847 = vrot.lane.b32.xlu0 %v1806, 32
          %v1848 = vpop.permute.xlu0 %1847
          %1849 = vrot.lane.b32.xlu0 %v1807, 32
          %v1850 = vpop.permute.xlu0 %1849
          %1851 = vrot.lane.b32.xlu0 %v1808, 32
          %v1852 = vpop.permute.xlu0 %1851
          %1853 = vrot.lane.b32.xlu0 %v1809, 32
          %v1854 = vpop.permute.xlu0 %1853
          %1855 = vrot.lane.b32.xlu0 %v1810, 32
          %v1856 = vpop.permute.xlu0 %1855
          %1857 = vrot.lane.b32.xlu0 %v1811, 32
          %v1858 = vpop.permute.xlu0 %1857
          %1859 = vrot.lane.b32.xlu0 %v1812, 32
          %v1860 = vpop.permute.xlu0 %1859
          %1869 = vmatpush.bf16.msra.mxu0 %v1860
          %1870 = vmatpush.bf16.msra.mxu0 %v1858
          %1871 = vmatpush.bf16.msra.mxu0 %v1856
          %1872 = vmatpush.bf16.msra.mxu0 %v1854
          %1873 = vmatpush.bf16.msra.mxu0 %v1852
          %1874 = vmatpush.bf16.msra.mxu0 %v1850
          %1875 = vmatpush.bf16.msra.mxu0 %v1848
          %1876 = vmatpush.bf16.msra.mxu0 %v1846
          %1877 = vmatmul.bf16.gmra.mxu0 %v530
          %v1878 = vpop.f32.mrf.mxu0
          %v1879 = vadd.f32 0.0, %v1878
          %v1880 = vpop.f32.mrf.mxu0
          %v1881 = vadd.f32 0.0, %v1880
          %1882 = vmatmul.bf16.gmra.mxu0 %v531
          %v1883 = vpop.f32.mrf.mxu0
          %v1884 = vadd.f32 0.0, %v1883
          %v1885 = vpop.f32.mrf.mxu0
          %v1886 = vadd.f32 0.0, %v1885
          %1887 = vmatmul.bf16.gmra.mxu0 %v532
          %v1888 = vpop.f32.mrf.mxu0
          %v1889 = vadd.f32 0.0, %v1888
          %v1890 = vpop.f32.mrf.mxu0
          %v1891 = vadd.f32 0.0, %v1890
          %1892 = vmatmul.bf16.gmra.mxu0 %v533
          %v1893 = vpop.f32.mrf.mxu0
          %v1894 = vadd.f32 0.0, %v1893
          %v1895 = vpop.f32.mrf.mxu0
          %v1896 = vadd.f32 0.0, %v1895
          %1897 = vmatmul.bf16.gmra.mxu0 %v534
          %v1898 = vpop.f32.mrf.mxu0
          %v1899 = vadd.f32 0.0, %v1898
          %v1900 = vpop.f32.mrf.mxu0
          %v1901 = vadd.f32 0.0, %v1900
          %1902 = vmatmul.bf16.gmra.mxu0 %v535
          %v1903 = vpop.f32.mrf.mxu0
          %v1904 = vadd.f32 0.0, %v1903
          %v1905 = vpop.f32.mrf.mxu0
          %v1906 = vadd.f32 0.0, %v1905
          %1907 = vmatmul.bf16.gmra.mxu0 %v536
          %v1908 = vpop.f32.mrf.mxu0
          %v1909 = vadd.f32 0.0, %v1908
          %v1910 = vpop.f32.mrf.mxu0
          %v1911 = vadd.f32 0.0, %v1910
          %1912 = vmatmul.bf16.gmra.mxu0 %v537
          %v1913 = vpop.f32.mrf.mxu0
          %v1914 = vadd.f32 0.0, %v1913
          %v1915 = vpop.f32.mrf.mxu0
          %v1916 = vadd.f32 0.0, %v1915
          %1917 = vmatmul.bf16.gmra.mxu0 %v538
          %v1918 = vpop.f32.mrf.mxu0
          %v1919 = vadd.f32 0.0, %v1918
          %v1920 = vpop.f32.mrf.mxu0
          %v1921 = vadd.f32 0.0, %v1920
          %1922 = vmatmul.bf16.gmra.mxu0 %v539
          %v1923 = vpop.f32.mrf.mxu0
          %v1924 = vadd.f32 0.0, %v1923
          %v1925 = vpop.f32.mrf.mxu0
          %v1926 = vadd.f32 0.0, %v1925
          %1927 = vmatmul.bf16.gmra.mxu0 %v540
          %v1928 = vpop.f32.mrf.mxu0
          %v1929 = vadd.f32 0.0, %v1928
          %v1930 = vpop.f32.mrf.mxu0
          %v1931 = vadd.f32 0.0, %v1930
          %1932 = vmatmul.bf16.gmra.mxu0 %v541
          %v1933 = vpop.f32.mrf.mxu0
          %v1934 = vadd.f32 0.0, %v1933
          %v1935 = vpop.f32.mrf.mxu0
          %v1936 = vadd.f32 0.0, %v1935
          %1937 = vmatmul.bf16.gmra.mxu0 %v542
          %v1938 = vpop.f32.mrf.mxu0
          %v1939 = vadd.f32 0.0, %v1938
          %v1940 = vpop.f32.mrf.mxu0
          %v1941 = vadd.f32 0.0, %v1940
          %1942 = vmatmul.bf16.gmra.mxu0 %v543
          %v1943 = vpop.f32.mrf.mxu0
          %v1944 = vadd.f32 0.0, %v1943
          %v1945 = vpop.f32.mrf.mxu0
          %v1946 = vadd.f32 0.0, %v1945
          %1947 = vmatmul.bf16.gmra.mxu0 %v544
          %v1948 = vpop.f32.mrf.mxu0
          %v1949 = vadd.f32 0.0, %v1948
          %v1950 = vpop.f32.mrf.mxu0
          %v1951 = vadd.f32 0.0, %v1950
          %1952 = vmatmul.bf16.gmra.mxu0 %v545
          %v1953 = vpop.f32.mrf.mxu0
          %v1954 = vadd.f32 0.0, %v1953
          %v1955 = vpop.f32.mrf.mxu0
          %v1956 = vadd.f32 0.0, %v1955
          %1957 = vdwg.mxu0
          %v1958 = vpack.c.bf16 %v1879, %v1879
          %v1959 = vpack.c.bf16 %v1881, %v1881
          %v1960 = vpack.c.bf16 %v1884, %v1884
          %v1961 = vpack.c.bf16 %v1886, %v1886
          %v1962 = vpack.c.bf16 %v1889, %v1889
          %v1963 = vpack.c.bf16 %v1891, %v1891
          %v1964 = vpack.c.bf16 %v1894, %v1894
          %v1965 = vpack.c.bf16 %v1896, %v1896
          %v1966 = vpack.c.bf16 %v1899, %v1899
          %v1967 = vpack.c.bf16 %v1901, %v1901
          %v1968 = vpack.c.bf16 %v1904, %v1904
          %v1969 = vpack.c.bf16 %v1906, %v1906
          %v1970 = vpack.c.bf16 %v1909, %v1909
          %v1971 = vpack.c.bf16 %v1911, %v1911
          %v1972 = vpack.c.bf16 %v1914, %v1914
          %v1973 = vpack.c.bf16 %v1916, %v1916
          %v1974 = vpack.c.bf16 %v1919, %v1919
          %v1975 = vpack.c.bf16 %v1921, %v1921
          %v1976 = vpack.c.bf16 %v1924, %v1924
          %v1977 = vpack.c.bf16 %v1926, %v1926
          %v1978 = vpack.c.bf16 %v1929, %v1929
          %v1979 = vpack.c.bf16 %v1931, %v1931
          %v1980 = vpack.c.bf16 %v1934, %v1934
          %v1981 = vpack.c.bf16 %v1936, %v1936
          %v1982 = vpack.c.bf16 %v1939, %v1939
          %v1983 = vpack.c.bf16 %v1941, %v1941
          %v1984 = vpack.c.bf16 %v1944, %v1944
          %v1985 = vpack.c.bf16 %v1946, %v1946
          %v1986 = vpack.c.bf16 %v1949, %v1949
          %v1987 = vpack.c.bf16 %v1951, %v1951
          %v1988 = vpack.c.bf16 %v1954, %v1954
          %v1989 = vpack.c.bf16 %v1956, %v1956
          %s1990 = scalar_lea.vmem [#allocation2], 384
          %1991 = vst.msk [vmem:[%s1990] sm:$0xf] %vm763, %v1958
          %1992 = vst.msk [vmem:[%s1990 + $0x4] sm:$0xf] %vm763, %v1959
          %1993 = vst.msk [vmem:[%s1990 + $0x8] sm:$0xf] %vm763, %v1960
          %1994 = vst.msk [vmem:[%s1990 + $0xc] sm:$0xf] %vm763, %v1961
          %1995 = vst.msk [vmem:[%s1990 + $0x10] sm:$0xf] %vm763, %v1962
          %1996 = vst.msk [vmem:[%s1990 + $0x14] sm:$0xf] %vm763, %v1963
          %1997 = vst.msk [vmem:[%s1990 + $0x18] sm:$0xf] %vm763, %v1964
          %1998 = vst.msk [vmem:[%s1990 + $0x1c] sm:$0xf] %vm763, %v1965
          %1999 = vst.msk [vmem:[%s1990 + $0x20] sm:$0xf] %vm763, %v1966
          %2000 = vst.msk [vmem:[%s1990 + $0x24] sm:$0xf] %vm763, %v1967
          %2001 = vst.msk [vmem:[%s1990 + $0x28] sm:$0xf] %vm763, %v1968
          %2002 = vst.msk [vmem:[%s1990 + $0x2c] sm:$0xf] %vm763, %v1969
          %2003 = vst.msk [vmem:[%s1990 + $0x30] sm:$0xf] %vm763, %v1970
          %2004 = vst.msk [vmem:[%s1990 + $0x34] sm:$0xf] %vm763, %v1971
          %2005 = vst.msk [vmem:[%s1990 + $0x38] sm:$0xf] %vm763, %v1972
          %2006 = vst.msk [vmem:[%s1990 + $0x3c] sm:$0xf] %vm763, %v1973
          %2007 = vst.msk [vmem:[%s1990 + $0x40] sm:$0xf] %vm763, %v1974
          %2008 = vst.msk [vmem:[%s1990 + $0x44] sm:$0xf] %vm763, %v1975
          %2009 = vst.msk [vmem:[%s1990 + $0x48] sm:$0xf] %vm763, %v1976
          %2010 = vst.msk [vmem:[%s1990 + $0x4c] sm:$0xf] %vm763, %v1977
          %2011 = vst.msk [vmem:[%s1990 + $0x50] sm:$0xf] %vm763, %v1978
          %2012 = vst.msk [vmem:[%s1990 + $0x54] sm:$0xf] %vm763, %v1979
          %2013 = vst.msk [vmem:[%s1990 + $0x58] sm:$0xf] %vm763, %v1980
          %2014 = vst.msk [vmem:[%s1990 + $0x5c] sm:$0xf] %vm763, %v1981
          %2015 = vst.msk [vmem:[%s1990 + $0x60] sm:$0xf] %vm763, %v1982
          %2016 = vst.msk [vmem:[%s1990 + $0x64] sm:$0xf] %vm763, %v1983
          %2017 = vst.msk [vmem:[%s1990 + $0x68] sm:$0xf] %vm763, %v1984
          %2018 = vst.msk [vmem:[%s1990 + $0x6c] sm:$0xf] %vm763, %v1985
          %2019 = vst.msk [vmem:[%s1990 + $0x70] sm:$0xf] %vm763, %v1986
          %2020 = vst.msk [vmem:[%s1990 + $0x74] sm:$0xf] %vm763, %v1987
          %2021 = vst.msk [vmem:[%s1990 + $0x78] sm:$0xf] %vm763, %v1988
          %2022 = vst.msk [vmem:[%s1990 + $0x7c] sm:$0xf] %vm763, %v1989
          %2031 = vrot.lane.b32.xlu0 %v1829, 32
          %v2032 = vpop.permute.xlu0 %2031
          %2033 = vrot.lane.b32.xlu0 %v1830, 32
          %v2034 = vpop.permute.xlu0 %2033
          %2035 = vrot.lane.b32.xlu0 %v1831, 32
          %v2036 = vpop.permute.xlu0 %2035
          %2037 = vrot.lane.b32.xlu0 %v1832, 32
          %v2038 = vpop.permute.xlu0 %2037
          %2039 = vrot.lane.b32.xlu0 %v1833, 32
          %v2040 = vpop.permute.xlu0 %2039
          %2041 = vrot.lane.b32.xlu0 %v1834, 32
          %v2042 = vpop.permute.xlu0 %2041
          %2043 = vrot.lane.b32.xlu0 %v1835, 32
          %v2044 = vpop.permute.xlu0 %2043
          %2045 = vrot.lane.b32.xlu0 %v1836, 32
          %v2046 = vpop.permute.xlu0 %2045
          %2055 = vmatpush.bf16.msra.mxu0 %v2046
          %2056 = vmatpush.bf16.msra.mxu0 %v2044
          %2057 = vmatpush.bf16.msra.mxu0 %v2042
          %2058 = vmatpush.bf16.msra.mxu0 %v2040
          %2059 = vmatpush.bf16.msra.mxu0 %v2038
          %2060 = vmatpush.bf16.msra.mxu0 %v2036
          %2061 = vmatpush.bf16.msra.mxu0 %v2034
          %2062 = vmatpush.bf16.msra.mxu0 %v2032
          %2063 = vmatmul.bf16.gmra.mxu0 %v578
          %v2064 = vpop.f32.mrf.mxu0
          %v2065 = vadd.f32 0.0, %v2064
          %v2066 = vpop.f32.mrf.mxu0
          %v2067 = vadd.f32 0.0, %v2066
          %2068 = vmatmul.bf16.gmra.mxu0 %v579
          %v2069 = vpop.f32.mrf.mxu0
          %v2070 = vadd.f32 0.0, %v2069
          %v2071 = vpop.f32.mrf.mxu0
          %v2072 = vadd.f32 0.0, %v2071
          %2073 = vmatmul.bf16.gmra.mxu0 %v580
          %v2074 = vpop.f32.mrf.mxu0
          %v2075 = vadd.f32 0.0, %v2074
          %v2076 = vpop.f32.mrf.mxu0
          %v2077 = vadd.f32 0.0, %v2076
          %2078 = vmatmul.bf16.gmra.mxu0 %v581
          %v2079 = vpop.f32.mrf.mxu0
          %v2080 = vadd.f32 0.0, %v2079
          %v2081 = vpop.f32.mrf.mxu0
          %v2082 = vadd.f32 0.0, %v2081
          %2083 = vmatmul.bf16.gmra.mxu0 %v582
          %v2084 = vpop.f32.mrf.mxu0
          %v2085 = vadd.f32 0.0, %v2084
          %v2086 = vpop.f32.mrf.mxu0
          %v2087 = vadd.f32 0.0, %v2086
          %2088 = vmatmul.bf16.gmra.mxu0 %v583
          %v2089 = vpop.f32.mrf.mxu0
          %v2090 = vadd.f32 0.0, %v2089
          %v2091 = vpop.f32.mrf.mxu0
          %v2092 = vadd.f32 0.0, %v2091
          %2093 = vmatmul.bf16.gmra.mxu0 %v584
          %v2094 = vpop.f32.mrf.mxu0
          %v2095 = vadd.f32 0.0, %v2094
          %v2096 = vpop.f32.mrf.mxu0
          %v2097 = vadd.f32 0.0, %v2096
          %2098 = vmatmul.bf16.gmra.mxu0 %v585
          %v2099 = vpop.f32.mrf.mxu0
          %v2100 = vadd.f32 0.0, %v2099
          %v2101 = vpop.f32.mrf.mxu0
          %v2102 = vadd.f32 0.0, %v2101
          %2103 = vmatmul.bf16.gmra.mxu0 %v586
          %v2104 = vpop.f32.mrf.mxu0
          %v2105 = vadd.f32 0.0, %v2104
          %v2106 = vpop.f32.mrf.mxu0
          %v2107 = vadd.f32 0.0, %v2106
          %2108 = vmatmul.bf16.gmra.mxu0 %v587
          %v2109 = vpop.f32.mrf.mxu0
          %v2110 = vadd.f32 0.0, %v2109
          %v2111 = vpop.f32.mrf.mxu0
          %v2112 = vadd.f32 0.0, %v2111
          %2113 = vmatmul.bf16.gmra.mxu0 %v588
          %v2114 = vpop.f32.mrf.mxu0
          %v2115 = vadd.f32 0.0, %v2114
          %v2116 = vpop.f32.mrf.mxu0
          %v2117 = vadd.f32 0.0, %v2116
          %2118 = vmatmul.bf16.gmra.mxu0 %v589
          %v2119 = vpop.f32.mrf.mxu0
          %v2120 = vadd.f32 0.0, %v2119
          %v2121 = vpop.f32.mrf.mxu0
          %v2122 = vadd.f32 0.0, %v2121
          %2123 = vmatmul.bf16.gmra.mxu0 %v590
          %v2124 = vpop.f32.mrf.mxu0
          %v2125 = vadd.f32 0.0, %v2124
          %v2126 = vpop.f32.mrf.mxu0
          %v2127 = vadd.f32 0.0, %v2126
          %2128 = vmatmul.bf16.gmra.mxu0 %v591
          %v2129 = vpop.f32.mrf.mxu0
          %v2130 = vadd.f32 0.0, %v2129
          %v2131 = vpop.f32.mrf.mxu0
          %v2132 = vadd.f32 0.0, %v2131
          %2133 = vmatmul.bf16.gmra.mxu0 %v592
          %v2134 = vpop.f32.mrf.mxu0
          %v2135 = vadd.f32 0.0, %v2134
          %v2136 = vpop.f32.mrf.mxu0
          %v2137 = vadd.f32 0.0, %v2136
          %2138 = vmatmul.bf16.gmra.mxu0 %v593
          %v2139 = vpop.f32.mrf.mxu0
          %v2140 = vadd.f32 0.0, %v2139
          %v2141 = vpop.f32.mrf.mxu0
          %v2142 = vadd.f32 0.0, %v2141
          %2143 = vdwg.mxu0
          %v2144 = vpack.c.bf16 %v2065, %v2065
          %v2145 = vpack.c.bf16 %v2067, %v2067
          %v2146 = vpack.c.bf16 %v2070, %v2070
          %v2147 = vpack.c.bf16 %v2072, %v2072
          %v2148 = vpack.c.bf16 %v2075, %v2075
          %v2149 = vpack.c.bf16 %v2077, %v2077
          %v2150 = vpack.c.bf16 %v2080, %v2080
          %v2151 = vpack.c.bf16 %v2082, %v2082
          %v2152 = vpack.c.bf16 %v2085, %v2085
          %v2153 = vpack.c.bf16 %v2087, %v2087
          %v2154 = vpack.c.bf16 %v2090, %v2090
          %v2155 = vpack.c.bf16 %v2092, %v2092
          %v2156 = vpack.c.bf16 %v2095, %v2095
          %v2157 = vpack.c.bf16 %v2097, %v2097
          %v2158 = vpack.c.bf16 %v2100, %v2100
          %v2159 = vpack.c.bf16 %v2102, %v2102
          %v2160 = vpack.c.bf16 %v2105, %v2105
          %v2161 = vpack.c.bf16 %v2107, %v2107
          %v2162 = vpack.c.bf16 %v2110, %v2110
          %v2163 = vpack.c.bf16 %v2112, %v2112
          %v2164 = vpack.c.bf16 %v2115, %v2115
          %v2165 = vpack.c.bf16 %v2117, %v2117
          %v2166 = vpack.c.bf16 %v2120, %v2120
          %v2167 = vpack.c.bf16 %v2122, %v2122
          %v2168 = vpack.c.bf16 %v2125, %v2125
          %v2169 = vpack.c.bf16 %v2127, %v2127
          %v2170 = vpack.c.bf16 %v2130, %v2130
          %v2171 = vpack.c.bf16 %v2132, %v2132
          %v2172 = vpack.c.bf16 %v2135, %v2135
          %v2173 = vpack.c.bf16 %v2137, %v2137
          %v2174 = vpack.c.bf16 %v2140, %v2140
          %v2175 = vpack.c.bf16 %v2142, %v2142
          %s2176 = scalar_lea.vmem [#allocation3], 384
          %2177 = vst.msk [vmem:[%s2176] sm:$0xf] %vm763, %v2144
          %2178 = vst.msk [vmem:[%s2176 + $0x4] sm:$0xf] %vm763, %v2145
          %2179 = vst.msk [vmem:[%s2176 + $0x8] sm:$0xf] %vm763, %v2146
          %2180 = vst.msk [vmem:[%s2176 + $0xc] sm:$0xf] %vm763, %v2147
          %2181 = vst.msk [vmem:[%s2176 + $0x10] sm:$0xf] %vm763, %v2148
          %2182 = vst.msk [vmem:[%s2176 + $0x14] sm:$0xf] %vm763, %v2149
          %2183 = vst.msk [vmem:[%s2176 + $0x18] sm:$0xf] %vm763, %v2150
          %2184 = vst.msk [vmem:[%s2176 + $0x1c] sm:$0xf] %vm763, %v2151
          %2185 = vst.msk [vmem:[%s2176 + $0x20] sm:$0xf] %vm763, %v2152
          %2186 = vst.msk [vmem:[%s2176 + $0x24] sm:$0xf] %vm763, %v2153
          %2187 = vst.msk [vmem:[%s2176 + $0x28] sm:$0xf] %vm763, %v2154
          %2188 = vst.msk [vmem:[%s2176 + $0x2c] sm:$0xf] %vm763, %v2155
          %2189 = vst.msk [vmem:[%s2176 + $0x30] sm:$0xf] %vm763, %v2156
          %2190 = vst.msk [vmem:[%s2176 + $0x34] sm:$0xf] %vm763, %v2157
          %2191 = vst.msk [vmem:[%s2176 + $0x38] sm:$0xf] %vm763, %v2158
          %2192 = vst.msk [vmem:[%s2176 + $0x3c] sm:$0xf] %vm763, %v2159
          %2193 = vst.msk [vmem:[%s2176 + $0x40] sm:$0xf] %vm763, %v2160
          %2194 = vst.msk [vmem:[%s2176 + $0x44] sm:$0xf] %vm763, %v2161
          %2195 = vst.msk [vmem:[%s2176 + $0x48] sm:$0xf] %vm763, %v2162
          %2196 = vst.msk [vmem:[%s2176 + $0x4c] sm:$0xf] %vm763, %v2163
          %2197 = vst.msk [vmem:[%s2176 + $0x50] sm:$0xf] %vm763, %v2164
          %2198 = vst.msk [vmem:[%s2176 + $0x54] sm:$0xf] %vm763, %v2165
          %2199 = vst.msk [vmem:[%s2176 + $0x58] sm:$0xf] %vm763, %v2166
          %2200 = vst.msk [vmem:[%s2176 + $0x5c] sm:$0xf] %vm763, %v2167
          %2201 = vst.msk [vmem:[%s2176 + $0x60] sm:$0xf] %vm763, %v2168
          %2202 = vst.msk [vmem:[%s2176 + $0x64] sm:$0xf] %vm763, %v2169
          %2203 = vst.msk [vmem:[%s2176 + $0x68] sm:$0xf] %vm763, %v2170
          %2204 = vst.msk [vmem:[%s2176 + $0x6c] sm:$0xf] %vm763, %v2171
          %2205 = vst.msk [vmem:[%s2176 + $0x70] sm:$0xf] %vm763, %v2172
          %2206 = vst.msk [vmem:[%s2176 + $0x74] sm:$0xf] %vm763, %v2173
          %2207 = vst.msk [vmem:[%s2176 + $0x78] sm:$0xf] %vm763, %v2174
          %2208 = vst.msk [vmem:[%s2176 + $0x7c] sm:$0xf] %vm763, %v2175
        $region84: #{mha_forward.1} parent=51 // pred_fallthru
          _
        %v2209 = vld [vmem:[%s407] sm:$0xff]
        %v2210 = vld [vmem:[%s407 + $0x8] sm:$0xff]
        %v2211 = vld [vmem:[%s407 + $0x10] sm:$0xff]
        %v2212 = vld [vmem:[%s407 + $0x18] sm:$0xff]
        %v2213 = vld [vmem:[%s407 + $0x20] sm:$0xff]
        %v2214 = vld [vmem:[%s407 + $0x28] sm:$0xff]
        %v2215 = vld [vmem:[%s407 + $0x30] sm:$0xff]
        %v2216 = vld [vmem:[%s407 + $0x38] sm:$0xff]
        %v2217 = vld [vmem:[%s407 + $0x40] sm:$0xff]
        %v2218 = vld [vmem:[%s407 + $0x48] sm:$0xff]
        %v2219 = vld [vmem:[%s407 + $0x50] sm:$0xff]
        %v2220 = vld [vmem:[%s407 + $0x58] sm:$0xff]
        %v2221 = vld [vmem:[%s407 + $0x60] sm:$0xff]
        %v2222 = vld [vmem:[%s407 + $0x68] sm:$0xff]
        %v2223 = vld [vmem:[%s407 + $0x70] sm:$0xff]
        %v2224 = vld [vmem:[%s407 + $0x78] sm:$0xff]
        %v2225 = vld [vmem:[%s407 + $0x80] sm:$0xff]
        %v2226 = vld [vmem:[%s407 + $0x88] sm:$0xff]
        %v2227 = vld [vmem:[%s407 + $0x90] sm:$0xff]
        %v2228 = vld [vmem:[%s407 + $0x98] sm:$0xff]
        %v2229 = vld [vmem:[%s407 + $0xa0] sm:$0xff]
        %v2230 = vld [vmem:[%s407 + $0xa8] sm:$0xff]
        %v2231 = vld [vmem:[%s407 + $0xb0] sm:$0xff]
        %v2232 = vld [vmem:[%s407 + $0xb8] sm:$0xff]
        %v2233 = vld [vmem:[%s407 + $0xc0] sm:$0xff]
        %v2234 = vld [vmem:[%s407 + $0xc8] sm:$0xff]
        %v2235 = vld [vmem:[%s407 + $0xd0] sm:$0xff]
        %v2236 = vld [vmem:[%s407 + $0xd8] sm:$0xff]
        %v2237 = vld [vmem:[%s407 + $0xe0] sm:$0xff]
        %v2238 = vld [vmem:[%s407 + $0xe8] sm:$0xff]
        %v2239 = vld [vmem:[%s407 + $0xf0] sm:$0xff]
        %v2240 = vld [vmem:[%s407 + $0xf8] sm:$0xff]
        %v2241 = vpack.c.bf16 %v2210, %v2209
        %v2242 = vpack.c.bf16 %v2212, %v2211
        %v2243 = vpack.c.bf16 %v2214, %v2213
        %v2244 = vpack.c.bf16 %v2216, %v2215
        %v2245 = vpack.c.bf16 %v2218, %v2217
        %v2246 = vpack.c.bf16 %v2220, %v2219
        %v2247 = vpack.c.bf16 %v2222, %v2221
        %v2248 = vpack.c.bf16 %v2224, %v2223
        %v2249 = vpack.c.bf16 %v2226, %v2225
        %v2250 = vpack.c.bf16 %v2228, %v2227
        %v2251 = vpack.c.bf16 %v2230, %v2229
        %v2252 = vpack.c.bf16 %v2232, %v2231
        %v2253 = vpack.c.bf16 %v2234, %v2233
        %v2254 = vpack.c.bf16 %v2236, %v2235
        %v2255 = vpack.c.bf16 %v2238, %v2237
        %v2256 = vpack.c.bf16 %v2240, %v2239
        %v2257 = vlaneseq
        %v2258 = vshrl.u32 %v2257, 7
        %v2259 = vadd.s32 %v2258, 8
        %v2260 = vadd.s32 %v2258, 16
        %v2261 = vadd.s32 %v2258, 24
        %v2262 = vadd.s32 %v2258, 32
        %v2263 = vadd.s32 %v2258, 40
        %v2264 = vadd.s32 %v2258, 48
        %v2265 = vadd.s32 %v2258, 56
        %v2266 = vadd.s32 %v2258, 64
        %v2267 = vadd.s32 %v2258, 72
        %v2268 = vadd.s32 %v2258, 80
        %v2269 = vadd.s32 %v2258, 88
        %v2270 = vadd.s32 %v2258, 96
        %v2271 = vadd.s32 %v2258, 104
        %v2272 = vadd.s32 %v2258, 112
        %v2273 = vadd.s32 %v2258, 120
        %v2274 = vadd.s32 %v2258, 128
        %v2275 = vadd.s32 %v2258, 136
        %v2276 = vadd.s32 %v2258, 144
        %v2277 = vadd.s32 %v2258, 152
        %v2278 = vadd.s32 %v2258, 160
        %v2279 = vadd.s32 %v2258, 168
        %v2280 = vadd.s32 %v2258, 176
        %v2281 = vadd.s32 %v2258, 184
        %v2282 = vadd.s32 %v2258, 192
        %v2283 = vadd.s32 %v2258, 200
        %v2284 = vadd.s32 %v2258, 208
        %v2285 = vadd.s32 %v2258, 216
        %v2286 = vadd.s32 %v2258, 224
        %v2287 = vadd.s32 %v2258, 232
        %v2288 = vadd.s32 %v2258, 240
        %v2289 = vadd.s32 %v2258, 248
        %s2290 = smul.u32 %s35, 256
        %v2291 = vstv %s2290
        %v2292 = vadd.s32 %v2258, %v2291
        %v2293 = vadd.s32 %v2259, %v2291
        %v2294 = vadd.s32 %v2260, %v2291
        %v2295 = vadd.s32 %v2261, %v2291
        %v2296 = vadd.s32 %v2262, %v2291
        %v2297 = vadd.s32 %v2263, %v2291
        %v2298 = vadd.s32 %v2264, %v2291
        %v2299 = vadd.s32 %v2265, %v2291
        %v2300 = vadd.s32 %v2266, %v2291
        %v2301 = vadd.s32 %v2267, %v2291
        %v2302 = vadd.s32 %v2268, %v2291
        %v2303 = vadd.s32 %v2269, %v2291
        %v2304 = vadd.s32 %v2270, %v2291
        %v2305 = vadd.s32 %v2271, %v2291
        %v2306 = vadd.s32 %v2272, %v2291
        %v2307 = vadd.s32 %v2273, %v2291
        %v2308 = vadd.s32 %v2274, %v2291
        %v2309 = vadd.s32 %v2275, %v2291
        %v2310 = vadd.s32 %v2276, %v2291
        %v2311 = vadd.s32 %v2277, %v2291
        %v2312 = vadd.s32 %v2278, %v2291
        %v2313 = vadd.s32 %v2279, %v2291
        %v2314 = vadd.s32 %v2280, %v2291
        %v2315 = vadd.s32 %v2281, %v2291
        %v2316 = vadd.s32 %v2282, %v2291
        %v2317 = vadd.s32 %v2283, %v2291
        %v2318 = vadd.s32 %v2284, %v2291
        %v2319 = vadd.s32 %v2285, %v2291
        %v2320 = vadd.s32 %v2286, %v2291
        %v2321 = vadd.s32 %v2287, %v2291
        %v2322 = vadd.s32 %v2288, %v2291
        %v2323 = vadd.s32 %v2289, %v2291
        %v2324 = vlaneseq
        %v2325 = vand.u32 %v2324, 127
        %v2326 = vadd.s32 %v2325, 128
        %vm2327 = vcmp.ge.s32.totalorder %v2292, %v2325
        %vm2328 = vcmp.ge.s32.totalorder %v2292, %v2326
        %vm2329 = vcmp.ge.s32.totalorder %v2293, %v2325
        %vm2330 = vcmp.ge.s32.totalorder %v2293, %v2326
        %vm2331 = vcmp.ge.s32.totalorder %v2294, %v2325
        %vm2332 = vcmp.ge.s32.totalorder %v2294, %v2326
        %vm2333 = vcmp.ge.s32.totalorder %v2295, %v2325
        %vm2334 = vcmp.ge.s32.totalorder %v2295, %v2326
        %vm2335 = vcmp.ge.s32.totalorder %v2296, %v2325
        %vm2336 = vcmp.ge.s32.totalorder %v2296, %v2326
        %vm2337 = vcmp.ge.s32.totalorder %v2297, %v2325
        %vm2338 = vcmp.ge.s32.totalorder %v2297, %v2326
        %vm2339 = vcmp.ge.s32.totalorder %v2298, %v2325
        %vm2340 = vcmp.ge.s32.totalorder %v2298, %v2326
        %vm2341 = vcmp.ge.s32.totalorder %v2299, %v2325
        %vm2342 = vcmp.ge.s32.totalorder %v2299, %v2326
        %vm2343 = vcmp.ge.s32.totalorder %v2300, %v2325
        %vm2344 = vcmp.ge.s32.totalorder %v2300, %v2326
        %vm2345 = vcmp.ge.s32.totalorder %v2301, %v2325
        %vm2346 = vcmp.ge.s32.totalorder %v2301, %v2326
        %vm2347 = vcmp.ge.s32.totalorder %v2302, %v2325
        %vm2348 = vcmp.ge.s32.totalorder %v2302, %v2326
        %vm2349 = vcmp.ge.s32.totalorder %v2303, %v2325
        %vm2350 = vcmp.ge.s32.totalorder %v2303, %v2326
        %vm2351 = vcmp.ge.s32.totalorder %v2304, %v2325
        %vm2352 = vcmp.ge.s32.totalorder %v2304, %v2326
        %vm2353 = vcmp.ge.s32.totalorder %v2305, %v2325
        %vm2354 = vcmp.ge.s32.totalorder %v2305, %v2326
        %vm2355 = vcmp.ge.s32.totalorder %v2306, %v2325
        %vm2356 = vcmp.ge.s32.totalorder %v2306, %v2326
        %vm2357 = vcmp.ge.s32.totalorder %v2307, %v2325
        %vm2358 = vcmp.ge.s32.totalorder %v2307, %v2326
        %vm2359 = vcmp.ge.s32.totalorder %v2308, %v2325
        %vm2360 = vcmp.ge.s32.totalorder %v2308, %v2326
        %vm2361 = vcmp.ge.s32.totalorder %v2309, %v2325
        %vm2362 = vcmp.ge.s32.totalorder %v2309, %v2326
        %vm2363 = vcmp.ge.s32.totalorder %v2310, %v2325
        %vm2364 = vcmp.ge.s32.totalorder %v2310, %v2326
        %vm2365 = vcmp.ge.s32.totalorder %v2311, %v2325
        %vm2366 = vcmp.ge.s32.totalorder %v2311, %v2326
        %vm2367 = vcmp.ge.s32.totalorder %v2312, %v2325
        %vm2368 = vcmp.ge.s32.totalorder %v2312, %v2326
        %vm2369 = vcmp.ge.s32.totalorder %v2313, %v2325
        %vm2370 = vcmp.ge.s32.totalorder %v2313, %v2326
        %vm2371 = vcmp.ge.s32.totalorder %v2314, %v2325
        %vm2372 = vcmp.ge.s32.totalorder %v2314, %v2326
        %vm2373 = vcmp.ge.s32.totalorder %v2315, %v2325
        %vm2374 = vcmp.ge.s32.totalorder %v2315, %v2326
        %vm2375 = vcmp.ge.s32.totalorder %v2316, %v2325
        %vm2376 = vcmp.ge.s32.totalorder %v2316, %v2326
        %vm2377 = vcmp.ge.s32.totalorder %v2317, %v2325
        %vm2378 = vcmp.ge.s32.totalorder %v2317, %v2326
        %vm2379 = vcmp.ge.s32.totalorder %v2318, %v2325
        %vm2380 = vcmp.ge.s32.totalorder %v2318, %v2326
        %vm2381 = vcmp.ge.s32.totalorder %v2319, %v2325
        %vm2382 = vcmp.ge.s32.totalorder %v2319, %v2326
        %vm2383 = vcmp.ge.s32.totalorder %v2320, %v2325
        %vm2384 = vcmp.ge.s32.totalorder %v2320, %v2326
        %vm2385 = vcmp.ge.s32.totalorder %v2321, %v2325
        %vm2386 = vcmp.ge.s32.totalorder %v2321, %v2326
        %vm2387 = vcmp.ge.s32.totalorder %v2322, %v2325
        %vm2388 = vcmp.ge.s32.totalorder %v2322, %v2326
        %vm2389 = vcmp.ge.s32.totalorder %v2323, %v2325
        %vm2390 = vcmp.ge.s32.totalorder %v2323, %v2326
        %v2391 = vsel %vm2327, 0.0, -2.3819763e+38
        %v2392 = vsel %vm2328, 0.0, -2.3819763e+38
        %v2393 = vsel %vm2329, 0.0, -2.3819763e+38
        %v2394 = vsel %vm2330, 0.0, -2.3819763e+38
        %v2395 = vsel %vm2331, 0.0, -2.3819763e+38
        %v2396 = vsel %vm2332, 0.0, -2.3819763e+38
        %v2397 = vsel %vm2333, 0.0, -2.3819763e+38
        %v2398 = vsel %vm2334, 0.0, -2.3819763e+38
        %v2399 = vsel %vm2335, 0.0, -2.3819763e+38
        %v2400 = vsel %vm2336, 0.0, -2.3819763e+38
        %v2401 = vsel %vm2337, 0.0, -2.3819763e+38
        %v2402 = vsel %vm2338, 0.0, -2.3819763e+38
        %v2403 = vsel %vm2339, 0.0, -2.3819763e+38
        %v2404 = vsel %vm2340, 0.0, -2.3819763e+38
        %v2405 = vsel %vm2341, 0.0, -2.3819763e+38
        %v2406 = vsel %vm2342, 0.0, -2.3819763e+38
        %v2407 = vsel %vm2343, 0.0, -2.3819763e+38
        %v2408 = vsel %vm2344, 0.0, -2.3819763e+38
        %v2409 = vsel %vm2345, 0.0, -2.3819763e+38
        %v2410 = vsel %vm2346, 0.0, -2.3819763e+38
        %v2411 = vsel %vm2347, 0.0, -2.3819763e+38
        %v2412 = vsel %vm2348, 0.0, -2.3819763e+38
        %v2413 = vsel %vm2349, 0.0, -2.3819763e+38
        %v2414 = vsel %vm2350, 0.0, -2.3819763e+38
        %v2415 = vsel %vm2351, 0.0, -2.3819763e+38
        %v2416 = vsel %vm2352, 0.0, -2.3819763e+38
        %v2417 = vsel %vm2353, 0.0, -2.3819763e+38
        %v2418 = vsel %vm2354, 0.0, -2.3819763e+38
        %v2419 = vsel %vm2355, 0.0, -2.3819763e+38
        %v2420 = vsel %vm2356, 0.0, -2.3819763e+38
        %v2421 = vsel %vm2357, 0.0, -2.3819763e+38
        %v2422 = vsel %vm2358, 0.0, -2.3819763e+38
        %v2423 = vsel %vm2359, 0.0, -2.3819763e+38
        %v2424 = vsel %vm2360, 0.0, -2.3819763e+38
        %v2425 = vsel %vm2361, 0.0, -2.3819763e+38
        %v2426 = vsel %vm2362, 0.0, -2.3819763e+38
        %v2427 = vsel %vm2363, 0.0, -2.3819763e+38
        %v2428 = vsel %vm2364, 0.0, -2.3819763e+38
        %v2429 = vsel %vm2365, 0.0, -2.3819763e+38
        %v2430 = vsel %vm2366, 0.0, -2.3819763e+38
        %v2431 = vsel %vm2367, 0.0, -2.3819763e+38
        %v2432 = vsel %vm2368, 0.0, -2.3819763e+38
        %v2433 = vsel %vm2369, 0.0, -2.3819763e+38
        %v2434 = vsel %vm2370, 0.0, -2.3819763e+38
        %v2435 = vsel %vm2371, 0.0, -2.3819763e+38
        %v2436 = vsel %vm2372, 0.0, -2.3819763e+38
        %v2437 = vsel %vm2373, 0.0, -2.3819763e+38
        %v2438 = vsel %vm2374, 0.0, -2.3819763e+38
        %v2439 = vsel %vm2375, 0.0, -2.3819763e+38
        %v2440 = vsel %vm2376, 0.0, -2.3819763e+38
        %v2441 = vsel %vm2377, 0.0, -2.3819763e+38
        %v2442 = vsel %vm2378, 0.0, -2.3819763e+38
        %v2443 = vsel %vm2379, 0.0, -2.3819763e+38
        %v2444 = vsel %vm2380, 0.0, -2.3819763e+38
        %v2445 = vsel %vm2381, 0.0, -2.3819763e+38
        %v2446 = vsel %vm2382, 0.0, -2.3819763e+38
        %v2447 = vsel %vm2383, 0.0, -2.3819763e+38
        %v2448 = vsel %vm2384, 0.0, -2.3819763e+38
        %v2449 = vsel %vm2385, 0.0, -2.3819763e+38
        %v2450 = vsel %vm2386, 0.0, -2.3819763e+38
        %v2451 = vsel %vm2387, 0.0, -2.3819763e+38
        %v2452 = vsel %vm2388, 0.0, -2.3819763e+38
        %v2453 = vsel %vm2389, 0.0, -2.3819763e+38
        %v2454 = vsel %vm2390, 0.0, -2.3819763e+38
        %v2455 = vld [vmem:[#allocation10] sm:$0xff]
        %v2456 = vld [vmem:[#allocation10 + $0x8] sm:$0xff]
        %v2457 = vld [vmem:[#allocation10 + $0x10] sm:$0xff]
        %v2458 = vld [vmem:[#allocation10 + $0x18] sm:$0xff]
        %v2459 = vld [vmem:[#allocation10 + $0x20] sm:$0xff]
        %v2460 = vld [vmem:[#allocation10 + $0x28] sm:$0xff]
        %v2461 = vld [vmem:[#allocation10 + $0x30] sm:$0xff]
        %v2462 = vld [vmem:[#allocation10 + $0x38] sm:$0xff]
        %v2463 = vld [vmem:[#allocation10 + $0x40] sm:$0xff]
        %v2464 = vld [vmem:[#allocation10 + $0x48] sm:$0xff]
        %v2465 = vld [vmem:[#allocation10 + $0x50] sm:$0xff]
        %v2466 = vld [vmem:[#allocation10 + $0x58] sm:$0xff]
        %v2467 = vld [vmem:[#allocation10 + $0x60] sm:$0xff]
        %v2468 = vld [vmem:[#allocation10 + $0x68] sm:$0xff]
        %v2469 = vld [vmem:[#allocation10 + $0x70] sm:$0xff]
        %v2470 = vld [vmem:[#allocation10 + $0x78] sm:$0xff]
        %v2471 = vpack.c.bf16 %v2456, %v2455
        %v2472 = vpack.c.bf16 %v2458, %v2457
        %v2473 = vpack.c.bf16 %v2460, %v2459
        %v2474 = vpack.c.bf16 %v2462, %v2461
        %v2475 = vpack.c.bf16 %v2464, %v2463
        %v2476 = vpack.c.bf16 %v2466, %v2465
        %v2477 = vpack.c.bf16 %v2468, %v2467
        %v2478 = vpack.c.bf16 %v2470, %v2469
        %2479 = vmatpush.bf16.msra.mxu0 %v2478
        %2480 = vmatpush.bf16.msra.mxu0 %v2477
        %2481 = vmatpush.bf16.msra.mxu0 %v2476
        %2482 = vmatpush.bf16.msra.mxu0 %v2475
        %2483 = vmatpush.bf16.msra.mxu0 %v2474
        %2484 = vmatpush.bf16.msra.mxu0 %v2473
        %2485 = vmatpush.bf16.msra.mxu0 %v2472
        %2486 = vmatpush.bf16.msra.mxu0 %v2471
        %2487 = vmatmul.bf16.gmra.mxu0 %v2241
        %v2488 = vpop.f32.mrf.mxu0
        %v2489 = vadd.f32 0.0, %v2488
        %v2490 = vpop.f32.mrf.mxu0
        %v2491 = vadd.f32 0.0, %v2490
        %2492 = vmatmul.bf16.gmra.mxu0 %v2242
        %v2493 = vpop.f32.mrf.mxu0
        %v2494 = vadd.f32 0.0, %v2493
        %v2495 = vpop.f32.mrf.mxu0
        %v2496 = vadd.f32 0.0, %v2495
        %2497 = vmatmul.bf16.gmra.mxu0 %v2243
        %v2498 = vpop.f32.mrf.mxu0
        %v2499 = vadd.f32 0.0, %v2498
        %v2500 = vpop.f32.mrf.mxu0
        %v2501 = vadd.f32 0.0, %v2500
        %2502 = vmatmul.bf16.gmra.mxu0 %v2244
        %v2503 = vpop.f32.mrf.mxu0
        %v2504 = vadd.f32 0.0, %v2503
        %v2505 = vpop.f32.mrf.mxu0
        %v2506 = vadd.f32 0.0, %v2505
        %2507 = vmatmul.bf16.gmra.mxu0 %v2245
        %v2508 = vpop.f32.mrf.mxu0
        %v2509 = vadd.f32 0.0, %v2508
        %v2510 = vpop.f32.mrf.mxu0
        %v2511 = vadd.f32 0.0, %v2510
        %2512 = vmatmul.bf16.gmra.mxu0 %v2246
        %v2513 = vpop.f32.mrf.mxu0
        %v2514 = vadd.f32 0.0, %v2513
        %v2515 = vpop.f32.mrf.mxu0
        %v2516 = vadd.f32 0.0, %v2515
        %2517 = vmatmul.bf16.gmra.mxu0 %v2247
        %v2518 = vpop.f32.mrf.mxu0
        %v2519 = vadd.f32 0.0, %v2518
        %v2520 = vpop.f32.mrf.mxu0
        %v2521 = vadd.f32 0.0, %v2520
        %2522 = vmatmul.bf16.gmra.mxu0 %v2248
        %v2523 = vpop.f32.mrf.mxu0
        %v2524 = vadd.f32 0.0, %v2523
        %v2525 = vpop.f32.mrf.mxu0
        %v2526 = vadd.f32 0.0, %v2525
        %2527 = vmatmul.bf16.gmra.mxu0 %v2249
        %v2528 = vpop.f32.mrf.mxu0
        %v2529 = vadd.f32 0.0, %v2528
        %v2530 = vpop.f32.mrf.mxu0
        %v2531 = vadd.f32 0.0, %v2530
        %2532 = vmatmul.bf16.gmra.mxu0 %v2250
        %v2533 = vpop.f32.mrf.mxu0
        %v2534 = vadd.f32 0.0, %v2533
        %v2535 = vpop.f32.mrf.mxu0
        %v2536 = vadd.f32 0.0, %v2535
        %2537 = vmatmul.bf16.gmra.mxu0 %v2251
        %v2538 = vpop.f32.mrf.mxu0
        %v2539 = vadd.f32 0.0, %v2538
        %v2540 = vpop.f32.mrf.mxu0
        %v2541 = vadd.f32 0.0, %v2540
        %2542 = vmatmul.bf16.gmra.mxu0 %v2252
        %v2543 = vpop.f32.mrf.mxu0
        %v2544 = vadd.f32 0.0, %v2543
        %v2545 = vpop.f32.mrf.mxu0
        %v2546 = vadd.f32 0.0, %v2545
        %2547 = vmatmul.bf16.gmra.mxu0 %v2253
        %v2548 = vpop.f32.mrf.mxu0
        %v2549 = vadd.f32 0.0, %v2548
        %v2550 = vpop.f32.mrf.mxu0
        %v2551 = vadd.f32 0.0, %v2550
        %2552 = vmatmul.bf16.gmra.mxu0 %v2254
        %v2553 = vpop.f32.mrf.mxu0
        %v2554 = vadd.f32 0.0, %v2553
        %v2555 = vpop.f32.mrf.mxu0
        %v2556 = vadd.f32 0.0, %v2555
        %2557 = vmatmul.bf16.gmra.mxu0 %v2255
        %v2558 = vpop.f32.mrf.mxu0
        %v2559 = vadd.f32 0.0, %v2558
        %v2560 = vpop.f32.mrf.mxu0
        %v2561 = vadd.f32 0.0, %v2560
        %2562 = vmatmul.bf16.gmra.mxu0 %v2256
        %v2563 = vpop.f32.mrf.mxu0
        %v2564 = vadd.f32 0.0, %v2563
        %v2565 = vpop.f32.mrf.mxu0
        %v2566 = vadd.f32 0.0, %v2565
        %2567 = vdwg.mxu0
        %v2568 = vmul.f32 %v2489, 0.17677669
        %v2569 = vmul.f32 %v2491, 0.17677669
        %v2570 = vmul.f32 %v2494, 0.17677669
        %v2571 = vmul.f32 %v2496, 0.17677669
        %v2572 = vmul.f32 %v2499, 0.17677669
        %v2573 = vmul.f32 %v2501, 0.17677669
        %v2574 = vmul.f32 %v2504, 0.17677669
        %v2575 = vmul.f32 %v2506, 0.17677669
        %v2576 = vmul.f32 %v2509, 0.17677669
        %v2577 = vmul.f32 %v2511, 0.17677669
        %v2578 = vmul.f32 %v2514, 0.17677669
        %v2579 = vmul.f32 %v2516, 0.17677669
        %v2580 = vmul.f32 %v2519, 0.17677669
        %v2581 = vmul.f32 %v2521, 0.17677669
        %v2582 = vmul.f32 %v2524, 0.17677669
        %v2583 = vmul.f32 %v2526, 0.17677669
        %v2584 = vmul.f32 %v2529, 0.17677669
        %v2585 = vmul.f32 %v2531, 0.17677669
        %v2586 = vmul.f32 %v2534, 0.17677669
        %v2587 = vmul.f32 %v2536, 0.17677669
        %v2588 = vmul.f32 %v2539, 0.17677669
        %v2589 = vmul.f32 %v2541, 0.17677669
        %v2590 = vmul.f32 %v2544, 0.17677669
        %v2591 = vmul.f32 %v2546, 0.17677669
        %v2592 = vmul.f32 %v2549, 0.17677669
        %v2593 = vmul.f32 %v2551, 0.17677669
        %v2594 = vmul.f32 %v2554, 0.17677669
        %v2595 = vmul.f32 %v2556, 0.17677669
        %v2596 = vmul.f32 %v2559, 0.17677669
        %v2597 = vmul.f32 %v2561, 0.17677669
        %v2598 = vmul.f32 %v2564, 0.17677669
        %v2599 = vmul.f32 %v2566, 0.17677669
        %v2600 = vpack.c.bf16 %v2569, %v2568
        %v2601 = vpack.c.bf16 %v2571, %v2570
        %v2602 = vpack.c.bf16 %v2573, %v2572
        %v2603 = vpack.c.bf16 %v2575, %v2574
        %v2604 = vpack.c.bf16 %v2577, %v2576
        %v2605 = vpack.c.bf16 %v2579, %v2578
        %v2606 = vpack.c.bf16 %v2581, %v2580
        %v2607 = vpack.c.bf16 %v2583, %v2582
        %v2608 = vpack.c.bf16 %v2585, %v2584
        %v2609 = vpack.c.bf16 %v2587, %v2586
        %v2610 = vpack.c.bf16 %v2589, %v2588
        %v2611 = vpack.c.bf16 %v2591, %v2590
        %v2612 = vpack.c.bf16 %v2593, %v2592
        %v2613 = vpack.c.bf16 %v2595, %v2594
        %v2614 = vpack.c.bf16 %v2597, %v2596
        %v2615 = vpack.c.bf16 %v2599, %v2598
        %v2616 = vld [vmem:[#allocation2] sm:$0xf]
        %v2617 = vld [vmem:[#allocation2 + $0x4] sm:$0xf]
        %v2618 = vld [vmem:[#allocation2 + $0x8] sm:$0xf]
        %v2619 = vld [vmem:[#allocation2 + $0xc] sm:$0xf]
        %v2620 = vld [vmem:[#allocation2 + $0x10] sm:$0xf]
        %v2621 = vld [vmem:[#allocation2 + $0x14] sm:$0xf]
        %v2622 = vld [vmem:[#allocation2 + $0x18] sm:$0xf]
        %v2623 = vld [vmem:[#allocation2 + $0x1c] sm:$0xf]
        %v2624 = vld [vmem:[#allocation2 + $0x20] sm:$0xf]
        %v2625 = vld [vmem:[#allocation2 + $0x24] sm:$0xf]
        %v2626 = vld [vmem:[#allocation2 + $0x28] sm:$0xf]
        %v2627 = vld [vmem:[#allocation2 + $0x2c] sm:$0xf]
        %v2628 = vld [vmem:[#allocation2 + $0x30] sm:$0xf]
        %v2629 = vld [vmem:[#allocation2 + $0x34] sm:$0xf]
        %v2630 = vld [vmem:[#allocation2 + $0x38] sm:$0xf]
        %v2631 = vld [vmem:[#allocation2 + $0x3c] sm:$0xf]
        %v2632 = vld [vmem:[#allocation2 + $0x40] sm:$0xf]
        %v2633 = vld [vmem:[#allocation2 + $0x44] sm:$0xf]
        %v2634 = vld [vmem:[#allocation2 + $0x48] sm:$0xf]
        %v2635 = vld [vmem:[#allocation2 + $0x4c] sm:$0xf]
        %v2636 = vld [vmem:[#allocation2 + $0x50] sm:$0xf]
        %v2637 = vld [vmem:[#allocation2 + $0x54] sm:$0xf]
        %v2638 = vld [vmem:[#allocation2 + $0x58] sm:$0xf]
        %v2639 = vld [vmem:[#allocation2 + $0x5c] sm:$0xf]
        %v2640 = vld [vmem:[#allocation2 + $0x60] sm:$0xf]
        %v2641 = vld [vmem:[#allocation2 + $0x64] sm:$0xf]
        %v2642 = vld [vmem:[#allocation2 + $0x68] sm:$0xf]
        %v2643 = vld [vmem:[#allocation2 + $0x6c] sm:$0xf]
        %v2644 = vld [vmem:[#allocation2 + $0x70] sm:$0xf]
        %v2645 = vld [vmem:[#allocation2 + $0x74] sm:$0xf]
        %v2646 = vld [vmem:[#allocation2 + $0x78] sm:$0xf]
        %v2647 = vld [vmem:[#allocation2 + $0x7c] sm:$0xf]
        %v2648 = vld [vmem:[#allocation3] sm:$0xf]
        %v2649 = vld [vmem:[#allocation3 + $0x4] sm:$0xf]
        %v2650 = vld [vmem:[#allocation3 + $0x8] sm:$0xf]
        %v2651 = vld [vmem:[#allocation3 + $0xc] sm:$0xf]
        %v2652 = vld [vmem:[#allocation3 + $0x10] sm:$0xf]
        %v2653 = vld [vmem:[#allocation3 + $0x14] sm:$0xf]
        %v2654 = vld [vmem:[#allocation3 + $0x18] sm:$0xf]
        %v2655 = vld [vmem:[#allocation3 + $0x1c] sm:$0xf]
        %v2656 = vld [vmem:[#allocation3 + $0x20] sm:$0xf]
        %v2657 = vld [vmem:[#allocation3 + $0x24] sm:$0xf]
        %v2658 = vld [vmem:[#allocation3 + $0x28] sm:$0xf]
        %v2659 = vld [vmem:[#allocation3 + $0x2c] sm:$0xf]
        %v2660 = vld [vmem:[#allocation3 + $0x30] sm:$0xf]
        %v2661 = vld [vmem:[#allocation3 + $0x34] sm:$0xf]
        %v2662 = vld [vmem:[#allocation3 + $0x38] sm:$0xf]
        %v2663 = vld [vmem:[#allocation3 + $0x3c] sm:$0xf]
        %v2664 = vld [vmem:[#allocation3 + $0x40] sm:$0xf]
        %v2665 = vld [vmem:[#allocation3 + $0x44] sm:$0xf]
        %v2666 = vld [vmem:[#allocation3 + $0x48] sm:$0xf]
        %v2667 = vld [vmem:[#allocation3 + $0x4c] sm:$0xf]
        %v2668 = vld [vmem:[#allocation3 + $0x50] sm:$0xf]
        %v2669 = vld [vmem:[#allocation3 + $0x54] sm:$0xf]
        %v2670 = vld [vmem:[#allocation3 + $0x58] sm:$0xf]
        %v2671 = vld [vmem:[#allocation3 + $0x5c] sm:$0xf]
        %v2672 = vld [vmem:[#allocation3 + $0x60] sm:$0xf]
        %v2673 = vld [vmem:[#allocation3 + $0x64] sm:$0xf]
        %v2674 = vld [vmem:[#allocation3 + $0x68] sm:$0xf]
        %v2675 = vld [vmem:[#allocation3 + $0x6c] sm:$0xf]
        %v2676 = vld [vmem:[#allocation3 + $0x70] sm:$0xf]
        %v2677 = vld [vmem:[#allocation3 + $0x74] sm:$0xf]
        %v2678 = vld [vmem:[#allocation3 + $0x78] sm:$0xf]
        %v2679 = vld [vmem:[#allocation3 + $0x7c] sm:$0xf]
        %v2712 = vunpack.c.l.b16 %v2616
        %v2713 = vunpack.c.l.b16 %v2617
        %v2714 = vunpack.c.l.b16 %v2618
        %v2715 = vunpack.c.l.b16 %v2619
        %v2716 = vunpack.c.l.b16 %v2620
        %v2717 = vunpack.c.l.b16 %v2621
        %v2718 = vunpack.c.l.b16 %v2622
        %v2719 = vunpack.c.l.b16 %v2623
        %v2720 = vunpack.c.l.b16 %v2624
        %v2721 = vunpack.c.l.b16 %v2625
        %v2722 = vunpack.c.l.b16 %v2626
        %v2723 = vunpack.c.l.b16 %v2627
        %v2724 = vunpack.c.l.b16 %v2628
        %v2725 = vunpack.c.l.b16 %v2629
        %v2726 = vunpack.c.l.b16 %v2630
        %v2727 = vunpack.c.l.b16 %v2631
        %v2728 = vunpack.c.l.b16 %v2632
        %v2729 = vunpack.c.l.b16 %v2633
        %v2730 = vunpack.c.l.b16 %v2634
        %v2731 = vunpack.c.l.b16 %v2635
        %v2732 = vunpack.c.l.b16 %v2636
        %v2733 = vunpack.c.l.b16 %v2637
        %v2734 = vunpack.c.l.b16 %v2638
        %v2735 = vunpack.c.l.b16 %v2639
        %v2736 = vunpack.c.l.b16 %v2640
        %v2737 = vunpack.c.l.b16 %v2641
        %v2738 = vunpack.c.l.b16 %v2642
        %v2739 = vunpack.c.l.b16 %v2643
        %v2740 = vunpack.c.l.b16 %v2644
        %v2741 = vunpack.c.l.b16 %v2645
        %v2742 = vunpack.c.l.b16 %v2646
        %v2743 = vunpack.c.l.b16 %v2647
        %v2744 = vpack.c.b16 %v2713, %v2712
        %v2745 = vpack.c.b16 %v2715, %v2714
        %v2746 = vpack.c.b16 %v2717, %v2716
        %v2747 = vpack.c.b16 %v2719, %v2718
        %v2748 = vpack.c.b16 %v2721, %v2720
        %v2749 = vpack.c.b16 %v2723, %v2722
        %v2750 = vpack.c.b16 %v2725, %v2724
        %v2751 = vpack.c.b16 %v2727, %v2726
        %v2752 = vpack.c.b16 %v2729, %v2728
        %v2753 = vpack.c.b16 %v2731, %v2730
        %v2754 = vpack.c.b16 %v2733, %v2732
        %v2755 = vpack.c.b16 %v2735, %v2734
        %v2756 = vpack.c.b16 %v2737, %v2736
        %v2757 = vpack.c.b16 %v2739, %v2738
        %v2758 = vpack.c.b16 %v2741, %v2740
        %v2759 = vpack.c.b16 %v2743, %v2742
        %vm2760 = vcmask 261120
        %v2762 = vsel %vm2760, %v2600, 0
        %v2765 = vsel %vm2760, %v2601, 0
        %v2768 = vsel %vm2760, %v2602, 0
        %v2771 = vsel %vm2760, %v2603, 0
        %v2774 = vsel %vm2760, %v2604, 0
        %v2777 = vsel %vm2760, %v2605, 0
        %v2780 = vsel %vm2760, %v2606, 0
        %v2783 = vsel %vm2760, %v2607, 0
        %v2786 = vsel %vm2760, %v2608, 0
        %v2789 = vsel %vm2760, %v2609, 0
        %v2792 = vsel %vm2760, %v2610, 0
        %v2795 = vsel %vm2760, %v2611, 0
        %v2798 = vsel %vm2760, %v2612, 0
        %v2801 = vsel %vm2760, %v2613, 0
        %v2804 = vsel %vm2760, %v2614, 0
        %v2807 = vsel %vm2760, %v2615, 0
        %v2810 = vsel %vm2760, %v2744, 0
        %v2813 = vsel %vm2760, %v2745, 0
        %v2816 = vsel %vm2760, %v2746, 0
        %v2819 = vsel %vm2760, %v2747, 0
        %v2822 = vsel %vm2760, %v2748, 0
        %v2825 = vsel %vm2760, %v2749, 0
        %v2828 = vsel %vm2760, %v2750, 0
        %v2831 = vsel %vm2760, %v2751, 0
        %v2834 = vsel %vm2760, %v2752, 0
        %v2837 = vsel %vm2760, %v2753, 0
        %v2840 = vsel %vm2760, %v2754, 0
        %v2843 = vsel %vm2760, %v2755, 0
        %v2846 = vsel %vm2760, %v2756, 0
        %v2849 = vsel %vm2760, %v2757, 0
        %v2852 = vsel %vm2760, %v2758, 0
        %v2855 = vsel %vm2760, %v2759, 0
        %2857 = vmatpush.bf16.xpose.msra.mxu0 %v2831
        %2858 = vmatpush.bf16.xpose.msra.mxu0 %v2828
        %2859 = vmatpush.bf16.xpose.msra.mxu0 %v2825
        %2860 = vmatpush.bf16.xpose.msra.mxu0 %v2822
        %2861 = vmatpush.bf16.xpose.msra.mxu0 %v2819
        %2862 = vmatpush.bf16.xpose.msra.mxu0 %v2816
        %2863 = vmatpush.bf16.xpose.msra.mxu0 %v2813
        %2864 = vmatpush.bf16.xpose.msra.mxu0 %v2810
        %2865 = vmatmul.bf16.gmra.mxu0 %v2762
        %v2866 = vpop.f32.mrf.mxu0
        %v2867 = vadd.f32 %v2391, %v2866
        %v2868 = vpop.f32.mrf.mxu0
        %v2869 = vadd.f32 %v2393, %v2868
        %2870 = vmatmul.bf16.gmra.mxu0 %v2765
        %v2871 = vpop.f32.mrf.mxu0
        %v2872 = vadd.f32 %v2395, %v2871
        %v2873 = vpop.f32.mrf.mxu0
        %v2874 = vadd.f32 %v2397, %v2873
        %2875 = vmatmul.bf16.gmra.mxu0 %v2768
        %v2876 = vpop.f32.mrf.mxu0
        %v2877 = vadd.f32 %v2399, %v2876
        %v2878 = vpop.f32.mrf.mxu0
        %v2879 = vadd.f32 %v2401, %v2878
        %2880 = vmatmul.bf16.gmra.mxu0 %v2771
        %v2881 = vpop.f32.mrf.mxu0
        %v2882 = vadd.f32 %v2403, %v2881
        %v2883 = vpop.f32.mrf.mxu0
        %v2884 = vadd.f32 %v2405, %v2883
        %2885 = vmatmul.bf16.gmra.mxu0 %v2774
        %v2886 = vpop.f32.mrf.mxu0
        %v2887 = vadd.f32 %v2407, %v2886
        %v2888 = vpop.f32.mrf.mxu0
        %v2889 = vadd.f32 %v2409, %v2888
        %2890 = vmatmul.bf16.gmra.mxu0 %v2777
        %v2891 = vpop.f32.mrf.mxu0
        %v2892 = vadd.f32 %v2411, %v2891
        %v2893 = vpop.f32.mrf.mxu0
        %v2894 = vadd.f32 %v2413, %v2893
        %2895 = vmatmul.bf16.gmra.mxu0 %v2780
        %v2896 = vpop.f32.mrf.mxu0
        %v2897 = vadd.f32 %v2415, %v2896
        %v2898 = vpop.f32.mrf.mxu0
        %v2899 = vadd.f32 %v2417, %v2898
        %2900 = vmatmul.bf16.gmra.mxu0 %v2783
        %v2901 = vpop.f32.mrf.mxu0
        %v2902 = vadd.f32 %v2419, %v2901
        %v2903 = vpop.f32.mrf.mxu0
        %v2904 = vadd.f32 %v2421, %v2903
        %2905 = vmatmul.bf16.gmra.mxu0 %v2786
        %v2906 = vpop.f32.mrf.mxu0
        %v2907 = vadd.f32 %v2423, %v2906
        %v2908 = vpop.f32.mrf.mxu0
        %v2909 = vadd.f32 %v2425, %v2908
        %2910 = vmatmul.bf16.gmra.mxu0 %v2789
        %v2911 = vpop.f32.mrf.mxu0
        %v2912 = vadd.f32 %v2427, %v2911
        %v2913 = vpop.f32.mrf.mxu0
        %v2914 = vadd.f32 %v2429, %v2913
        %2915 = vmatmul.bf16.gmra.mxu0 %v2792
        %v2916 = vpop.f32.mrf.mxu0
        %v2917 = vadd.f32 %v2431, %v2916
        %v2918 = vpop.f32.mrf.mxu0
        %v2919 = vadd.f32 %v2433, %v2918
        %2920 = vmatmul.bf16.gmra.mxu0 %v2795
        %v2921 = vpop.f32.mrf.mxu0
        %v2922 = vadd.f32 %v2435, %v2921
        %v2923 = vpop.f32.mrf.mxu0
        %v2924 = vadd.f32 %v2437, %v2923
        %2925 = vmatmul.bf16.gmra.mxu0 %v2798
        %v2926 = vpop.f32.mrf.mxu0
        %v2927 = vadd.f32 %v2439, %v2926
        %v2928 = vpop.f32.mrf.mxu0
        %v2929 = vadd.f32 %v2441, %v2928
        %2930 = vmatmul.bf16.gmra.mxu0 %v2801
        %v2931 = vpop.f32.mrf.mxu0
        %v2932 = vadd.f32 %v2443, %v2931
        %v2933 = vpop.f32.mrf.mxu0
        %v2934 = vadd.f32 %v2445, %v2933
        %2935 = vmatmul.bf16.gmra.mxu0 %v2804
        %v2936 = vpop.f32.mrf.mxu0
        %v2937 = vadd.f32 %v2447, %v2936
        %v2938 = vpop.f32.mrf.mxu0
        %v2939 = vadd.f32 %v2449, %v2938
        %2940 = vmatmul.bf16.gmra.mxu0 %v2807
        %v2941 = vpop.f32.mrf.mxu0
        %v2942 = vadd.f32 %v2451, %v2941
        %v2943 = vpop.f32.mrf.mxu0
        %v2944 = vadd.f32 %v2453, %v2943
        %2945 = vdwg.mxu0
        %2946 = vmatpush.bf16.xpose.msra.mxu0 %v2855
        %2947 = vmatpush.bf16.xpose.msra.mxu0 %v2852
        %2948 = vmatpush.bf16.xpose.msra.mxu0 %v2849
        %2949 = vmatpush.bf16.xpose.msra.mxu0 %v2846
        %2950 = vmatpush.bf16.xpose.msra.mxu0 %v2843
        %2951 = vmatpush.bf16.xpose.msra.mxu0 %v2840
        %2952 = vmatpush.bf16.xpose.msra.mxu0 %v2837
        %2953 = vmatpush.bf16.xpose.msra.mxu0 %v2834
        %2954 = vmatmul.bf16.gmra.mxu0 %v2762
        %v2955 = vpop.f32.mrf.mxu0
        %v2956 = vadd.f32 %v2392, %v2955
        %v2957 = vpop.f32.mrf.mxu0
        %v2958 = vadd.f32 %v2394, %v2957
        %2959 = vmatmul.bf16.gmra.mxu0 %v2765
        %v2960 = vpop.f32.mrf.mxu0
        %v2961 = vadd.f32 %v2396, %v2960
        %v2962 = vpop.f32.mrf.mxu0
        %v2963 = vadd.f32 %v2398, %v2962
        %2964 = vmatmul.bf16.gmra.mxu0 %v2768
        %v2965 = vpop.f32.mrf.mxu0
        %v2966 = vadd.f32 %v2400, %v2965
        %v2967 = vpop.f32.mrf.mxu0
        %v2968 = vadd.f32 %v2402, %v2967
        %2969 = vmatmul.bf16.gmra.mxu0 %v2771
        %v2970 = vpop.f32.mrf.mxu0
        %v2971 = vadd.f32 %v2404, %v2970
        %v2972 = vpop.f32.mrf.mxu0
        %v2973 = vadd.f32 %v2406, %v2972
        %2974 = vmatmul.bf16.gmra.mxu0 %v2774
        %v2975 = vpop.f32.mrf.mxu0
        %v2976 = vadd.f32 %v2408, %v2975
        %v2977 = vpop.f32.mrf.mxu0
        %v2978 = vadd.f32 %v2410, %v2977
        %2979 = vmatmul.bf16.gmra.mxu0 %v2777
        %v2980 = vpop.f32.mrf.mxu0
        %v2981 = vadd.f32 %v2412, %v2980
        %v2982 = vpop.f32.mrf.mxu0
        %v2983 = vadd.f32 %v2414, %v2982
        %2984 = vmatmul.bf16.gmra.mxu0 %v2780
        %v2985 = vpop.f32.mrf.mxu0
        %v2986 = vadd.f32 %v2416, %v2985
        %v2987 = vpop.f32.mrf.mxu0
        %v2988 = vadd.f32 %v2418, %v2987
        %2989 = vmatmul.bf16.gmra.mxu0 %v2783
        %v2990 = vpop.f32.mrf.mxu0
        %v2991 = vadd.f32 %v2420, %v2990
        %v2992 = vpop.f32.mrf.mxu0
        %v2993 = vadd.f32 %v2422, %v2992
        %2994 = vmatmul.bf16.gmra.mxu0 %v2786
        %v2995 = vpop.f32.mrf.mxu0
        %v2996 = vadd.f32 %v2424, %v2995
        %v2997 = vpop.f32.mrf.mxu0
        %v2998 = vadd.f32 %v2426, %v2997
        %2999 = vmatmul.bf16.gmra.mxu0 %v2789
        %v3000 = vpop.f32.mrf.mxu0
        %v3001 = vadd.f32 %v2428, %v3000
        %v3002 = vpop.f32.mrf.mxu0
        %v3003 = vadd.f32 %v2430, %v3002
        %3004 = vmatmul.bf16.gmra.mxu0 %v2792
        %v3005 = vpop.f32.mrf.mxu0
        %v3006 = vadd.f32 %v2432, %v3005
        %v3007 = vpop.f32.mrf.mxu0
        %v3008 = vadd.f32 %v2434, %v3007
        %3009 = vmatmul.bf16.gmra.mxu0 %v2795
        %v3010 = vpop.f32.mrf.mxu0
        %v3011 = vadd.f32 %v2436, %v3010
        %v3012 = vpop.f32.mrf.mxu0
        %v3013 = vadd.f32 %v2438, %v3012
        %3014 = vmatmul.bf16.gmra.mxu0 %v2798
        %v3015 = vpop.f32.mrf.mxu0
        %v3016 = vadd.f32 %v2440, %v3015
        %v3017 = vpop.f32.mrf.mxu0
        %v3018 = vadd.f32 %v2442, %v3017
        %3019 = vmatmul.bf16.gmra.mxu0 %v2801
        %v3020 = vpop.f32.mrf.mxu0
        %v3021 = vadd.f32 %v2444, %v3020
        %v3022 = vpop.f32.mrf.mxu0
        %v3023 = vadd.f32 %v2446, %v3022
        %3024 = vmatmul.bf16.gmra.mxu0 %v2804
        %v3025 = vpop.f32.mrf.mxu0
        %v3026 = vadd.f32 %v2448, %v3025
        %v3027 = vpop.f32.mrf.mxu0
        %v3028 = vadd.f32 %v2450, %v3027
        %3029 = vmatmul.bf16.gmra.mxu0 %v2807
        %v3030 = vpop.f32.mrf.mxu0
        %v3031 = vadd.f32 %v2452, %v3030
        %v3032 = vpop.f32.mrf.mxu0
        %v3033 = vadd.f32 %v2454, %v3032
        %3034 = vdwg.mxu0
        %v3035 = vmax.f32 %v2867, %v2956
        %3036 = vmax.xlane.f32.xlu0 %v3035
        %v3037 = vpop.xlane.xlu0 %3036
        %v3038 = vmax.f32 %v2869, %v2958
        %3039 = vmax.xlane.f32.xlu0 %v3038
        %v3040 = vpop.xlane.xlu0 %3039
        %v3041 = vmax.f32 %v2872, %v2961
        %3042 = vmax.xlane.f32.xlu0 %v3041
        %v3043 = vpop.xlane.xlu0 %3042
        %v3044 = vmax.f32 %v2874, %v2963
        %3045 = vmax.xlane.f32.xlu0 %v3044
        %v3046 = vpop.xlane.xlu0 %3045
        %v3047 = vmax.f32 %v2877, %v2966
        %3048 = vmax.xlane.f32.xlu0 %v3047
        %v3049 = vpop.xlane.xlu0 %3048
        %v3050 = vmax.f32 %v2879, %v2968
        %3051 = vmax.xlane.f32.xlu0 %v3050
        %v3052 = vpop.xlane.xlu0 %3051
        %v3053 = vmax.f32 %v2882, %v2971
        %3054 = vmax.xlane.f32.xlu0 %v3053
        %v3055 = vpop.xlane.xlu0 %3054
        %v3056 = vmax.f32 %v2884, %v2973
        %3057 = vmax.xlane.f32.xlu0 %v3056
        %v3058 = vpop.xlane.xlu0 %3057
        %v3059 = vmax.f32 %v2887, %v2976
        %3060 = vmax.xlane.f32.xlu0 %v3059
        %v3061 = vpop.xlane.xlu0 %3060
        %v3062 = vmax.f32 %v2889, %v2978
        %3063 = vmax.xlane.f32.xlu0 %v3062
        %v3064 = vpop.xlane.xlu0 %3063
        %v3065 = vmax.f32 %v2892, %v2981
        %3066 = vmax.xlane.f32.xlu0 %v3065
        %v3067 = vpop.xlane.xlu0 %3066
        %v3068 = vmax.f32 %v2894, %v2983
        %3069 = vmax.xlane.f32.xlu0 %v3068
        %v3070 = vpop.xlane.xlu0 %3069
        %v3071 = vmax.f32 %v2897, %v2986
        %3072 = vmax.xlane.f32.xlu0 %v3071
        %v3073 = vpop.xlane.xlu0 %3072
        %v3074 = vmax.f32 %v2899, %v2988
        %3075 = vmax.xlane.f32.xlu0 %v3074
        %v3076 = vpop.xlane.xlu0 %3075
        %v3077 = vmax.f32 %v2902, %v2991
        %3078 = vmax.xlane.f32.xlu0 %v3077
        %v3079 = vpop.xlane.xlu0 %3078
        %v3080 = vmax.f32 %v2904, %v2993
        %3081 = vmax.xlane.f32.xlu0 %v3080
        %v3082 = vpop.xlane.xlu0 %3081
        %v3083 = vmax.f32 %v2907, %v2996
        %3084 = vmax.xlane.f32.xlu0 %v3083
        %v3085 = vpop.xlane.xlu0 %3084
        %v3086 = vmax.f32 %v2909, %v2998
        %3087 = vmax.xlane.f32.xlu0 %v3086
        %v3088 = vpop.xlane.xlu0 %3087
        %v3089 = vmax.f32 %v2912, %v3001
        %3090 = vmax.xlane.f32.xlu0 %v3089
        %v3091 = vpop.xlane.xlu0 %3090
        %v3092 = vmax.f32 %v2914, %v3003
        %3093 = vmax.xlane.f32.xlu0 %v3092
        %v3094 = vpop.xlane.xlu0 %3093
        %v3095 = vmax.f32 %v2917, %v3006
        %3096 = vmax.xlane.f32.xlu0 %v3095
        %v3097 = vpop.xlane.xlu0 %3096
        %v3098 = vmax.f32 %v2919, %v3008
        %3099 = vmax.xlane.f32.xlu0 %v3098
        %v3100 = vpop.xlane.xlu0 %3099
        %v3101 = vmax.f32 %v2922, %v3011
        %3102 = vmax.xlane.f32.xlu0 %v3101
        %v3103 = vpop.xlane.xlu0 %3102
        %v3104 = vmax.f32 %v2924, %v3013
        %3105 = vmax.xlane.f32.xlu0 %v3104
        %v3106 = vpop.xlane.xlu0 %3105
        %v3107 = vmax.f32 %v2927, %v3016
        %3108 = vmax.xlane.f32.xlu0 %v3107
        %v3109 = vpop.xlane.xlu0 %3108
        %v3110 = vmax.f32 %v2929, %v3018
        %3111 = vmax.xlane.f32.xlu0 %v3110
        %v3112 = vpop.xlane.xlu0 %3111
        %v3113 = vmax.f32 %v2932, %v3021
        %3114 = vmax.xlane.f32.xlu0 %v3113
        %v3115 = vpop.xlane.xlu0 %3114
        %v3116 = vmax.f32 %v2934, %v3023
        %3117 = vmax.xlane.f32.xlu0 %v3116
        %v3118 = vpop.xlane.xlu0 %3117
        %v3119 = vmax.f32 %v2937, %v3026
        %3120 = vmax.xlane.f32.xlu0 %v3119
        %v3121 = vpop.xlane.xlu0 %3120
        %v3122 = vmax.f32 %v2939, %v3028
        %3123 = vmax.xlane.f32.xlu0 %v3122
        %v3124 = vpop.xlane.xlu0 %3123
        %v3125 = vmax.f32 %v2942, %v3031
        %3126 = vmax.xlane.f32.xlu0 %v3125
        %v3127 = vpop.xlane.xlu0 %3126
        %v3128 = vmax.f32 %v2944, %v3033
        %3129 = vmax.xlane.f32.xlu0 %v3128
        %v3130 = vpop.xlane.xlu0 %3129
        %v3131 = vsub.f32 %v2867, %v3037
        %v3132 = vsub.f32 %v2956, %v3037
        %v3133 = vsub.f32 %v2869, %v3040
        %v3134 = vsub.f32 %v2958, %v3040
        %v3135 = vsub.f32 %v2872, %v3043
        %v3136 = vsub.f32 %v2961, %v3043
        %v3137 = vsub.f32 %v2874, %v3046
        %v3138 = vsub.f32 %v2963, %v3046
        %v3139 = vsub.f32 %v2877, %v3049
        %v3140 = vsub.f32 %v2966, %v3049
        %v3141 = vsub.f32 %v2879, %v3052
        %v3142 = vsub.f32 %v2968, %v3052
        %v3143 = vsub.f32 %v2882, %v3055
        %v3144 = vsub.f32 %v2971, %v3055
        %v3145 = vsub.f32 %v2884, %v3058
        %v3146 = vsub.f32 %v2973, %v3058
        %v3147 = vsub.f32 %v2887, %v3061
        %v3148 = vsub.f32 %v2976, %v3061
        %v3149 = vsub.f32 %v2889, %v3064
        %v3150 = vsub.f32 %v2978, %v3064
        %v3151 = vsub.f32 %v2892, %v3067
        %v3152 = vsub.f32 %v2981, %v3067
        %v3153 = vsub.f32 %v2894, %v3070
        %v3154 = vsub.f32 %v2983, %v3070
        %v3155 = vsub.f32 %v2897, %v3073
        %v3156 = vsub.f32 %v2986, %v3073
        %v3157 = vsub.f32 %v2899, %v3076
        %v3158 = vsub.f32 %v2988, %v3076
        %v3159 = vsub.f32 %v2902, %v3079
        %v3160 = vsub.f32 %v2991, %v3079
        %v3161 = vsub.f32 %v2904, %v3082
        %v3162 = vsub.f32 %v2993, %v3082
        %v3163 = vsub.f32 %v2907, %v3085
        %v3164 = vsub.f32 %v2996, %v3085
        %v3165 = vsub.f32 %v2909, %v3088
        %v3166 = vsub.f32 %v2998, %v3088
        %v3167 = vsub.f32 %v2912, %v3091
        %v3168 = vsub.f32 %v3001, %v3091
        %v3169 = vsub.f32 %v2914, %v3094
        %v3170 = vsub.f32 %v3003, %v3094
        %v3171 = vsub.f32 %v2917, %v3097
        %v3172 = vsub.f32 %v3006, %v3097
        %v3173 = vsub.f32 %v2919, %v3100
        %v3174 = vsub.f32 %v3008, %v3100
        %v3175 = vsub.f32 %v2922, %v3103
        %v3176 = vsub.f32 %v3011, %v3103
        %v3177 = vsub.f32 %v2924, %v3106
        %v3178 = vsub.f32 %v3013, %v3106
        %v3179 = vsub.f32 %v2927, %v3109
        %v3180 = vsub.f32 %v3016, %v3109
        %v3181 = vsub.f32 %v2929, %v3112
        %v3182 = vsub.f32 %v3018, %v3112
        %v3183 = vsub.f32 %v2932, %v3115
        %v3184 = vsub.f32 %v3021, %v3115
        %v3185 = vsub.f32 %v2934, %v3118
        %v3186 = vsub.f32 %v3023, %v3118
        %v3187 = vsub.f32 %v2937, %v3121
        %v3188 = vsub.f32 %v3026, %v3121
        %v3189 = vsub.f32 %v2939, %v3124
        %v3190 = vsub.f32 %v3028, %v3124
        %v3191 = vsub.f32 %v2942, %v3127
        %v3192 = vsub.f32 %v3031, %v3127
        %v3193 = vsub.f32 %v2944, %v3130
        %v3194 = vsub.f32 %v3033, %v3130
        %v3195 = vmul.f32 %v3131, 1.442695
        %v3196 = vpow.pop %v3195
        %v3197 = vmul.f32 %v3132, 1.442695
        %v3198 = vpow.pop %v3197
        %v3199 = vmul.f32 %v3133, 1.442695
        %v3200 = vpow.pop %v3199
        %v3201 = vmul.f32 %v3134, 1.442695
        %v3202 = vpow.pop %v3201
        %v3203 = vmul.f32 %v3135, 1.442695
        %v3204 = vpow.pop %v3203
        %v3205 = vmul.f32 %v3136, 1.442695
        %v3206 = vpow.pop %v3205
        %v3207 = vmul.f32 %v3137, 1.442695
        %v3208 = vpow.pop %v3207
        %v3209 = vmul.f32 %v3138, 1.442695
        %v3210 = vpow.pop %v3209
        %v3211 = vmul.f32 %v3139, 1.442695
        %v3212 = vpow.pop %v3211
        %v3213 = vmul.f32 %v3140, 1.442695
        %v3214 = vpow.pop %v3213
        %v3215 = vmul.f32 %v3141, 1.442695
        %v3216 = vpow.pop %v3215
        %v3217 = vmul.f32 %v3142, 1.442695
        %v3218 = vpow.pop %v3217
        %v3219 = vmul.f32 %v3143, 1.442695
        %v3220 = vpow.pop %v3219
        %v3221 = vmul.f32 %v3144, 1.442695
        %v3222 = vpow.pop %v3221
        %v3223 = vmul.f32 %v3145, 1.442695
        %v3224 = vpow.pop %v3223
        %v3225 = vmul.f32 %v3146, 1.442695
        %v3226 = vpow.pop %v3225
        %v3227 = vmul.f32 %v3147, 1.442695
        %v3228 = vpow.pop %v3227
        %v3229 = vmul.f32 %v3148, 1.442695
        %v3230 = vpow.pop %v3229
        %v3231 = vmul.f32 %v3149, 1.442695
        %v3232 = vpow.pop %v3231
        %v3233 = vmul.f32 %v3150, 1.442695
        %v3234 = vpow.pop %v3233
        %v3235 = vmul.f32 %v3151, 1.442695
        %v3236 = vpow.pop %v3235
        %v3237 = vmul.f32 %v3152, 1.442695
        %v3238 = vpow.pop %v3237
        %v3239 = vmul.f32 %v3153, 1.442695
        %v3240 = vpow.pop %v3239
        %v3241 = vmul.f32 %v3154, 1.442695
        %v3242 = vpow.pop %v3241
        %v3243 = vmul.f32 %v3155, 1.442695
        %v3244 = vpow.pop %v3243
        %v3245 = vmul.f32 %v3156, 1.442695
        %v3246 = vpow.pop %v3245
        %v3247 = vmul.f32 %v3157, 1.442695
        %v3248 = vpow.pop %v3247
        %v3249 = vmul.f32 %v3158, 1.442695
        %v3250 = vpow.pop %v3249
        %v3251 = vmul.f32 %v3159, 1.442695
        %v3252 = vpow.pop %v3251
        %v3253 = vmul.f32 %v3160, 1.442695
        %v3254 = vpow.pop %v3253
        %v3255 = vmul.f32 %v3161, 1.442695
        %v3256 = vpow.pop %v3255
        %v3257 = vmul.f32 %v3162, 1.442695
        %v3258 = vpow.pop %v3257
        %v3259 = vmul.f32 %v3163, 1.442695
        %v3260 = vpow.pop %v3259
        %v3261 = vmul.f32 %v3164, 1.442695
        %v3262 = vpow.pop %v3261
        %v3263 = vmul.f32 %v3165, 1.442695
        %v3264 = vpow.pop %v3263
        %v3265 = vmul.f32 %v3166, 1.442695
        %v3266 = vpow.pop %v3265
        %v3267 = vmul.f32 %v3167, 1.442695
        %v3268 = vpow.pop %v3267
        %v3269 = vmul.f32 %v3168, 1.442695
        %v3270 = vpow.pop %v3269
        %v3271 = vmul.f32 %v3169, 1.442695
        %v3272 = vpow.pop %v3271
        %v3273 = vmul.f32 %v3170, 1.442695
        %v3274 = vpow.pop %v3273
        %v3275 = vmul.f32 %v3171, 1.442695
        %v3276 = vpow.pop %v3275
        %v3277 = vmul.f32 %v3172, 1.442695
        %v3278 = vpow.pop %v3277
        %v3279 = vmul.f32 %v3173, 1.442695
        %v3280 = vpow.pop %v3279
        %v3281 = vmul.f32 %v3174, 1.442695
        %v3282 = vpow.pop %v3281
        %v3283 = vmul.f32 %v3175, 1.442695
        %v3284 = vpow.pop %v3283
        %v3285 = vmul.f32 %v3176, 1.442695
        %v3286 = vpow.pop %v3285
        %v3287 = vmul.f32 %v3177, 1.442695
        %v3288 = vpow.pop %v3287
        %v3289 = vmul.f32 %v3178, 1.442695
        %v3290 = vpow.pop %v3289
        %v3291 = vmul.f32 %v3179, 1.442695
        %v3292 = vpow.pop %v3291
        %v3293 = vmul.f32 %v3180, 1.442695
        %v3294 = vpow.pop %v3293
        %v3295 = vmul.f32 %v3181, 1.442695
        %v3296 = vpow.pop %v3295
        %v3297 = vmul.f32 %v3182, 1.442695
        %v3298 = vpow.pop %v3297
        %v3299 = vmul.f32 %v3183, 1.442695
        %v3300 = vpow.pop %v3299
        %v3301 = vmul.f32 %v3184, 1.442695
        %v3302 = vpow.pop %v3301
        %v3303 = vmul.f32 %v3185, 1.442695
        %v3304 = vpow.pop %v3303
        %v3305 = vmul.f32 %v3186, 1.442695
        %v3306 = vpow.pop %v3305
        %v3307 = vmul.f32 %v3187, 1.442695
        %v3308 = vpow.pop %v3307
        %v3309 = vmul.f32 %v3188, 1.442695
        %v3310 = vpow.pop %v3309
        %v3311 = vmul.f32 %v3189, 1.442695
        %v3312 = vpow.pop %v3311
        %v3313 = vmul.f32 %v3190, 1.442695
        %v3314 = vpow.pop %v3313
        %v3315 = vmul.f32 %v3191, 1.442695
        %v3316 = vpow.pop %v3315
        %v3317 = vmul.f32 %v3192, 1.442695
        %v3318 = vpow.pop %v3317
        %v3319 = vmul.f32 %v3193, 1.442695
        %v3320 = vpow.pop %v3319
        %v3321 = vmul.f32 %v3194, 1.442695
        %v3322 = vpow.pop %v3321
        %v3323 = vadd.f32 %v3196, %v3198
        %3324 = vadd.xlane.f32.xlu0 %v3323
        %v3325 = vpop.xlane.xlu0 %3324
        %v3326 = vadd.f32 %v3200, %v3202
        %3327 = vadd.xlane.f32.xlu0 %v3326
        %v3328 = vpop.xlane.xlu0 %3327
        %v3329 = vadd.f32 %v3204, %v3206
        %3330 = vadd.xlane.f32.xlu0 %v3329
        %v3331 = vpop.xlane.xlu0 %3330
        %v3332 = vadd.f32 %v3208, %v3210
        %3333 = vadd.xlane.f32.xlu0 %v3332
        %v3334 = vpop.xlane.xlu0 %3333
        %v3335 = vadd.f32 %v3212, %v3214
        %3336 = vadd.xlane.f32.xlu0 %v3335
        %v3337 = vpop.xlane.xlu0 %3336
        %v3338 = vadd.f32 %v3216, %v3218
        %3339 = vadd.xlane.f32.xlu0 %v3338
        %v3340 = vpop.xlane.xlu0 %3339
        %v3341 = vadd.f32 %v3220, %v3222
        %3342 = vadd.xlane.f32.xlu0 %v3341
        %v3343 = vpop.xlane.xlu0 %3342
        %v3344 = vadd.f32 %v3224, %v3226
        %3345 = vadd.xlane.f32.xlu0 %v3344
        %v3346 = vpop.xlane.xlu0 %3345
        %v3347 = vadd.f32 %v3228, %v3230
        %3348 = vadd.xlane.f32.xlu0 %v3347
        %v3349 = vpop.xlane.xlu0 %3348
        %v3350 = vadd.f32 %v3232, %v3234
        %3351 = vadd.xlane.f32.xlu0 %v3350
        %v3352 = vpop.xlane.xlu0 %3351
        %v3353 = vadd.f32 %v3236, %v3238
        %3354 = vadd.xlane.f32.xlu0 %v3353
        %v3355 = vpop.xlane.xlu0 %3354
        %v3356 = vadd.f32 %v3240, %v3242
        %3357 = vadd.xlane.f32.xlu0 %v3356
        %v3358 = vpop.xlane.xlu0 %3357
        %v3359 = vadd.f32 %v3244, %v3246
        %3360 = vadd.xlane.f32.xlu0 %v3359
        %v3361 = vpop.xlane.xlu0 %3360
        %v3362 = vadd.f32 %v3248, %v3250
        %3363 = vadd.xlane.f32.xlu0 %v3362
        %v3364 = vpop.xlane.xlu0 %3363
        %v3365 = vadd.f32 %v3252, %v3254
        %3366 = vadd.xlane.f32.xlu0 %v3365
        %v3367 = vpop.xlane.xlu0 %3366
        %v3368 = vadd.f32 %v3256, %v3258
        %3369 = vadd.xlane.f32.xlu0 %v3368
        %v3370 = vpop.xlane.xlu0 %3369
        %v3371 = vadd.f32 %v3260, %v3262
        %3372 = vadd.xlane.f32.xlu0 %v3371
        %v3373 = vpop.xlane.xlu0 %3372
        %v3374 = vadd.f32 %v3264, %v3266
        %3375 = vadd.xlane.f32.xlu0 %v3374
        %v3376 = vpop.xlane.xlu0 %3375
        %v3377 = vadd.f32 %v3268, %v3270
        %3378 = vadd.xlane.f32.xlu0 %v3377
        %v3379 = vpop.xlane.xlu0 %3378
        %v3380 = vadd.f32 %v3272, %v3274
        %3381 = vadd.xlane.f32.xlu0 %v3380
        %v3382 = vpop.xlane.xlu0 %3381
        %v3383 = vadd.f32 %v3276, %v3278
        %3384 = vadd.xlane.f32.xlu0 %v3383
        %v3385 = vpop.xlane.xlu0 %3384
        %v3386 = vadd.f32 %v3280, %v3282
        %3387 = vadd.xlane.f32.xlu0 %v3386
        %v3388 = vpop.xlane.xlu0 %3387
        %v3389 = vadd.f32 %v3284, %v3286
        %3390 = vadd.xlane.f32.xlu0 %v3389
        %v3391 = vpop.xlane.xlu0 %3390
        %v3392 = vadd.f32 %v3288, %v3290
        %3393 = vadd.xlane.f32.xlu0 %v3392
        %v3394 = vpop.xlane.xlu0 %3393
        %v3395 = vadd.f32 %v3292, %v3294
        %3396 = vadd.xlane.f32.xlu0 %v3395
        %v3397 = vpop.xlane.xlu0 %3396
        %v3398 = vadd.f32 %v3296, %v3298
        %3399 = vadd.xlane.f32.xlu0 %v3398
        %v3400 = vpop.xlane.xlu0 %3399
        %v3401 = vadd.f32 %v3300, %v3302
        %3402 = vadd.xlane.f32.xlu0 %v3401
        %v3403 = vpop.xlane.xlu0 %3402
        %v3404 = vadd.f32 %v3304, %v3306
        %3405 = vadd.xlane.f32.xlu0 %v3404
        %v3406 = vpop.xlane.xlu0 %3405
        %v3407 = vadd.f32 %v3308, %v3310
        %3408 = vadd.xlane.f32.xlu0 %v3407
        %v3409 = vpop.xlane.xlu0 %3408
        %v3410 = vadd.f32 %v3312, %v3314
        %3411 = vadd.xlane.f32.xlu0 %v3410
        %v3412 = vpop.xlane.xlu0 %3411
        %v3413 = vadd.f32 %v3316, %v3318
        %3414 = vadd.xlane.f32.xlu0 %v3413
        %v3415 = vpop.xlane.xlu0 %3414
        %v3416 = vadd.f32 %v3320, %v3322
        %3417 = vadd.xlane.f32.xlu0 %v3416
        %v3418 = vpop.xlane.xlu0 %3417
        %v3419 = vrcp.pop %v3325
        %v3420 = vrcp.pop %v3328
        %v3421 = vrcp.pop %v3331
        %v3422 = vrcp.pop %v3334
        %v3423 = vrcp.pop %v3337
        %v3424 = vrcp.pop %v3340
        %v3425 = vrcp.pop %v3343
        %v3426 = vrcp.pop %v3346
        %v3427 = vrcp.pop %v3349
        %v3428 = vrcp.pop %v3352
        %v3429 = vrcp.pop %v3355
        %v3430 = vrcp.pop %v3358
        %v3431 = vrcp.pop %v3361
        %v3432 = vrcp.pop %v3364
        %v3433 = vrcp.pop %v3367
        %v3434 = vrcp.pop %v3370
        %v3435 = vrcp.pop %v3373
        %v3436 = vrcp.pop %v3376
        %v3437 = vrcp.pop %v3379
        %v3438 = vrcp.pop %v3382
        %v3439 = vrcp.pop %v3385
        %v3440 = vrcp.pop %v3388
        %v3441 = vrcp.pop %v3391
        %v3442 = vrcp.pop %v3394
        %v3443 = vrcp.pop %v3397
        %v3444 = vrcp.pop %v3400
        %v3445 = vrcp.pop %v3403
        %v3446 = vrcp.pop %v3406
        %v3447 = vrcp.pop %v3409
        %v3448 = vrcp.pop %v3412
        %v3449 = vrcp.pop %v3415
        %v3450 = vrcp.pop %v3418
        %v3451 = vpack.c.bf16 %v3200, %v3196
        %v3452 = vpack.c.bf16 %v3202, %v3198
        %v3453 = vpack.c.bf16 %v3208, %v3204
        %v3454 = vpack.c.bf16 %v3210, %v3206
        %v3455 = vpack.c.bf16 %v3216, %v3212
        %v3456 = vpack.c.bf16 %v3218, %v3214
        %v3457 = vpack.c.bf16 %v3224, %v3220
        %v3458 = vpack.c.bf16 %v3226, %v3222
        %v3459 = vpack.c.bf16 %v3232, %v3228
        %v3460 = vpack.c.bf16 %v3234, %v3230
        %v3461 = vpack.c.bf16 %v3240, %v3236
        %v3462 = vpack.c.bf16 %v3242, %v3238
        %v3463 = vpack.c.bf16 %v3248, %v3244
        %v3464 = vpack.c.bf16 %v3250, %v3246
        %v3465 = vpack.c.bf16 %v3256, %v3252
        %v3466 = vpack.c.bf16 %v3258, %v3254
        %v3467 = vpack.c.bf16 %v3264, %v3260
        %v3468 = vpack.c.bf16 %v3266, %v3262
        %v3469 = vpack.c.bf16 %v3272, %v3268
        %v3470 = vpack.c.bf16 %v3274, %v3270
        %v3471 = vpack.c.bf16 %v3280, %v3276
        %v3472 = vpack.c.bf16 %v3282, %v3278
        %v3473 = vpack.c.bf16 %v3288, %v3284
        %v3474 = vpack.c.bf16 %v3290, %v3286
        %v3475 = vpack.c.bf16 %v3296, %v3292
        %v3476 = vpack.c.bf16 %v3298, %v3294
        %v3477 = vpack.c.bf16 %v3304, %v3300
        %v3478 = vpack.c.bf16 %v3306, %v3302
        %v3479 = vpack.c.bf16 %v3312, %v3308
        %v3480 = vpack.c.bf16 %v3314, %v3310
        %v3481 = vpack.c.bf16 %v3320, %v3316
        %v3482 = vpack.c.bf16 %v3322, %v3318
        %v3515 = vunpack.c.l.b16 %v2648
        %v3516 = vunpack.c.l.b16 %v2649
        %v3517 = vunpack.c.l.b16 %v2650
        %v3518 = vunpack.c.l.b16 %v2651
        %v3519 = vunpack.c.l.b16 %v2652
        %v3520 = vunpack.c.l.b16 %v2653
        %v3521 = vunpack.c.l.b16 %v2654
        %v3522 = vunpack.c.l.b16 %v2655
        %v3523 = vunpack.c.l.b16 %v2656
        %v3524 = vunpack.c.l.b16 %v2657
        %v3525 = vunpack.c.l.b16 %v2658
        %v3526 = vunpack.c.l.b16 %v2659
        %v3527 = vunpack.c.l.b16 %v2660
        %v3528 = vunpack.c.l.b16 %v2661
        %v3529 = vunpack.c.l.b16 %v2662
        %v3530 = vunpack.c.l.b16 %v2663
        %v3531 = vunpack.c.l.b16 %v2664
        %v3532 = vunpack.c.l.b16 %v2665
        %v3533 = vunpack.c.l.b16 %v2666
        %v3534 = vunpack.c.l.b16 %v2667
        %v3535 = vunpack.c.l.b16 %v2668
        %v3536 = vunpack.c.l.b16 %v2669
        %v3537 = vunpack.c.l.b16 %v2670
        %v3538 = vunpack.c.l.b16 %v2671
        %v3539 = vunpack.c.l.b16 %v2672
        %v3540 = vunpack.c.l.b16 %v2673
        %v3541 = vunpack.c.l.b16 %v2674
        %v3542 = vunpack.c.l.b16 %v2675
        %v3543 = vunpack.c.l.b16 %v2676
        %v3544 = vunpack.c.l.b16 %v2677
        %v3545 = vunpack.c.l.b16 %v2678
        %v3546 = vunpack.c.l.b16 %v2679
        %v3547 = vpack.c.b16 %v3516, %v3515
        %v3548 = vpack.c.b16 %v3518, %v3517
        %v3549 = vpack.c.b16 %v3520, %v3519
        %v3550 = vpack.c.b16 %v3522, %v3521
        %v3551 = vpack.c.b16 %v3524, %v3523
        %v3552 = vpack.c.b16 %v3526, %v3525
        %v3553 = vpack.c.b16 %v3528, %v3527
        %v3554 = vpack.c.b16 %v3530, %v3529
        %v3555 = vpack.c.b16 %v3532, %v3531
        %v3556 = vpack.c.b16 %v3534, %v3533
        %v3557 = vpack.c.b16 %v3536, %v3535
        %v3558 = vpack.c.b16 %v3538, %v3537
        %v3559 = vpack.c.b16 %v3540, %v3539
        %v3560 = vpack.c.b16 %v3542, %v3541
        %v3561 = vpack.c.b16 %v3544, %v3543
        %v3562 = vpack.c.b16 %v3546, %v3545
        %3579 = vmatpush.bf16.msra.mxu0 %v3554
        %3580 = vmatpush.bf16.msra.mxu0 %v3553
        %3581 = vmatpush.bf16.msra.mxu0 %v3552
        %3582 = vmatpush.bf16.msra.mxu0 %v3551
        %3583 = vmatpush.bf16.msra.mxu0 %v3550
        %3584 = vmatpush.bf16.msra.mxu0 %v3549
        %3585 = vmatpush.bf16.msra.mxu0 %v3548
        %3586 = vmatpush.bf16.msra.mxu0 %v3547
        %3587 = vmatmul.bf16.gmra.mxu0 %v3451
        %v3588 = vpop.f32.mrf.mxu0
        %v3589 = vadd.f32 0.0, %v3588
        %v3590 = vpop.f32.mrf.mxu0
        %v3591 = vadd.f32 0.0, %v3590
        %3592 = vmatmul.bf16.gmra.mxu0 %v3453
        %v3593 = vpop.f32.mrf.mxu0
        %v3594 = vadd.f32 0.0, %v3593
        %v3595 = vpop.f32.mrf.mxu0
        %v3596 = vadd.f32 0.0, %v3595
        %3597 = vmatmul.bf16.gmra.mxu0 %v3455
        %v3598 = vpop.f32.mrf.mxu0
        %v3599 = vadd.f32 0.0, %v3598
        %v3600 = vpop.f32.mrf.mxu0
        %v3601 = vadd.f32 0.0, %v3600
        %3602 = vmatmul.bf16.gmra.mxu0 %v3457
        %v3603 = vpop.f32.mrf.mxu0
        %v3604 = vadd.f32 0.0, %v3603
        %v3605 = vpop.f32.mrf.mxu0
        %v3606 = vadd.f32 0.0, %v3605
        %3607 = vmatmul.bf16.gmra.mxu0 %v3459
        %v3608 = vpop.f32.mrf.mxu0
        %v3609 = vadd.f32 0.0, %v3608
        %v3610 = vpop.f32.mrf.mxu0
        %v3611 = vadd.f32 0.0, %v3610
        %3612 = vmatmul.bf16.gmra.mxu0 %v3461
        %v3613 = vpop.f32.mrf.mxu0
        %v3614 = vadd.f32 0.0, %v3613
        %v3615 = vpop.f32.mrf.mxu0
        %v3616 = vadd.f32 0.0, %v3615
        %3617 = vmatmul.bf16.gmra.mxu0 %v3463
        %v3618 = vpop.f32.mrf.mxu0
        %v3619 = vadd.f32 0.0, %v3618
        %v3620 = vpop.f32.mrf.mxu0
        %v3621 = vadd.f32 0.0, %v3620
        %3622 = vmatmul.bf16.gmra.mxu0 %v3465
        %v3623 = vpop.f32.mrf.mxu0
        %v3624 = vadd.f32 0.0, %v3623
        %v3625 = vpop.f32.mrf.mxu0
        %v3626 = vadd.f32 0.0, %v3625
        %3627 = vmatmul.bf16.gmra.mxu0 %v3467
        %v3628 = vpop.f32.mrf.mxu0
        %v3629 = vadd.f32 0.0, %v3628
        %v3630 = vpop.f32.mrf.mxu0
        %v3631 = vadd.f32 0.0, %v3630
        %3632 = vmatmul.bf16.gmra.mxu0 %v3469
        %v3633 = vpop.f32.mrf.mxu0
        %v3634 = vadd.f32 0.0, %v3633
        %v3635 = vpop.f32.mrf.mxu0
        %v3636 = vadd.f32 0.0, %v3635
        %3637 = vmatmul.bf16.gmra.mxu0 %v3471
        %v3638 = vpop.f32.mrf.mxu0
        %v3639 = vadd.f32 0.0, %v3638
        %v3640 = vpop.f32.mrf.mxu0
        %v3641 = vadd.f32 0.0, %v3640
        %3642 = vmatmul.bf16.gmra.mxu0 %v3473
        %v3643 = vpop.f32.mrf.mxu0
        %v3644 = vadd.f32 0.0, %v3643
        %v3645 = vpop.f32.mrf.mxu0
        %v3646 = vadd.f32 0.0, %v3645
        %3647 = vmatmul.bf16.gmra.mxu0 %v3475
        %v3648 = vpop.f32.mrf.mxu0
        %v3649 = vadd.f32 0.0, %v3648
        %v3650 = vpop.f32.mrf.mxu0
        %v3651 = vadd.f32 0.0, %v3650
        %3652 = vmatmul.bf16.gmra.mxu0 %v3477
        %v3653 = vpop.f32.mrf.mxu0
        %v3654 = vadd.f32 0.0, %v3653
        %v3655 = vpop.f32.mrf.mxu0
        %v3656 = vadd.f32 0.0, %v3655
        %3657 = vmatmul.bf16.gmra.mxu0 %v3479
        %v3658 = vpop.f32.mrf.mxu0
        %v3659 = vadd.f32 0.0, %v3658
        %v3660 = vpop.f32.mrf.mxu0
        %v3661 = vadd.f32 0.0, %v3660
        %3662 = vmatmul.bf16.gmra.mxu0 %v3481
        %v3663 = vpop.f32.mrf.mxu0
        %v3664 = vadd.f32 0.0, %v3663
        %v3665 = vpop.f32.mrf.mxu0
        %v3666 = vadd.f32 0.0, %v3665
        %3667 = vdwg.mxu0
        %3668 = vmatpush.bf16.msra.mxu0 %v3562
        %3669 = vmatpush.bf16.msra.mxu0 %v3561
        %3670 = vmatpush.bf16.msra.mxu0 %v3560
        %3671 = vmatpush.bf16.msra.mxu0 %v3559
        %3672 = vmatpush.bf16.msra.mxu0 %v3558
        %3673 = vmatpush.bf16.msra.mxu0 %v3557
        %3674 = vmatpush.bf16.msra.mxu0 %v3556
        %3675 = vmatpush.bf16.msra.mxu0 %v3555
        %3676 = vmatmul.bf16.gmra.mxu0 %v3452
        %v3677 = vpop.f32.mrf.mxu0
        %v3678 = vadd.f32 %v3589, %v3677
        %v3679 = vpop.f32.mrf.mxu0
        %v3680 = vadd.f32 %v3591, %v3679
        %3681 = vmatmul.bf16.gmra.mxu0 %v3454
        %v3682 = vpop.f32.mrf.mxu0
        %v3683 = vadd.f32 %v3594, %v3682
        %v3684 = vpop.f32.mrf.mxu0
        %v3685 = vadd.f32 %v3596, %v3684
        %3686 = vmatmul.bf16.gmra.mxu0 %v3456
        %v3687 = vpop.f32.mrf.mxu0
        %v3688 = vadd.f32 %v3599, %v3687
        %v3689 = vpop.f32.mrf.mxu0
        %v3690 = vadd.f32 %v3601, %v3689
        %3691 = vmatmul.bf16.gmra.mxu0 %v3458
        %v3692 = vpop.f32.mrf.mxu0
        %v3693 = vadd.f32 %v3604, %v3692
        %v3694 = vpop.f32.mrf.mxu0
        %v3695 = vadd.f32 %v3606, %v3694
        %3696 = vmatmul.bf16.gmra.mxu0 %v3460
        %v3697 = vpop.f32.mrf.mxu0
        %v3698 = vadd.f32 %v3609, %v3697
        %v3699 = vpop.f32.mrf.mxu0
        %v3700 = vadd.f32 %v3611, %v3699
        %3701 = vmatmul.bf16.gmra.mxu0 %v3462
        %v3702 = vpop.f32.mrf.mxu0
        %v3703 = vadd.f32 %v3614, %v3702
        %v3704 = vpop.f32.mrf.mxu0
        %v3705 = vadd.f32 %v3616, %v3704
        %3706 = vmatmul.bf16.gmra.mxu0 %v3464
        %v3707 = vpop.f32.mrf.mxu0
        %v3708 = vadd.f32 %v3619, %v3707
        %v3709 = vpop.f32.mrf.mxu0
        %v3710 = vadd.f32 %v3621, %v3709
        %3711 = vmatmul.bf16.gmra.mxu0 %v3466
        %v3712 = vpop.f32.mrf.mxu0
        %v3713 = vadd.f32 %v3624, %v3712
        %v3714 = vpop.f32.mrf.mxu0
        %v3715 = vadd.f32 %v3626, %v3714
        %3716 = vmatmul.bf16.gmra.mxu0 %v3468
        %v3717 = vpop.f32.mrf.mxu0
        %v3718 = vadd.f32 %v3629, %v3717
        %v3719 = vpop.f32.mrf.mxu0
        %v3720 = vadd.f32 %v3631, %v3719
        %3721 = vmatmul.bf16.gmra.mxu0 %v3470
        %v3722 = vpop.f32.mrf.mxu0
        %v3723 = vadd.f32 %v3634, %v3722
        %v3724 = vpop.f32.mrf.mxu0
        %v3725 = vadd.f32 %v3636, %v3724
        %3726 = vmatmul.bf16.gmra.mxu0 %v3472
        %v3727 = vpop.f32.mrf.mxu0
        %v3728 = vadd.f32 %v3639, %v3727
        %v3729 = vpop.f32.mrf.mxu0
        %v3730 = vadd.f32 %v3641, %v3729
        %3731 = vmatmul.bf16.gmra.mxu0 %v3474
        %v3732 = vpop.f32.mrf.mxu0
        %v3733 = vadd.f32 %v3644, %v3732
        %v3734 = vpop.f32.mrf.mxu0
        %v3735 = vadd.f32 %v3646, %v3734
        %3736 = vmatmul.bf16.gmra.mxu0 %v3476
        %v3737 = vpop.f32.mrf.mxu0
        %v3738 = vadd.f32 %v3649, %v3737
        %v3739 = vpop.f32.mrf.mxu0
        %v3740 = vadd.f32 %v3651, %v3739
        %3741 = vmatmul.bf16.gmra.mxu0 %v3478
        %v3742 = vpop.f32.mrf.mxu0
        %v3743 = vadd.f32 %v3654, %v3742
        %v3744 = vpop.f32.mrf.mxu0
        %v3745 = vadd.f32 %v3656, %v3744
        %3746 = vmatmul.bf16.gmra.mxu0 %v3480
        %v3747 = vpop.f32.mrf.mxu0
        %v3748 = vadd.f32 %v3659, %v3747
        %v3749 = vpop.f32.mrf.mxu0
        %v3750 = vadd.f32 %v3661, %v3749
        %3751 = vmatmul.bf16.gmra.mxu0 %v3482
        %v3752 = vpop.f32.mrf.mxu0
        %v3753 = vadd.f32 %v3664, %v3752
        %v3754 = vpop.f32.mrf.mxu0
        %v3755 = vadd.f32 %v3666, %v3754
        %3756 = vdwg.mxu0
        %v3757 = vmul.f32 %v3678, %v3419
        %v3758 = vmul.f32 %v3680, %v3420
        %v3759 = vmul.f32 %v3683, %v3421
        %v3760 = vmul.f32 %v3685, %v3422
        %v3761 = vmul.f32 %v3688, %v3423
        %v3762 = vmul.f32 %v3690, %v3424
        %v3763 = vmul.f32 %v3693, %v3425
        %v3764 = vmul.f32 %v3695, %v3426
        %v3765 = vmul.f32 %v3698, %v3427
        %v3766 = vmul.f32 %v3700, %v3428
        %v3767 = vmul.f32 %v3703, %v3429
        %v3768 = vmul.f32 %v3705, %v3430
        %v3769 = vmul.f32 %v3708, %v3431
        %v3770 = vmul.f32 %v3710, %v3432
        %v3771 = vmul.f32 %v3713, %v3433
        %v3772 = vmul.f32 %v3715, %v3434
        %v3773 = vmul.f32 %v3718, %v3435
        %v3774 = vmul.f32 %v3720, %v3436
        %v3775 = vmul.f32 %v3723, %v3437
        %v3776 = vmul.f32 %v3725, %v3438
        %v3777 = vmul.f32 %v3728, %v3439
        %v3778 = vmul.f32 %v3730, %v3440
        %v3779 = vmul.f32 %v3733, %v3441
        %v3780 = vmul.f32 %v3735, %v3442
        %v3781 = vmul.f32 %v3738, %v3443
        %v3782 = vmul.f32 %v3740, %v3444
        %v3783 = vmul.f32 %v3743, %v3445
        %v3784 = vmul.f32 %v3745, %v3446
        %v3785 = vmul.f32 %v3748, %v3447
        %v3786 = vmul.f32 %v3750, %v3448
        %v3787 = vmul.f32 %v3753, %v3449
        %v3788 = vmul.f32 %v3755, %v3450
        %v3789 = vpack.c.bf16 %v3758, %v3757
        %v3790 = vpack.c.bf16 %v3760, %v3759
        %v3791 = vpack.c.bf16 %v3762, %v3761
        %v3792 = vpack.c.bf16 %v3764, %v3763
        %v3793 = vpack.c.bf16 %v3766, %v3765
        %v3794 = vpack.c.bf16 %v3768, %v3767
        %v3795 = vpack.c.bf16 %v3770, %v3769
        %v3796 = vpack.c.bf16 %v3772, %v3771
        %v3797 = vpack.c.bf16 %v3774, %v3773
        %v3798 = vpack.c.bf16 %v3776, %v3775
        %v3799 = vpack.c.bf16 %v3778, %v3777
        %v3800 = vpack.c.bf16 %v3780, %v3779
        %v3801 = vpack.c.bf16 %v3782, %v3781
        %v3802 = vpack.c.bf16 %v3784, %v3783
        %v3803 = vpack.c.bf16 %v3786, %v3785
        %v3804 = vpack.c.bf16 %v3788, %v3787
        %v3805 = vld [vmem:[#allocation15] sm:$0xff]
        %v3806 = vld [vmem:[#allocation15 + $0x8] sm:$0xff]
        %v3807 = vld [vmem:[#allocation15 + $0x10] sm:$0xff]
        %v3808 = vld [vmem:[#allocation15 + $0x18] sm:$0xff]
        %v3809 = vpack.c.bf16 %v3806, %v3805
        %v3810 = vpack.c.bf16 %v3808, %v3807
        %3819 = vrot.lane.b32.xlu0 %v2471, 96
        %v3820 = vpop.permute.xlu0 %3819
        %3821 = vrot.lane.b32.xlu0 %v2472, 96
        %v3822 = vpop.permute.xlu0 %3821
        %3823 = vrot.lane.b32.xlu0 %v2473, 96
        %v3824 = vpop.permute.xlu0 %3823
        %3825 = vrot.lane.b32.xlu0 %v2474, 96
        %v3826 = vpop.permute.xlu0 %3825
        %3827 = vrot.lane.b32.xlu0 %v2475, 96
        %v3828 = vpop.permute.xlu0 %3827
        %3829 = vrot.lane.b32.xlu0 %v2476, 96
        %v3830 = vpop.permute.xlu0 %3829
        %3831 = vrot.lane.b32.xlu0 %v2477, 96
        %v3832 = vpop.permute.xlu0 %3831
        %3833 = vrot.lane.b32.xlu0 %v2478, 96
        %v3834 = vpop.permute.xlu0 %3833
        %3843 = vmatpush.bf16.msra.mxu0 %v3834
        %3844 = vmatpush.bf16.msra.mxu0 %v3832
        %3845 = vmatpush.bf16.msra.mxu0 %v3830
        %3846 = vmatpush.bf16.msra.mxu0 %v3828
        %3847 = vmatpush.bf16.msra.mxu0 %v3826
        %3848 = vmatpush.bf16.msra.mxu0 %v3824
        %3849 = vmatpush.bf16.msra.mxu0 %v3822
        %3850 = vmatpush.bf16.msra.mxu0 %v3820
        %3851 = vmatmul.bf16.gmra.mxu0 %v2241
        %v3852 = vpop.f32.mrf.mxu0
        %v3853 = vadd.f32 0.0, %v3852
        %v3854 = vpop.f32.mrf.mxu0
        %v3855 = vadd.f32 0.0, %v3854
        %3856 = vmatmul.bf16.gmra.mxu0 %v2242
        %v3857 = vpop.f32.mrf.mxu0
        %v3858 = vadd.f32 0.0, %v3857
        %v3859 = vpop.f32.mrf.mxu0
        %v3860 = vadd.f32 0.0, %v3859
        %3861 = vmatmul.bf16.gmra.mxu0 %v2243
        %v3862 = vpop.f32.mrf.mxu0
        %v3863 = vadd.f32 0.0, %v3862
        %v3864 = vpop.f32.mrf.mxu0
        %v3865 = vadd.f32 0.0, %v3864
        %3866 = vmatmul.bf16.gmra.mxu0 %v2244
        %v3867 = vpop.f32.mrf.mxu0
        %v3868 = vadd.f32 0.0, %v3867
        %v3869 = vpop.f32.mrf.mxu0
        %v3870 = vadd.f32 0.0, %v3869
        %3871 = vmatmul.bf16.gmra.mxu0 %v2245
        %v3872 = vpop.f32.mrf.mxu0
        %v3873 = vadd.f32 0.0, %v3872
        %v3874 = vpop.f32.mrf.mxu0
        %v3875 = vadd.f32 0.0, %v3874
        %3876 = vmatmul.bf16.gmra.mxu0 %v2246
        %v3877 = vpop.f32.mrf.mxu0
        %v3878 = vadd.f32 0.0, %v3877
        %v3879 = vpop.f32.mrf.mxu0
        %v3880 = vadd.f32 0.0, %v3879
        %3881 = vmatmul.bf16.gmra.mxu0 %v2247
        %v3882 = vpop.f32.mrf.mxu0
        %v3883 = vadd.f32 0.0, %v3882
        %v3884 = vpop.f32.mrf.mxu0
        %v3885 = vadd.f32 0.0, %v3884
        %3886 = vmatmul.bf16.gmra.mxu0 %v2248
        %v3887 = vpop.f32.mrf.mxu0
        %v3888 = vadd.f32 0.0, %v3887
        %v3889 = vpop.f32.mrf.mxu0
        %v3890 = vadd.f32 0.0, %v3889
        %3891 = vmatmul.bf16.gmra.mxu0 %v2249
        %v3892 = vpop.f32.mrf.mxu0
        %v3893 = vadd.f32 0.0, %v3892
        %v3894 = vpop.f32.mrf.mxu0
        %v3895 = vadd.f32 0.0, %v3894
        %3896 = vmatmul.bf16.gmra.mxu0 %v2250
        %v3897 = vpop.f32.mrf.mxu0
        %v3898 = vadd.f32 0.0, %v3897
        %v3899 = vpop.f32.mrf.mxu0
        %v3900 = vadd.f32 0.0, %v3899
        %3901 = vmatmul.bf16.gmra.mxu0 %v2251
        %v3902 = vpop.f32.mrf.mxu0
        %v3903 = vadd.f32 0.0, %v3902
        %v3904 = vpop.f32.mrf.mxu0
        %v3905 = vadd.f32 0.0, %v3904
        %3906 = vmatmul.bf16.gmra.mxu0 %v2252
        %v3907 = vpop.f32.mrf.mxu0
        %v3908 = vadd.f32 0.0, %v3907
        %v3909 = vpop.f32.mrf.mxu0
        %v3910 = vadd.f32 0.0, %v3909
        %3911 = vmatmul.bf16.gmra.mxu0 %v2253
        %v3912 = vpop.f32.mrf.mxu0
        %v3913 = vadd.f32 0.0, %v3912
        %v3914 = vpop.f32.mrf.mxu0
        %v3915 = vadd.f32 0.0, %v3914
        %3916 = vmatmul.bf16.gmra.mxu0 %v2254
        %v3917 = vpop.f32.mrf.mxu0
        %v3918 = vadd.f32 0.0, %v3917
        %v3919 = vpop.f32.mrf.mxu0
        %v3920 = vadd.f32 0.0, %v3919
        %3921 = vmatmul.bf16.gmra.mxu0 %v2255
        %v3922 = vpop.f32.mrf.mxu0
        %v3923 = vadd.f32 0.0, %v3922
        %v3924 = vpop.f32.mrf.mxu0
        %v3925 = vadd.f32 0.0, %v3924
        %3926 = vmatmul.bf16.gmra.mxu0 %v2256
        %v3927 = vpop.f32.mrf.mxu0
        %v3928 = vadd.f32 0.0, %v3927
        %v3929 = vpop.f32.mrf.mxu0
        %v3930 = vadd.f32 0.0, %v3929
        %3931 = vdwg.mxu0
        %v3932 = vmul.f32 %v3853, 0.17677669
        %v3933 = vmul.f32 %v3855, 0.17677669
        %v3934 = vmul.f32 %v3858, 0.17677669
        %v3935 = vmul.f32 %v3860, 0.17677669
        %v3936 = vmul.f32 %v3863, 0.17677669
        %v3937 = vmul.f32 %v3865, 0.17677669
        %v3938 = vmul.f32 %v3868, 0.17677669
        %v3939 = vmul.f32 %v3870, 0.17677669
        %v3940 = vmul.f32 %v3873, 0.17677669
        %v3941 = vmul.f32 %v3875, 0.17677669
        %v3942 = vmul.f32 %v3878, 0.17677669
        %v3943 = vmul.f32 %v3880, 0.17677669
        %v3944 = vmul.f32 %v3883, 0.17677669
        %v3945 = vmul.f32 %v3885, 0.17677669
        %v3946 = vmul.f32 %v3888, 0.17677669
        %v3947 = vmul.f32 %v3890, 0.17677669
        %v3948 = vmul.f32 %v3893, 0.17677669
        %v3949 = vmul.f32 %v3895, 0.17677669
        %v3950 = vmul.f32 %v3898, 0.17677669
        %v3951 = vmul.f32 %v3900, 0.17677669
        %v3952 = vmul.f32 %v3903, 0.17677669
        %v3953 = vmul.f32 %v3905, 0.17677669
        %v3954 = vmul.f32 %v3908, 0.17677669
        %v3955 = vmul.f32 %v3910, 0.17677669
        %v3956 = vmul.f32 %v3913, 0.17677669
        %v3957 = vmul.f32 %v3915, 0.17677669
        %v3958 = vmul.f32 %v3918, 0.17677669
        %v3959 = vmul.f32 %v3920, 0.17677669
        %v3960 = vmul.f32 %v3923, 0.17677669
        %v3961 = vmul.f32 %v3925, 0.17677669
        %v3962 = vmul.f32 %v3928, 0.17677669
        %v3963 = vmul.f32 %v3930, 0.17677669
        %v3964 = vpack.c.bf16 %v3933, %v3932
        %v3965 = vpack.c.bf16 %v3935, %v3934
        %v3966 = vpack.c.bf16 %v3937, %v3936
        %v3967 = vpack.c.bf16 %v3939, %v3938
        %v3968 = vpack.c.bf16 %v3941, %v3940
        %v3969 = vpack.c.bf16 %v3943, %v3942
        %v3970 = vpack.c.bf16 %v3945, %v3944
        %v3971 = vpack.c.bf16 %v3947, %v3946
        %v3972 = vpack.c.bf16 %v3949, %v3948
        %v3973 = vpack.c.bf16 %v3951, %v3950
        %v3974 = vpack.c.bf16 %v3953, %v3952
        %v3975 = vpack.c.bf16 %v3955, %v3954
        %v3976 = vpack.c.bf16 %v3957, %v3956
        %v3977 = vpack.c.bf16 %v3959, %v3958
        %v3978 = vpack.c.bf16 %v3961, %v3960
        %v3979 = vpack.c.bf16 %v3963, %v3962
        %s3980 = scalar_lea.vmem [#allocation2], 128
        %v3981 = vld [vmem:[%s3980] sm:$0xf]
        %v3982 = vld [vmem:[%s3980 + $0x4] sm:$0xf]
        %v3983 = vld [vmem:[%s3980 + $0x8] sm:$0xf]
        %v3984 = vld [vmem:[%s3980 + $0xc] sm:$0xf]
        %v3985 = vld [vmem:[%s3980 + $0x10] sm:$0xf]
        %v3986 = vld [vmem:[%s3980 + $0x14] sm:$0xf]
        %v3987 = vld [vmem:[%s3980 + $0x18] sm:$0xf]
        %v3988 = vld [vmem:[%s3980 + $0x1c] sm:$0xf]
        %v3989 = vld [vmem:[%s3980 + $0x20] sm:$0xf]
        %v3990 = vld [vmem:[%s3980 + $0x24] sm:$0xf]
        %v3991 = vld [vmem:[%s3980 + $0x28] sm:$0xf]
        %v3992 = vld [vmem:[%s3980 + $0x2c] sm:$0xf]
        %v3993 = vld [vmem:[%s3980 + $0x30] sm:$0xf]
        %v3994 = vld [vmem:[%s3980 + $0x34] sm:$0xf]
        %v3995 = vld [vmem:[%s3980 + $0x38] sm:$0xf]
        %v3996 = vld [vmem:[%s3980 + $0x3c] sm:$0xf]
        %v3997 = vld [vmem:[%s3980 + $0x40] sm:$0xf]
        %v3998 = vld [vmem:[%s3980 + $0x44] sm:$0xf]
        %v3999 = vld [vmem:[%s3980 + $0x48] sm:$0xf]
        %v4000 = vld [vmem:[%s3980 + $0x4c] sm:$0xf]
        %v4001 = vld [vmem:[%s3980 + $0x50] sm:$0xf]
        %v4002 = vld [vmem:[%s3980 + $0x54] sm:$0xf]
        %v4003 = vld [vmem:[%s3980 + $0x58] sm:$0xf]
        %v4004 = vld [vmem:[%s3980 + $0x5c] sm:$0xf]
        %v4005 = vld [vmem:[%s3980 + $0x60] sm:$0xf]
        %v4006 = vld [vmem:[%s3980 + $0x64] sm:$0xf]
        %v4007 = vld [vmem:[%s3980 + $0x68] sm:$0xf]
        %v4008 = vld [vmem:[%s3980 + $0x6c] sm:$0xf]
        %v4009 = vld [vmem:[%s3980 + $0x70] sm:$0xf]
        %v4010 = vld [vmem:[%s3980 + $0x74] sm:$0xf]
        %v4011 = vld [vmem:[%s3980 + $0x78] sm:$0xf]
        %v4012 = vld [vmem:[%s3980 + $0x7c] sm:$0xf]
        %s4013 = scalar_lea.vmem [#allocation3], 128
        %v4014 = vld [vmem:[%s4013] sm:$0xf]
        %v4015 = vld [vmem:[%s4013 + $0x4] sm:$0xf]
        %v4016 = vld [vmem:[%s4013 + $0x8] sm:$0xf]
        %v4017 = vld [vmem:[%s4013 + $0xc] sm:$0xf]
        %v4018 = vld [vmem:[%s4013 + $0x10] sm:$0xf]
        %v4019 = vld [vmem:[%s4013 + $0x14] sm:$0xf]
        %v4020 = vld [vmem:[%s4013 + $0x18] sm:$0xf]
        %v4021 = vld [vmem:[%s4013 + $0x1c] sm:$0xf]
        %v4022 = vld [vmem:[%s4013 + $0x20] sm:$0xf]
        %v4023 = vld [vmem:[%s4013 + $0x24] sm:$0xf]
        %v4024 = vld [vmem:[%s4013 + $0x28] sm:$0xf]
        %v4025 = vld [vmem:[%s4013 + $0x2c] sm:$0xf]
        %v4026 = vld [vmem:[%s4013 + $0x30] sm:$0xf]
        %v4027 = vld [vmem:[%s4013 + $0x34] sm:$0xf]
        %v4028 = vld [vmem:[%s4013 + $0x38] sm:$0xf]
        %v4029 = vld [vmem:[%s4013 + $0x3c] sm:$0xf]
        %v4030 = vld [vmem:[%s4013 + $0x40] sm:$0xf]
        %v4031 = vld [vmem:[%s4013 + $0x44] sm:$0xf]
        %v4032 = vld [vmem:[%s4013 + $0x48] sm:$0xf]
        %v4033 = vld [vmem:[%s4013 + $0x4c] sm:$0xf]
        %v4034 = vld [vmem:[%s4013 + $0x50] sm:$0xf]
        %v4035 = vld [vmem:[%s4013 + $0x54] sm:$0xf]
        %v4036 = vld [vmem:[%s4013 + $0x58] sm:$0xf]
        %v4037 = vld [vmem:[%s4013 + $0x5c] sm:$0xf]
        %v4038 = vld [vmem:[%s4013 + $0x60] sm:$0xf]
        %v4039 = vld [vmem:[%s4013 + $0x64] sm:$0xf]
        %v4040 = vld [vmem:[%s4013 + $0x68] sm:$0xf]
        %v4041 = vld [vmem:[%s4013 + $0x6c] sm:$0xf]
        %v4042 = vld [vmem:[%s4013 + $0x70] sm:$0xf]
        %v4043 = vld [vmem:[%s4013 + $0x74] sm:$0xf]
        %v4044 = vld [vmem:[%s4013 + $0x78] sm:$0xf]
        %v4045 = vld [vmem:[%s4013 + $0x7c] sm:$0xf]
        %v4078 = vunpack.c.l.b16 %v3981
        %v4079 = vunpack.c.l.b16 %v3982
        %v4080 = vunpack.c.l.b16 %v3983
        %v4081 = vunpack.c.l.b16 %v3984
        %v4082 = vunpack.c.l.b16 %v3985
        %v4083 = vunpack.c.l.b16 %v3986
        %v4084 = vunpack.c.l.b16 %v3987
        %v4085 = vunpack.c.l.b16 %v3988
        %v4086 = vunpack.c.l.b16 %v3989
        %v4087 = vunpack.c.l.b16 %v3990
        %v4088 = vunpack.c.l.b16 %v3991
        %v4089 = vunpack.c.l.b16 %v3992
        %v4090 = vunpack.c.l.b16 %v3993
        %v4091 = vunpack.c.l.b16 %v3994
        %v4092 = vunpack.c.l.b16 %v3995
        %v4093 = vunpack.c.l.b16 %v3996
        %v4094 = vunpack.c.l.b16 %v3997
        %v4095 = vunpack.c.l.b16 %v3998
        %v4096 = vunpack.c.l.b16 %v3999
        %v4097 = vunpack.c.l.b16 %v4000
        %v4098 = vunpack.c.l.b16 %v4001
        %v4099 = vunpack.c.l.b16 %v4002
        %v4100 = vunpack.c.l.b16 %v4003
        %v4101 = vunpack.c.l.b16 %v4004
        %v4102 = vunpack.c.l.b16 %v4005
        %v4103 = vunpack.c.l.b16 %v4006
        %v4104 = vunpack.c.l.b16 %v4007
        %v4105 = vunpack.c.l.b16 %v4008
        %v4106 = vunpack.c.l.b16 %v4009
        %v4107 = vunpack.c.l.b16 %v4010
        %v4108 = vunpack.c.l.b16 %v4011
        %v4109 = vunpack.c.l.b16 %v4012
        %v4110 = vpack.c.b16 %v4079, %v4078
        %v4111 = vpack.c.b16 %v4081, %v4080
        %v4112 = vpack.c.b16 %v4083, %v4082
        %v4113 = vpack.c.b16 %v4085, %v4084
        %v4114 = vpack.c.b16 %v4087, %v4086
        %v4115 = vpack.c.b16 %v4089, %v4088
        %v4116 = vpack.c.b16 %v4091, %v4090
        %v4117 = vpack.c.b16 %v4093, %v4092
        %v4118 = vpack.c.b16 %v4095, %v4094
        %v4119 = vpack.c.b16 %v4097, %v4096
        %v4120 = vpack.c.b16 %v4099, %v4098
        %v4121 = vpack.c.b16 %v4101, %v4100
        %v4122 = vpack.c.b16 %v4103, %v4102
        %v4123 = vpack.c.b16 %v4105, %v4104
        %v4124 = vpack.c.b16 %v4107, %v4106
        %v4125 = vpack.c.b16 %v4109, %v4108
        %v4127 = vsel %vm2760, %v3964, 0
        %v4130 = vsel %vm2760, %v3965, 0
        %v4133 = vsel %vm2760, %v3966, 0
        %v4136 = vsel %vm2760, %v3967, 0
        %v4139 = vsel %vm2760, %v3968, 0
        %v4142 = vsel %vm2760, %v3969, 0
        %v4145 = vsel %vm2760, %v3970, 0
        %v4148 = vsel %vm2760, %v3971, 0
        %v4151 = vsel %vm2760, %v3972, 0
        %v4154 = vsel %vm2760, %v3973, 0
        %v4157 = vsel %vm2760, %v3974, 0
        %v4160 = vsel %vm2760, %v3975, 0
        %v4163 = vsel %vm2760, %v3976, 0
        %v4166 = vsel %vm2760, %v3977, 0
        %v4169 = vsel %vm2760, %v3978, 0
        %v4172 = vsel %vm2760, %v3979, 0
        %v4175 = vsel %vm2760, %v4110, 0
        %v4178 = vsel %vm2760, %v4111, 0
        %v4181 = vsel %vm2760, %v4112, 0
        %v4184 = vsel %vm2760, %v4113, 0
        %v4187 = vsel %vm2760, %v4114, 0
        %v4190 = vsel %vm2760, %v4115, 0
        %v4193 = vsel %vm2760, %v4116, 0
        %v4196 = vsel %vm2760, %v4117, 0
        %v4199 = vsel %vm2760, %v4118, 0
        %v4202 = vsel %vm2760, %v4119, 0
        %v4205 = vsel %vm2760, %v4120, 0
        %v4208 = vsel %vm2760, %v4121, 0
        %v4211 = vsel %vm2760, %v4122, 0
        %v4214 = vsel %vm2760, %v4123, 0
        %v4217 = vsel %vm2760, %v4124, 0
        %v4220 = vsel %vm2760, %v4125, 0
        %4222 = vmatpush.bf16.xpose.msra.mxu0 %v4196
        %4223 = vmatpush.bf16.xpose.msra.mxu0 %v4193
        %4224 = vmatpush.bf16.xpose.msra.mxu0 %v4190
        %4225 = vmatpush.bf16.xpose.msra.mxu0 %v4187
        %4226 = vmatpush.bf16.xpose.msra.mxu0 %v4184
        %4227 = vmatpush.bf16.xpose.msra.mxu0 %v4181
        %4228 = vmatpush.bf16.xpose.msra.mxu0 %v4178
        %4229 = vmatpush.bf16.xpose.msra.mxu0 %v4175
        %4230 = vmatmul.bf16.gmra.mxu0 %v4127
        %v4231 = vpop.f32.mrf.mxu0
        %v4232 = vadd.f32 %v2391, %v4231
        %v4233 = vpop.f32.mrf.mxu0
        %v4234 = vadd.f32 %v2393, %v4233
        %4235 = vmatmul.bf16.gmra.mxu0 %v4130
        %v4236 = vpop.f32.mrf.mxu0
        %v4237 = vadd.f32 %v2395, %v4236
        %v4238 = vpop.f32.mrf.mxu0
        %v4239 = vadd.f32 %v2397, %v4238
        %4240 = vmatmul.bf16.gmra.mxu0 %v4133
        %v4241 = vpop.f32.mrf.mxu0
        %v4242 = vadd.f32 %v2399, %v4241
        %v4243 = vpop.f32.mrf.mxu0
        %v4244 = vadd.f32 %v2401, %v4243
        %4245 = vmatmul.bf16.gmra.mxu0 %v4136
        %v4246 = vpop.f32.mrf.mxu0
        %v4247 = vadd.f32 %v2403, %v4246
        %v4248 = vpop.f32.mrf.mxu0
        %v4249 = vadd.f32 %v2405, %v4248
        %4250 = vmatmul.bf16.gmra.mxu0 %v4139
        %v4251 = vpop.f32.mrf.mxu0
        %v4252 = vadd.f32 %v2407, %v4251
        %v4253 = vpop.f32.mrf.mxu0
        %v4254 = vadd.f32 %v2409, %v4253
        %4255 = vmatmul.bf16.gmra.mxu0 %v4142
        %v4256 = vpop.f32.mrf.mxu0
        %v4257 = vadd.f32 %v2411, %v4256
        %v4258 = vpop.f32.mrf.mxu0
        %v4259 = vadd.f32 %v2413, %v4258
        %4260 = vmatmul.bf16.gmra.mxu0 %v4145
        %v4261 = vpop.f32.mrf.mxu0
        %v4262 = vadd.f32 %v2415, %v4261
        %v4263 = vpop.f32.mrf.mxu0
        %v4264 = vadd.f32 %v2417, %v4263
        %4265 = vmatmul.bf16.gmra.mxu0 %v4148
        %v4266 = vpop.f32.mrf.mxu0
        %v4267 = vadd.f32 %v2419, %v4266
        %v4268 = vpop.f32.mrf.mxu0
        %v4269 = vadd.f32 %v2421, %v4268
        %4270 = vmatmul.bf16.gmra.mxu0 %v4151
        %v4271 = vpop.f32.mrf.mxu0
        %v4272 = vadd.f32 %v2423, %v4271
        %v4273 = vpop.f32.mrf.mxu0
        %v4274 = vadd.f32 %v2425, %v4273
        %4275 = vmatmul.bf16.gmra.mxu0 %v4154
        %v4276 = vpop.f32.mrf.mxu0
        %v4277 = vadd.f32 %v2427, %v4276
        %v4278 = vpop.f32.mrf.mxu0
        %v4279 = vadd.f32 %v2429, %v4278
        %4280 = vmatmul.bf16.gmra.mxu0 %v4157
        %v4281 = vpop.f32.mrf.mxu0
        %v4282 = vadd.f32 %v2431, %v4281
        %v4283 = vpop.f32.mrf.mxu0
        %v4284 = vadd.f32 %v2433, %v4283
        %4285 = vmatmul.bf16.gmra.mxu0 %v4160
        %v4286 = vpop.f32.mrf.mxu0
        %v4287 = vadd.f32 %v2435, %v4286
        %v4288 = vpop.f32.mrf.mxu0
        %v4289 = vadd.f32 %v2437, %v4288
        %4290 = vmatmul.bf16.gmra.mxu0 %v4163
        %v4291 = vpop.f32.mrf.mxu0
        %v4292 = vadd.f32 %v2439, %v4291
        %v4293 = vpop.f32.mrf.mxu0
        %v4294 = vadd.f32 %v2441, %v4293
        %4295 = vmatmul.bf16.gmra.mxu0 %v4166
        %v4296 = vpop.f32.mrf.mxu0
        %v4297 = vadd.f32 %v2443, %v4296
        %v4298 = vpop.f32.mrf.mxu0
        %v4299 = vadd.f32 %v2445, %v4298
        %4300 = vmatmul.bf16.gmra.mxu0 %v4169
        %v4301 = vpop.f32.mrf.mxu0
        %v4302 = vadd.f32 %v2447, %v4301
        %v4303 = vpop.f32.mrf.mxu0
        %v4304 = vadd.f32 %v2449, %v4303
        %4305 = vmatmul.bf16.gmra.mxu0 %v4172
        %v4306 = vpop.f32.mrf.mxu0
        %v4307 = vadd.f32 %v2451, %v4306
        %v4308 = vpop.f32.mrf.mxu0
        %v4309 = vadd.f32 %v2453, %v4308
        %4310 = vdwg.mxu0
        %4311 = vmatpush.bf16.xpose.msra.mxu0 %v4220
        %4312 = vmatpush.bf16.xpose.msra.mxu0 %v4217
        %4313 = vmatpush.bf16.xpose.msra.mxu0 %v4214
        %4314 = vmatpush.bf16.xpose.msra.mxu0 %v4211
        %4315 = vmatpush.bf16.xpose.msra.mxu0 %v4208
        %4316 = vmatpush.bf16.xpose.msra.mxu0 %v4205
        %4317 = vmatpush.bf16.xpose.msra.mxu0 %v4202
        %4318 = vmatpush.bf16.xpose.msra.mxu0 %v4199
        %4319 = vmatmul.bf16.gmra.mxu0 %v4127
        %v4320 = vpop.f32.mrf.mxu0
        %v4321 = vadd.f32 %v2392, %v4320
        %v4322 = vpop.f32.mrf.mxu0
        %v4323 = vadd.f32 %v2394, %v4322
        %4324 = vmatmul.bf16.gmra.mxu0 %v4130
        %v4325 = vpop.f32.mrf.mxu0
        %v4326 = vadd.f32 %v2396, %v4325
        %v4327 = vpop.f32.mrf.mxu0
        %v4328 = vadd.f32 %v2398, %v4327
        %4329 = vmatmul.bf16.gmra.mxu0 %v4133
        %v4330 = vpop.f32.mrf.mxu0
        %v4331 = vadd.f32 %v2400, %v4330
        %v4332 = vpop.f32.mrf.mxu0
        %v4333 = vadd.f32 %v2402, %v4332
        %4334 = vmatmul.bf16.gmra.mxu0 %v4136
        %v4335 = vpop.f32.mrf.mxu0
        %v4336 = vadd.f32 %v2404, %v4335
        %v4337 = vpop.f32.mrf.mxu0
        %v4338 = vadd.f32 %v2406, %v4337
        %4339 = vmatmul.bf16.gmra.mxu0 %v4139
        %v4340 = vpop.f32.mrf.mxu0
        %v4341 = vadd.f32 %v2408, %v4340
        %v4342 = vpop.f32.mrf.mxu0
        %v4343 = vadd.f32 %v2410, %v4342
        %4344 = vmatmul.bf16.gmra.mxu0 %v4142
        %v4345 = vpop.f32.mrf.mxu0
        %v4346 = vadd.f32 %v2412, %v4345
        %v4347 = vpop.f32.mrf.mxu0
        %v4348 = vadd.f32 %v2414, %v4347
        %4349 = vmatmul.bf16.gmra.mxu0 %v4145
        %v4350 = vpop.f32.mrf.mxu0
        %v4351 = vadd.f32 %v2416, %v4350
        %v4352 = vpop.f32.mrf.mxu0
        %v4353 = vadd.f32 %v2418, %v4352
        %4354 = vmatmul.bf16.gmra.mxu0 %v4148
        %v4355 = vpop.f32.mrf.mxu0
        %v4356 = vadd.f32 %v2420, %v4355
        %v4357 = vpop.f32.mrf.mxu0
        %v4358 = vadd.f32 %v2422, %v4357
        %4359 = vmatmul.bf16.gmra.mxu0 %v4151
        %v4360 = vpop.f32.mrf.mxu0
        %v4361 = vadd.f32 %v2424, %v4360
        %v4362 = vpop.f32.mrf.mxu0
        %v4363 = vadd.f32 %v2426, %v4362
        %4364 = vmatmul.bf16.gmra.mxu0 %v4154
        %v4365 = vpop.f32.mrf.mxu0
        %v4366 = vadd.f32 %v2428, %v4365
        %v4367 = vpop.f32.mrf.mxu0
        %v4368 = vadd.f32 %v2430, %v4367
        %4369 = vmatmul.bf16.gmra.mxu0 %v4157
        %v4370 = vpop.f32.mrf.mxu0
        %v4371 = vadd.f32 %v2432, %v4370
        %v4372 = vpop.f32.mrf.mxu0
        %v4373 = vadd.f32 %v2434, %v4372
        %4374 = vmatmul.bf16.gmra.mxu0 %v4160
        %v4375 = vpop.f32.mrf.mxu0
        %v4376 = vadd.f32 %v2436, %v4375
        %v4377 = vpop.f32.mrf.mxu0
        %v4378 = vadd.f32 %v2438, %v4377
        %4379 = vmatmul.bf16.gmra.mxu0 %v4163
        %v4380 = vpop.f32.mrf.mxu0
        %v4381 = vadd.f32 %v2440, %v4380
        %v4382 = vpop.f32.mrf.mxu0
        %v4383 = vadd.f32 %v2442, %v4382
        %4384 = vmatmul.bf16.gmra.mxu0 %v4166
        %v4385 = vpop.f32.mrf.mxu0
        %v4386 = vadd.f32 %v2444, %v4385
        %v4387 = vpop.f32.mrf.mxu0
        %v4388 = vadd.f32 %v2446, %v4387
        %4389 = vmatmul.bf16.gmra.mxu0 %v4169
        %v4390 = vpop.f32.mrf.mxu0
        %v4391 = vadd.f32 %v2448, %v4390
        %v4392 = vpop.f32.mrf.mxu0
        %v4393 = vadd.f32 %v2450, %v4392
        %4394 = vmatmul.bf16.gmra.mxu0 %v4172
        %v4395 = vpop.f32.mrf.mxu0
        %v4396 = vadd.f32 %v2452, %v4395
        %v4397 = vpop.f32.mrf.mxu0
        %v4398 = vadd.f32 %v2454, %v4397
        %4399 = vdwg.mxu0
        %v4400 = vmax.f32 %v4232, %v4321
        %4401 = vmax.xlane.f32.xlu0 %v4400
        %v4402 = vpop.xlane.xlu0 %4401
        %v4403 = vmax.f32 %v4234, %v4323
        %4404 = vmax.xlane.f32.xlu0 %v4403
        %v4405 = vpop.xlane.xlu0 %4404
        %v4406 = vmax.f32 %v4237, %v4326
        %4407 = vmax.xlane.f32.xlu0 %v4406
        %v4408 = vpop.xlane.xlu0 %4407
        %v4409 = vmax.f32 %v4239, %v4328
        %4410 = vmax.xlane.f32.xlu0 %v4409
        %v4411 = vpop.xlane.xlu0 %4410
        %v4412 = vmax.f32 %v4242, %v4331
        %4413 = vmax.xlane.f32.xlu0 %v4412
        %v4414 = vpop.xlane.xlu0 %4413
        %v4415 = vmax.f32 %v4244, %v4333
        %4416 = vmax.xlane.f32.xlu0 %v4415
        %v4417 = vpop.xlane.xlu0 %4416
        %v4418 = vmax.f32 %v4247, %v4336
        %4419 = vmax.xlane.f32.xlu0 %v4418
        %v4420 = vpop.xlane.xlu0 %4419
        %v4421 = vmax.f32 %v4249, %v4338
        %4422 = vmax.xlane.f32.xlu0 %v4421
        %v4423 = vpop.xlane.xlu0 %4422
        %v4424 = vmax.f32 %v4252, %v4341
        %4425 = vmax.xlane.f32.xlu0 %v4424
        %v4426 = vpop.xlane.xlu0 %4425
        %v4427 = vmax.f32 %v4254, %v4343
        %4428 = vmax.xlane.f32.xlu0 %v4427
        %v4429 = vpop.xlane.xlu0 %4428
        %v4430 = vmax.f32 %v4257, %v4346
        %4431 = vmax.xlane.f32.xlu0 %v4430
        %v4432 = vpop.xlane.xlu0 %4431
        %v4433 = vmax.f32 %v4259, %v4348
        %4434 = vmax.xlane.f32.xlu0 %v4433
        %v4435 = vpop.xlane.xlu0 %4434
        %v4436 = vmax.f32 %v4262, %v4351
        %4437 = vmax.xlane.f32.xlu0 %v4436
        %v4438 = vpop.xlane.xlu0 %4437
        %v4439 = vmax.f32 %v4264, %v4353
        %4440 = vmax.xlane.f32.xlu0 %v4439
        %v4441 = vpop.xlane.xlu0 %4440
        %v4442 = vmax.f32 %v4267, %v4356
        %4443 = vmax.xlane.f32.xlu0 %v4442
        %v4444 = vpop.xlane.xlu0 %4443
        %v4445 = vmax.f32 %v4269, %v4358
        %4446 = vmax.xlane.f32.xlu0 %v4445
        %v4447 = vpop.xlane.xlu0 %4446
        %v4448 = vmax.f32 %v4272, %v4361
        %4449 = vmax.xlane.f32.xlu0 %v4448
        %v4450 = vpop.xlane.xlu0 %4449
        %v4451 = vmax.f32 %v4274, %v4363
        %4452 = vmax.xlane.f32.xlu0 %v4451
        %v4453 = vpop.xlane.xlu0 %4452
        %v4454 = vmax.f32 %v4277, %v4366
        %4455 = vmax.xlane.f32.xlu0 %v4454
        %v4456 = vpop.xlane.xlu0 %4455
        %v4457 = vmax.f32 %v4279, %v4368
        %4458 = vmax.xlane.f32.xlu0 %v4457
        %v4459 = vpop.xlane.xlu0 %4458
        %v4460 = vmax.f32 %v4282, %v4371
        %4461 = vmax.xlane.f32.xlu0 %v4460
        %v4462 = vpop.xlane.xlu0 %4461
        %v4463 = vmax.f32 %v4284, %v4373
        %4464 = vmax.xlane.f32.xlu0 %v4463
        %v4465 = vpop.xlane.xlu0 %4464
        %v4466 = vmax.f32 %v4287, %v4376
        %4467 = vmax.xlane.f32.xlu0 %v4466
        %v4468 = vpop.xlane.xlu0 %4467
        %v4469 = vmax.f32 %v4289, %v4378
        %4470 = vmax.xlane.f32.xlu0 %v4469
        %v4471 = vpop.xlane.xlu0 %4470
        %v4472 = vmax.f32 %v4292, %v4381
        %4473 = vmax.xlane.f32.xlu0 %v4472
        %v4474 = vpop.xlane.xlu0 %4473
        %v4475 = vmax.f32 %v4294, %v4383
        %4476 = vmax.xlane.f32.xlu0 %v4475
        %v4477 = vpop.xlane.xlu0 %4476
        %v4478 = vmax.f32 %v4297, %v4386
        %4479 = vmax.xlane.f32.xlu0 %v4478
        %v4480 = vpop.xlane.xlu0 %4479
        %v4481 = vmax.f32 %v4299, %v4388
        %4482 = vmax.xlane.f32.xlu0 %v4481
        %v4483 = vpop.xlane.xlu0 %4482
        %v4484 = vmax.f32 %v4302, %v4391
        %4485 = vmax.xlane.f32.xlu0 %v4484
        %v4486 = vpop.xlane.xlu0 %4485
        %v4487 = vmax.f32 %v4304, %v4393
        %4488 = vmax.xlane.f32.xlu0 %v4487
        %v4489 = vpop.xlane.xlu0 %4488
        %v4490 = vmax.f32 %v4307, %v4396
        %4491 = vmax.xlane.f32.xlu0 %v4490
        %v4492 = vpop.xlane.xlu0 %4491
        %v4493 = vmax.f32 %v4309, %v4398
        %4494 = vmax.xlane.f32.xlu0 %v4493
        %v4495 = vpop.xlane.xlu0 %4494
        %v4496 = vsub.f32 %v4232, %v4402
        %v4497 = vsub.f32 %v4321, %v4402
        %v4498 = vsub.f32 %v4234, %v4405
        %v4499 = vsub.f32 %v4323, %v4405
        %v4500 = vsub.f32 %v4237, %v4408
        %v4501 = vsub.f32 %v4326, %v4408
        %v4502 = vsub.f32 %v4239, %v4411
        %v4503 = vsub.f32 %v4328, %v4411
        %v4504 = vsub.f32 %v4242, %v4414
        %v4505 = vsub.f32 %v4331, %v4414
        %v4506 = vsub.f32 %v4244, %v4417
        %v4507 = vsub.f32 %v4333, %v4417
        %v4508 = vsub.f32 %v4247, %v4420
        %v4509 = vsub.f32 %v4336, %v4420
        %v4510 = vsub.f32 %v4249, %v4423
        %v4511 = vsub.f32 %v4338, %v4423
        %v4512 = vsub.f32 %v4252, %v4426
        %v4513 = vsub.f32 %v4341, %v4426
        %v4514 = vsub.f32 %v4254, %v4429
        %v4515 = vsub.f32 %v4343, %v4429
        %v4516 = vsub.f32 %v4257, %v4432
        %v4517 = vsub.f32 %v4346, %v4432
        %v4518 = vsub.f32 %v4259, %v4435
        %v4519 = vsub.f32 %v4348, %v4435
        %v4520 = vsub.f32 %v4262, %v4438
        %v4521 = vsub.f32 %v4351, %v4438
        %v4522 = vsub.f32 %v4264, %v4441
        %v4523 = vsub.f32 %v4353, %v4441
        %v4524 = vsub.f32 %v4267, %v4444
        %v4525 = vsub.f32 %v4356, %v4444
        %v4526 = vsub.f32 %v4269, %v4447
        %v4527 = vsub.f32 %v4358, %v4447
        %v4528 = vsub.f32 %v4272, %v4450
        %v4529 = vsub.f32 %v4361, %v4450
        %v4530 = vsub.f32 %v4274, %v4453
        %v4531 = vsub.f32 %v4363, %v4453
        %v4532 = vsub.f32 %v4277, %v4456
        %v4533 = vsub.f32 %v4366, %v4456
        %v4534 = vsub.f32 %v4279, %v4459
        %v4535 = vsub.f32 %v4368, %v4459
        %v4536 = vsub.f32 %v4282, %v4462
        %v4537 = vsub.f32 %v4371, %v4462
        %v4538 = vsub.f32 %v4284, %v4465
        %v4539 = vsub.f32 %v4373, %v4465
        %v4540 = vsub.f32 %v4287, %v4468
        %v4541 = vsub.f32 %v4376, %v4468
        %v4542 = vsub.f32 %v4289, %v4471
        %v4543 = vsub.f32 %v4378, %v4471
        %v4544 = vsub.f32 %v4292, %v4474
        %v4545 = vsub.f32 %v4381, %v4474
        %v4546 = vsub.f32 %v4294, %v4477
        %v4547 = vsub.f32 %v4383, %v4477
        %v4548 = vsub.f32 %v4297, %v4480
        %v4549 = vsub.f32 %v4386, %v4480
        %v4550 = vsub.f32 %v4299, %v4483
        %v4551 = vsub.f32 %v4388, %v4483
        %v4552 = vsub.f32 %v4302, %v4486
        %v4553 = vsub.f32 %v4391, %v4486
        %v4554 = vsub.f32 %v4304, %v4489
        %v4555 = vsub.f32 %v4393, %v4489
        %v4556 = vsub.f32 %v4307, %v4492
        %v4557 = vsub.f32 %v4396, %v4492
        %v4558 = vsub.f32 %v4309, %v4495
        %v4559 = vsub.f32 %v4398, %v4495
        %v4560 = vmul.f32 %v4496, 1.442695
        %v4561 = vpow.pop %v4560
        %v4562 = vmul.f32 %v4497, 1.442695
        %v4563 = vpow.pop %v4562
        %v4564 = vmul.f32 %v4498, 1.442695
        %v4565 = vpow.pop %v4564
        %v4566 = vmul.f32 %v4499, 1.442695
        %v4567 = vpow.pop %v4566
        %v4568 = vmul.f32 %v4500, 1.442695
        %v4569 = vpow.pop %v4568
        %v4570 = vmul.f32 %v4501, 1.442695
        %v4571 = vpow.pop %v4570
        %v4572 = vmul.f32 %v4502, 1.442695
        %v4573 = vpow.pop %v4572
        %v4574 = vmul.f32 %v4503, 1.442695
        %v4575 = vpow.pop %v4574
        %v4576 = vmul.f32 %v4504, 1.442695
        %v4577 = vpow.pop %v4576
        %v4578 = vmul.f32 %v4505, 1.442695
        %v4579 = vpow.pop %v4578
        %v4580 = vmul.f32 %v4506, 1.442695
        %v4581 = vpow.pop %v4580
        %v4582 = vmul.f32 %v4507, 1.442695
        %v4583 = vpow.pop %v4582
        %v4584 = vmul.f32 %v4508, 1.442695
        %v4585 = vpow.pop %v4584
        %v4586 = vmul.f32 %v4509, 1.442695
        %v4587 = vpow.pop %v4586
        %v4588 = vmul.f32 %v4510, 1.442695
        %v4589 = vpow.pop %v4588
        %v4590 = vmul.f32 %v4511, 1.442695
        %v4591 = vpow.pop %v4590
        %v4592 = vmul.f32 %v4512, 1.442695
        %v4593 = vpow.pop %v4592
        %v4594 = vmul.f32 %v4513, 1.442695
        %v4595 = vpow.pop %v4594
        %v4596 = vmul.f32 %v4514, 1.442695
        %v4597 = vpow.pop %v4596
        %v4598 = vmul.f32 %v4515, 1.442695
        %v4599 = vpow.pop %v4598
        %v4600 = vmul.f32 %v4516, 1.442695
        %v4601 = vpow.pop %v4600
        %v4602 = vmul.f32 %v4517, 1.442695
        %v4603 = vpow.pop %v4602
        %v4604 = vmul.f32 %v4518, 1.442695
        %v4605 = vpow.pop %v4604
        %v4606 = vmul.f32 %v4519, 1.442695
        %v4607 = vpow.pop %v4606
        %v4608 = vmul.f32 %v4520, 1.442695
        %v4609 = vpow.pop %v4608
        %v4610 = vmul.f32 %v4521, 1.442695
        %v4611 = vpow.pop %v4610
        %v4612 = vmul.f32 %v4522, 1.442695
        %v4613 = vpow.pop %v4612
        %v4614 = vmul.f32 %v4523, 1.442695
        %v4615 = vpow.pop %v4614
        %v4616 = vmul.f32 %v4524, 1.442695
        %v4617 = vpow.pop %v4616
        %v4618 = vmul.f32 %v4525, 1.442695
        %v4619 = vpow.pop %v4618
        %v4620 = vmul.f32 %v4526, 1.442695
        %v4621 = vpow.pop %v4620
        %v4622 = vmul.f32 %v4527, 1.442695
        %v4623 = vpow.pop %v4622
        %v4624 = vmul.f32 %v4528, 1.442695
        %v4625 = vpow.pop %v4624
        %v4626 = vmul.f32 %v4529, 1.442695
        %v4627 = vpow.pop %v4626
        %v4628 = vmul.f32 %v4530, 1.442695
        %v4629 = vpow.pop %v4628
        %v4630 = vmul.f32 %v4531, 1.442695
        %v4631 = vpow.pop %v4630
        %v4632 = vmul.f32 %v4532, 1.442695
        %v4633 = vpow.pop %v4632
        %v4634 = vmul.f32 %v4533, 1.442695
        %v4635 = vpow.pop %v4634
        %v4636 = vmul.f32 %v4534, 1.442695
        %v4637 = vpow.pop %v4636
        %v4638 = vmul.f32 %v4535, 1.442695
        %v4639 = vpow.pop %v4638
        %v4640 = vmul.f32 %v4536, 1.442695
        %v4641 = vpow.pop %v4640
        %v4642 = vmul.f32 %v4537, 1.442695
        %v4643 = vpow.pop %v4642
        %v4644 = vmul.f32 %v4538, 1.442695
        %v4645 = vpow.pop %v4644
        %v4646 = vmul.f32 %v4539, 1.442695
        %v4647 = vpow.pop %v4646
        %v4648 = vmul.f32 %v4540, 1.442695
        %v4649 = vpow.pop %v4648
        %v4650 = vmul.f32 %v4541, 1.442695
        %v4651 = vpow.pop %v4650
        %v4652 = vmul.f32 %v4542, 1.442695
        %v4653 = vpow.pop %v4652
        %v4654 = vmul.f32 %v4543, 1.442695
        %v4655 = vpow.pop %v4654
        %v4656 = vmul.f32 %v4544, 1.442695
        %v4657 = vpow.pop %v4656
        %v4658 = vmul.f32 %v4545, 1.442695
        %v4659 = vpow.pop %v4658
        %v4660 = vmul.f32 %v4546, 1.442695
        %v4661 = vpow.pop %v4660
        %v4662 = vmul.f32 %v4547, 1.442695
        %v4663 = vpow.pop %v4662
        %v4664 = vmul.f32 %v4548, 1.442695
        %v4665 = vpow.pop %v4664
        %v4666 = vmul.f32 %v4549, 1.442695
        %v4667 = vpow.pop %v4666
        %v4668 = vmul.f32 %v4550, 1.442695
        %v4669 = vpow.pop %v4668
        %v4670 = vmul.f32 %v4551, 1.442695
        %v4671 = vpow.pop %v4670
        %v4672 = vmul.f32 %v4552, 1.442695
        %v4673 = vpow.pop %v4672
        %v4674 = vmul.f32 %v4553, 1.442695
        %v4675 = vpow.pop %v4674
        %v4676 = vmul.f32 %v4554, 1.442695
        %v4677 = vpow.pop %v4676
        %v4678 = vmul.f32 %v4555, 1.442695
        %v4679 = vpow.pop %v4678
        %v4680 = vmul.f32 %v4556, 1.442695
        %v4681 = vpow.pop %v4680
        %v4682 = vmul.f32 %v4557, 1.442695
        %v4683 = vpow.pop %v4682
        %v4684 = vmul.f32 %v4558, 1.442695
        %v4685 = vpow.pop %v4684
        %v4686 = vmul.f32 %v4559, 1.442695
        %v4687 = vpow.pop %v4686
        %v4688 = vadd.f32 %v4561, %v4563
        %4689 = vadd.xlane.f32.xlu0 %v4688
        %v4690 = vpop.xlane.xlu0 %4689
        %v4691 = vadd.f32 %v4565, %v4567
        %4692 = vadd.xlane.f32.xlu0 %v4691
        %v4693 = vpop.xlane.xlu0 %4692
        %v4694 = vadd.f32 %v4569, %v4571
        %4695 = vadd.xlane.f32.xlu0 %v4694
        %v4696 = vpop.xlane.xlu0 %4695
        %v4697 = vadd.f32 %v4573, %v4575
        %4698 = vadd.xlane.f32.xlu0 %v4697
        %v4699 = vpop.xlane.xlu0 %4698
        %v4700 = vadd.f32 %v4577, %v4579
        %4701 = vadd.xlane.f32.xlu0 %v4700
        %v4702 = vpop.xlane.xlu0 %4701
        %v4703 = vadd.f32 %v4581, %v4583
        %4704 = vadd.xlane.f32.xlu0 %v4703
        %v4705 = vpop.xlane.xlu0 %4704
        %v4706 = vadd.f32 %v4585, %v4587
        %4707 = vadd.xlane.f32.xlu0 %v4706
        %v4708 = vpop.xlane.xlu0 %4707
        %v4709 = vadd.f32 %v4589, %v4591
        %4710 = vadd.xlane.f32.xlu0 %v4709
        %v4711 = vpop.xlane.xlu0 %4710
        %v4712 = vadd.f32 %v4593, %v4595
        %4713 = vadd.xlane.f32.xlu0 %v4712
        %v4714 = vpop.xlane.xlu0 %4713
        %v4715 = vadd.f32 %v4597, %v4599
        %4716 = vadd.xlane.f32.xlu0 %v4715
        %v4717 = vpop.xlane.xlu0 %4716
        %v4718 = vadd.f32 %v4601, %v4603
        %4719 = vadd.xlane.f32.xlu0 %v4718
        %v4720 = vpop.xlane.xlu0 %4719
        %v4721 = vadd.f32 %v4605, %v4607
        %4722 = vadd.xlane.f32.xlu0 %v4721
        %v4723 = vpop.xlane.xlu0 %4722
        %v4724 = vadd.f32 %v4609, %v4611
        %4725 = vadd.xlane.f32.xlu0 %v4724
        %v4726 = vpop.xlane.xlu0 %4725
        %v4727 = vadd.f32 %v4613, %v4615
        %4728 = vadd.xlane.f32.xlu0 %v4727
        %v4729 = vpop.xlane.xlu0 %4728
        %v4730 = vadd.f32 %v4617, %v4619
        %4731 = vadd.xlane.f32.xlu0 %v4730
        %v4732 = vpop.xlane.xlu0 %4731
        %v4733 = vadd.f32 %v4621, %v4623
        %4734 = vadd.xlane.f32.xlu0 %v4733
        %v4735 = vpop.xlane.xlu0 %4734
        %v4736 = vadd.f32 %v4625, %v4627
        %4737 = vadd.xlane.f32.xlu0 %v4736
        %v4738 = vpop.xlane.xlu0 %4737
        %v4739 = vadd.f32 %v4629, %v4631
        %4740 = vadd.xlane.f32.xlu0 %v4739
        %v4741 = vpop.xlane.xlu0 %4740
        %v4742 = vadd.f32 %v4633, %v4635
        %4743 = vadd.xlane.f32.xlu0 %v4742
        %v4744 = vpop.xlane.xlu0 %4743
        %v4745 = vadd.f32 %v4637, %v4639
        %4746 = vadd.xlane.f32.xlu0 %v4745
        %v4747 = vpop.xlane.xlu0 %4746
        %v4748 = vadd.f32 %v4641, %v4643
        %4749 = vadd.xlane.f32.xlu0 %v4748
        %v4750 = vpop.xlane.xlu0 %4749
        %v4751 = vadd.f32 %v4645, %v4647
        %4752 = vadd.xlane.f32.xlu0 %v4751
        %v4753 = vpop.xlane.xlu0 %4752
        %v4754 = vadd.f32 %v4649, %v4651
        %4755 = vadd.xlane.f32.xlu0 %v4754
        %v4756 = vpop.xlane.xlu0 %4755
        %v4757 = vadd.f32 %v4653, %v4655
        %4758 = vadd.xlane.f32.xlu0 %v4757
        %v4759 = vpop.xlane.xlu0 %4758
        %v4760 = vadd.f32 %v4657, %v4659
        %4761 = vadd.xlane.f32.xlu0 %v4760
        %v4762 = vpop.xlane.xlu0 %4761
        %v4763 = vadd.f32 %v4661, %v4663
        %4764 = vadd.xlane.f32.xlu0 %v4763
        %v4765 = vpop.xlane.xlu0 %4764
        %v4766 = vadd.f32 %v4665, %v4667
        %4767 = vadd.xlane.f32.xlu0 %v4766
        %v4768 = vpop.xlane.xlu0 %4767
        %v4769 = vadd.f32 %v4669, %v4671
        %4770 = vadd.xlane.f32.xlu0 %v4769
        %v4771 = vpop.xlane.xlu0 %4770
        %v4772 = vadd.f32 %v4673, %v4675
        %4773 = vadd.xlane.f32.xlu0 %v4772
        %v4774 = vpop.xlane.xlu0 %4773
        %v4775 = vadd.f32 %v4677, %v4679
        %4776 = vadd.xlane.f32.xlu0 %v4775
        %v4777 = vpop.xlane.xlu0 %4776
        %v4778 = vadd.f32 %v4681, %v4683
        %4779 = vadd.xlane.f32.xlu0 %v4778
        %v4780 = vpop.xlane.xlu0 %4779
        %v4781 = vadd.f32 %v4685, %v4687
        %4782 = vadd.xlane.f32.xlu0 %v4781
        %v4783 = vpop.xlane.xlu0 %4782
        %v4784 = vrcp.pop %v4690
        %v4785 = vrcp.pop %v4693
        %v4786 = vrcp.pop %v4696
        %v4787 = vrcp.pop %v4699
        %v4788 = vrcp.pop %v4702
        %v4789 = vrcp.pop %v4705
        %v4790 = vrcp.pop %v4708
        %v4791 = vrcp.pop %v4711
        %v4792 = vrcp.pop %v4714
        %v4793 = vrcp.pop %v4717
        %v4794 = vrcp.pop %v4720
        %v4795 = vrcp.pop %v4723
        %v4796 = vrcp.pop %v4726
        %v4797 = vrcp.pop %v4729
        %v4798 = vrcp.pop %v4732
        %v4799 = vrcp.pop %v4735
        %v4800 = vrcp.pop %v4738
        %v4801 = vrcp.pop %v4741
        %v4802 = vrcp.pop %v4744
        %v4803 = vrcp.pop %v4747
        %v4804 = vrcp.pop %v4750
        %v4805 = vrcp.pop %v4753
        %v4806 = vrcp.pop %v4756
        %v4807 = vrcp.pop %v4759
        %v4808 = vrcp.pop %v4762
        %v4809 = vrcp.pop %v4765
        %v4810 = vrcp.pop %v4768
        %v4811 = vrcp.pop %v4771
        %v4812 = vrcp.pop %v4774
        %v4813 = vrcp.pop %v4777
        %v4814 = vrcp.pop %v4780
        %v4815 = vrcp.pop %v4783
        %v4816 = vpack.c.bf16 %v4565, %v4561
        %v4817 = vpack.c.bf16 %v4567, %v4563
        %v4818 = vpack.c.bf16 %v4573, %v4569
        %v4819 = vpack.c.bf16 %v4575, %v4571
        %v4820 = vpack.c.bf16 %v4581, %v4577
        %v4821 = vpack.c.bf16 %v4583, %v4579
        %v4822 = vpack.c.bf16 %v4589, %v4585
        %v4823 = vpack.c.bf16 %v4591, %v4587
        %v4824 = vpack.c.bf16 %v4597, %v4593
        %v4825 = vpack.c.bf16 %v4599, %v4595
        %v4826 = vpack.c.bf16 %v4605, %v4601
        %v4827 = vpack.c.bf16 %v4607, %v4603
        %v4828 = vpack.c.bf16 %v4613, %v4609
        %v4829 = vpack.c.bf16 %v4615, %v4611
        %v4830 = vpack.c.bf16 %v4621, %v4617
        %v4831 = vpack.c.bf16 %v4623, %v4619
        %v4832 = vpack.c.bf16 %v4629, %v4625
        %v4833 = vpack.c.bf16 %v4631, %v4627
        %v4834 = vpack.c.bf16 %v4637, %v4633
        %v4835 = vpack.c.bf16 %v4639, %v4635
        %v4836 = vpack.c.bf16 %v4645, %v4641
        %v4837 = vpack.c.bf16 %v4647, %v4643
        %v4838 = vpack.c.bf16 %v4653, %v4649
        %v4839 = vpack.c.bf16 %v4655, %v4651
        %v4840 = vpack.c.bf16 %v4661, %v4657
        %v4841 = vpack.c.bf16 %v4663, %v4659
        %v4842 = vpack.c.bf16 %v4669, %v4665
        %v4843 = vpack.c.bf16 %v4671, %v4667
        %v4844 = vpack.c.bf16 %v4677, %v4673
        %v4845 = vpack.c.bf16 %v4679, %v4675
        %v4846 = vpack.c.bf16 %v4685, %v4681
        %v4847 = vpack.c.bf16 %v4687, %v4683
        %v4880 = vunpack.c.l.b16 %v4014
        %v4881 = vunpack.c.l.b16 %v4015
        %v4882 = vunpack.c.l.b16 %v4016
        %v4883 = vunpack.c.l.b16 %v4017
        %v4884 = vunpack.c.l.b16 %v4018
        %v4885 = vunpack.c.l.b16 %v4019
        %v4886 = vunpack.c.l.b16 %v4020
        %v4887 = vunpack.c.l.b16 %v4021
        %v4888 = vunpack.c.l.b16 %v4022
        %v4889 = vunpack.c.l.b16 %v4023
        %v4890 = vunpack.c.l.b16 %v4024
        %v4891 = vunpack.c.l.b16 %v4025
        %v4892 = vunpack.c.l.b16 %v4026
        %v4893 = vunpack.c.l.b16 %v4027
        %v4894 = vunpack.c.l.b16 %v4028
        %v4895 = vunpack.c.l.b16 %v4029
        %v4896 = vunpack.c.l.b16 %v4030
        %v4897 = vunpack.c.l.b16 %v4031
        %v4898 = vunpack.c.l.b16 %v4032
        %v4899 = vunpack.c.l.b16 %v4033
        %v4900 = vunpack.c.l.b16 %v4034
        %v4901 = vunpack.c.l.b16 %v4035
        %v4902 = vunpack.c.l.b16 %v4036
        %v4903 = vunpack.c.l.b16 %v4037
        %v4904 = vunpack.c.l.b16 %v4038
        %v4905 = vunpack.c.l.b16 %v4039
        %v4906 = vunpack.c.l.b16 %v4040
        %v4907 = vunpack.c.l.b16 %v4041
        %v4908 = vunpack.c.l.b16 %v4042
        %v4909 = vunpack.c.l.b16 %v4043
        %v4910 = vunpack.c.l.b16 %v4044
        %v4911 = vunpack.c.l.b16 %v4045
        %v4912 = vpack.c.b16 %v4881, %v4880
        %v4913 = vpack.c.b16 %v4883, %v4882
        %v4914 = vpack.c.b16 %v4885, %v4884
        %v4915 = vpack.c.b16 %v4887, %v4886
        %v4916 = vpack.c.b16 %v4889, %v4888
        %v4917 = vpack.c.b16 %v4891, %v4890
        %v4918 = vpack.c.b16 %v4893, %v4892
        %v4919 = vpack.c.b16 %v4895, %v4894
        %v4920 = vpack.c.b16 %v4897, %v4896
        %v4921 = vpack.c.b16 %v4899, %v4898
        %v4922 = vpack.c.b16 %v4901, %v4900
        %v4923 = vpack.c.b16 %v4903, %v4902
        %v4924 = vpack.c.b16 %v4905, %v4904
        %v4925 = vpack.c.b16 %v4907, %v4906
        %v4926 = vpack.c.b16 %v4909, %v4908
        %v4927 = vpack.c.b16 %v4911, %v4910
        %4944 = vmatpush.bf16.msra.mxu0 %v4919
        %4945 = vmatpush.bf16.msra.mxu0 %v4918
        %4946 = vmatpush.bf16.msra.mxu0 %v4917
        %4947 = vmatpush.bf16.msra.mxu0 %v4916
        %4948 = vmatpush.bf16.msra.mxu0 %v4915
        %4949 = vmatpush.bf16.msra.mxu0 %v4914
        %4950 = vmatpush.bf16.msra.mxu0 %v4913
        %4951 = vmatpush.bf16.msra.mxu0 %v4912
        %4952 = vmatmul.bf16.gmra.mxu0 %v4816
        %v4953 = vpop.f32.mrf.mxu0
        %v4954 = vadd.f32 0.0, %v4953
        %v4955 = vpop.f32.mrf.mxu0
        %v4956 = vadd.f32 0.0, %v4955
        %4957 = vmatmul.bf16.gmra.mxu0 %v4818
        %v4958 = vpop.f32.mrf.mxu0
        %v4959 = vadd.f32 0.0, %v4958
        %v4960 = vpop.f32.mrf.mxu0
        %v4961 = vadd.f32 0.0, %v4960
        %4962 = vmatmul.bf16.gmra.mxu0 %v4820
        %v4963 = vpop.f32.mrf.mxu0
        %v4964 = vadd.f32 0.0, %v4963
        %v4965 = vpop.f32.mrf.mxu0
        %v4966 = vadd.f32 0.0, %v4965
        %4967 = vmatmul.bf16.gmra.mxu0 %v4822
        %v4968 = vpop.f32.mrf.mxu0
        %v4969 = vadd.f32 0.0, %v4968
        %v4970 = vpop.f32.mrf.mxu0
        %v4971 = vadd.f32 0.0, %v4970
        %4972 = vmatmul.bf16.gmra.mxu0 %v4824
        %v4973 = vpop.f32.mrf.mxu0
        %v4974 = vadd.f32 0.0, %v4973
        %v4975 = vpop.f32.mrf.mxu0
        %v4976 = vadd.f32 0.0, %v4975
        %4977 = vmatmul.bf16.gmra.mxu0 %v4826
        %v4978 = vpop.f32.mrf.mxu0
        %v4979 = vadd.f32 0.0, %v4978
        %v4980 = vpop.f32.mrf.mxu0
        %v4981 = vadd.f32 0.0, %v4980
        %4982 = vmatmul.bf16.gmra.mxu0 %v4828
        %v4983 = vpop.f32.mrf.mxu0
        %v4984 = vadd.f32 0.0, %v4983
        %v4985 = vpop.f32.mrf.mxu0
        %v4986 = vadd.f32 0.0, %v4985
        %4987 = vmatmul.bf16.gmra.mxu0 %v4830
        %v4988 = vpop.f32.mrf.mxu0
        %v4989 = vadd.f32 0.0, %v4988
        %v4990 = vpop.f32.mrf.mxu0
        %v4991 = vadd.f32 0.0, %v4990
        %4992 = vmatmul.bf16.gmra.mxu0 %v4832
        %v4993 = vpop.f32.mrf.mxu0
        %v4994 = vadd.f32 0.0, %v4993
        %v4995 = vpop.f32.mrf.mxu0
        %v4996 = vadd.f32 0.0, %v4995
        %4997 = vmatmul.bf16.gmra.mxu0 %v4834
        %v4998 = vpop.f32.mrf.mxu0
        %v4999 = vadd.f32 0.0, %v4998
        %v5000 = vpop.f32.mrf.mxu0
        %v5001 = vadd.f32 0.0, %v5000
        %5002 = vmatmul.bf16.gmra.mxu0 %v4836
        %v5003 = vpop.f32.mrf.mxu0
        %v5004 = vadd.f32 0.0, %v5003
        %v5005 = vpop.f32.mrf.mxu0
        %v5006 = vadd.f32 0.0, %v5005
        %5007 = vmatmul.bf16.gmra.mxu0 %v4838
        %v5008 = vpop.f32.mrf.mxu0
        %v5009 = vadd.f32 0.0, %v5008
        %v5010 = vpop.f32.mrf.mxu0
        %v5011 = vadd.f32 0.0, %v5010
        %5012 = vmatmul.bf16.gmra.mxu0 %v4840
        %v5013 = vpop.f32.mrf.mxu0
        %v5014 = vadd.f32 0.0, %v5013
        %v5015 = vpop.f32.mrf.mxu0
        %v5016 = vadd.f32 0.0, %v5015
        %5017 = vmatmul.bf16.gmra.mxu0 %v4842
        %v5018 = vpop.f32.mrf.mxu0
        %v5019 = vadd.f32 0.0, %v5018
        %v5020 = vpop.f32.mrf.mxu0
        %v5021 = vadd.f32 0.0, %v5020
        %5022 = vmatmul.bf16.gmra.mxu0 %v4844
        %v5023 = vpop.f32.mrf.mxu0
        %v5024 = vadd.f32 0.0, %v5023
        %v5025 = vpop.f32.mrf.mxu0
        %v5026 = vadd.f32 0.0, %v5025
        %5027 = vmatmul.bf16.gmra.mxu0 %v4846
        %v5028 = vpop.f32.mrf.mxu0
        %v5029 = vadd.f32 0.0, %v5028
        %v5030 = vpop.f32.mrf.mxu0
        %v5031 = vadd.f32 0.0, %v5030
        %5032 = vdwg.mxu0
        %5033 = vmatpush.bf16.msra.mxu0 %v4927
        %5034 = vmatpush.bf16.msra.mxu0 %v4926
        %5035 = vmatpush.bf16.msra.mxu0 %v4925
        %5036 = vmatpush.bf16.msra.mxu0 %v4924
        %5037 = vmatpush.bf16.msra.mxu0 %v4923
        %5038 = vmatpush.bf16.msra.mxu0 %v4922
        %5039 = vmatpush.bf16.msra.mxu0 %v4921
        %5040 = vmatpush.bf16.msra.mxu0 %v4920
        %5041 = vmatmul.bf16.gmra.mxu0 %v4817
        %v5042 = vpop.f32.mrf.mxu0
        %v5043 = vadd.f32 %v4954, %v5042
        %v5044 = vpop.f32.mrf.mxu0
        %v5045 = vadd.f32 %v4956, %v5044
        %5046 = vmatmul.bf16.gmra.mxu0 %v4819
        %v5047 = vpop.f32.mrf.mxu0
        %v5048 = vadd.f32 %v4959, %v5047
        %v5049 = vpop.f32.mrf.mxu0
        %v5050 = vadd.f32 %v4961, %v5049
        %5051 = vmatmul.bf16.gmra.mxu0 %v4821
        %v5052 = vpop.f32.mrf.mxu0
        %v5053 = vadd.f32 %v4964, %v5052
        %v5054 = vpop.f32.mrf.mxu0
        %v5055 = vadd.f32 %v4966, %v5054
        %5056 = vmatmul.bf16.gmra.mxu0 %v4823
        %v5057 = vpop.f32.mrf.mxu0
        %v5058 = vadd.f32 %v4969, %v5057
        %v5059 = vpop.f32.mrf.mxu0
        %v5060 = vadd.f32 %v4971, %v5059
        %5061 = vmatmul.bf16.gmra.mxu0 %v4825
        %v5062 = vpop.f32.mrf.mxu0
        %v5063 = vadd.f32 %v4974, %v5062
        %v5064 = vpop.f32.mrf.mxu0
        %v5065 = vadd.f32 %v4976, %v5064
        %5066 = vmatmul.bf16.gmra.mxu0 %v4827
        %v5067 = vpop.f32.mrf.mxu0
        %v5068 = vadd.f32 %v4979, %v5067
        %v5069 = vpop.f32.mrf.mxu0
        %v5070 = vadd.f32 %v4981, %v5069
        %5071 = vmatmul.bf16.gmra.mxu0 %v4829
        %v5072 = vpop.f32.mrf.mxu0
        %v5073 = vadd.f32 %v4984, %v5072
        %v5074 = vpop.f32.mrf.mxu0
        %v5075 = vadd.f32 %v4986, %v5074
        %5076 = vmatmul.bf16.gmra.mxu0 %v4831
        %v5077 = vpop.f32.mrf.mxu0
        %v5078 = vadd.f32 %v4989, %v5077
        %v5079 = vpop.f32.mrf.mxu0
        %v5080 = vadd.f32 %v4991, %v5079
        %5081 = vmatmul.bf16.gmra.mxu0 %v4833
        %v5082 = vpop.f32.mrf.mxu0
        %v5083 = vadd.f32 %v4994, %v5082
        %v5084 = vpop.f32.mrf.mxu0
        %v5085 = vadd.f32 %v4996, %v5084
        %5086 = vmatmul.bf16.gmra.mxu0 %v4835
        %v5087 = vpop.f32.mrf.mxu0
        %v5088 = vadd.f32 %v4999, %v5087
        %v5089 = vpop.f32.mrf.mxu0
        %v5090 = vadd.f32 %v5001, %v5089
        %5091 = vmatmul.bf16.gmra.mxu0 %v4837
        %v5092 = vpop.f32.mrf.mxu0
        %v5093 = vadd.f32 %v5004, %v5092
        %v5094 = vpop.f32.mrf.mxu0
        %v5095 = vadd.f32 %v5006, %v5094
        %5096 = vmatmul.bf16.gmra.mxu0 %v4839
        %v5097 = vpop.f32.mrf.mxu0
        %v5098 = vadd.f32 %v5009, %v5097
        %v5099 = vpop.f32.mrf.mxu0
        %v5100 = vadd.f32 %v5011, %v5099
        %5101 = vmatmul.bf16.gmra.mxu0 %v4841
        %v5102 = vpop.f32.mrf.mxu0
        %v5103 = vadd.f32 %v5014, %v5102
        %v5104 = vpop.f32.mrf.mxu0
        %v5105 = vadd.f32 %v5016, %v5104
        %5106 = vmatmul.bf16.gmra.mxu0 %v4843
        %v5107 = vpop.f32.mrf.mxu0
        %v5108 = vadd.f32 %v5019, %v5107
        %v5109 = vpop.f32.mrf.mxu0
        %v5110 = vadd.f32 %v5021, %v5109
        %5111 = vmatmul.bf16.gmra.mxu0 %v4845
        %v5112 = vpop.f32.mrf.mxu0
        %v5113 = vadd.f32 %v5024, %v5112
        %v5114 = vpop.f32.mrf.mxu0
        %v5115 = vadd.f32 %v5026, %v5114
        %5116 = vmatmul.bf16.gmra.mxu0 %v4847
        %v5117 = vpop.f32.mrf.mxu0
        %v5118 = vadd.f32 %v5029, %v5117
        %v5119 = vpop.f32.mrf.mxu0
        %v5120 = vadd.f32 %v5031, %v5119
        %5121 = vdwg.mxu0
        %v5122 = vmul.f32 %v5043, %v4784
        %v5123 = vmul.f32 %v5045, %v4785
        %v5124 = vmul.f32 %v5048, %v4786
        %v5125 = vmul.f32 %v5050, %v4787
        %v5126 = vmul.f32 %v5053, %v4788
        %v5127 = vmul.f32 %v5055, %v4789
        %v5128 = vmul.f32 %v5058, %v4790
        %v5129 = vmul.f32 %v5060, %v4791
        %v5130 = vmul.f32 %v5063, %v4792
        %v5131 = vmul.f32 %v5065, %v4793
        %v5132 = vmul.f32 %v5068, %v4794
        %v5133 = vmul.f32 %v5070, %v4795
        %v5134 = vmul.f32 %v5073, %v4796
        %v5135 = vmul.f32 %v5075, %v4797
        %v5136 = vmul.f32 %v5078, %v4798
        %v5137 = vmul.f32 %v5080, %v4799
        %v5138 = vmul.f32 %v5083, %v4800
        %v5139 = vmul.f32 %v5085, %v4801
        %v5140 = vmul.f32 %v5088, %v4802
        %v5141 = vmul.f32 %v5090, %v4803
        %v5142 = vmul.f32 %v5093, %v4804
        %v5143 = vmul.f32 %v5095, %v4805
        %v5144 = vmul.f32 %v5098, %v4806
        %v5145 = vmul.f32 %v5100, %v4807
        %v5146 = vmul.f32 %v5103, %v4808
        %v5147 = vmul.f32 %v5105, %v4809
        %v5148 = vmul.f32 %v5108, %v4810
        %v5149 = vmul.f32 %v5110, %v4811
        %v5150 = vmul.f32 %v5113, %v4812
        %v5151 = vmul.f32 %v5115, %v4813
        %v5152 = vmul.f32 %v5118, %v4814
        %v5153 = vmul.f32 %v5120, %v4815
        %v5154 = vpack.c.bf16 %v5123, %v5122
        %v5155 = vpack.c.bf16 %v5125, %v5124
        %v5156 = vpack.c.bf16 %v5127, %v5126
        %v5157 = vpack.c.bf16 %v5129, %v5128
        %v5158 = vpack.c.bf16 %v5131, %v5130
        %v5159 = vpack.c.bf16 %v5133, %v5132
        %v5160 = vpack.c.bf16 %v5135, %v5134
        %v5161 = vpack.c.bf16 %v5137, %v5136
        %v5162 = vpack.c.bf16 %v5139, %v5138
        %v5163 = vpack.c.bf16 %v5141, %v5140
        %v5164 = vpack.c.bf16 %v5143, %v5142
        %v5165 = vpack.c.bf16 %v5145, %v5144
        %v5166 = vpack.c.bf16 %v5147, %v5146
        %v5167 = vpack.c.bf16 %v5149, %v5148
        %v5168 = vpack.c.bf16 %v5151, %v5150
        %v5169 = vpack.c.bf16 %v5153, %v5152
        %v5170 = vld [vmem:[#allocation15 + $0x20] sm:$0xff]
        %v5171 = vld [vmem:[#allocation15 + $0x28] sm:$0xff]
        %v5172 = vld [vmem:[#allocation15 + $0x30] sm:$0xff]
        %v5173 = vld [vmem:[#allocation15 + $0x38] sm:$0xff]
        %v5174 = vpack.c.bf16 %v5171, %v5170
        %v5175 = vpack.c.bf16 %v5173, %v5172
        %v5177 = vsel %vm2760, %v5154, 0
        %v5180 = vsel %vm2760, %v5155, 0
        %v5183 = vsel %vm2760, %v5156, 0
        %v5186 = vsel %vm2760, %v5157, 0
        %v5189 = vsel %vm2760, %v5158, 0
        %v5192 = vsel %vm2760, %v5159, 0
        %v5195 = vsel %vm2760, %v5160, 0
        %v5198 = vsel %vm2760, %v5161, 0
        %v5201 = vsel %vm2760, %v5162, 0
        %v5204 = vsel %vm2760, %v5163, 0
        %v5207 = vsel %vm2760, %v5164, 0
        %v5210 = vsel %vm2760, %v5165, 0
        %v5213 = vsel %vm2760, %v5166, 0
        %v5216 = vsel %vm2760, %v5167, 0
        %v5219 = vsel %vm2760, %v5168, 0
        %v5222 = vsel %vm2760, %v5169, 0
        %5224 = vmatpush.bf16.msra.mxu0 0
        %5225 = vmatpush.bf16.msra.mxu0 0
        %5226 = vmatpush.bf16.msra.mxu0 0
        %5227 = vmatpush.bf16.msra.mxu0 0
        %5228 = vmatpush.bf16.msra.mxu0 0
        %5229 = vmatpush.bf16.msra.mxu0 0
        %5230 = vmatpush.bf16.msra.mxu0 %v5175
        %5231 = vmatpush.bf16.msra.mxu0 %v5174
        %5232 = vmatmul.bf16.gmra.mxu0 %v5177
        %v5233 = vpop.f32.mrf.mxu0
        %v5234 = vadd.f32 0.0, %v5233
        %v5235 = vpop.f32.mrf.mxu0
        %v5236 = vadd.f32 0.0, %v5235
        %5237 = vmatmul.bf16.gmra.mxu0 %v5180
        %v5238 = vpop.f32.mrf.mxu0
        %v5239 = vadd.f32 0.0, %v5238
        %v5240 = vpop.f32.mrf.mxu0
        %v5241 = vadd.f32 0.0, %v5240
        %5242 = vmatmul.bf16.gmra.mxu0 %v5183
        %v5243 = vpop.f32.mrf.mxu0
        %v5244 = vadd.f32 0.0, %v5243
        %v5245 = vpop.f32.mrf.mxu0
        %v5246 = vadd.f32 0.0, %v5245
        %5247 = vmatmul.bf16.gmra.mxu0 %v5186
        %v5248 = vpop.f32.mrf.mxu0
        %v5249 = vadd.f32 0.0, %v5248
        %v5250 = vpop.f32.mrf.mxu0
        %v5251 = vadd.f32 0.0, %v5250
        %5252 = vmatmul.bf16.gmra.mxu0 %v5189
        %v5253 = vpop.f32.mrf.mxu0
        %v5254 = vadd.f32 0.0, %v5253
        %v5255 = vpop.f32.mrf.mxu0
        %v5256 = vadd.f32 0.0, %v5255
        %5257 = vmatmul.bf16.gmra.mxu0 %v5192
        %v5258 = vpop.f32.mrf.mxu0
        %v5259 = vadd.f32 0.0, %v5258
        %v5260 = vpop.f32.mrf.mxu0
        %v5261 = vadd.f32 0.0, %v5260
        %5262 = vmatmul.bf16.gmra.mxu0 %v5195
        %v5263 = vpop.f32.mrf.mxu0
        %v5264 = vadd.f32 0.0, %v5263
        %v5265 = vpop.f32.mrf.mxu0
        %v5266 = vadd.f32 0.0, %v5265
        %5267 = vmatmul.bf16.gmra.mxu0 %v5198
        %v5268 = vpop.f32.mrf.mxu0
        %v5269 = vadd.f32 0.0, %v5268
        %v5270 = vpop.f32.mrf.mxu0
        %v5271 = vadd.f32 0.0, %v5270
        %5272 = vmatmul.bf16.gmra.mxu0 %v5201
        %v5273 = vpop.f32.mrf.mxu0
        %v5274 = vadd.f32 0.0, %v5273
        %v5275 = vpop.f32.mrf.mxu0
        %v5276 = vadd.f32 0.0, %v5275
        %5277 = vmatmul.bf16.gmra.mxu0 %v5204
        %v5278 = vpop.f32.mrf.mxu0
        %v5279 = vadd.f32 0.0, %v5278
        %v5280 = vpop.f32.mrf.mxu0
        %v5281 = vadd.f32 0.0, %v5280
        %5282 = vmatmul.bf16.gmra.mxu0 %v5207
        %v5283 = vpop.f32.mrf.mxu0
        %v5284 = vadd.f32 0.0, %v5283
        %v5285 = vpop.f32.mrf.mxu0
        %v5286 = vadd.f32 0.0, %v5285
        %5287 = vmatmul.bf16.gmra.mxu0 %v5210
        %v5288 = vpop.f32.mrf.mxu0
        %v5289 = vadd.f32 0.0, %v5288
        %v5290 = vpop.f32.mrf.mxu0
        %v5291 = vadd.f32 0.0, %v5290
        %5292 = vmatmul.bf16.gmra.mxu0 %v5213
        %v5293 = vpop.f32.mrf.mxu0
        %v5294 = vadd.f32 0.0, %v5293
        %v5295 = vpop.f32.mrf.mxu0
        %v5296 = vadd.f32 0.0, %v5295
        %5297 = vmatmul.bf16.gmra.mxu0 %v5216
        %v5298 = vpop.f32.mrf.mxu0
        %v5299 = vadd.f32 0.0, %v5298
        %v5300 = vpop.f32.mrf.mxu0
        %v5301 = vadd.f32 0.0, %v5300
        %5302 = vmatmul.bf16.gmra.mxu0 %v5219
        %v5303 = vpop.f32.mrf.mxu0
        %v5304 = vadd.f32 0.0, %v5303
        %v5305 = vpop.f32.mrf.mxu0
        %v5306 = vadd.f32 0.0, %v5305
        %5307 = vmatmul.bf16.gmra.mxu0 %v5222
        %v5308 = vpop.f32.mrf.mxu0
        %v5309 = vadd.f32 0.0, %v5308
        %v5310 = vpop.f32.mrf.mxu0
        %v5311 = vadd.f32 0.0, %v5310
        %5312 = vdwg.mxu0
        %v5314 = vsel %vm2760, %v3789, 0
        %v5317 = vsel %vm2760, %v3790, 0
        %v5320 = vsel %vm2760, %v3791, 0
        %v5323 = vsel %vm2760, %v3792, 0
        %v5326 = vsel %vm2760, %v3793, 0
        %v5329 = vsel %vm2760, %v3794, 0
        %v5332 = vsel %vm2760, %v3795, 0
        %v5335 = vsel %vm2760, %v3796, 0
        %v5338 = vsel %vm2760, %v3797, 0
        %v5341 = vsel %vm2760, %v3798, 0
        %v5344 = vsel %vm2760, %v3799, 0
        %v5347 = vsel %vm2760, %v3800, 0
        %v5350 = vsel %vm2760, %v3801, 0
        %v5353 = vsel %vm2760, %v3802, 0
        %v5356 = vsel %vm2760, %v3803, 0
        %v5359 = vsel %vm2760, %v3804, 0
        %5361 = vmatpush.bf16.msra.mxu0 0
        %5362 = vmatpush.bf16.msra.mxu0 0
        %5363 = vmatpush.bf16.msra.mxu0 0
        %5364 = vmatpush.bf16.msra.mxu0 0
        %5365 = vmatpush.bf16.msra.mxu0 0
        %5366 = vmatpush.bf16.msra.mxu0 0
        %5367 = vmatpush.bf16.msra.mxu0 %v3810
        %5368 = vmatpush.bf16.msra.mxu0 %v3809
        %5369 = vmatmul.bf16.gmra.mxu0 %v5314
        %v5370 = vpop.f32.mrf.mxu0
        %v5371 = vadd.f32 %v5234, %v5370
        %v5372 = vpop.f32.mrf.mxu0
        %v5373 = vadd.f32 %v5236, %v5372
        %5374 = vmatmul.bf16.gmra.mxu0 %v5317
        %v5375 = vpop.f32.mrf.mxu0
        %v5376 = vadd.f32 %v5239, %v5375
        %v5377 = vpop.f32.mrf.mxu0
        %v5378 = vadd.f32 %v5241, %v5377
        %5379 = vmatmul.bf16.gmra.mxu0 %v5320
        %v5380 = vpop.f32.mrf.mxu0
        %v5381 = vadd.f32 %v5244, %v5380
        %v5382 = vpop.f32.mrf.mxu0
        %v5383 = vadd.f32 %v5246, %v5382
        %5384 = vmatmul.bf16.gmra.mxu0 %v5323
        %v5385 = vpop.f32.mrf.mxu0
        %v5386 = vadd.f32 %v5249, %v5385
        %v5387 = vpop.f32.mrf.mxu0
        %v5388 = vadd.f32 %v5251, %v5387
        %5389 = vmatmul.bf16.gmra.mxu0 %v5326
        %v5390 = vpop.f32.mrf.mxu0
        %v5391 = vadd.f32 %v5254, %v5390
        %v5392 = vpop.f32.mrf.mxu0
        %v5393 = vadd.f32 %v5256, %v5392
        %5394 = vmatmul.bf16.gmra.mxu0 %v5329
        %v5395 = vpop.f32.mrf.mxu0
        %v5396 = vadd.f32 %v5259, %v5395
        %v5397 = vpop.f32.mrf.mxu0
        %v5398 = vadd.f32 %v5261, %v5397
        %5399 = vmatmul.bf16.gmra.mxu0 %v5332
        %v5400 = vpop.f32.mrf.mxu0
        %v5401 = vadd.f32 %v5264, %v5400
        %v5402 = vpop.f32.mrf.mxu0
        %v5403 = vadd.f32 %v5266, %v5402
        %5404 = vmatmul.bf16.gmra.mxu0 %v5335
        %v5405 = vpop.f32.mrf.mxu0
        %v5406 = vadd.f32 %v5269, %v5405
        %v5407 = vpop.f32.mrf.mxu0
        %v5408 = vadd.f32 %v5271, %v5407
        %5409 = vmatmul.bf16.gmra.mxu0 %v5338
        %v5410 = vpop.f32.mrf.mxu0
        %v5411 = vadd.f32 %v5274, %v5410
        %v5412 = vpop.f32.mrf.mxu0
        %v5413 = vadd.f32 %v5276, %v5412
        %5414 = vmatmul.bf16.gmra.mxu0 %v5341
        %v5415 = vpop.f32.mrf.mxu0
        %v5416 = vadd.f32 %v5279, %v5415
        %v5417 = vpop.f32.mrf.mxu0
        %v5418 = vadd.f32 %v5281, %v5417
        %5419 = vmatmul.bf16.gmra.mxu0 %v5344
        %v5420 = vpop.f32.mrf.mxu0
        %v5421 = vadd.f32 %v5284, %v5420
        %v5422 = vpop.f32.mrf.mxu0
        %v5423 = vadd.f32 %v5286, %v5422
        %5424 = vmatmul.bf16.gmra.mxu0 %v5347
        %v5425 = vpop.f32.mrf.mxu0
        %v5426 = vadd.f32 %v5289, %v5425
        %v5427 = vpop.f32.mrf.mxu0
        %v5428 = vadd.f32 %v5291, %v5427
        %5429 = vmatmul.bf16.gmra.mxu0 %v5350
        %v5430 = vpop.f32.mrf.mxu0
        %v5431 = vadd.f32 %v5294, %v5430
        %v5432 = vpop.f32.mrf.mxu0
        %v5433 = vadd.f32 %v5296, %v5432
        %5434 = vmatmul.bf16.gmra.mxu0 %v5353
        %v5435 = vpop.f32.mrf.mxu0
        %v5436 = vadd.f32 %v5299, %v5435
        %v5437 = vpop.f32.mrf.mxu0
        %v5438 = vadd.f32 %v5301, %v5437
        %5439 = vmatmul.bf16.gmra.mxu0 %v5356
        %v5440 = vpop.f32.mrf.mxu0
        %v5441 = vadd.f32 %v5304, %v5440
        %v5442 = vpop.f32.mrf.mxu0
        %v5443 = vadd.f32 %v5306, %v5442
        %5444 = vmatmul.bf16.gmra.mxu0 %v5359
        %v5445 = vpop.f32.mrf.mxu0
        %v5446 = vadd.f32 %v5309, %v5445
        %v5447 = vpop.f32.mrf.mxu0
        %v5448 = vadd.f32 %v5311, %v5447
        %5449 = vdwg.mxu0
        %5450 = vrot.lane.b32.xlu0 %v2471, 64
        %v5451 = vpop.permute.xlu0 %5450
        %5452 = vrot.lane.b32.xlu0 %v2472, 64
        %v5453 = vpop.permute.xlu0 %5452
        %5454 = vrot.lane.b32.xlu0 %v2473, 64
        %v5455 = vpop.permute.xlu0 %5454
        %5456 = vrot.lane.b32.xlu0 %v2474, 64
        %v5457 = vpop.permute.xlu0 %5456
        %5458 = vrot.lane.b32.xlu0 %v2475, 64
        %v5459 = vpop.permute.xlu0 %5458
        %5460 = vrot.lane.b32.xlu0 %v2476, 64
        %v5461 = vpop.permute.xlu0 %5460
        %5462 = vrot.lane.b32.xlu0 %v2477, 64
        %v5463 = vpop.permute.xlu0 %5462
        %5464 = vrot.lane.b32.xlu0 %v2478, 64
        %v5465 = vpop.permute.xlu0 %5464
        %5474 = vmatpush.bf16.msra.mxu0 %v5465
        %5475 = vmatpush.bf16.msra.mxu0 %v5463
        %5476 = vmatpush.bf16.msra.mxu0 %v5461
        %5477 = vmatpush.bf16.msra.mxu0 %v5459
        %5478 = vmatpush.bf16.msra.mxu0 %v5457
        %5479 = vmatpush.bf16.msra.mxu0 %v5455
        %5480 = vmatpush.bf16.msra.mxu0 %v5453
        %5481 = vmatpush.bf16.msra.mxu0 %v5451
        %5482 = vmatmul.bf16.gmra.mxu0 %v2241
        %v5483 = vpop.f32.mrf.mxu0
        %v5484 = vadd.f32 0.0, %v5483
        %v5485 = vpop.f32.mrf.mxu0
        %v5486 = vadd.f32 0.0, %v5485
        %5487 = vmatmul.bf16.gmra.mxu0 %v2242
        %v5488 = vpop.f32.mrf.mxu0
        %v5489 = vadd.f32 0.0, %v5488
        %v5490 = vpop.f32.mrf.mxu0
        %v5491 = vadd.f32 0.0, %v5490
        %5492 = vmatmul.bf16.gmra.mxu0 %v2243
        %v5493 = vpop.f32.mrf.mxu0
        %v5494 = vadd.f32 0.0, %v5493
        %v5495 = vpop.f32.mrf.mxu0
        %v5496 = vadd.f32 0.0, %v5495
        %5497 = vmatmul.bf16.gmra.mxu0 %v2244
        %v5498 = vpop.f32.mrf.mxu0
        %v5499 = vadd.f32 0.0, %v5498
        %v5500 = vpop.f32.mrf.mxu0
        %v5501 = vadd.f32 0.0, %v5500
        %5502 = vmatmul.bf16.gmra.mxu0 %v2245
        %v5503 = vpop.f32.mrf.mxu0
        %v5504 = vadd.f32 0.0, %v5503
        %v5505 = vpop.f32.mrf.mxu0
        %v5506 = vadd.f32 0.0, %v5505
        %5507 = vmatmul.bf16.gmra.mxu0 %v2246
        %v5508 = vpop.f32.mrf.mxu0
        %v5509 = vadd.f32 0.0, %v5508
        %v5510 = vpop.f32.mrf.mxu0
        %v5511 = vadd.f32 0.0, %v5510
        %5512 = vmatmul.bf16.gmra.mxu0 %v2247
        %v5513 = vpop.f32.mrf.mxu0
        %v5514 = vadd.f32 0.0, %v5513
        %v5515 = vpop.f32.mrf.mxu0
        %v5516 = vadd.f32 0.0, %v5515
        %5517 = vmatmul.bf16.gmra.mxu0 %v2248
        %v5518 = vpop.f32.mrf.mxu0
        %v5519 = vadd.f32 0.0, %v5518
        %v5520 = vpop.f32.mrf.mxu0
        %v5521 = vadd.f32 0.0, %v5520
        %5522 = vmatmul.bf16.gmra.mxu0 %v2249
        %v5523 = vpop.f32.mrf.mxu0
        %v5524 = vadd.f32 0.0, %v5523
        %v5525 = vpop.f32.mrf.mxu0
        %v5526 = vadd.f32 0.0, %v5525
        %5527 = vmatmul.bf16.gmra.mxu0 %v2250
        %v5528 = vpop.f32.mrf.mxu0
        %v5529 = vadd.f32 0.0, %v5528
        %v5530 = vpop.f32.mrf.mxu0
        %v5531 = vadd.f32 0.0, %v5530
        %5532 = vmatmul.bf16.gmra.mxu0 %v2251
        %v5533 = vpop.f32.mrf.mxu0
        %v5534 = vadd.f32 0.0, %v5533
        %v5535 = vpop.f32.mrf.mxu0
        %v5536 = vadd.f32 0.0, %v5535
        %5537 = vmatmul.bf16.gmra.mxu0 %v2252
        %v5538 = vpop.f32.mrf.mxu0
        %v5539 = vadd.f32 0.0, %v5538
        %v5540 = vpop.f32.mrf.mxu0
        %v5541 = vadd.f32 0.0, %v5540
        %5542 = vmatmul.bf16.gmra.mxu0 %v2253
        %v5543 = vpop.f32.mrf.mxu0
        %v5544 = vadd.f32 0.0, %v5543
        %v5545 = vpop.f32.mrf.mxu0
        %v5546 = vadd.f32 0.0, %v5545
        %5547 = vmatmul.bf16.gmra.mxu0 %v2254
        %v5548 = vpop.f32.mrf.mxu0
        %v5549 = vadd.f32 0.0, %v5548
        %v5550 = vpop.f32.mrf.mxu0
        %v5551 = vadd.f32 0.0, %v5550
        %5552 = vmatmul.bf16.gmra.mxu0 %v2255
        %v5553 = vpop.f32.mrf.mxu0
        %v5554 = vadd.f32 0.0, %v5553
        %v5555 = vpop.f32.mrf.mxu0
        %v5556 = vadd.f32 0.0, %v5555
        %5557 = vmatmul.bf16.gmra.mxu0 %v2256
        %v5558 = vpop.f32.mrf.mxu0
        %v5559 = vadd.f32 0.0, %v5558
        %v5560 = vpop.f32.mrf.mxu0
        %v5561 = vadd.f32 0.0, %v5560
        %5562 = vdwg.mxu0
        %v5563 = vmul.f32 %v5484, 0.17677669
        %v5564 = vmul.f32 %v5486, 0.17677669
        %v5565 = vmul.f32 %v5489, 0.17677669
        %v5566 = vmul.f32 %v5491, 0.17677669
        %v5567 = vmul.f32 %v5494, 0.17677669
        %v5568 = vmul.f32 %v5496, 0.17677669
        %v5569 = vmul.f32 %v5499, 0.17677669
        %v5570 = vmul.f32 %v5501, 0.17677669
        %v5571 = vmul.f32 %v5504, 0.17677669
        %v5572 = vmul.f32 %v5506, 0.17677669
        %v5573 = vmul.f32 %v5509, 0.17677669
        %v5574 = vmul.f32 %v5511, 0.17677669
        %v5575 = vmul.f32 %v5514, 0.17677669
        %v5576 = vmul.f32 %v5516, 0.17677669
        %v5577 = vmul.f32 %v5519, 0.17677669
        %v5578 = vmul.f32 %v5521, 0.17677669
        %v5579 = vmul.f32 %v5524, 0.17677669
        %v5580 = vmul.f32 %v5526, 0.17677669
        %v5581 = vmul.f32 %v5529, 0.17677669
        %v5582 = vmul.f32 %v5531, 0.17677669
        %v5583 = vmul.f32 %v5534, 0.17677669
        %v5584 = vmul.f32 %v5536, 0.17677669
        %v5585 = vmul.f32 %v5539, 0.17677669
        %v5586 = vmul.f32 %v5541, 0.17677669
        %v5587 = vmul.f32 %v5544, 0.17677669
        %v5588 = vmul.f32 %v5546, 0.17677669
        %v5589 = vmul.f32 %v5549, 0.17677669
        %v5590 = vmul.f32 %v5551, 0.17677669
        %v5591 = vmul.f32 %v5554, 0.17677669
        %v5592 = vmul.f32 %v5556, 0.17677669
        %v5593 = vmul.f32 %v5559, 0.17677669
        %v5594 = vmul.f32 %v5561, 0.17677669
        %v5595 = vpack.c.bf16 %v5564, %v5563
        %v5596 = vpack.c.bf16 %v5566, %v5565
        %v5597 = vpack.c.bf16 %v5568, %v5567
        %v5598 = vpack.c.bf16 %v5570, %v5569
        %v5599 = vpack.c.bf16 %v5572, %v5571
        %v5600 = vpack.c.bf16 %v5574, %v5573
        %v5601 = vpack.c.bf16 %v5576, %v5575
        %v5602 = vpack.c.bf16 %v5578, %v5577
        %v5603 = vpack.c.bf16 %v5580, %v5579
        %v5604 = vpack.c.bf16 %v5582, %v5581
        %v5605 = vpack.c.bf16 %v5584, %v5583
        %v5606 = vpack.c.bf16 %v5586, %v5585
        %v5607 = vpack.c.bf16 %v5588, %v5587
        %v5608 = vpack.c.bf16 %v5590, %v5589
        %v5609 = vpack.c.bf16 %v5592, %v5591
        %v5610 = vpack.c.bf16 %v5594, %v5593
        %s5611 = scalar_lea.vmem [#allocation2], 256
        %v5612 = vld [vmem:[%s5611] sm:$0xf]
        %v5613 = vld [vmem:[%s5611 + $0x4] sm:$0xf]
        %v5614 = vld [vmem:[%s5611 + $0x8] sm:$0xf]
        %v5615 = vld [vmem:[%s5611 + $0xc] sm:$0xf]
        %v5616 = vld [vmem:[%s5611 + $0x10] sm:$0xf]
        %v5617 = vld [vmem:[%s5611 + $0x14] sm:$0xf]
        %v5618 = vld [vmem:[%s5611 + $0x18] sm:$0xf]
        %v5619 = vld [vmem:[%s5611 + $0x1c] sm:$0xf]
        %v5620 = vld [vmem:[%s5611 + $0x20] sm:$0xf]
        %v5621 = vld [vmem:[%s5611 + $0x24] sm:$0xf]
        %v5622 = vld [vmem:[%s5611 + $0x28] sm:$0xf]
        %v5623 = vld [vmem:[%s5611 + $0x2c] sm:$0xf]
        %v5624 = vld [vmem:[%s5611 + $0x30] sm:$0xf]
        %v5625 = vld [vmem:[%s5611 + $0x34] sm:$0xf]
        %v5626 = vld [vmem:[%s5611 + $0x38] sm:$0xf]
        %v5627 = vld [vmem:[%s5611 + $0x3c] sm:$0xf]
        %v5628 = vld [vmem:[%s5611 + $0x40] sm:$0xf]
        %v5629 = vld [vmem:[%s5611 + $0x44] sm:$0xf]
        %v5630 = vld [vmem:[%s5611 + $0x48] sm:$0xf]
        %v5631 = vld [vmem:[%s5611 + $0x4c] sm:$0xf]
        %v5632 = vld [vmem:[%s5611 + $0x50] sm:$0xf]
        %v5633 = vld [vmem:[%s5611 + $0x54] sm:$0xf]
        %v5634 = vld [vmem:[%s5611 + $0x58] sm:$0xf]
        %v5635 = vld [vmem:[%s5611 + $0x5c] sm:$0xf]
        %v5636 = vld [vmem:[%s5611 + $0x60] sm:$0xf]
        %v5637 = vld [vmem:[%s5611 + $0x64] sm:$0xf]
        %v5638 = vld [vmem:[%s5611 + $0x68] sm:$0xf]
        %v5639 = vld [vmem:[%s5611 + $0x6c] sm:$0xf]
        %v5640 = vld [vmem:[%s5611 + $0x70] sm:$0xf]
        %v5641 = vld [vmem:[%s5611 + $0x74] sm:$0xf]
        %v5642 = vld [vmem:[%s5611 + $0x78] sm:$0xf]
        %v5643 = vld [vmem:[%s5611 + $0x7c] sm:$0xf]
        %s5644 = scalar_lea.vmem [#allocation3], 256
        %v5645 = vld [vmem:[%s5644] sm:$0xf]
        %v5646 = vld [vmem:[%s5644 + $0x4] sm:$0xf]
        %v5647 = vld [vmem:[%s5644 + $0x8] sm:$0xf]
        %v5648 = vld [vmem:[%s5644 + $0xc] sm:$0xf]
        %v5649 = vld [vmem:[%s5644 + $0x10] sm:$0xf]
        %v5650 = vld [vmem:[%s5644 + $0x14] sm:$0xf]
        %v5651 = vld [vmem:[%s5644 + $0x18] sm:$0xf]
        %v5652 = vld [vmem:[%s5644 + $0x1c] sm:$0xf]
        %v5653 = vld [vmem:[%s5644 + $0x20] sm:$0xf]
        %v5654 = vld [vmem:[%s5644 + $0x24] sm:$0xf]
        %v5655 = vld [vmem:[%s5644 + $0x28] sm:$0xf]
        %v5656 = vld [vmem:[%s5644 + $0x2c] sm:$0xf]
        %v5657 = vld [vmem:[%s5644 + $0x30] sm:$0xf]
        %v5658 = vld [vmem:[%s5644 + $0x34] sm:$0xf]
        %v5659 = vld [vmem:[%s5644 + $0x38] sm:$0xf]
        %v5660 = vld [vmem:[%s5644 + $0x3c] sm:$0xf]
        %v5661 = vld [vmem:[%s5644 + $0x40] sm:$0xf]
        %v5662 = vld [vmem:[%s5644 + $0x44] sm:$0xf]
        %v5663 = vld [vmem:[%s5644 + $0x48] sm:$0xf]
        %v5664 = vld [vmem:[%s5644 + $0x4c] sm:$0xf]
        %v5665 = vld [vmem:[%s5644 + $0x50] sm:$0xf]
        %v5666 = vld [vmem:[%s5644 + $0x54] sm:$0xf]
        %v5667 = vld [vmem:[%s5644 + $0x58] sm:$0xf]
        %v5668 = vld [vmem:[%s5644 + $0x5c] sm:$0xf]
        %v5669 = vld [vmem:[%s5644 + $0x60] sm:$0xf]
        %v5670 = vld [vmem:[%s5644 + $0x64] sm:$0xf]
        %v5671 = vld [vmem:[%s5644 + $0x68] sm:$0xf]
        %v5672 = vld [vmem:[%s5644 + $0x6c] sm:$0xf]
        %v5673 = vld [vmem:[%s5644 + $0x70] sm:$0xf]
        %v5674 = vld [vmem:[%s5644 + $0x74] sm:$0xf]
        %v5675 = vld [vmem:[%s5644 + $0x78] sm:$0xf]
        %v5676 = vld [vmem:[%s5644 + $0x7c] sm:$0xf]
        %v5709 = vunpack.c.l.b16 %v5612
        %v5710 = vunpack.c.l.b16 %v5613
        %v5711 = vunpack.c.l.b16 %v5614
        %v5712 = vunpack.c.l.b16 %v5615
        %v5713 = vunpack.c.l.b16 %v5616
        %v5714 = vunpack.c.l.b16 %v5617
        %v5715 = vunpack.c.l.b16 %v5618
        %v5716 = vunpack.c.l.b16 %v5619
        %v5717 = vunpack.c.l.b16 %v5620
        %v5718 = vunpack.c.l.b16 %v5621
        %v5719 = vunpack.c.l.b16 %v5622
        %v5720 = vunpack.c.l.b16 %v5623
        %v5721 = vunpack.c.l.b16 %v5624
        %v5722 = vunpack.c.l.b16 %v5625
        %v5723 = vunpack.c.l.b16 %v5626
        %v5724 = vunpack.c.l.b16 %v5627
        %v5725 = vunpack.c.l.b16 %v5628
        %v5726 = vunpack.c.l.b16 %v5629
        %v5727 = vunpack.c.l.b16 %v5630
        %v5728 = vunpack.c.l.b16 %v5631
        %v5729 = vunpack.c.l.b16 %v5632
        %v5730 = vunpack.c.l.b16 %v5633
        %v5731 = vunpack.c.l.b16 %v5634
        %v5732 = vunpack.c.l.b16 %v5635
        %v5733 = vunpack.c.l.b16 %v5636
        %v5734 = vunpack.c.l.b16 %v5637
        %v5735 = vunpack.c.l.b16 %v5638
        %v5736 = vunpack.c.l.b16 %v5639
        %v5737 = vunpack.c.l.b16 %v5640
        %v5738 = vunpack.c.l.b16 %v5641
        %v5739 = vunpack.c.l.b16 %v5642
        %v5740 = vunpack.c.l.b16 %v5643
        %v5741 = vpack.c.b16 %v5710, %v5709
        %v5742 = vpack.c.b16 %v5712, %v5711
        %v5743 = vpack.c.b16 %v5714, %v5713
        %v5744 = vpack.c.b16 %v5716, %v5715
        %v5745 = vpack.c.b16 %v5718, %v5717
        %v5746 = vpack.c.b16 %v5720, %v5719
        %v5747 = vpack.c.b16 %v5722, %v5721
        %v5748 = vpack.c.b16 %v5724, %v5723
        %v5749 = vpack.c.b16 %v5726, %v5725
        %v5750 = vpack.c.b16 %v5728, %v5727
        %v5751 = vpack.c.b16 %v5730, %v5729
        %v5752 = vpack.c.b16 %v5732, %v5731
        %v5753 = vpack.c.b16 %v5734, %v5733
        %v5754 = vpack.c.b16 %v5736, %v5735
        %v5755 = vpack.c.b16 %v5738, %v5737
        %v5756 = vpack.c.b16 %v5740, %v5739
        %v5758 = vsel %vm2760, %v5595, 0
        %v5761 = vsel %vm2760, %v5596, 0
        %v5764 = vsel %vm2760, %v5597, 0
        %v5767 = vsel %vm2760, %v5598, 0
        %v5770 = vsel %vm2760, %v5599, 0
        %v5773 = vsel %vm2760, %v5600, 0
        %v5776 = vsel %vm2760, %v5601, 0
        %v5779 = vsel %vm2760, %v5602, 0
        %v5782 = vsel %vm2760, %v5603, 0
        %v5785 = vsel %vm2760, %v5604, 0
        %v5788 = vsel %vm2760, %v5605, 0
        %v5791 = vsel %vm2760, %v5606, 0
        %v5794 = vsel %vm2760, %v5607, 0
        %v5797 = vsel %vm2760, %v5608, 0
        %v5800 = vsel %vm2760, %v5609, 0
        %v5803 = vsel %vm2760, %v5610, 0
        %v5806 = vsel %vm2760, %v5741, 0
        %v5809 = vsel %vm2760, %v5742, 0
        %v5812 = vsel %vm2760, %v5743, 0
        %v5815 = vsel %vm2760, %v5744, 0
        %v5818 = vsel %vm2760, %v5745, 0
        %v5821 = vsel %vm2760, %v5746, 0
        %v5824 = vsel %vm2760, %v5747, 0
        %v5827 = vsel %vm2760, %v5748, 0
        %v5830 = vsel %vm2760, %v5749, 0
        %v5833 = vsel %vm2760, %v5750, 0
        %v5836 = vsel %vm2760, %v5751, 0
        %v5839 = vsel %vm2760, %v5752, 0
        %v5842 = vsel %vm2760, %v5753, 0
        %v5845 = vsel %vm2760, %v5754, 0
        %v5848 = vsel %vm2760, %v5755, 0
        %v5851 = vsel %vm2760, %v5756, 0
        %5853 = vmatpush.bf16.xpose.msra.mxu0 %v5827
        %5854 = vmatpush.bf16.xpose.msra.mxu0 %v5824
        %5855 = vmatpush.bf16.xpose.msra.mxu0 %v5821
        %5856 = vmatpush.bf16.xpose.msra.mxu0 %v5818
        %5857 = vmatpush.bf16.xpose.msra.mxu0 %v5815
        %5858 = vmatpush.bf16.xpose.msra.mxu0 %v5812
        %5859 = vmatpush.bf16.xpose.msra.mxu0 %v5809
        %5860 = vmatpush.bf16.xpose.msra.mxu0 %v5806
        %5861 = vmatmul.bf16.gmra.mxu0 %v5758
        %v5862 = vpop.f32.mrf.mxu0
        %v5863 = vadd.f32 %v2391, %v5862
        %v5864 = vpop.f32.mrf.mxu0
        %v5865 = vadd.f32 %v2393, %v5864
        %5866 = vmatmul.bf16.gmra.mxu0 %v5761
        %v5867 = vpop.f32.mrf.mxu0
        %v5868 = vadd.f32 %v2395, %v5867
        %v5869 = vpop.f32.mrf.mxu0
        %v5870 = vadd.f32 %v2397, %v5869
        %5871 = vmatmul.bf16.gmra.mxu0 %v5764
        %v5872 = vpop.f32.mrf.mxu0
        %v5873 = vadd.f32 %v2399, %v5872
        %v5874 = vpop.f32.mrf.mxu0
        %v5875 = vadd.f32 %v2401, %v5874
        %5876 = vmatmul.bf16.gmra.mxu0 %v5767
        %v5877 = vpop.f32.mrf.mxu0
        %v5878 = vadd.f32 %v2403, %v5877
        %v5879 = vpop.f32.mrf.mxu0
        %v5880 = vadd.f32 %v2405, %v5879
        %5881 = vmatmul.bf16.gmra.mxu0 %v5770
        %v5882 = vpop.f32.mrf.mxu0
        %v5883 = vadd.f32 %v2407, %v5882
        %v5884 = vpop.f32.mrf.mxu0
        %v5885 = vadd.f32 %v2409, %v5884
        %5886 = vmatmul.bf16.gmra.mxu0 %v5773
        %v5887 = vpop.f32.mrf.mxu0
        %v5888 = vadd.f32 %v2411, %v5887
        %v5889 = vpop.f32.mrf.mxu0
        %v5890 = vadd.f32 %v2413, %v5889
        %5891 = vmatmul.bf16.gmra.mxu0 %v5776
        %v5892 = vpop.f32.mrf.mxu0
        %v5893 = vadd.f32 %v2415, %v5892
        %v5894 = vpop.f32.mrf.mxu0
        %v5895 = vadd.f32 %v2417, %v5894
        %5896 = vmatmul.bf16.gmra.mxu0 %v5779
        %v5897 = vpop.f32.mrf.mxu0
        %v5898 = vadd.f32 %v2419, %v5897
        %v5899 = vpop.f32.mrf.mxu0
        %v5900 = vadd.f32 %v2421, %v5899
        %5901 = vmatmul.bf16.gmra.mxu0 %v5782
        %v5902 = vpop.f32.mrf.mxu0
        %v5903 = vadd.f32 %v2423, %v5902
        %v5904 = vpop.f32.mrf.mxu0
        %v5905 = vadd.f32 %v2425, %v5904
        %5906 = vmatmul.bf16.gmra.mxu0 %v5785
        %v5907 = vpop.f32.mrf.mxu0
        %v5908 = vadd.f32 %v2427, %v5907
        %v5909 = vpop.f32.mrf.mxu0
        %v5910 = vadd.f32 %v2429, %v5909
        %5911 = vmatmul.bf16.gmra.mxu0 %v5788
        %v5912 = vpop.f32.mrf.mxu0
        %v5913 = vadd.f32 %v2431, %v5912
        %v5914 = vpop.f32.mrf.mxu0
        %v5915 = vadd.f32 %v2433, %v5914
        %5916 = vmatmul.bf16.gmra.mxu0 %v5791
        %v5917 = vpop.f32.mrf.mxu0
        %v5918 = vadd.f32 %v2435, %v5917
        %v5919 = vpop.f32.mrf.mxu0
        %v5920 = vadd.f32 %v2437, %v5919
        %5921 = vmatmul.bf16.gmra.mxu0 %v5794
        %v5922 = vpop.f32.mrf.mxu0
        %v5923 = vadd.f32 %v2439, %v5922
        %v5924 = vpop.f32.mrf.mxu0
        %v5925 = vadd.f32 %v2441, %v5924
        %5926 = vmatmul.bf16.gmra.mxu0 %v5797
        %v5927 = vpop.f32.mrf.mxu0
        %v5928 = vadd.f32 %v2443, %v5927
        %v5929 = vpop.f32.mrf.mxu0
        %v5930 = vadd.f32 %v2445, %v5929
        %5931 = vmatmul.bf16.gmra.mxu0 %v5800
        %v5932 = vpop.f32.mrf.mxu0
        %v5933 = vadd.f32 %v2447, %v5932
        %v5934 = vpop.f32.mrf.mxu0
        %v5935 = vadd.f32 %v2449, %v5934
        %5936 = vmatmul.bf16.gmra.mxu0 %v5803
        %v5937 = vpop.f32.mrf.mxu0
        %v5938 = vadd.f32 %v2451, %v5937
        %v5939 = vpop.f32.mrf.mxu0
        %v5940 = vadd.f32 %v2453, %v5939
        %5941 = vdwg.mxu0
        %5942 = vmatpush.bf16.xpose.msra.mxu0 %v5851
        %5943 = vmatpush.bf16.xpose.msra.mxu0 %v5848
        %5944 = vmatpush.bf16.xpose.msra.mxu0 %v5845
        %5945 = vmatpush.bf16.xpose.msra.mxu0 %v5842
        %5946 = vmatpush.bf16.xpose.msra.mxu0 %v5839
        %5947 = vmatpush.bf16.xpose.msra.mxu0 %v5836
        %5948 = vmatpush.bf16.xpose.msra.mxu0 %v5833
        %5949 = vmatpush.bf16.xpose.msra.mxu0 %v5830
        %5950 = vmatmul.bf16.gmra.mxu0 %v5758
        %v5951 = vpop.f32.mrf.mxu0
        %v5952 = vadd.f32 %v2392, %v5951
        %v5953 = vpop.f32.mrf.mxu0
        %v5954 = vadd.f32 %v2394, %v5953
        %5955 = vmatmul.bf16.gmra.mxu0 %v5761
        %v5956 = vpop.f32.mrf.mxu0
        %v5957 = vadd.f32 %v2396, %v5956
        %v5958 = vpop.f32.mrf.mxu0
        %v5959 = vadd.f32 %v2398, %v5958
        %5960 = vmatmul.bf16.gmra.mxu0 %v5764
        %v5961 = vpop.f32.mrf.mxu0
        %v5962 = vadd.f32 %v2400, %v5961
        %v5963 = vpop.f32.mrf.mxu0
        %v5964 = vadd.f32 %v2402, %v5963
        %5965 = vmatmul.bf16.gmra.mxu0 %v5767
        %v5966 = vpop.f32.mrf.mxu0
        %v5967 = vadd.f32 %v2404, %v5966
        %v5968 = vpop.f32.mrf.mxu0
        %v5969 = vadd.f32 %v2406, %v5968
        %5970 = vmatmul.bf16.gmra.mxu0 %v5770
        %v5971 = vpop.f32.mrf.mxu0
        %v5972 = vadd.f32 %v2408, %v5971
        %v5973 = vpop.f32.mrf.mxu0
        %v5974 = vadd.f32 %v2410, %v5973
        %5975 = vmatmul.bf16.gmra.mxu0 %v5773
        %v5976 = vpop.f32.mrf.mxu0
        %v5977 = vadd.f32 %v2412, %v5976
        %v5978 = vpop.f32.mrf.mxu0
        %v5979 = vadd.f32 %v2414, %v5978
        %5980 = vmatmul.bf16.gmra.mxu0 %v5776
        %v5981 = vpop.f32.mrf.mxu0
        %v5982 = vadd.f32 %v2416, %v5981
        %v5983 = vpop.f32.mrf.mxu0
        %v5984 = vadd.f32 %v2418, %v5983
        %5985 = vmatmul.bf16.gmra.mxu0 %v5779
        %v5986 = vpop.f32.mrf.mxu0
        %v5987 = vadd.f32 %v2420, %v5986
        %v5988 = vpop.f32.mrf.mxu0
        %v5989 = vadd.f32 %v2422, %v5988
        %5990 = vmatmul.bf16.gmra.mxu0 %v5782
        %v5991 = vpop.f32.mrf.mxu0
        %v5992 = vadd.f32 %v2424, %v5991
        %v5993 = vpop.f32.mrf.mxu0
        %v5994 = vadd.f32 %v2426, %v5993
        %5995 = vmatmul.bf16.gmra.mxu0 %v5785
        %v5996 = vpop.f32.mrf.mxu0
        %v5997 = vadd.f32 %v2428, %v5996
        %v5998 = vpop.f32.mrf.mxu0
        %v5999 = vadd.f32 %v2430, %v5998
        %6000 = vmatmul.bf16.gmra.mxu0 %v5788
        %v6001 = vpop.f32.mrf.mxu0
        %v6002 = vadd.f32 %v2432, %v6001
        %v6003 = vpop.f32.mrf.mxu0
        %v6004 = vadd.f32 %v2434, %v6003
        %6005 = vmatmul.bf16.gmra.mxu0 %v5791
        %v6006 = vpop.f32.mrf.mxu0
        %v6007 = vadd.f32 %v2436, %v6006
        %v6008 = vpop.f32.mrf.mxu0
        %v6009 = vadd.f32 %v2438, %v6008
        %6010 = vmatmul.bf16.gmra.mxu0 %v5794
        %v6011 = vpop.f32.mrf.mxu0
        %v6012 = vadd.f32 %v2440, %v6011
        %v6013 = vpop.f32.mrf.mxu0
        %v6014 = vadd.f32 %v2442, %v6013
        %6015 = vmatmul.bf16.gmra.mxu0 %v5797
        %v6016 = vpop.f32.mrf.mxu0
        %v6017 = vadd.f32 %v2444, %v6016
        %v6018 = vpop.f32.mrf.mxu0
        %v6019 = vadd.f32 %v2446, %v6018
        %6020 = vmatmul.bf16.gmra.mxu0 %v5800
        %v6021 = vpop.f32.mrf.mxu0
        %v6022 = vadd.f32 %v2448, %v6021
        %v6023 = vpop.f32.mrf.mxu0
        %v6024 = vadd.f32 %v2450, %v6023
        %6025 = vmatmul.bf16.gmra.mxu0 %v5803
        %v6026 = vpop.f32.mrf.mxu0
        %v6027 = vadd.f32 %v2452, %v6026
        %v6028 = vpop.f32.mrf.mxu0
        %v6029 = vadd.f32 %v2454, %v6028
        %6030 = vdwg.mxu0
        %v6031 = vmax.f32 %v5863, %v5952
        %6032 = vmax.xlane.f32.xlu0 %v6031
        %v6033 = vpop.xlane.xlu0 %6032
        %v6034 = vmax.f32 %v5865, %v5954
        %6035 = vmax.xlane.f32.xlu0 %v6034
        %v6036 = vpop.xlane.xlu0 %6035
        %v6037 = vmax.f32 %v5868, %v5957
        %6038 = vmax.xlane.f32.xlu0 %v6037
        %v6039 = vpop.xlane.xlu0 %6038
        %v6040 = vmax.f32 %v5870, %v5959
        %6041 = vmax.xlane.f32.xlu0 %v6040
        %v6042 = vpop.xlane.xlu0 %6041
        %v6043 = vmax.f32 %v5873, %v5962
        %6044 = vmax.xlane.f32.xlu0 %v6043
        %v6045 = vpop.xlane.xlu0 %6044
        %v6046 = vmax.f32 %v5875, %v5964
        %6047 = vmax.xlane.f32.xlu0 %v6046
        %v6048 = vpop.xlane.xlu0 %6047
        %v6049 = vmax.f32 %v5878, %v5967
        %6050 = vmax.xlane.f32.xlu0 %v6049
        %v6051 = vpop.xlane.xlu0 %6050
        %v6052 = vmax.f32 %v5880, %v5969
        %6053 = vmax.xlane.f32.xlu0 %v6052
        %v6054 = vpop.xlane.xlu0 %6053
        %v6055 = vmax.f32 %v5883, %v5972
        %6056 = vmax.xlane.f32.xlu0 %v6055
        %v6057 = vpop.xlane.xlu0 %6056
        %v6058 = vmax.f32 %v5885, %v5974
        %6059 = vmax.xlane.f32.xlu0 %v6058
        %v6060 = vpop.xlane.xlu0 %6059
        %v6061 = vmax.f32 %v5888, %v5977
        %6062 = vmax.xlane.f32.xlu0 %v6061
        %v6063 = vpop.xlane.xlu0 %6062
        %v6064 = vmax.f32 %v5890, %v5979
        %6065 = vmax.xlane.f32.xlu0 %v6064
        %v6066 = vpop.xlane.xlu0 %6065
        %v6067 = vmax.f32 %v5893, %v5982
        %6068 = vmax.xlane.f32.xlu0 %v6067
        %v6069 = vpop.xlane.xlu0 %6068
        %v6070 = vmax.f32 %v5895, %v5984
        %6071 = vmax.xlane.f32.xlu0 %v6070
        %v6072 = vpop.xlane.xlu0 %6071
        %v6073 = vmax.f32 %v5898, %v5987
        %6074 = vmax.xlane.f32.xlu0 %v6073
        %v6075 = vpop.xlane.xlu0 %6074
        %v6076 = vmax.f32 %v5900, %v5989
        %6077 = vmax.xlane.f32.xlu0 %v6076
        %v6078 = vpop.xlane.xlu0 %6077
        %v6079 = vmax.f32 %v5903, %v5992
        %6080 = vmax.xlane.f32.xlu0 %v6079
        %v6081 = vpop.xlane.xlu0 %6080
        %v6082 = vmax.f32 %v5905, %v5994
        %6083 = vmax.xlane.f32.xlu0 %v6082
        %v6084 = vpop.xlane.xlu0 %6083
        %v6085 = vmax.f32 %v5908, %v5997
        %6086 = vmax.xlane.f32.xlu0 %v6085
        %v6087 = vpop.xlane.xlu0 %6086
        %v6088 = vmax.f32 %v5910, %v5999
        %6089 = vmax.xlane.f32.xlu0 %v6088
        %v6090 = vpop.xlane.xlu0 %6089
        %v6091 = vmax.f32 %v5913, %v6002
        %6092 = vmax.xlane.f32.xlu0 %v6091
        %v6093 = vpop.xlane.xlu0 %6092
        %v6094 = vmax.f32 %v5915, %v6004
        %6095 = vmax.xlane.f32.xlu0 %v6094
        %v6096 = vpop.xlane.xlu0 %6095
        %v6097 = vmax.f32 %v5918, %v6007
        %6098 = vmax.xlane.f32.xlu0 %v6097
        %v6099 = vpop.xlane.xlu0 %6098
        %v6100 = vmax.f32 %v5920, %v6009
        %6101 = vmax.xlane.f32.xlu0 %v6100
        %v6102 = vpop.xlane.xlu0 %6101
        %v6103 = vmax.f32 %v5923, %v6012
        %6104 = vmax.xlane.f32.xlu0 %v6103
        %v6105 = vpop.xlane.xlu0 %6104
        %v6106 = vmax.f32 %v5925, %v6014
        %6107 = vmax.xlane.f32.xlu0 %v6106
        %v6108 = vpop.xlane.xlu0 %6107
        %v6109 = vmax.f32 %v5928, %v6017
        %6110 = vmax.xlane.f32.xlu0 %v6109
        %v6111 = vpop.xlane.xlu0 %6110
        %v6112 = vmax.f32 %v5930, %v6019
        %6113 = vmax.xlane.f32.xlu0 %v6112
        %v6114 = vpop.xlane.xlu0 %6113
        %v6115 = vmax.f32 %v5933, %v6022
        %6116 = vmax.xlane.f32.xlu0 %v6115
        %v6117 = vpop.xlane.xlu0 %6116
        %v6118 = vmax.f32 %v5935, %v6024
        %6119 = vmax.xlane.f32.xlu0 %v6118
        %v6120 = vpop.xlane.xlu0 %6119
        %v6121 = vmax.f32 %v5938, %v6027
        %6122 = vmax.xlane.f32.xlu0 %v6121
        %v6123 = vpop.xlane.xlu0 %6122
        %v6124 = vmax.f32 %v5940, %v6029
        %6125 = vmax.xlane.f32.xlu0 %v6124
        %v6126 = vpop.xlane.xlu0 %6125
        %v6127 = vsub.f32 %v5863, %v6033
        %v6128 = vsub.f32 %v5952, %v6033
        %v6129 = vsub.f32 %v5865, %v6036
        %v6130 = vsub.f32 %v5954, %v6036
        %v6131 = vsub.f32 %v5868, %v6039
        %v6132 = vsub.f32 %v5957, %v6039
        %v6133 = vsub.f32 %v5870, %v6042
        %v6134 = vsub.f32 %v5959, %v6042
        %v6135 = vsub.f32 %v5873, %v6045
        %v6136 = vsub.f32 %v5962, %v6045
        %v6137 = vsub.f32 %v5875, %v6048
        %v6138 = vsub.f32 %v5964, %v6048
        %v6139 = vsub.f32 %v5878, %v6051
        %v6140 = vsub.f32 %v5967, %v6051
        %v6141 = vsub.f32 %v5880, %v6054
        %v6142 = vsub.f32 %v5969, %v6054
        %v6143 = vsub.f32 %v5883, %v6057
        %v6144 = vsub.f32 %v5972, %v6057
        %v6145 = vsub.f32 %v5885, %v6060
        %v6146 = vsub.f32 %v5974, %v6060
        %v6147 = vsub.f32 %v5888, %v6063
        %v6148 = vsub.f32 %v5977, %v6063
        %v6149 = vsub.f32 %v5890, %v6066
        %v6150 = vsub.f32 %v5979, %v6066
        %v6151 = vsub.f32 %v5893, %v6069
        %v6152 = vsub.f32 %v5982, %v6069
        %v6153 = vsub.f32 %v5895, %v6072
        %v6154 = vsub.f32 %v5984, %v6072
        %v6155 = vsub.f32 %v5898, %v6075
        %v6156 = vsub.f32 %v5987, %v6075
        %v6157 = vsub.f32 %v5900, %v6078
        %v6158 = vsub.f32 %v5989, %v6078
        %v6159 = vsub.f32 %v5903, %v6081
        %v6160 = vsub.f32 %v5992, %v6081
        %v6161 = vsub.f32 %v5905, %v6084
        %v6162 = vsub.f32 %v5994, %v6084
        %v6163 = vsub.f32 %v5908, %v6087
        %v6164 = vsub.f32 %v5997, %v6087
        %v6165 = vsub.f32 %v5910, %v6090
        %v6166 = vsub.f32 %v5999, %v6090
        %v6167 = vsub.f32 %v5913, %v6093
        %v6168 = vsub.f32 %v6002, %v6093
        %v6169 = vsub.f32 %v5915, %v6096
        %v6170 = vsub.f32 %v6004, %v6096
        %v6171 = vsub.f32 %v5918, %v6099
        %v6172 = vsub.f32 %v6007, %v6099
        %v6173 = vsub.f32 %v5920, %v6102
        %v6174 = vsub.f32 %v6009, %v6102
        %v6175 = vsub.f32 %v5923, %v6105
        %v6176 = vsub.f32 %v6012, %v6105
        %v6177 = vsub.f32 %v5925, %v6108
        %v6178 = vsub.f32 %v6014, %v6108
        %v6179 = vsub.f32 %v5928, %v6111
        %v6180 = vsub.f32 %v6017, %v6111
        %v6181 = vsub.f32 %v5930, %v6114
        %v6182 = vsub.f32 %v6019, %v6114
        %v6183 = vsub.f32 %v5933, %v6117
        %v6184 = vsub.f32 %v6022, %v6117
        %v6185 = vsub.f32 %v5935, %v6120
        %v6186 = vsub.f32 %v6024, %v6120
        %v6187 = vsub.f32 %v5938, %v6123
        %v6188 = vsub.f32 %v6027, %v6123
        %v6189 = vsub.f32 %v5940, %v6126
        %v6190 = vsub.f32 %v6029, %v6126
        %v6191 = vmul.f32 %v6127, 1.442695
        %v6192 = vpow.pop %v6191
        %v6193 = vmul.f32 %v6128, 1.442695
        %v6194 = vpow.pop %v6193
        %v6195 = vmul.f32 %v6129, 1.442695
        %v6196 = vpow.pop %v6195
        %v6197 = vmul.f32 %v6130, 1.442695
        %v6198 = vpow.pop %v6197
        %v6199 = vmul.f32 %v6131, 1.442695
        %v6200 = vpow.pop %v6199
        %v6201 = vmul.f32 %v6132, 1.442695
        %v6202 = vpow.pop %v6201
        %v6203 = vmul.f32 %v6133, 1.442695
        %v6204 = vpow.pop %v6203
        %v6205 = vmul.f32 %v6134, 1.442695
        %v6206 = vpow.pop %v6205
        %v6207 = vmul.f32 %v6135, 1.442695
        %v6208 = vpow.pop %v6207
        %v6209 = vmul.f32 %v6136, 1.442695
        %v6210 = vpow.pop %v6209
        %v6211 = vmul.f32 %v6137, 1.442695
        %v6212 = vpow.pop %v6211
        %v6213 = vmul.f32 %v6138, 1.442695
        %v6214 = vpow.pop %v6213
        %v6215 = vmul.f32 %v6139, 1.442695
        %v6216 = vpow.pop %v6215
        %v6217 = vmul.f32 %v6140, 1.442695
        %v6218 = vpow.pop %v6217
        %v6219 = vmul.f32 %v6141, 1.442695
        %v6220 = vpow.pop %v6219
        %v6221 = vmul.f32 %v6142, 1.442695
        %v6222 = vpow.pop %v6221
        %v6223 = vmul.f32 %v6143, 1.442695
        %v6224 = vpow.pop %v6223
        %v6225 = vmul.f32 %v6144, 1.442695
        %v6226 = vpow.pop %v6225
        %v6227 = vmul.f32 %v6145, 1.442695
        %v6228 = vpow.pop %v6227
        %v6229 = vmul.f32 %v6146, 1.442695
        %v6230 = vpow.pop %v6229
        %v6231 = vmul.f32 %v6147, 1.442695
        %v6232 = vpow.pop %v6231
        %v6233 = vmul.f32 %v6148, 1.442695
        %v6234 = vpow.pop %v6233
        %v6235 = vmul.f32 %v6149, 1.442695
        %v6236 = vpow.pop %v6235
        %v6237 = vmul.f32 %v6150, 1.442695
        %v6238 = vpow.pop %v6237
        %v6239 = vmul.f32 %v6151, 1.442695
        %v6240 = vpow.pop %v6239
        %v6241 = vmul.f32 %v6152, 1.442695
        %v6242 = vpow.pop %v6241
        %v6243 = vmul.f32 %v6153, 1.442695
        %v6244 = vpow.pop %v6243
        %v6245 = vmul.f32 %v6154, 1.442695
        %v6246 = vpow.pop %v6245
        %v6247 = vmul.f32 %v6155, 1.442695
        %v6248 = vpow.pop %v6247
        %v6249 = vmul.f32 %v6156, 1.442695
        %v6250 = vpow.pop %v6249
        %v6251 = vmul.f32 %v6157, 1.442695
        %v6252 = vpow.pop %v6251
        %v6253 = vmul.f32 %v6158, 1.442695
        %v6254 = vpow.pop %v6253
        %v6255 = vmul.f32 %v6159, 1.442695
        %v6256 = vpow.pop %v6255
        %v6257 = vmul.f32 %v6160, 1.442695
        %v6258 = vpow.pop %v6257
        %v6259 = vmul.f32 %v6161, 1.442695
        %v6260 = vpow.pop %v6259
        %v6261 = vmul.f32 %v6162, 1.442695
        %v6262 = vpow.pop %v6261
        %v6263 = vmul.f32 %v6163, 1.442695
        %v6264 = vpow.pop %v6263
        %v6265 = vmul.f32 %v6164, 1.442695
        %v6266 = vpow.pop %v6265
        %v6267 = vmul.f32 %v6165, 1.442695
        %v6268 = vpow.pop %v6267
        %v6269 = vmul.f32 %v6166, 1.442695
        %v6270 = vpow.pop %v6269
        %v6271 = vmul.f32 %v6167, 1.442695
        %v6272 = vpow.pop %v6271
        %v6273 = vmul.f32 %v6168, 1.442695
        %v6274 = vpow.pop %v6273
        %v6275 = vmul.f32 %v6169, 1.442695
        %v6276 = vpow.pop %v6275
        %v6277 = vmul.f32 %v6170, 1.442695
        %v6278 = vpow.pop %v6277
        %v6279 = vmul.f32 %v6171, 1.442695
        %v6280 = vpow.pop %v6279
        %v6281 = vmul.f32 %v6172, 1.442695
        %v6282 = vpow.pop %v6281
        %v6283 = vmul.f32 %v6173, 1.442695
        %v6284 = vpow.pop %v6283
        %v6285 = vmul.f32 %v6174, 1.442695
        %v6286 = vpow.pop %v6285
        %v6287 = vmul.f32 %v6175, 1.442695
        %v6288 = vpow.pop %v6287
        %v6289 = vmul.f32 %v6176, 1.442695
        %v6290 = vpow.pop %v6289
        %v6291 = vmul.f32 %v6177, 1.442695
        %v6292 = vpow.pop %v6291
        %v6293 = vmul.f32 %v6178, 1.442695
        %v6294 = vpow.pop %v6293
        %v6295 = vmul.f32 %v6179, 1.442695
        %v6296 = vpow.pop %v6295
        %v6297 = vmul.f32 %v6180, 1.442695
        %v6298 = vpow.pop %v6297
        %v6299 = vmul.f32 %v6181, 1.442695
        %v6300 = vpow.pop %v6299
        %v6301 = vmul.f32 %v6182, 1.442695
        %v6302 = vpow.pop %v6301
        %v6303 = vmul.f32 %v6183, 1.442695
        %v6304 = vpow.pop %v6303
        %v6305 = vmul.f32 %v6184, 1.442695
        %v6306 = vpow.pop %v6305
        %v6307 = vmul.f32 %v6185, 1.442695
        %v6308 = vpow.pop %v6307
        %v6309 = vmul.f32 %v6186, 1.442695
        %v6310 = vpow.pop %v6309
        %v6311 = vmul.f32 %v6187, 1.442695
        %v6312 = vpow.pop %v6311
        %v6313 = vmul.f32 %v6188, 1.442695
        %v6314 = vpow.pop %v6313
        %v6315 = vmul.f32 %v6189, 1.442695
        %v6316 = vpow.pop %v6315
        %v6317 = vmul.f32 %v6190, 1.442695
        %v6318 = vpow.pop %v6317
        %v6319 = vadd.f32 %v6192, %v6194
        %6320 = vadd.xlane.f32.xlu0 %v6319
        %v6321 = vpop.xlane.xlu0 %6320
        %v6322 = vadd.f32 %v6196, %v6198
        %6323 = vadd.xlane.f32.xlu0 %v6322
        %v6324 = vpop.xlane.xlu0 %6323
        %v6325 = vadd.f32 %v6200, %v6202
        %6326 = vadd.xlane.f32.xlu0 %v6325
        %v6327 = vpop.xlane.xlu0 %6326
        %v6328 = vadd.f32 %v6204, %v6206
        %6329 = vadd.xlane.f32.xlu0 %v6328
        %v6330 = vpop.xlane.xlu0 %6329
        %v6331 = vadd.f32 %v6208, %v6210
        %6332 = vadd.xlane.f32.xlu0 %v6331
        %v6333 = vpop.xlane.xlu0 %6332
        %v6334 = vadd.f32 %v6212, %v6214
        %6335 = vadd.xlane.f32.xlu0 %v6334
        %v6336 = vpop.xlane.xlu0 %6335
        %v6337 = vadd.f32 %v6216, %v6218
        %6338 = vadd.xlane.f32.xlu0 %v6337
        %v6339 = vpop.xlane.xlu0 %6338
        %v6340 = vadd.f32 %v6220, %v6222
        %6341 = vadd.xlane.f32.xlu0 %v6340
        %v6342 = vpop.xlane.xlu0 %6341
        %v6343 = vadd.f32 %v6224, %v6226
        %6344 = vadd.xlane.f32.xlu0 %v6343
        %v6345 = vpop.xlane.xlu0 %6344
        %v6346 = vadd.f32 %v6228, %v6230
        %6347 = vadd.xlane.f32.xlu0 %v6346
        %v6348 = vpop.xlane.xlu0 %6347
        %v6349 = vadd.f32 %v6232, %v6234
        %6350 = vadd.xlane.f32.xlu0 %v6349
        %v6351 = vpop.xlane.xlu0 %6350
        %v6352 = vadd.f32 %v6236, %v6238
        %6353 = vadd.xlane.f32.xlu0 %v6352
        %v6354 = vpop.xlane.xlu0 %6353
        %v6355 = vadd.f32 %v6240, %v6242
        %6356 = vadd.xlane.f32.xlu0 %v6355
        %v6357 = vpop.xlane.xlu0 %6356
        %v6358 = vadd.f32 %v6244, %v6246
        %6359 = vadd.xlane.f32.xlu0 %v6358
        %v6360 = vpop.xlane.xlu0 %6359
        %v6361 = vadd.f32 %v6248, %v6250
        %6362 = vadd.xlane.f32.xlu0 %v6361
        %v6363 = vpop.xlane.xlu0 %6362
        %v6364 = vadd.f32 %v6252, %v6254
        %6365 = vadd.xlane.f32.xlu0 %v6364
        %v6366 = vpop.xlane.xlu0 %6365
        %v6367 = vadd.f32 %v6256, %v6258
        %6368 = vadd.xlane.f32.xlu0 %v6367
        %v6369 = vpop.xlane.xlu0 %6368
        %v6370 = vadd.f32 %v6260, %v6262
        %6371 = vadd.xlane.f32.xlu0 %v6370
        %v6372 = vpop.xlane.xlu0 %6371
        %v6373 = vadd.f32 %v6264, %v6266
        %6374 = vadd.xlane.f32.xlu0 %v6373
        %v6375 = vpop.xlane.xlu0 %6374
        %v6376 = vadd.f32 %v6268, %v6270
        %6377 = vadd.xlane.f32.xlu0 %v6376
        %v6378 = vpop.xlane.xlu0 %6377
        %v6379 = vadd.f32 %v6272, %v6274
        %6380 = vadd.xlane.f32.xlu0 %v6379
        %v6381 = vpop.xlane.xlu0 %6380
        %v6382 = vadd.f32 %v6276, %v6278
        %6383 = vadd.xlane.f32.xlu0 %v6382
        %v6384 = vpop.xlane.xlu0 %6383
        %v6385 = vadd.f32 %v6280, %v6282
        %6386 = vadd.xlane.f32.xlu0 %v6385
        %v6387 = vpop.xlane.xlu0 %6386
        %v6388 = vadd.f32 %v6284, %v6286
        %6389 = vadd.xlane.f32.xlu0 %v6388
        %v6390 = vpop.xlane.xlu0 %6389
        %v6391 = vadd.f32 %v6288, %v6290
        %6392 = vadd.xlane.f32.xlu0 %v6391
        %v6393 = vpop.xlane.xlu0 %6392
        %v6394 = vadd.f32 %v6292, %v6294
        %6395 = vadd.xlane.f32.xlu0 %v6394
        %v6396 = vpop.xlane.xlu0 %6395
        %v6397 = vadd.f32 %v6296, %v6298
        %6398 = vadd.xlane.f32.xlu0 %v6397
        %v6399 = vpop.xlane.xlu0 %6398
        %v6400 = vadd.f32 %v6300, %v6302
        %6401 = vadd.xlane.f32.xlu0 %v6400
        %v6402 = vpop.xlane.xlu0 %6401
        %v6403 = vadd.f32 %v6304, %v6306
        %6404 = vadd.xlane.f32.xlu0 %v6403
        %v6405 = vpop.xlane.xlu0 %6404
        %v6406 = vadd.f32 %v6308, %v6310
        %6407 = vadd.xlane.f32.xlu0 %v6406
        %v6408 = vpop.xlane.xlu0 %6407
        %v6409 = vadd.f32 %v6312, %v6314
        %6410 = vadd.xlane.f32.xlu0 %v6409
        %v6411 = vpop.xlane.xlu0 %6410
        %v6412 = vadd.f32 %v6316, %v6318
        %6413 = vadd.xlane.f32.xlu0 %v6412
        %v6414 = vpop.xlane.xlu0 %6413
        %v6415 = vrcp.pop %v6321
        %v6416 = vrcp.pop %v6324
        %v6417 = vrcp.pop %v6327
        %v6418 = vrcp.pop %v6330
        %v6419 = vrcp.pop %v6333
        %v6420 = vrcp.pop %v6336
        %v6421 = vrcp.pop %v6339
        %v6422 = vrcp.pop %v6342
        %v6423 = vrcp.pop %v6345
        %v6424 = vrcp.pop %v6348
        %v6425 = vrcp.pop %v6351
        %v6426 = vrcp.pop %v6354
        %v6427 = vrcp.pop %v6357
        %v6428 = vrcp.pop %v6360
        %v6429 = vrcp.pop %v6363
        %v6430 = vrcp.pop %v6366
        %v6431 = vrcp.pop %v6369
        %v6432 = vrcp.pop %v6372
        %v6433 = vrcp.pop %v6375
        %v6434 = vrcp.pop %v6378
        %v6435 = vrcp.pop %v6381
        %v6436 = vrcp.pop %v6384
        %v6437 = vrcp.pop %v6387
        %v6438 = vrcp.pop %v6390
        %v6439 = vrcp.pop %v6393
        %v6440 = vrcp.pop %v6396
        %v6441 = vrcp.pop %v6399
        %v6442 = vrcp.pop %v6402
        %v6443 = vrcp.pop %v6405
        %v6444 = vrcp.pop %v6408
        %v6445 = vrcp.pop %v6411
        %v6446 = vrcp.pop %v6414
        %v6447 = vpack.c.bf16 %v6196, %v6192
        %v6448 = vpack.c.bf16 %v6198, %v6194
        %v6449 = vpack.c.bf16 %v6204, %v6200
        %v6450 = vpack.c.bf16 %v6206, %v6202
        %v6451 = vpack.c.bf16 %v6212, %v6208
        %v6452 = vpack.c.bf16 %v6214, %v6210
        %v6453 = vpack.c.bf16 %v6220, %v6216
        %v6454 = vpack.c.bf16 %v6222, %v6218
        %v6455 = vpack.c.bf16 %v6228, %v6224
        %v6456 = vpack.c.bf16 %v6230, %v6226
        %v6457 = vpack.c.bf16 %v6236, %v6232
        %v6458 = vpack.c.bf16 %v6238, %v6234
        %v6459 = vpack.c.bf16 %v6244, %v6240
        %v6460 = vpack.c.bf16 %v6246, %v6242
        %v6461 = vpack.c.bf16 %v6252, %v6248
        %v6462 = vpack.c.bf16 %v6254, %v6250
        %v6463 = vpack.c.bf16 %v6260, %v6256
        %v6464 = vpack.c.bf16 %v6262, %v6258
        %v6465 = vpack.c.bf16 %v6268, %v6264
        %v6466 = vpack.c.bf16 %v6270, %v6266
        %v6467 = vpack.c.bf16 %v6276, %v6272
        %v6468 = vpack.c.bf16 %v6278, %v6274
        %v6469 = vpack.c.bf16 %v6284, %v6280
        %v6470 = vpack.c.bf16 %v6286, %v6282
        %v6471 = vpack.c.bf16 %v6292, %v6288
        %v6472 = vpack.c.bf16 %v6294, %v6290
        %v6473 = vpack.c.bf16 %v6300, %v6296
        %v6474 = vpack.c.bf16 %v6302, %v6298
        %v6475 = vpack.c.bf16 %v6308, %v6304
        %v6476 = vpack.c.bf16 %v6310, %v6306
        %v6477 = vpack.c.bf16 %v6316, %v6312
        %v6478 = vpack.c.bf16 %v6318, %v6314
        %v6511 = vunpack.c.l.b16 %v5645
        %v6512 = vunpack.c.l.b16 %v5646
        %v6513 = vunpack.c.l.b16 %v5647
        %v6514 = vunpack.c.l.b16 %v5648
        %v6515 = vunpack.c.l.b16 %v5649
        %v6516 = vunpack.c.l.b16 %v5650
        %v6517 = vunpack.c.l.b16 %v5651
        %v6518 = vunpack.c.l.b16 %v5652
        %v6519 = vunpack.c.l.b16 %v5653
        %v6520 = vunpack.c.l.b16 %v5654
        %v6521 = vunpack.c.l.b16 %v5655
        %v6522 = vunpack.c.l.b16 %v5656
        %v6523 = vunpack.c.l.b16 %v5657
        %v6524 = vunpack.c.l.b16 %v5658
        %v6525 = vunpack.c.l.b16 %v5659
        %v6526 = vunpack.c.l.b16 %v5660
        %v6527 = vunpack.c.l.b16 %v5661
        %v6528 = vunpack.c.l.b16 %v5662
        %v6529 = vunpack.c.l.b16 %v5663
        %v6530 = vunpack.c.l.b16 %v5664
        %v6531 = vunpack.c.l.b16 %v5665
        %v6532 = vunpack.c.l.b16 %v5666
        %v6533 = vunpack.c.l.b16 %v5667
        %v6534 = vunpack.c.l.b16 %v5668
        %v6535 = vunpack.c.l.b16 %v5669
        %v6536 = vunpack.c.l.b16 %v5670
        %v6537 = vunpack.c.l.b16 %v5671
        %v6538 = vunpack.c.l.b16 %v5672
        %v6539 = vunpack.c.l.b16 %v5673
        %v6540 = vunpack.c.l.b16 %v5674
        %v6541 = vunpack.c.l.b16 %v5675
        %v6542 = vunpack.c.l.b16 %v5676
        %v6543 = vpack.c.b16 %v6512, %v6511
        %v6544 = vpack.c.b16 %v6514, %v6513
        %v6545 = vpack.c.b16 %v6516, %v6515
        %v6546 = vpack.c.b16 %v6518, %v6517
        %v6547 = vpack.c.b16 %v6520, %v6519
        %v6548 = vpack.c.b16 %v6522, %v6521
        %v6549 = vpack.c.b16 %v6524, %v6523
        %v6550 = vpack.c.b16 %v6526, %v6525
        %v6551 = vpack.c.b16 %v6528, %v6527
        %v6552 = vpack.c.b16 %v6530, %v6529
        %v6553 = vpack.c.b16 %v6532, %v6531
        %v6554 = vpack.c.b16 %v6534, %v6533
        %v6555 = vpack.c.b16 %v6536, %v6535
        %v6556 = vpack.c.b16 %v6538, %v6537
        %v6557 = vpack.c.b16 %v6540, %v6539
        %v6558 = vpack.c.b16 %v6542, %v6541
        %6575 = vmatpush.bf16.msra.mxu0 %v6550
        %6576 = vmatpush.bf16.msra.mxu0 %v6549
        %6577 = vmatpush.bf16.msra.mxu0 %v6548
        %6578 = vmatpush.bf16.msra.mxu0 %v6547
        %6579 = vmatpush.bf16.msra.mxu0 %v6546
        %6580 = vmatpush.bf16.msra.mxu0 %v6545
        %6581 = vmatpush.bf16.msra.mxu0 %v6544
        %6582 = vmatpush.bf16.msra.mxu0 %v6543
        %6583 = vmatmul.bf16.gmra.mxu0 %v6447
        %v6584 = vpop.f32.mrf.mxu0
        %v6585 = vadd.f32 0.0, %v6584
        %v6586 = vpop.f32.mrf.mxu0
        %v6587 = vadd.f32 0.0, %v6586
        %6588 = vmatmul.bf16.gmra.mxu0 %v6449
        %v6589 = vpop.f32.mrf.mxu0
        %v6590 = vadd.f32 0.0, %v6589
        %v6591 = vpop.f32.mrf.mxu0
        %v6592 = vadd.f32 0.0, %v6591
        %6593 = vmatmul.bf16.gmra.mxu0 %v6451
        %v6594 = vpop.f32.mrf.mxu0
        %v6595 = vadd.f32 0.0, %v6594
        %v6596 = vpop.f32.mrf.mxu0
        %v6597 = vadd.f32 0.0, %v6596
        %6598 = vmatmul.bf16.gmra.mxu0 %v6453
        %v6599 = vpop.f32.mrf.mxu0
        %v6600 = vadd.f32 0.0, %v6599
        %v6601 = vpop.f32.mrf.mxu0
        %v6602 = vadd.f32 0.0, %v6601
        %6603 = vmatmul.bf16.gmra.mxu0 %v6455
        %v6604 = vpop.f32.mrf.mxu0
        %v6605 = vadd.f32 0.0, %v6604
        %v6606 = vpop.f32.mrf.mxu0
        %v6607 = vadd.f32 0.0, %v6606
        %6608 = vmatmul.bf16.gmra.mxu0 %v6457
        %v6609 = vpop.f32.mrf.mxu0
        %v6610 = vadd.f32 0.0, %v6609
        %v6611 = vpop.f32.mrf.mxu0
        %v6612 = vadd.f32 0.0, %v6611
        %6613 = vmatmul.bf16.gmra.mxu0 %v6459
        %v6614 = vpop.f32.mrf.mxu0
        %v6615 = vadd.f32 0.0, %v6614
        %v6616 = vpop.f32.mrf.mxu0
        %v6617 = vadd.f32 0.0, %v6616
        %6618 = vmatmul.bf16.gmra.mxu0 %v6461
        %v6619 = vpop.f32.mrf.mxu0
        %v6620 = vadd.f32 0.0, %v6619
        %v6621 = vpop.f32.mrf.mxu0
        %v6622 = vadd.f32 0.0, %v6621
        %6623 = vmatmul.bf16.gmra.mxu0 %v6463
        %v6624 = vpop.f32.mrf.mxu0
        %v6625 = vadd.f32 0.0, %v6624
        %v6626 = vpop.f32.mrf.mxu0
        %v6627 = vadd.f32 0.0, %v6626
        %6628 = vmatmul.bf16.gmra.mxu0 %v6465
        %v6629 = vpop.f32.mrf.mxu0
        %v6630 = vadd.f32 0.0, %v6629
        %v6631 = vpop.f32.mrf.mxu0
        %v6632 = vadd.f32 0.0, %v6631
        %6633 = vmatmul.bf16.gmra.mxu0 %v6467
        %v6634 = vpop.f32.mrf.mxu0
        %v6635 = vadd.f32 0.0, %v6634
        %v6636 = vpop.f32.mrf.mxu0
        %v6637 = vadd.f32 0.0, %v6636
        %6638 = vmatmul.bf16.gmra.mxu0 %v6469
        %v6639 = vpop.f32.mrf.mxu0
        %v6640 = vadd.f32 0.0, %v6639
        %v6641 = vpop.f32.mrf.mxu0
        %v6642 = vadd.f32 0.0, %v6641
        %6643 = vmatmul.bf16.gmra.mxu0 %v6471
        %v6644 = vpop.f32.mrf.mxu0
        %v6645 = vadd.f32 0.0, %v6644
        %v6646 = vpop.f32.mrf.mxu0
        %v6647 = vadd.f32 0.0, %v6646
        %6648 = vmatmul.bf16.gmra.mxu0 %v6473
        %v6649 = vpop.f32.mrf.mxu0
        %v6650 = vadd.f32 0.0, %v6649
        %v6651 = vpop.f32.mrf.mxu0
        %v6652 = vadd.f32 0.0, %v6651
        %6653 = vmatmul.bf16.gmra.mxu0 %v6475
        %v6654 = vpop.f32.mrf.mxu0
        %v6655 = vadd.f32 0.0, %v6654
        %v6656 = vpop.f32.mrf.mxu0
        %v6657 = vadd.f32 0.0, %v6656
        %6658 = vmatmul.bf16.gmra.mxu0 %v6477
        %v6659 = vpop.f32.mrf.mxu0
        %v6660 = vadd.f32 0.0, %v6659
        %v6661 = vpop.f32.mrf.mxu0
        %v6662 = vadd.f32 0.0, %v6661
        %6663 = vdwg.mxu0
        %6664 = vmatpush.bf16.msra.mxu0 %v6558
        %6665 = vmatpush.bf16.msra.mxu0 %v6557
        %6666 = vmatpush.bf16.msra.mxu0 %v6556
        %6667 = vmatpush.bf16.msra.mxu0 %v6555
        %6668 = vmatpush.bf16.msra.mxu0 %v6554
        %6669 = vmatpush.bf16.msra.mxu0 %v6553
        %6670 = vmatpush.bf16.msra.mxu0 %v6552
        %6671 = vmatpush.bf16.msra.mxu0 %v6551
        %6672 = vmatmul.bf16.gmra.mxu0 %v6448
        %v6673 = vpop.f32.mrf.mxu0
        %v6674 = vadd.f32 %v6585, %v6673
        %v6675 = vpop.f32.mrf.mxu0
        %v6676 = vadd.f32 %v6587, %v6675
        %6677 = vmatmul.bf16.gmra.mxu0 %v6450
        %v6678 = vpop.f32.mrf.mxu0
        %v6679 = vadd.f32 %v6590, %v6678
        %v6680 = vpop.f32.mrf.mxu0
        %v6681 = vadd.f32 %v6592, %v6680
        %6682 = vmatmul.bf16.gmra.mxu0 %v6452
        %v6683 = vpop.f32.mrf.mxu0
        %v6684 = vadd.f32 %v6595, %v6683
        %v6685 = vpop.f32.mrf.mxu0
        %v6686 = vadd.f32 %v6597, %v6685
        %6687 = vmatmul.bf16.gmra.mxu0 %v6454
        %v6688 = vpop.f32.mrf.mxu0
        %v6689 = vadd.f32 %v6600, %v6688
        %v6690 = vpop.f32.mrf.mxu0
        %v6691 = vadd.f32 %v6602, %v6690
        %6692 = vmatmul.bf16.gmra.mxu0 %v6456
        %v6693 = vpop.f32.mrf.mxu0
        %v6694 = vadd.f32 %v6605, %v6693
        %v6695 = vpop.f32.mrf.mxu0
        %v6696 = vadd.f32 %v6607, %v6695
        %6697 = vmatmul.bf16.gmra.mxu0 %v6458
        %v6698 = vpop.f32.mrf.mxu0
        %v6699 = vadd.f32 %v6610, %v6698
        %v6700 = vpop.f32.mrf.mxu0
        %v6701 = vadd.f32 %v6612, %v6700
        %6702 = vmatmul.bf16.gmra.mxu0 %v6460
        %v6703 = vpop.f32.mrf.mxu0
        %v6704 = vadd.f32 %v6615, %v6703
        %v6705 = vpop.f32.mrf.mxu0
        %v6706 = vadd.f32 %v6617, %v6705
        %6707 = vmatmul.bf16.gmra.mxu0 %v6462
        %v6708 = vpop.f32.mrf.mxu0
        %v6709 = vadd.f32 %v6620, %v6708
        %v6710 = vpop.f32.mrf.mxu0
        %v6711 = vadd.f32 %v6622, %v6710
        %6712 = vmatmul.bf16.gmra.mxu0 %v6464
        %v6713 = vpop.f32.mrf.mxu0
        %v6714 = vadd.f32 %v6625, %v6713
        %v6715 = vpop.f32.mrf.mxu0
        %v6716 = vadd.f32 %v6627, %v6715
        %6717 = vmatmul.bf16.gmra.mxu0 %v6466
        %v6718 = vpop.f32.mrf.mxu0
        %v6719 = vadd.f32 %v6630, %v6718
        %v6720 = vpop.f32.mrf.mxu0
        %v6721 = vadd.f32 %v6632, %v6720
        %6722 = vmatmul.bf16.gmra.mxu0 %v6468
        %v6723 = vpop.f32.mrf.mxu0
        %v6724 = vadd.f32 %v6635, %v6723
        %v6725 = vpop.f32.mrf.mxu0
        %v6726 = vadd.f32 %v6637, %v6725
        %6727 = vmatmul.bf16.gmra.mxu0 %v6470
        %v6728 = vpop.f32.mrf.mxu0
        %v6729 = vadd.f32 %v6640, %v6728
        %v6730 = vpop.f32.mrf.mxu0
        %v6731 = vadd.f32 %v6642, %v6730
        %6732 = vmatmul.bf16.gmra.mxu0 %v6472
        %v6733 = vpop.f32.mrf.mxu0
        %v6734 = vadd.f32 %v6645, %v6733
        %v6735 = vpop.f32.mrf.mxu0
        %v6736 = vadd.f32 %v6647, %v6735
        %6737 = vmatmul.bf16.gmra.mxu0 %v6474
        %v6738 = vpop.f32.mrf.mxu0
        %v6739 = vadd.f32 %v6650, %v6738
        %v6740 = vpop.f32.mrf.mxu0
        %v6741 = vadd.f32 %v6652, %v6740
        %6742 = vmatmul.bf16.gmra.mxu0 %v6476
        %v6743 = vpop.f32.mrf.mxu0
        %v6744 = vadd.f32 %v6655, %v6743
        %v6745 = vpop.f32.mrf.mxu0
        %v6746 = vadd.f32 %v6657, %v6745
        %6747 = vmatmul.bf16.gmra.mxu0 %v6478
        %v6748 = vpop.f32.mrf.mxu0
        %v6749 = vadd.f32 %v6660, %v6748
        %v6750 = vpop.f32.mrf.mxu0
        %v6751 = vadd.f32 %v6662, %v6750
        %6752 = vdwg.mxu0
        %v6753 = vmul.f32 %v6674, %v6415
        %v6754 = vmul.f32 %v6676, %v6416
        %v6755 = vmul.f32 %v6679, %v6417
        %v6756 = vmul.f32 %v6681, %v6418
        %v6757 = vmul.f32 %v6684, %v6419
        %v6758 = vmul.f32 %v6686, %v6420
        %v6759 = vmul.f32 %v6689, %v6421
        %v6760 = vmul.f32 %v6691, %v6422
        %v6761 = vmul.f32 %v6694, %v6423
        %v6762 = vmul.f32 %v6696, %v6424
        %v6763 = vmul.f32 %v6699, %v6425
        %v6764 = vmul.f32 %v6701, %v6426
        %v6765 = vmul.f32 %v6704, %v6427
        %v6766 = vmul.f32 %v6706, %v6428
        %v6767 = vmul.f32 %v6709, %v6429
        %v6768 = vmul.f32 %v6711, %v6430
        %v6769 = vmul.f32 %v6714, %v6431
        %v6770 = vmul.f32 %v6716, %v6432
        %v6771 = vmul.f32 %v6719, %v6433
        %v6772 = vmul.f32 %v6721, %v6434
        %v6773 = vmul.f32 %v6724, %v6435
        %v6774 = vmul.f32 %v6726, %v6436
        %v6775 = vmul.f32 %v6729, %v6437
        %v6776 = vmul.f32 %v6731, %v6438
        %v6777 = vmul.f32 %v6734, %v6439
        %v6778 = vmul.f32 %v6736, %v6440
        %v6779 = vmul.f32 %v6739, %v6441
        %v6780 = vmul.f32 %v6741, %v6442
        %v6781 = vmul.f32 %v6744, %v6443
        %v6782 = vmul.f32 %v6746, %v6444
        %v6783 = vmul.f32 %v6749, %v6445
        %v6784 = vmul.f32 %v6751, %v6446
        %v6785 = vpack.c.bf16 %v6754, %v6753
        %v6786 = vpack.c.bf16 %v6756, %v6755
        %v6787 = vpack.c.bf16 %v6758, %v6757
        %v6788 = vpack.c.bf16 %v6760, %v6759
        %v6789 = vpack.c.bf16 %v6762, %v6761
        %v6790 = vpack.c.bf16 %v6764, %v6763
        %v6791 = vpack.c.bf16 %v6766, %v6765
        %v6792 = vpack.c.bf16 %v6768, %v6767
        %v6793 = vpack.c.bf16 %v6770, %v6769
        %v6794 = vpack.c.bf16 %v6772, %v6771
        %v6795 = vpack.c.bf16 %v6774, %v6773
        %v6796 = vpack.c.bf16 %v6776, %v6775
        %v6797 = vpack.c.bf16 %v6778, %v6777
        %v6798 = vpack.c.bf16 %v6780, %v6779
        %v6799 = vpack.c.bf16 %v6782, %v6781
        %v6800 = vpack.c.bf16 %v6784, %v6783
        %v6801 = vld [vmem:[#allocation15 + $0x40] sm:$0xff]
        %v6802 = vld [vmem:[#allocation15 + $0x48] sm:$0xff]
        %v6803 = vld [vmem:[#allocation15 + $0x50] sm:$0xff]
        %v6804 = vld [vmem:[#allocation15 + $0x58] sm:$0xff]
        %v6805 = vpack.c.bf16 %v6802, %v6801
        %v6806 = vpack.c.bf16 %v6804, %v6803
        %v6808 = vsel %vm2760, %v6785, 0
        %v6811 = vsel %vm2760, %v6786, 0
        %v6814 = vsel %vm2760, %v6787, 0
        %v6817 = vsel %vm2760, %v6788, 0
        %v6820 = vsel %vm2760, %v6789, 0
        %v6823 = vsel %vm2760, %v6790, 0
        %v6826 = vsel %vm2760, %v6791, 0
        %v6829 = vsel %vm2760, %v6792, 0
        %v6832 = vsel %vm2760, %v6793, 0
        %v6835 = vsel %vm2760, %v6794, 0
        %v6838 = vsel %vm2760, %v6795, 0
        %v6841 = vsel %vm2760, %v6796, 0
        %v6844 = vsel %vm2760, %v6797, 0
        %v6847 = vsel %vm2760, %v6798, 0
        %v6850 = vsel %vm2760, %v6799, 0
        %v6853 = vsel %vm2760, %v6800, 0
        %6855 = vmatpush.bf16.msra.mxu0 0
        %6856 = vmatpush.bf16.msra.mxu0 0
        %6857 = vmatpush.bf16.msra.mxu0 0
        %6858 = vmatpush.bf16.msra.mxu0 0
        %6859 = vmatpush.bf16.msra.mxu0 0
        %6860 = vmatpush.bf16.msra.mxu0 0
        %6861 = vmatpush.bf16.msra.mxu0 %v6806
        %6862 = vmatpush.bf16.msra.mxu0 %v6805
        %6863 = vmatmul.bf16.gmra.mxu0 %v6808
        %v6864 = vpop.f32.mrf.mxu0
        %v6865 = vadd.f32 0.0, %v6864
        %v6866 = vpop.f32.mrf.mxu0
        %v6867 = vadd.f32 0.0, %v6866
        %6868 = vmatmul.bf16.gmra.mxu0 %v6811
        %v6869 = vpop.f32.mrf.mxu0
        %v6870 = vadd.f32 0.0, %v6869
        %v6871 = vpop.f32.mrf.mxu0
        %v6872 = vadd.f32 0.0, %v6871
        %6873 = vmatmul.bf16.gmra.mxu0 %v6814
        %v6874 = vpop.f32.mrf.mxu0
        %v6875 = vadd.f32 0.0, %v6874
        %v6876 = vpop.f32.mrf.mxu0
        %v6877 = vadd.f32 0.0, %v6876
        %6878 = vmatmul.bf16.gmra.mxu0 %v6817
        %v6879 = vpop.f32.mrf.mxu0
        %v6880 = vadd.f32 0.0, %v6879
        %v6881 = vpop.f32.mrf.mxu0
        %v6882 = vadd.f32 0.0, %v6881
        %6883 = vmatmul.bf16.gmra.mxu0 %v6820
        %v6884 = vpop.f32.mrf.mxu0
        %v6885 = vadd.f32 0.0, %v6884
        %v6886 = vpop.f32.mrf.mxu0
        %v6887 = vadd.f32 0.0, %v6886
        %6888 = vmatmul.bf16.gmra.mxu0 %v6823
        %v6889 = vpop.f32.mrf.mxu0
        %v6890 = vadd.f32 0.0, %v6889
        %v6891 = vpop.f32.mrf.mxu0
        %v6892 = vadd.f32 0.0, %v6891
        %6893 = vmatmul.bf16.gmra.mxu0 %v6826
        %v6894 = vpop.f32.mrf.mxu0
        %v6895 = vadd.f32 0.0, %v6894
        %v6896 = vpop.f32.mrf.mxu0
        %v6897 = vadd.f32 0.0, %v6896
        %6898 = vmatmul.bf16.gmra.mxu0 %v6829
        %v6899 = vpop.f32.mrf.mxu0
        %v6900 = vadd.f32 0.0, %v6899
        %v6901 = vpop.f32.mrf.mxu0
        %v6902 = vadd.f32 0.0, %v6901
        %6903 = vmatmul.bf16.gmra.mxu0 %v6832
        %v6904 = vpop.f32.mrf.mxu0
        %v6905 = vadd.f32 0.0, %v6904
        %v6906 = vpop.f32.mrf.mxu0
        %v6907 = vadd.f32 0.0, %v6906
        %6908 = vmatmul.bf16.gmra.mxu0 %v6835
        %v6909 = vpop.f32.mrf.mxu0
        %v6910 = vadd.f32 0.0, %v6909
        %v6911 = vpop.f32.mrf.mxu0
        %v6912 = vadd.f32 0.0, %v6911
        %6913 = vmatmul.bf16.gmra.mxu0 %v6838
        %v6914 = vpop.f32.mrf.mxu0
        %v6915 = vadd.f32 0.0, %v6914
        %v6916 = vpop.f32.mrf.mxu0
        %v6917 = vadd.f32 0.0, %v6916
        %6918 = vmatmul.bf16.gmra.mxu0 %v6841
        %v6919 = vpop.f32.mrf.mxu0
        %v6920 = vadd.f32 0.0, %v6919
        %v6921 = vpop.f32.mrf.mxu0
        %v6922 = vadd.f32 0.0, %v6921
        %6923 = vmatmul.bf16.gmra.mxu0 %v6844
        %v6924 = vpop.f32.mrf.mxu0
        %v6925 = vadd.f32 0.0, %v6924
        %v6926 = vpop.f32.mrf.mxu0
        %v6927 = vadd.f32 0.0, %v6926
        %6928 = vmatmul.bf16.gmra.mxu0 %v6847
        %v6929 = vpop.f32.mrf.mxu0
        %v6930 = vadd.f32 0.0, %v6929
        %v6931 = vpop.f32.mrf.mxu0
        %v6932 = vadd.f32 0.0, %v6931
        %6933 = vmatmul.bf16.gmra.mxu0 %v6850
        %v6934 = vpop.f32.mrf.mxu0
        %v6935 = vadd.f32 0.0, %v6934
        %v6936 = vpop.f32.mrf.mxu0
        %v6937 = vadd.f32 0.0, %v6936
        %6938 = vmatmul.bf16.gmra.mxu0 %v6853
        %v6939 = vpop.f32.mrf.mxu0
        %v6940 = vadd.f32 0.0, %v6939
        %v6941 = vpop.f32.mrf.mxu0
        %v6942 = vadd.f32 0.0, %v6941
        %6943 = vdwg.mxu0
        %v6944 = vadd.f32 %v5371, %v6865
        %v6945 = vadd.f32 %v5373, %v6867
        %v6946 = vadd.f32 %v5376, %v6870
        %v6947 = vadd.f32 %v5378, %v6872
        %v6948 = vadd.f32 %v5381, %v6875
        %v6949 = vadd.f32 %v5383, %v6877
        %v6950 = vadd.f32 %v5386, %v6880
        %v6951 = vadd.f32 %v5388, %v6882
        %v6952 = vadd.f32 %v5391, %v6885
        %v6953 = vadd.f32 %v5393, %v6887
        %v6954 = vadd.f32 %v5396, %v6890
        %v6955 = vadd.f32 %v5398, %v6892
        %v6956 = vadd.f32 %v5401, %v6895
        %v6957 = vadd.f32 %v5403, %v6897
        %v6958 = vadd.f32 %v5406, %v6900
        %v6959 = vadd.f32 %v5408, %v6902
        %v6960 = vadd.f32 %v5411, %v6905
        %v6961 = vadd.f32 %v5413, %v6907
        %v6962 = vadd.f32 %v5416, %v6910
        %v6963 = vadd.f32 %v5418, %v6912
        %v6964 = vadd.f32 %v5421, %v6915
        %v6965 = vadd.f32 %v5423, %v6917
        %v6966 = vadd.f32 %v5426, %v6920
        %v6967 = vadd.f32 %v5428, %v6922
        %v6968 = vadd.f32 %v5431, %v6925
        %v6969 = vadd.f32 %v5433, %v6927
        %v6970 = vadd.f32 %v5436, %v6930
        %v6971 = vadd.f32 %v5438, %v6932
        %v6972 = vadd.f32 %v5441, %v6935
        %v6973 = vadd.f32 %v5443, %v6937
        %v6974 = vadd.f32 %v5446, %v6940
        %v6975 = vadd.f32 %v5448, %v6942
        %6976 = vrot.lane.b32.xlu0 %v2471, 32
        %v6977 = vpop.permute.xlu0 %6976
        %6978 = vrot.lane.b32.xlu0 %v2472, 32
        %v6979 = vpop.permute.xlu0 %6978
        %6980 = vrot.lane.b32.xlu0 %v2473, 32
        %v6981 = vpop.permute.xlu0 %6980
        %6982 = vrot.lane.b32.xlu0 %v2474, 32
        %v6983 = vpop.permute.xlu0 %6982
        %6984 = vrot.lane.b32.xlu0 %v2475, 32
        %v6985 = vpop.permute.xlu0 %6984
        %6986 = vrot.lane.b32.xlu0 %v2476, 32
        %v6987 = vpop.permute.xlu0 %6986
        %6988 = vrot.lane.b32.xlu0 %v2477, 32
        %v6989 = vpop.permute.xlu0 %6988
        %6990 = vrot.lane.b32.xlu0 %v2478, 32
        %v6991 = vpop.permute.xlu0 %6990
        %7000 = vmatpush.bf16.msra.mxu0 %v6991
        %7001 = vmatpush.bf16.msra.mxu0 %v6989
        %7002 = vmatpush.bf16.msra.mxu0 %v6987
        %7003 = vmatpush.bf16.msra.mxu0 %v6985
        %7004 = vmatpush.bf16.msra.mxu0 %v6983
        %7005 = vmatpush.bf16.msra.mxu0 %v6981
        %7006 = vmatpush.bf16.msra.mxu0 %v6979
        %7007 = vmatpush.bf16.msra.mxu0 %v6977
        %7008 = vmatmul.bf16.gmra.mxu0 %v2241
        %v7009 = vpop.f32.mrf.mxu0
        %v7010 = vadd.f32 0.0, %v7009
        %v7011 = vpop.f32.mrf.mxu0
        %v7012 = vadd.f32 0.0, %v7011
        %7013 = vmatmul.bf16.gmra.mxu0 %v2242
        %v7014 = vpop.f32.mrf.mxu0
        %v7015 = vadd.f32 0.0, %v7014
        %v7016 = vpop.f32.mrf.mxu0
        %v7017 = vadd.f32 0.0, %v7016
        %7018 = vmatmul.bf16.gmra.mxu0 %v2243
        %v7019 = vpop.f32.mrf.mxu0
        %v7020 = vadd.f32 0.0, %v7019
        %v7021 = vpop.f32.mrf.mxu0
        %v7022 = vadd.f32 0.0, %v7021
        %7023 = vmatmul.bf16.gmra.mxu0 %v2244
        %v7024 = vpop.f32.mrf.mxu0
        %v7025 = vadd.f32 0.0, %v7024
        %v7026 = vpop.f32.mrf.mxu0
        %v7027 = vadd.f32 0.0, %v7026
        %7028 = vmatmul.bf16.gmra.mxu0 %v2245
        %v7029 = vpop.f32.mrf.mxu0
        %v7030 = vadd.f32 0.0, %v7029
        %v7031 = vpop.f32.mrf.mxu0
        %v7032 = vadd.f32 0.0, %v7031
        %7033 = vmatmul.bf16.gmra.mxu0 %v2246
        %v7034 = vpop.f32.mrf.mxu0
        %v7035 = vadd.f32 0.0, %v7034
        %v7036 = vpop.f32.mrf.mxu0
        %v7037 = vadd.f32 0.0, %v7036
        %7038 = vmatmul.bf16.gmra.mxu0 %v2247
        %v7039 = vpop.f32.mrf.mxu0
        %v7040 = vadd.f32 0.0, %v7039
        %v7041 = vpop.f32.mrf.mxu0
        %v7042 = vadd.f32 0.0, %v7041
        %7043 = vmatmul.bf16.gmra.mxu0 %v2248
        %v7044 = vpop.f32.mrf.mxu0
        %v7045 = vadd.f32 0.0, %v7044
        %v7046 = vpop.f32.mrf.mxu0
        %v7047 = vadd.f32 0.0, %v7046
        %7048 = vmatmul.bf16.gmra.mxu0 %v2249
        %v7049 = vpop.f32.mrf.mxu0
        %v7050 = vadd.f32 0.0, %v7049
        %v7051 = vpop.f32.mrf.mxu0
        %v7052 = vadd.f32 0.0, %v7051
        %7053 = vmatmul.bf16.gmra.mxu0 %v2250
        %v7054 = vpop.f32.mrf.mxu0
        %v7055 = vadd.f32 0.0, %v7054
        %v7056 = vpop.f32.mrf.mxu0
        %v7057 = vadd.f32 0.0, %v7056
        %7058 = vmatmul.bf16.gmra.mxu0 %v2251
        %v7059 = vpop.f32.mrf.mxu0
        %v7060 = vadd.f32 0.0, %v7059
        %v7061 = vpop.f32.mrf.mxu0
        %v7062 = vadd.f32 0.0, %v7061
        %7063 = vmatmul.bf16.gmra.mxu0 %v2252
        %v7064 = vpop.f32.mrf.mxu0
        %v7065 = vadd.f32 0.0, %v7064
        %v7066 = vpop.f32.mrf.mxu0
        %v7067 = vadd.f32 0.0, %v7066
        %7068 = vmatmul.bf16.gmra.mxu0 %v2253
        %v7069 = vpop.f32.mrf.mxu0
        %v7070 = vadd.f32 0.0, %v7069
        %v7071 = vpop.f32.mrf.mxu0
        %v7072 = vadd.f32 0.0, %v7071
        %7073 = vmatmul.bf16.gmra.mxu0 %v2254
        %v7074 = vpop.f32.mrf.mxu0
        %v7075 = vadd.f32 0.0, %v7074
        %v7076 = vpop.f32.mrf.mxu0
        %v7077 = vadd.f32 0.0, %v7076
        %7078 = vmatmul.bf16.gmra.mxu0 %v2255
        %v7079 = vpop.f32.mrf.mxu0
        %v7080 = vadd.f32 0.0, %v7079
        %v7081 = vpop.f32.mrf.mxu0
        %v7082 = vadd.f32 0.0, %v7081
        %7083 = vmatmul.bf16.gmra.mxu0 %v2256
        %v7084 = vpop.f32.mrf.mxu0
        %v7085 = vadd.f32 0.0, %v7084
        %v7086 = vpop.f32.mrf.mxu0
        %v7087 = vadd.f32 0.0, %v7086
        %7088 = vdwg.mxu0
        %v7089 = vmul.f32 %v7010, 0.17677669
        %v7090 = vmul.f32 %v7012, 0.17677669
        %v7091 = vmul.f32 %v7015, 0.17677669
        %v7092 = vmul.f32 %v7017, 0.17677669
        %v7093 = vmul.f32 %v7020, 0.17677669
        %v7094 = vmul.f32 %v7022, 0.17677669
        %v7095 = vmul.f32 %v7025, 0.17677669
        %v7096 = vmul.f32 %v7027, 0.17677669
        %v7097 = vmul.f32 %v7030, 0.17677669
        %v7098 = vmul.f32 %v7032, 0.17677669
        %v7099 = vmul.f32 %v7035, 0.17677669
        %v7100 = vmul.f32 %v7037, 0.17677669
        %v7101 = vmul.f32 %v7040, 0.17677669
        %v7102 = vmul.f32 %v7042, 0.17677669
        %v7103 = vmul.f32 %v7045, 0.17677669
        %v7104 = vmul.f32 %v7047, 0.17677669
        %v7105 = vmul.f32 %v7050, 0.17677669
        %v7106 = vmul.f32 %v7052, 0.17677669
        %v7107 = vmul.f32 %v7055, 0.17677669
        %v7108 = vmul.f32 %v7057, 0.17677669
        %v7109 = vmul.f32 %v7060, 0.17677669
        %v7110 = vmul.f32 %v7062, 0.17677669
        %v7111 = vmul.f32 %v7065, 0.17677669
        %v7112 = vmul.f32 %v7067, 0.17677669
        %v7113 = vmul.f32 %v7070, 0.17677669
        %v7114 = vmul.f32 %v7072, 0.17677669
        %v7115 = vmul.f32 %v7075, 0.17677669
        %v7116 = vmul.f32 %v7077, 0.17677669
        %v7117 = vmul.f32 %v7080, 0.17677669
        %v7118 = vmul.f32 %v7082, 0.17677669
        %v7119 = vmul.f32 %v7085, 0.17677669
        %v7120 = vmul.f32 %v7087, 0.17677669
        %v7121 = vpack.c.bf16 %v7090, %v7089
        %v7122 = vpack.c.bf16 %v7092, %v7091
        %v7123 = vpack.c.bf16 %v7094, %v7093
        %v7124 = vpack.c.bf16 %v7096, %v7095
        %v7125 = vpack.c.bf16 %v7098, %v7097
        %v7126 = vpack.c.bf16 %v7100, %v7099
        %v7127 = vpack.c.bf16 %v7102, %v7101
        %v7128 = vpack.c.bf16 %v7104, %v7103
        %v7129 = vpack.c.bf16 %v7106, %v7105
        %v7130 = vpack.c.bf16 %v7108, %v7107
        %v7131 = vpack.c.bf16 %v7110, %v7109
        %v7132 = vpack.c.bf16 %v7112, %v7111
        %v7133 = vpack.c.bf16 %v7114, %v7113
        %v7134 = vpack.c.bf16 %v7116, %v7115
        %v7135 = vpack.c.bf16 %v7118, %v7117
        %v7136 = vpack.c.bf16 %v7120, %v7119
        %s7137 = scalar_lea.vmem [#allocation2], 384
        %v7138 = vld [vmem:[%s7137] sm:$0xf]
        %v7139 = vld [vmem:[%s7137 + $0x4] sm:$0xf]
        %v7140 = vld [vmem:[%s7137 + $0x8] sm:$0xf]
        %v7141 = vld [vmem:[%s7137 + $0xc] sm:$0xf]
        %v7142 = vld [vmem:[%s7137 + $0x10] sm:$0xf]
        %v7143 = vld [vmem:[%s7137 + $0x14] sm:$0xf]
        %v7144 = vld [vmem:[%s7137 + $0x18] sm:$0xf]
        %v7145 = vld [vmem:[%s7137 + $0x1c] sm:$0xf]
        %v7146 = vld [vmem:[%s7137 + $0x20] sm:$0xf]
        %v7147 = vld [vmem:[%s7137 + $0x24] sm:$0xf]
        %v7148 = vld [vmem:[%s7137 + $0x28] sm:$0xf]
        %v7149 = vld [vmem:[%s7137 + $0x2c] sm:$0xf]
        %v7150 = vld [vmem:[%s7137 + $0x30] sm:$0xf]
        %v7151 = vld [vmem:[%s7137 + $0x34] sm:$0xf]
        %v7152 = vld [vmem:[%s7137 + $0x38] sm:$0xf]
        %v7153 = vld [vmem:[%s7137 + $0x3c] sm:$0xf]
        %v7154 = vld [vmem:[%s7137 + $0x40] sm:$0xf]
        %v7155 = vld [vmem:[%s7137 + $0x44] sm:$0xf]
        %v7156 = vld [vmem:[%s7137 + $0x48] sm:$0xf]
        %v7157 = vld [vmem:[%s7137 + $0x4c] sm:$0xf]
        %v7158 = vld [vmem:[%s7137 + $0x50] sm:$0xf]
        %v7159 = vld [vmem:[%s7137 + $0x54] sm:$0xf]
        %v7160 = vld [vmem:[%s7137 + $0x58] sm:$0xf]
        %v7161 = vld [vmem:[%s7137 + $0x5c] sm:$0xf]
        %v7162 = vld [vmem:[%s7137 + $0x60] sm:$0xf]
        %v7163 = vld [vmem:[%s7137 + $0x64] sm:$0xf]
        %v7164 = vld [vmem:[%s7137 + $0x68] sm:$0xf]
        %v7165 = vld [vmem:[%s7137 + $0x6c] sm:$0xf]
        %v7166 = vld [vmem:[%s7137 + $0x70] sm:$0xf]
        %v7167 = vld [vmem:[%s7137 + $0x74] sm:$0xf]
        %v7168 = vld [vmem:[%s7137 + $0x78] sm:$0xf]
        %v7169 = vld [vmem:[%s7137 + $0x7c] sm:$0xf]
        %s7170 = scalar_lea.vmem [#allocation3], 384
        %v7171 = vld [vmem:[%s7170] sm:$0xf]
        %v7172 = vld [vmem:[%s7170 + $0x4] sm:$0xf]
        %v7173 = vld [vmem:[%s7170 + $0x8] sm:$0xf]
        %v7174 = vld [vmem:[%s7170 + $0xc] sm:$0xf]
        %v7175 = vld [vmem:[%s7170 + $0x10] sm:$0xf]
        %v7176 = vld [vmem:[%s7170 + $0x14] sm:$0xf]
        %v7177 = vld [vmem:[%s7170 + $0x18] sm:$0xf]
        %v7178 = vld [vmem:[%s7170 + $0x1c] sm:$0xf]
        %v7179 = vld [vmem:[%s7170 + $0x20] sm:$0xf]
        %v7180 = vld [vmem:[%s7170 + $0x24] sm:$0xf]
        %v7181 = vld [vmem:[%s7170 + $0x28] sm:$0xf]
        %v7182 = vld [vmem:[%s7170 + $0x2c] sm:$0xf]
        %v7183 = vld [vmem:[%s7170 + $0x30] sm:$0xf]
        %v7184 = vld [vmem:[%s7170 + $0x34] sm:$0xf]
        %v7185 = vld [vmem:[%s7170 + $0x38] sm:$0xf]
        %v7186 = vld [vmem:[%s7170 + $0x3c] sm:$0xf]
        %v7187 = vld [vmem:[%s7170 + $0x40] sm:$0xf]
        %v7188 = vld [vmem:[%s7170 + $0x44] sm:$0xf]
        %v7189 = vld [vmem:[%s7170 + $0x48] sm:$0xf]
        %v7190 = vld [vmem:[%s7170 + $0x4c] sm:$0xf]
        %v7191 = vld [vmem:[%s7170 + $0x50] sm:$0xf]
        %v7192 = vld [vmem:[%s7170 + $0x54] sm:$0xf]
        %v7193 = vld [vmem:[%s7170 + $0x58] sm:$0xf]
        %v7194 = vld [vmem:[%s7170 + $0x5c] sm:$0xf]
        %v7195 = vld [vmem:[%s7170 + $0x60] sm:$0xf]
        %v7196 = vld [vmem:[%s7170 + $0x64] sm:$0xf]
        %v7197 = vld [vmem:[%s7170 + $0x68] sm:$0xf]
        %v7198 = vld [vmem:[%s7170 + $0x6c] sm:$0xf]
        %v7199 = vld [vmem:[%s7170 + $0x70] sm:$0xf]
        %v7200 = vld [vmem:[%s7170 + $0x74] sm:$0xf]
        %v7201 = vld [vmem:[%s7170 + $0x78] sm:$0xf]
        %v7202 = vld [vmem:[%s7170 + $0x7c] sm:$0xf]
        %v7235 = vunpack.c.l.b16 %v7138
        %v7236 = vunpack.c.l.b16 %v7139
        %v7237 = vunpack.c.l.b16 %v7140
        %v7238 = vunpack.c.l.b16 %v7141
        %v7239 = vunpack.c.l.b16 %v7142
        %v7240 = vunpack.c.l.b16 %v7143
        %v7241 = vunpack.c.l.b16 %v7144
        %v7242 = vunpack.c.l.b16 %v7145
        %v7243 = vunpack.c.l.b16 %v7146
        %v7244 = vunpack.c.l.b16 %v7147
        %v7245 = vunpack.c.l.b16 %v7148
        %v7246 = vunpack.c.l.b16 %v7149
        %v7247 = vunpack.c.l.b16 %v7150
        %v7248 = vunpack.c.l.b16 %v7151
        %v7249 = vunpack.c.l.b16 %v7152
        %v7250 = vunpack.c.l.b16 %v7153
        %v7251 = vunpack.c.l.b16 %v7154
        %v7252 = vunpack.c.l.b16 %v7155
        %v7253 = vunpack.c.l.b16 %v7156
        %v7254 = vunpack.c.l.b16 %v7157
        %v7255 = vunpack.c.l.b16 %v7158
        %v7256 = vunpack.c.l.b16 %v7159
        %v7257 = vunpack.c.l.b16 %v7160
        %v7258 = vunpack.c.l.b16 %v7161
        %v7259 = vunpack.c.l.b16 %v7162
        %v7260 = vunpack.c.l.b16 %v7163
        %v7261 = vunpack.c.l.b16 %v7164
        %v7262 = vunpack.c.l.b16 %v7165
        %v7263 = vunpack.c.l.b16 %v7166
        %v7264 = vunpack.c.l.b16 %v7167
        %v7265 = vunpack.c.l.b16 %v7168
        %v7266 = vunpack.c.l.b16 %v7169
        %v7267 = vpack.c.b16 %v7236, %v7235
        %v7268 = vpack.c.b16 %v7238, %v7237
        %v7269 = vpack.c.b16 %v7240, %v7239
        %v7270 = vpack.c.b16 %v7242, %v7241
        %v7271 = vpack.c.b16 %v7244, %v7243
        %v7272 = vpack.c.b16 %v7246, %v7245
        %v7273 = vpack.c.b16 %v7248, %v7247
        %v7274 = vpack.c.b16 %v7250, %v7249
        %v7275 = vpack.c.b16 %v7252, %v7251
        %v7276 = vpack.c.b16 %v7254, %v7253
        %v7277 = vpack.c.b16 %v7256, %v7255
        %v7278 = vpack.c.b16 %v7258, %v7257
        %v7279 = vpack.c.b16 %v7260, %v7259
        %v7280 = vpack.c.b16 %v7262, %v7261
        %v7281 = vpack.c.b16 %v7264, %v7263
        %v7282 = vpack.c.b16 %v7266, %v7265
        %v7284 = vsel %vm2760, %v7121, 0
        %v7287 = vsel %vm2760, %v7122, 0
        %v7290 = vsel %vm2760, %v7123, 0
        %v7293 = vsel %vm2760, %v7124, 0
        %v7296 = vsel %vm2760, %v7125, 0
        %v7299 = vsel %vm2760, %v7126, 0
        %v7302 = vsel %vm2760, %v7127, 0
        %v7305 = vsel %vm2760, %v7128, 0
        %v7308 = vsel %vm2760, %v7129, 0
        %v7311 = vsel %vm2760, %v7130, 0
        %v7314 = vsel %vm2760, %v7131, 0
        %v7317 = vsel %vm2760, %v7132, 0
        %v7320 = vsel %vm2760, %v7133, 0
        %v7323 = vsel %vm2760, %v7134, 0
        %v7326 = vsel %vm2760, %v7135, 0
        %v7329 = vsel %vm2760, %v7136, 0
        %v7332 = vsel %vm2760, %v7267, 0
        %v7335 = vsel %vm2760, %v7268, 0
        %v7338 = vsel %vm2760, %v7269, 0
        %v7341 = vsel %vm2760, %v7270, 0
        %v7344 = vsel %vm2760, %v7271, 0
        %v7347 = vsel %vm2760, %v7272, 0
        %v7350 = vsel %vm2760, %v7273, 0
        %v7353 = vsel %vm2760, %v7274, 0
        %v7356 = vsel %vm2760, %v7275, 0
        %v7359 = vsel %vm2760, %v7276, 0
        %v7362 = vsel %vm2760, %v7277, 0
        %v7365 = vsel %vm2760, %v7278, 0
        %v7368 = vsel %vm2760, %v7279, 0
        %v7371 = vsel %vm2760, %v7280, 0
        %v7374 = vsel %vm2760, %v7281, 0
        %v7377 = vsel %vm2760, %v7282, 0
        %7379 = vmatpush.bf16.xpose.msra.mxu0 %v7353
        %7380 = vmatpush.bf16.xpose.msra.mxu0 %v7350
        %7381 = vmatpush.bf16.xpose.msra.mxu0 %v7347
        %7382 = vmatpush.bf16.xpose.msra.mxu0 %v7344
        %7383 = vmatpush.bf16.xpose.msra.mxu0 %v7341
        %7384 = vmatpush.bf16.xpose.msra.mxu0 %v7338
        %7385 = vmatpush.bf16.xpose.msra.mxu0 %v7335
        %7386 = vmatpush.bf16.xpose.msra.mxu0 %v7332
        %7387 = vmatmul.bf16.gmra.mxu0 %v7284
        %v7388 = vpop.f32.mrf.mxu0
        %v7389 = vadd.f32 %v2391, %v7388
        %v7390 = vpop.f32.mrf.mxu0
        %v7391 = vadd.f32 %v2393, %v7390
        %7392 = vmatmul.bf16.gmra.mxu0 %v7287
        %v7393 = vpop.f32.mrf.mxu0
        %v7394 = vadd.f32 %v2395, %v7393
        %v7395 = vpop.f32.mrf.mxu0
        %v7396 = vadd.f32 %v2397, %v7395
        %7397 = vmatmul.bf16.gmra.mxu0 %v7290
        %v7398 = vpop.f32.mrf.mxu0
        %v7399 = vadd.f32 %v2399, %v7398
        %v7400 = vpop.f32.mrf.mxu0
        %v7401 = vadd.f32 %v2401, %v7400
        %7402 = vmatmul.bf16.gmra.mxu0 %v7293
        %v7403 = vpop.f32.mrf.mxu0
        %v7404 = vadd.f32 %v2403, %v7403
        %v7405 = vpop.f32.mrf.mxu0
        %v7406 = vadd.f32 %v2405, %v7405
        %7407 = vmatmul.bf16.gmra.mxu0 %v7296
        %v7408 = vpop.f32.mrf.mxu0
        %v7409 = vadd.f32 %v2407, %v7408
        %v7410 = vpop.f32.mrf.mxu0
        %v7411 = vadd.f32 %v2409, %v7410
        %7412 = vmatmul.bf16.gmra.mxu0 %v7299
        %v7413 = vpop.f32.mrf.mxu0
        %v7414 = vadd.f32 %v2411, %v7413
        %v7415 = vpop.f32.mrf.mxu0
        %v7416 = vadd.f32 %v2413, %v7415
        %7417 = vmatmul.bf16.gmra.mxu0 %v7302
        %v7418 = vpop.f32.mrf.mxu0
        %v7419 = vadd.f32 %v2415, %v7418
        %v7420 = vpop.f32.mrf.mxu0
        %v7421 = vadd.f32 %v2417, %v7420
        %7422 = vmatmul.bf16.gmra.mxu0 %v7305
        %v7423 = vpop.f32.mrf.mxu0
        %v7424 = vadd.f32 %v2419, %v7423
        %v7425 = vpop.f32.mrf.mxu0
        %v7426 = vadd.f32 %v2421, %v7425
        %7427 = vmatmul.bf16.gmra.mxu0 %v7308
        %v7428 = vpop.f32.mrf.mxu0
        %v7429 = vadd.f32 %v2423, %v7428
        %v7430 = vpop.f32.mrf.mxu0
        %v7431 = vadd.f32 %v2425, %v7430
        %7432 = vmatmul.bf16.gmra.mxu0 %v7311
        %v7433 = vpop.f32.mrf.mxu0
        %v7434 = vadd.f32 %v2427, %v7433
        %v7435 = vpop.f32.mrf.mxu0
        %v7436 = vadd.f32 %v2429, %v7435
        %7437 = vmatmul.bf16.gmra.mxu0 %v7314
        %v7438 = vpop.f32.mrf.mxu0
        %v7439 = vadd.f32 %v2431, %v7438
        %v7440 = vpop.f32.mrf.mxu0
        %v7441 = vadd.f32 %v2433, %v7440
        %7442 = vmatmul.bf16.gmra.mxu0 %v7317
        %v7443 = vpop.f32.mrf.mxu0
        %v7444 = vadd.f32 %v2435, %v7443
        %v7445 = vpop.f32.mrf.mxu0
        %v7446 = vadd.f32 %v2437, %v7445
        %7447 = vmatmul.bf16.gmra.mxu0 %v7320
        %v7448 = vpop.f32.mrf.mxu0
        %v7449 = vadd.f32 %v2439, %v7448
        %v7450 = vpop.f32.mrf.mxu0
        %v7451 = vadd.f32 %v2441, %v7450
        %7452 = vmatmul.bf16.gmra.mxu0 %v7323
        %v7453 = vpop.f32.mrf.mxu0
        %v7454 = vadd.f32 %v2443, %v7453
        %v7455 = vpop.f32.mrf.mxu0
        %v7456 = vadd.f32 %v2445, %v7455
        %7457 = vmatmul.bf16.gmra.mxu0 %v7326
        %v7458 = vpop.f32.mrf.mxu0
        %v7459 = vadd.f32 %v2447, %v7458
        %v7460 = vpop.f32.mrf.mxu0
        %v7461 = vadd.f32 %v2449, %v7460
        %7462 = vmatmul.bf16.gmra.mxu0 %v7329
        %v7463 = vpop.f32.mrf.mxu0
        %v7464 = vadd.f32 %v2451, %v7463
        %v7465 = vpop.f32.mrf.mxu0
        %v7466 = vadd.f32 %v2453, %v7465
        %7467 = vdwg.mxu0
        %7468 = vmatpush.bf16.xpose.msra.mxu0 %v7377
        %7469 = vmatpush.bf16.xpose.msra.mxu0 %v7374
        %7470 = vmatpush.bf16.xpose.msra.mxu0 %v7371
        %7471 = vmatpush.bf16.xpose.msra.mxu0 %v7368
        %7472 = vmatpush.bf16.xpose.msra.mxu0 %v7365
        %7473 = vmatpush.bf16.xpose.msra.mxu0 %v7362
        %7474 = vmatpush.bf16.xpose.msra.mxu0 %v7359
        %7475 = vmatpush.bf16.xpose.msra.mxu0 %v7356
        %7476 = vmatmul.bf16.gmra.mxu0 %v7284
        %v7477 = vpop.f32.mrf.mxu0
        %v7478 = vadd.f32 %v2392, %v7477
        %v7479 = vpop.f32.mrf.mxu0
        %v7480 = vadd.f32 %v2394, %v7479
        %7481 = vmatmul.bf16.gmra.mxu0 %v7287
        %v7482 = vpop.f32.mrf.mxu0
        %v7483 = vadd.f32 %v2396, %v7482
        %v7484 = vpop.f32.mrf.mxu0
        %v7485 = vadd.f32 %v2398, %v7484
        %7486 = vmatmul.bf16.gmra.mxu0 %v7290
        %v7487 = vpop.f32.mrf.mxu0
        %v7488 = vadd.f32 %v2400, %v7487
        %v7489 = vpop.f32.mrf.mxu0
        %v7490 = vadd.f32 %v2402, %v7489
        %7491 = vmatmul.bf16.gmra.mxu0 %v7293
        %v7492 = vpop.f32.mrf.mxu0
        %v7493 = vadd.f32 %v2404, %v7492
        %v7494 = vpop.f32.mrf.mxu0
        %v7495 = vadd.f32 %v2406, %v7494
        %7496 = vmatmul.bf16.gmra.mxu0 %v7296
        %v7497 = vpop.f32.mrf.mxu0
        %v7498 = vadd.f32 %v2408, %v7497
        %v7499 = vpop.f32.mrf.mxu0
        %v7500 = vadd.f32 %v2410, %v7499
        %7501 = vmatmul.bf16.gmra.mxu0 %v7299
        %v7502 = vpop.f32.mrf.mxu0
        %v7503 = vadd.f32 %v2412, %v7502
        %v7504 = vpop.f32.mrf.mxu0
        %v7505 = vadd.f32 %v2414, %v7504
        %7506 = vmatmul.bf16.gmra.mxu0 %v7302
        %v7507 = vpop.f32.mrf.mxu0
        %v7508 = vadd.f32 %v2416, %v7507
        %v7509 = vpop.f32.mrf.mxu0
        %v7510 = vadd.f32 %v2418, %v7509
        %7511 = vmatmul.bf16.gmra.mxu0 %v7305
        %v7512 = vpop.f32.mrf.mxu0
        %v7513 = vadd.f32 %v2420, %v7512
        %v7514 = vpop.f32.mrf.mxu0
        %v7515 = vadd.f32 %v2422, %v7514
        %7516 = vmatmul.bf16.gmra.mxu0 %v7308
        %v7517 = vpop.f32.mrf.mxu0
        %v7518 = vadd.f32 %v2424, %v7517
        %v7519 = vpop.f32.mrf.mxu0
        %v7520 = vadd.f32 %v2426, %v7519
        %7521 = vmatmul.bf16.gmra.mxu0 %v7311
        %v7522 = vpop.f32.mrf.mxu0
        %v7523 = vadd.f32 %v2428, %v7522
        %v7524 = vpop.f32.mrf.mxu0
        %v7525 = vadd.f32 %v2430, %v7524
        %7526 = vmatmul.bf16.gmra.mxu0 %v7314
        %v7527 = vpop.f32.mrf.mxu0
        %v7528 = vadd.f32 %v2432, %v7527
        %v7529 = vpop.f32.mrf.mxu0
        %v7530 = vadd.f32 %v2434, %v7529
        %7531 = vmatmul.bf16.gmra.mxu0 %v7317
        %v7532 = vpop.f32.mrf.mxu0
        %v7533 = vadd.f32 %v2436, %v7532
        %v7534 = vpop.f32.mrf.mxu0
        %v7535 = vadd.f32 %v2438, %v7534
        %7536 = vmatmul.bf16.gmra.mxu0 %v7320
        %v7537 = vpop.f32.mrf.mxu0
        %v7538 = vadd.f32 %v2440, %v7537
        %v7539 = vpop.f32.mrf.mxu0
        %v7540 = vadd.f32 %v2442, %v7539
        %7541 = vmatmul.bf16.gmra.mxu0 %v7323
        %v7542 = vpop.f32.mrf.mxu0
        %v7543 = vadd.f32 %v2444, %v7542
        %v7544 = vpop.f32.mrf.mxu0
        %v7545 = vadd.f32 %v2446, %v7544
        %7546 = vmatmul.bf16.gmra.mxu0 %v7326
        %v7547 = vpop.f32.mrf.mxu0
        %v7548 = vadd.f32 %v2448, %v7547
        %v7549 = vpop.f32.mrf.mxu0
        %v7550 = vadd.f32 %v2450, %v7549
        %7551 = vmatmul.bf16.gmra.mxu0 %v7329
        %v7552 = vpop.f32.mrf.mxu0
        %v7553 = vadd.f32 %v2452, %v7552
        %v7554 = vpop.f32.mrf.mxu0
        %v7555 = vadd.f32 %v2454, %v7554
        %7556 = vdwg.mxu0
        %v7557 = vmax.f32 %v7389, %v7478
        %7558 = vmax.xlane.f32.xlu0 %v7557
        %v7559 = vpop.xlane.xlu0 %7558
        %v7560 = vmax.f32 %v7391, %v7480
        %7561 = vmax.xlane.f32.xlu0 %v7560
        %v7562 = vpop.xlane.xlu0 %7561
        %v7563 = vmax.f32 %v7394, %v7483
        %7564 = vmax.xlane.f32.xlu0 %v7563
        %v7565 = vpop.xlane.xlu0 %7564
        %v7566 = vmax.f32 %v7396, %v7485
        %7567 = vmax.xlane.f32.xlu0 %v7566
        %v7568 = vpop.xlane.xlu0 %7567
        %v7569 = vmax.f32 %v7399, %v7488
        %7570 = vmax.xlane.f32.xlu0 %v7569
        %v7571 = vpop.xlane.xlu0 %7570
        %v7572 = vmax.f32 %v7401, %v7490
        %7573 = vmax.xlane.f32.xlu0 %v7572
        %v7574 = vpop.xlane.xlu0 %7573
        %v7575 = vmax.f32 %v7404, %v7493
        %7576 = vmax.xlane.f32.xlu0 %v7575
        %v7577 = vpop.xlane.xlu0 %7576
        %v7578 = vmax.f32 %v7406, %v7495
        %7579 = vmax.xlane.f32.xlu0 %v7578
        %v7580 = vpop.xlane.xlu0 %7579
        %v7581 = vmax.f32 %v7409, %v7498
        %7582 = vmax.xlane.f32.xlu0 %v7581
        %v7583 = vpop.xlane.xlu0 %7582
        %v7584 = vmax.f32 %v7411, %v7500
        %7585 = vmax.xlane.f32.xlu0 %v7584
        %v7586 = vpop.xlane.xlu0 %7585
        %v7587 = vmax.f32 %v7414, %v7503
        %7588 = vmax.xlane.f32.xlu0 %v7587
        %v7589 = vpop.xlane.xlu0 %7588
        %v7590 = vmax.f32 %v7416, %v7505
        %7591 = vmax.xlane.f32.xlu0 %v7590
        %v7592 = vpop.xlane.xlu0 %7591
        %v7593 = vmax.f32 %v7419, %v7508
        %7594 = vmax.xlane.f32.xlu0 %v7593
        %v7595 = vpop.xlane.xlu0 %7594
        %v7596 = vmax.f32 %v7421, %v7510
        %7597 = vmax.xlane.f32.xlu0 %v7596
        %v7598 = vpop.xlane.xlu0 %7597
        %v7599 = vmax.f32 %v7424, %v7513
        %7600 = vmax.xlane.f32.xlu0 %v7599
        %v7601 = vpop.xlane.xlu0 %7600
        %v7602 = vmax.f32 %v7426, %v7515
        %7603 = vmax.xlane.f32.xlu0 %v7602
        %v7604 = vpop.xlane.xlu0 %7603
        %v7605 = vmax.f32 %v7429, %v7518
        %7606 = vmax.xlane.f32.xlu0 %v7605
        %v7607 = vpop.xlane.xlu0 %7606
        %v7608 = vmax.f32 %v7431, %v7520
        %7609 = vmax.xlane.f32.xlu0 %v7608
        %v7610 = vpop.xlane.xlu0 %7609
        %v7611 = vmax.f32 %v7434, %v7523
        %7612 = vmax.xlane.f32.xlu0 %v7611
        %v7613 = vpop.xlane.xlu0 %7612
        %v7614 = vmax.f32 %v7436, %v7525
        %7615 = vmax.xlane.f32.xlu0 %v7614
        %v7616 = vpop.xlane.xlu0 %7615
        %v7617 = vmax.f32 %v7439, %v7528
        %7618 = vmax.xlane.f32.xlu0 %v7617
        %v7619 = vpop.xlane.xlu0 %7618
        %v7620 = vmax.f32 %v7441, %v7530
        %7621 = vmax.xlane.f32.xlu0 %v7620
        %v7622 = vpop.xlane.xlu0 %7621
        %v7623 = vmax.f32 %v7444, %v7533
        %7624 = vmax.xlane.f32.xlu0 %v7623
        %v7625 = vpop.xlane.xlu0 %7624
        %v7626 = vmax.f32 %v7446, %v7535
        %7627 = vmax.xlane.f32.xlu0 %v7626
        %v7628 = vpop.xlane.xlu0 %7627
        %v7629 = vmax.f32 %v7449, %v7538
        %7630 = vmax.xlane.f32.xlu0 %v7629
        %v7631 = vpop.xlane.xlu0 %7630
        %v7632 = vmax.f32 %v7451, %v7540
        %7633 = vmax.xlane.f32.xlu0 %v7632
        %v7634 = vpop.xlane.xlu0 %7633
        %v7635 = vmax.f32 %v7454, %v7543
        %7636 = vmax.xlane.f32.xlu0 %v7635
        %v7637 = vpop.xlane.xlu0 %7636
        %v7638 = vmax.f32 %v7456, %v7545
        %7639 = vmax.xlane.f32.xlu0 %v7638
        %v7640 = vpop.xlane.xlu0 %7639
        %v7641 = vmax.f32 %v7459, %v7548
        %7642 = vmax.xlane.f32.xlu0 %v7641
        %v7643 = vpop.xlane.xlu0 %7642
        %v7644 = vmax.f32 %v7461, %v7550
        %7645 = vmax.xlane.f32.xlu0 %v7644
        %v7646 = vpop.xlane.xlu0 %7645
        %v7647 = vmax.f32 %v7464, %v7553
        %7648 = vmax.xlane.f32.xlu0 %v7647
        %v7649 = vpop.xlane.xlu0 %7648
        %v7650 = vmax.f32 %v7466, %v7555
        %7651 = vmax.xlane.f32.xlu0 %v7650
        %v7652 = vpop.xlane.xlu0 %7651
        %v7653 = vsub.f32 %v7389, %v7559
        %v7654 = vsub.f32 %v7478, %v7559
        %v7655 = vsub.f32 %v7391, %v7562
        %v7656 = vsub.f32 %v7480, %v7562
        %v7657 = vsub.f32 %v7394, %v7565
        %v7658 = vsub.f32 %v7483, %v7565
        %v7659 = vsub.f32 %v7396, %v7568
        %v7660 = vsub.f32 %v7485, %v7568
        %v7661 = vsub.f32 %v7399, %v7571
        %v7662 = vsub.f32 %v7488, %v7571
        %v7663 = vsub.f32 %v7401, %v7574
        %v7664 = vsub.f32 %v7490, %v7574
        %v7665 = vsub.f32 %v7404, %v7577
        %v7666 = vsub.f32 %v7493, %v7577
        %v7667 = vsub.f32 %v7406, %v7580
        %v7668 = vsub.f32 %v7495, %v7580
        %v7669 = vsub.f32 %v7409, %v7583
        %v7670 = vsub.f32 %v7498, %v7583
        %v7671 = vsub.f32 %v7411, %v7586
        %v7672 = vsub.f32 %v7500, %v7586
        %v7673 = vsub.f32 %v7414, %v7589
        %v7674 = vsub.f32 %v7503, %v7589
        %v7675 = vsub.f32 %v7416, %v7592
        %v7676 = vsub.f32 %v7505, %v7592
        %v7677 = vsub.f32 %v7419, %v7595
        %v7678 = vsub.f32 %v7508, %v7595
        %v7679 = vsub.f32 %v7421, %v7598
        %v7680 = vsub.f32 %v7510, %v7598
        %v7681 = vsub.f32 %v7424, %v7601
        %v7682 = vsub.f32 %v7513, %v7601
        %v7683 = vsub.f32 %v7426, %v7604
        %v7684 = vsub.f32 %v7515, %v7604
        %v7685 = vsub.f32 %v7429, %v7607
        %v7686 = vsub.f32 %v7518, %v7607
        %v7687 = vsub.f32 %v7431, %v7610
        %v7688 = vsub.f32 %v7520, %v7610
        %v7689 = vsub.f32 %v7434, %v7613
        %v7690 = vsub.f32 %v7523, %v7613
        %v7691 = vsub.f32 %v7436, %v7616
        %v7692 = vsub.f32 %v7525, %v7616
        %v7693 = vsub.f32 %v7439, %v7619
        %v7694 = vsub.f32 %v7528, %v7619
        %v7695 = vsub.f32 %v7441, %v7622
        %v7696 = vsub.f32 %v7530, %v7622
        %v7697 = vsub.f32 %v7444, %v7625
        %v7698 = vsub.f32 %v7533, %v7625
        %v7699 = vsub.f32 %v7446, %v7628
        %v7700 = vsub.f32 %v7535, %v7628
        %v7701 = vsub.f32 %v7449, %v7631
        %v7702 = vsub.f32 %v7538, %v7631
        %v7703 = vsub.f32 %v7451, %v7634
        %v7704 = vsub.f32 %v7540, %v7634
        %v7705 = vsub.f32 %v7454, %v7637
        %v7706 = vsub.f32 %v7543, %v7637
        %v7707 = vsub.f32 %v7456, %v7640
        %v7708 = vsub.f32 %v7545, %v7640
        %v7709 = vsub.f32 %v7459, %v7643
        %v7710 = vsub.f32 %v7548, %v7643
        %v7711 = vsub.f32 %v7461, %v7646
        %v7712 = vsub.f32 %v7550, %v7646
        %v7713 = vsub.f32 %v7464, %v7649
        %v7714 = vsub.f32 %v7553, %v7649
        %v7715 = vsub.f32 %v7466, %v7652
        %v7716 = vsub.f32 %v7555, %v7652
        %v7717 = vmul.f32 %v7653, 1.442695
        %v7718 = vpow.pop %v7717
        %v7719 = vmul.f32 %v7654, 1.442695
        %v7720 = vpow.pop %v7719
        %v7721 = vmul.f32 %v7655, 1.442695
        %v7722 = vpow.pop %v7721
        %v7723 = vmul.f32 %v7656, 1.442695
        %v7724 = vpow.pop %v7723
        %v7725 = vmul.f32 %v7657, 1.442695
        %v7726 = vpow.pop %v7725
        %v7727 = vmul.f32 %v7658, 1.442695
        %v7728 = vpow.pop %v7727
        %v7729 = vmul.f32 %v7659, 1.442695
        %v7730 = vpow.pop %v7729
        %v7731 = vmul.f32 %v7660, 1.442695
        %v7732 = vpow.pop %v7731
        %v7733 = vmul.f32 %v7661, 1.442695
        %v7734 = vpow.pop %v7733
        %v7735 = vmul.f32 %v7662, 1.442695
        %v7736 = vpow.pop %v7735
        %v7737 = vmul.f32 %v7663, 1.442695
        %v7738 = vpow.pop %v7737
        %v7739 = vmul.f32 %v7664, 1.442695
        %v7740 = vpow.pop %v7739
        %v7741 = vmul.f32 %v7665, 1.442695
        %v7742 = vpow.pop %v7741
        %v7743 = vmul.f32 %v7666, 1.442695
        %v7744 = vpow.pop %v7743
        %v7745 = vmul.f32 %v7667, 1.442695
        %v7746 = vpow.pop %v7745
        %v7747 = vmul.f32 %v7668, 1.442695
        %v7748 = vpow.pop %v7747
        %v7749 = vmul.f32 %v7669, 1.442695
        %v7750 = vpow.pop %v7749
        %v7751 = vmul.f32 %v7670, 1.442695
        %v7752 = vpow.pop %v7751
        %v7753 = vmul.f32 %v7671, 1.442695
        %v7754 = vpow.pop %v7753
        %v7755 = vmul.f32 %v7672, 1.442695
        %v7756 = vpow.pop %v7755
        %v7757 = vmul.f32 %v7673, 1.442695
        %v7758 = vpow.pop %v7757
        %v7759 = vmul.f32 %v7674, 1.442695
        %v7760 = vpow.pop %v7759
        %v7761 = vmul.f32 %v7675, 1.442695
        %v7762 = vpow.pop %v7761
        %v7763 = vmul.f32 %v7676, 1.442695
        %v7764 = vpow.pop %v7763
        %v7765 = vmul.f32 %v7677, 1.442695
        %v7766 = vpow.pop %v7765
        %v7767 = vmul.f32 %v7678, 1.442695
        %v7768 = vpow.pop %v7767
        %v7769 = vmul.f32 %v7679, 1.442695
        %v7770 = vpow.pop %v7769
        %v7771 = vmul.f32 %v7680, 1.442695
        %v7772 = vpow.pop %v7771
        %v7773 = vmul.f32 %v7681, 1.442695
        %v7774 = vpow.pop %v7773
        %v7775 = vmul.f32 %v7682, 1.442695
        %v7776 = vpow.pop %v7775
        %v7777 = vmul.f32 %v7683, 1.442695
        %v7778 = vpow.pop %v7777
        %v7779 = vmul.f32 %v7684, 1.442695
        %v7780 = vpow.pop %v7779
        %v7781 = vmul.f32 %v7685, 1.442695
        %v7782 = vpow.pop %v7781
        %v7783 = vmul.f32 %v7686, 1.442695
        %v7784 = vpow.pop %v7783
        %v7785 = vmul.f32 %v7687, 1.442695
        %v7786 = vpow.pop %v7785
        %v7787 = vmul.f32 %v7688, 1.442695
        %v7788 = vpow.pop %v7787
        %v7789 = vmul.f32 %v7689, 1.442695
        %v7790 = vpow.pop %v7789
        %v7791 = vmul.f32 %v7690, 1.442695
        %v7792 = vpow.pop %v7791
        %v7793 = vmul.f32 %v7691, 1.442695
        %v7794 = vpow.pop %v7793
        %v7795 = vmul.f32 %v7692, 1.442695
        %v7796 = vpow.pop %v7795
        %v7797 = vmul.f32 %v7693, 1.442695
        %v7798 = vpow.pop %v7797
        %v7799 = vmul.f32 %v7694, 1.442695
        %v7800 = vpow.pop %v7799
        %v7801 = vmul.f32 %v7695, 1.442695
        %v7802 = vpow.pop %v7801
        %v7803 = vmul.f32 %v7696, 1.442695
        %v7804 = vpow.pop %v7803
        %v7805 = vmul.f32 %v7697, 1.442695
        %v7806 = vpow.pop %v7805
        %v7807 = vmul.f32 %v7698, 1.442695
        %v7808 = vpow.pop %v7807
        %v7809 = vmul.f32 %v7699, 1.442695
        %v7810 = vpow.pop %v7809
        %v7811 = vmul.f32 %v7700, 1.442695
        %v7812 = vpow.pop %v7811
        %v7813 = vmul.f32 %v7701, 1.442695
        %v7814 = vpow.pop %v7813
        %v7815 = vmul.f32 %v7702, 1.442695
        %v7816 = vpow.pop %v7815
        %v7817 = vmul.f32 %v7703, 1.442695
        %v7818 = vpow.pop %v7817
        %v7819 = vmul.f32 %v7704, 1.442695
        %v7820 = vpow.pop %v7819
        %v7821 = vmul.f32 %v7705, 1.442695
        %v7822 = vpow.pop %v7821
        %v7823 = vmul.f32 %v7706, 1.442695
        %v7824 = vpow.pop %v7823
        %v7825 = vmul.f32 %v7707, 1.442695
        %v7826 = vpow.pop %v7825
        %v7827 = vmul.f32 %v7708, 1.442695
        %v7828 = vpow.pop %v7827
        %v7829 = vmul.f32 %v7709, 1.442695
        %v7830 = vpow.pop %v7829
        %v7831 = vmul.f32 %v7710, 1.442695
        %v7832 = vpow.pop %v7831
        %v7833 = vmul.f32 %v7711, 1.442695
        %v7834 = vpow.pop %v7833
        %v7835 = vmul.f32 %v7712, 1.442695
        %v7836 = vpow.pop %v7835
        %v7837 = vmul.f32 %v7713, 1.442695
        %v7838 = vpow.pop %v7837
        %v7839 = vmul.f32 %v7714, 1.442695
        %v7840 = vpow.pop %v7839
        %v7841 = vmul.f32 %v7715, 1.442695
        %v7842 = vpow.pop %v7841
        %v7843 = vmul.f32 %v7716, 1.442695
        %v7844 = vpow.pop %v7843
        %v7845 = vadd.f32 %v7718, %v7720
        %7846 = vadd.xlane.f32.xlu0 %v7845
        %v7847 = vpop.xlane.xlu0 %7846
        %v7848 = vadd.f32 %v7722, %v7724
        %7849 = vadd.xlane.f32.xlu0 %v7848
        %v7850 = vpop.xlane.xlu0 %7849
        %v7851 = vadd.f32 %v7726, %v7728
        %7852 = vadd.xlane.f32.xlu0 %v7851
        %v7853 = vpop.xlane.xlu0 %7852
        %v7854 = vadd.f32 %v7730, %v7732
        %7855 = vadd.xlane.f32.xlu0 %v7854
        %v7856 = vpop.xlane.xlu0 %7855
        %v7857 = vadd.f32 %v7734, %v7736
        %7858 = vadd.xlane.f32.xlu0 %v7857
        %v7859 = vpop.xlane.xlu0 %7858
        %v7860 = vadd.f32 %v7738, %v7740
        %7861 = vadd.xlane.f32.xlu0 %v7860
        %v7862 = vpop.xlane.xlu0 %7861
        %v7863 = vadd.f32 %v7742, %v7744
        %7864 = vadd.xlane.f32.xlu0 %v7863
        %v7865 = vpop.xlane.xlu0 %7864
        %v7866 = vadd.f32 %v7746, %v7748
        %7867 = vadd.xlane.f32.xlu0 %v7866
        %v7868 = vpop.xlane.xlu0 %7867
        %v7869 = vadd.f32 %v7750, %v7752
        %7870 = vadd.xlane.f32.xlu0 %v7869
        %v7871 = vpop.xlane.xlu0 %7870
        %v7872 = vadd.f32 %v7754, %v7756
        %7873 = vadd.xlane.f32.xlu0 %v7872
        %v7874 = vpop.xlane.xlu0 %7873
        %v7875 = vadd.f32 %v7758, %v7760
        %7876 = vadd.xlane.f32.xlu0 %v7875
        %v7877 = vpop.xlane.xlu0 %7876
        %v7878 = vadd.f32 %v7762, %v7764
        %7879 = vadd.xlane.f32.xlu0 %v7878
        %v7880 = vpop.xlane.xlu0 %7879
        %v7881 = vadd.f32 %v7766, %v7768
        %7882 = vadd.xlane.f32.xlu0 %v7881
        %v7883 = vpop.xlane.xlu0 %7882
        %v7884 = vadd.f32 %v7770, %v7772
        %7885 = vadd.xlane.f32.xlu0 %v7884
        %v7886 = vpop.xlane.xlu0 %7885
        %v7887 = vadd.f32 %v7774, %v7776
        %7888 = vadd.xlane.f32.xlu0 %v7887
        %v7889 = vpop.xlane.xlu0 %7888
        %v7890 = vadd.f32 %v7778, %v7780
        %7891 = vadd.xlane.f32.xlu0 %v7890
        %v7892 = vpop.xlane.xlu0 %7891
        %v7893 = vadd.f32 %v7782, %v7784
        %7894 = vadd.xlane.f32.xlu0 %v7893
        %v7895 = vpop.xlane.xlu0 %7894
        %v7896 = vadd.f32 %v7786, %v7788
        %7897 = vadd.xlane.f32.xlu0 %v7896
        %v7898 = vpop.xlane.xlu0 %7897
        %v7899 = vadd.f32 %v7790, %v7792
        %7900 = vadd.xlane.f32.xlu0 %v7899
        %v7901 = vpop.xlane.xlu0 %7900
        %v7902 = vadd.f32 %v7794, %v7796
        %7903 = vadd.xlane.f32.xlu0 %v7902
        %v7904 = vpop.xlane.xlu0 %7903
        %v7905 = vadd.f32 %v7798, %v7800
        %7906 = vadd.xlane.f32.xlu0 %v7905
        %v7907 = vpop.xlane.xlu0 %7906
        %v7908 = vadd.f32 %v7802, %v7804
        %7909 = vadd.xlane.f32.xlu0 %v7908
        %v7910 = vpop.xlane.xlu0 %7909
        %v7911 = vadd.f32 %v7806, %v7808
        %7912 = vadd.xlane.f32.xlu0 %v7911
        %v7913 = vpop.xlane.xlu0 %7912
        %v7914 = vadd.f32 %v7810, %v7812
        %7915 = vadd.xlane.f32.xlu0 %v7914
        %v7916 = vpop.xlane.xlu0 %7915
        %v7917 = vadd.f32 %v7814, %v7816
        %7918 = vadd.xlane.f32.xlu0 %v7917
        %v7919 = vpop.xlane.xlu0 %7918
        %v7920 = vadd.f32 %v7818, %v7820
        %7921 = vadd.xlane.f32.xlu0 %v7920
        %v7922 = vpop.xlane.xlu0 %7921
        %v7923 = vadd.f32 %v7822, %v7824
        %7924 = vadd.xlane.f32.xlu0 %v7923
        %v7925 = vpop.xlane.xlu0 %7924
        %v7926 = vadd.f32 %v7826, %v7828
        %7927 = vadd.xlane.f32.xlu0 %v7926
        %v7928 = vpop.xlane.xlu0 %7927
        %v7929 = vadd.f32 %v7830, %v7832
        %7930 = vadd.xlane.f32.xlu0 %v7929
        %v7931 = vpop.xlane.xlu0 %7930
        %v7932 = vadd.f32 %v7834, %v7836
        %7933 = vadd.xlane.f32.xlu0 %v7932
        %v7934 = vpop.xlane.xlu0 %7933
        %v7935 = vadd.f32 %v7838, %v7840
        %7936 = vadd.xlane.f32.xlu0 %v7935
        %v7937 = vpop.xlane.xlu0 %7936
        %v7938 = vadd.f32 %v7842, %v7844
        %7939 = vadd.xlane.f32.xlu0 %v7938
        %v7940 = vpop.xlane.xlu0 %7939
        %v7941 = vrcp.pop %v7847
        %v7942 = vrcp.pop %v7850
        %v7943 = vrcp.pop %v7853
        %v7944 = vrcp.pop %v7856
        %v7945 = vrcp.pop %v7859
        %v7946 = vrcp.pop %v7862
        %v7947 = vrcp.pop %v7865
        %v7948 = vrcp.pop %v7868
        %v7949 = vrcp.pop %v7871
        %v7950 = vrcp.pop %v7874
        %v7951 = vrcp.pop %v7877
        %v7952 = vrcp.pop %v7880
        %v7953 = vrcp.pop %v7883
        %v7954 = vrcp.pop %v7886
        %v7955 = vrcp.pop %v7889
        %v7956 = vrcp.pop %v7892
        %v7957 = vrcp.pop %v7895
        %v7958 = vrcp.pop %v7898
        %v7959 = vrcp.pop %v7901
        %v7960 = vrcp.pop %v7904
        %v7961 = vrcp.pop %v7907
        %v7962 = vrcp.pop %v7910
        %v7963 = vrcp.pop %v7913
        %v7964 = vrcp.pop %v7916
        %v7965 = vrcp.pop %v7919
        %v7966 = vrcp.pop %v7922
        %v7967 = vrcp.pop %v7925
        %v7968 = vrcp.pop %v7928
        %v7969 = vrcp.pop %v7931
        %v7970 = vrcp.pop %v7934
        %v7971 = vrcp.pop %v7937
        %v7972 = vrcp.pop %v7940
        %v7973 = vpack.c.bf16 %v7722, %v7718
        %v7974 = vpack.c.bf16 %v7724, %v7720
        %v7975 = vpack.c.bf16 %v7730, %v7726
        %v7976 = vpack.c.bf16 %v7732, %v7728
        %v7977 = vpack.c.bf16 %v7738, %v7734
        %v7978 = vpack.c.bf16 %v7740, %v7736
        %v7979 = vpack.c.bf16 %v7746, %v7742
        %v7980 = vpack.c.bf16 %v7748, %v7744
        %v7981 = vpack.c.bf16 %v7754, %v7750
        %v7982 = vpack.c.bf16 %v7756, %v7752
        %v7983 = vpack.c.bf16 %v7762, %v7758
        %v7984 = vpack.c.bf16 %v7764, %v7760
        %v7985 = vpack.c.bf16 %v7770, %v7766
        %v7986 = vpack.c.bf16 %v7772, %v7768
        %v7987 = vpack.c.bf16 %v7778, %v7774
        %v7988 = vpack.c.bf16 %v7780, %v7776
        %v7989 = vpack.c.bf16 %v7786, %v7782
        %v7990 = vpack.c.bf16 %v7788, %v7784
        %v7991 = vpack.c.bf16 %v7794, %v7790
        %v7992 = vpack.c.bf16 %v7796, %v7792
        %v7993 = vpack.c.bf16 %v7802, %v7798
        %v7994 = vpack.c.bf16 %v7804, %v7800
        %v7995 = vpack.c.bf16 %v7810, %v7806
        %v7996 = vpack.c.bf16 %v7812, %v7808
        %v7997 = vpack.c.bf16 %v7818, %v7814
        %v7998 = vpack.c.bf16 %v7820, %v7816
        %v7999 = vpack.c.bf16 %v7826, %v7822
        %v8000 = vpack.c.bf16 %v7828, %v7824
        %v8001 = vpack.c.bf16 %v7834, %v7830
        %v8002 = vpack.c.bf16 %v7836, %v7832
        %v8003 = vpack.c.bf16 %v7842, %v7838
        %v8004 = vpack.c.bf16 %v7844, %v7840
        %v8037 = vunpack.c.l.b16 %v7171
        %v8038 = vunpack.c.l.b16 %v7172
        %v8039 = vunpack.c.l.b16 %v7173
        %v8040 = vunpack.c.l.b16 %v7174
        %v8041 = vunpack.c.l.b16 %v7175
        %v8042 = vunpack.c.l.b16 %v7176
        %v8043 = vunpack.c.l.b16 %v7177
        %v8044 = vunpack.c.l.b16 %v7178
        %v8045 = vunpack.c.l.b16 %v7179
        %v8046 = vunpack.c.l.b16 %v7180
        %v8047 = vunpack.c.l.b16 %v7181
        %v8048 = vunpack.c.l.b16 %v7182
        %v8049 = vunpack.c.l.b16 %v7183
        %v8050 = vunpack.c.l.b16 %v7184
        %v8051 = vunpack.c.l.b16 %v7185
        %v8052 = vunpack.c.l.b16 %v7186
        %v8053 = vunpack.c.l.b16 %v7187
        %v8054 = vunpack.c.l.b16 %v7188
        %v8055 = vunpack.c.l.b16 %v7189
        %v8056 = vunpack.c.l.b16 %v7190
        %v8057 = vunpack.c.l.b16 %v7191
        %v8058 = vunpack.c.l.b16 %v7192
        %v8059 = vunpack.c.l.b16 %v7193
        %v8060 = vunpack.c.l.b16 %v7194
        %v8061 = vunpack.c.l.b16 %v7195
        %v8062 = vunpack.c.l.b16 %v7196
        %v8063 = vunpack.c.l.b16 %v7197
        %v8064 = vunpack.c.l.b16 %v7198
        %v8065 = vunpack.c.l.b16 %v7199
        %v8066 = vunpack.c.l.b16 %v7200
        %v8067 = vunpack.c.l.b16 %v7201
        %v8068 = vunpack.c.l.b16 %v7202
        %v8069 = vpack.c.b16 %v8038, %v8037
        %v8070 = vpack.c.b16 %v8040, %v8039
        %v8071 = vpack.c.b16 %v8042, %v8041
        %v8072 = vpack.c.b16 %v8044, %v8043
        %v8073 = vpack.c.b16 %v8046, %v8045
        %v8074 = vpack.c.b16 %v8048, %v8047
        %v8075 = vpack.c.b16 %v8050, %v8049
        %v8076 = vpack.c.b16 %v8052, %v8051
        %v8077 = vpack.c.b16 %v8054, %v8053
        %v8078 = vpack.c.b16 %v8056, %v8055
        %v8079 = vpack.c.b16 %v8058, %v8057
        %v8080 = vpack.c.b16 %v8060, %v8059
        %v8081 = vpack.c.b16 %v8062, %v8061
        %v8082 = vpack.c.b16 %v8064, %v8063
        %v8083 = vpack.c.b16 %v8066, %v8065
        %v8084 = vpack.c.b16 %v8068, %v8067
        %8101 = vmatpush.bf16.msra.mxu0 %v8076
        %8102 = vmatpush.bf16.msra.mxu0 %v8075
        %8103 = vmatpush.bf16.msra.mxu0 %v8074
        %8104 = vmatpush.bf16.msra.mxu0 %v8073
        %8105 = vmatpush.bf16.msra.mxu0 %v8072
        %8106 = vmatpush.bf16.msra.mxu0 %v8071
        %8107 = vmatpush.bf16.msra.mxu0 %v8070
        %8108 = vmatpush.bf16.msra.mxu0 %v8069
        %8109 = vmatmul.bf16.gmra.mxu0 %v7973
        %v8110 = vpop.f32.mrf.mxu0
        %v8111 = vadd.f32 0.0, %v8110
        %v8112 = vpop.f32.mrf.mxu0
        %v8113 = vadd.f32 0.0, %v8112
        %8114 = vmatmul.bf16.gmra.mxu0 %v7975
        %v8115 = vpop.f32.mrf.mxu0
        %v8116 = vadd.f32 0.0, %v8115
        %v8117 = vpop.f32.mrf.mxu0
        %v8118 = vadd.f32 0.0, %v8117
        %8119 = vmatmul.bf16.gmra.mxu0 %v7977
        %v8120 = vpop.f32.mrf.mxu0
        %v8121 = vadd.f32 0.0, %v8120
        %v8122 = vpop.f32.mrf.mxu0
        %v8123 = vadd.f32 0.0, %v8122
        %8124 = vmatmul.bf16.gmra.mxu0 %v7979
        %v8125 = vpop.f32.mrf.mxu0
        %v8126 = vadd.f32 0.0, %v8125
        %v8127 = vpop.f32.mrf.mxu0
        %v8128 = vadd.f32 0.0, %v8127
        %8129 = vmatmul.bf16.gmra.mxu0 %v7981
        %v8130 = vpop.f32.mrf.mxu0
        %v8131 = vadd.f32 0.0, %v8130
        %v8132 = vpop.f32.mrf.mxu0
        %v8133 = vadd.f32 0.0, %v8132
        %8134 = vmatmul.bf16.gmra.mxu0 %v7983
        %v8135 = vpop.f32.mrf.mxu0
        %v8136 = vadd.f32 0.0, %v8135
        %v8137 = vpop.f32.mrf.mxu0
        %v8138 = vadd.f32 0.0, %v8137
        %8139 = vmatmul.bf16.gmra.mxu0 %v7985
        %v8140 = vpop.f32.mrf.mxu0
        %v8141 = vadd.f32 0.0, %v8140
        %v8142 = vpop.f32.mrf.mxu0
        %v8143 = vadd.f32 0.0, %v8142
        %8144 = vmatmul.bf16.gmra.mxu0 %v7987
        %v8145 = vpop.f32.mrf.mxu0
        %v8146 = vadd.f32 0.0, %v8145
        %v8147 = vpop.f32.mrf.mxu0
        %v8148 = vadd.f32 0.0, %v8147
        %8149 = vmatmul.bf16.gmra.mxu0 %v7989
        %v8150 = vpop.f32.mrf.mxu0
        %v8151 = vadd.f32 0.0, %v8150
        %v8152 = vpop.f32.mrf.mxu0
        %v8153 = vadd.f32 0.0, %v8152
        %8154 = vmatmul.bf16.gmra.mxu0 %v7991
        %v8155 = vpop.f32.mrf.mxu0
        %v8156 = vadd.f32 0.0, %v8155
        %v8157 = vpop.f32.mrf.mxu0
        %v8158 = vadd.f32 0.0, %v8157
        %8159 = vmatmul.bf16.gmra.mxu0 %v7993
        %v8160 = vpop.f32.mrf.mxu0
        %v8161 = vadd.f32 0.0, %v8160
        %v8162 = vpop.f32.mrf.mxu0
        %v8163 = vadd.f32 0.0, %v8162
        %8164 = vmatmul.bf16.gmra.mxu0 %v7995
        %v8165 = vpop.f32.mrf.mxu0
        %v8166 = vadd.f32 0.0, %v8165
        %v8167 = vpop.f32.mrf.mxu0
        %v8168 = vadd.f32 0.0, %v8167
        %8169 = vmatmul.bf16.gmra.mxu0 %v7997
        %v8170 = vpop.f32.mrf.mxu0
        %v8171 = vadd.f32 0.0, %v8170
        %v8172 = vpop.f32.mrf.mxu0
        %v8173 = vadd.f32 0.0, %v8172
        %8174 = vmatmul.bf16.gmra.mxu0 %v7999
        %v8175 = vpop.f32.mrf.mxu0
        %v8176 = vadd.f32 0.0, %v8175
        %v8177 = vpop.f32.mrf.mxu0
        %v8178 = vadd.f32 0.0, %v8177
        %8179 = vmatmul.bf16.gmra.mxu0 %v8001
        %v8180 = vpop.f32.mrf.mxu0
        %v8181 = vadd.f32 0.0, %v8180
        %v8182 = vpop.f32.mrf.mxu0
        %v8183 = vadd.f32 0.0, %v8182
        %8184 = vmatmul.bf16.gmra.mxu0 %v8003
        %v8185 = vpop.f32.mrf.mxu0
        %v8186 = vadd.f32 0.0, %v8185
        %v8187 = vpop.f32.mrf.mxu0
        %v8188 = vadd.f32 0.0, %v8187
        %8189 = vdwg.mxu0
        %8190 = vmatpush.bf16.msra.mxu0 %v8084
        %8191 = vmatpush.bf16.msra.mxu0 %v8083
        %8192 = vmatpush.bf16.msra.mxu0 %v8082
        %8193 = vmatpush.bf16.msra.mxu0 %v8081
        %8194 = vmatpush.bf16.msra.mxu0 %v8080
        %8195 = vmatpush.bf16.msra.mxu0 %v8079
        %8196 = vmatpush.bf16.msra.mxu0 %v8078
        %8197 = vmatpush.bf16.msra.mxu0 %v8077
        %8198 = vmatmul.bf16.gmra.mxu0 %v7974
        %v8199 = vpop.f32.mrf.mxu0
        %v8200 = vadd.f32 %v8111, %v8199
        %v8201 = vpop.f32.mrf.mxu0
        %v8202 = vadd.f32 %v8113, %v8201
        %8203 = vmatmul.bf16.gmra.mxu0 %v7976
        %v8204 = vpop.f32.mrf.mxu0
        %v8205 = vadd.f32 %v8116, %v8204
        %v8206 = vpop.f32.mrf.mxu0
        %v8207 = vadd.f32 %v8118, %v8206
        %8208 = vmatmul.bf16.gmra.mxu0 %v7978
        %v8209 = vpop.f32.mrf.mxu0
        %v8210 = vadd.f32 %v8121, %v8209
        %v8211 = vpop.f32.mrf.mxu0
        %v8212 = vadd.f32 %v8123, %v8211
        %8213 = vmatmul.bf16.gmra.mxu0 %v7980
        %v8214 = vpop.f32.mrf.mxu0
        %v8215 = vadd.f32 %v8126, %v8214
        %v8216 = vpop.f32.mrf.mxu0
        %v8217 = vadd.f32 %v8128, %v8216
        %8218 = vmatmul.bf16.gmra.mxu0 %v7982
        %v8219 = vpop.f32.mrf.mxu0
        %v8220 = vadd.f32 %v8131, %v8219
        %v8221 = vpop.f32.mrf.mxu0
        %v8222 = vadd.f32 %v8133, %v8221
        %8223 = vmatmul.bf16.gmra.mxu0 %v7984
        %v8224 = vpop.f32.mrf.mxu0
        %v8225 = vadd.f32 %v8136, %v8224
        %v8226 = vpop.f32.mrf.mxu0
        %v8227 = vadd.f32 %v8138, %v8226
        %8228 = vmatmul.bf16.gmra.mxu0 %v7986
        %v8229 = vpop.f32.mrf.mxu0
        %v8230 = vadd.f32 %v8141, %v8229
        %v8231 = vpop.f32.mrf.mxu0
        %v8232 = vadd.f32 %v8143, %v8231
        %8233 = vmatmul.bf16.gmra.mxu0 %v7988
        %v8234 = vpop.f32.mrf.mxu0
        %v8235 = vadd.f32 %v8146, %v8234
        %v8236 = vpop.f32.mrf.mxu0
        %v8237 = vadd.f32 %v8148, %v8236
        %8238 = vmatmul.bf16.gmra.mxu0 %v7990
        %v8239 = vpop.f32.mrf.mxu0
        %v8240 = vadd.f32 %v8151, %v8239
        %v8241 = vpop.f32.mrf.mxu0
        %v8242 = vadd.f32 %v8153, %v8241
        %8243 = vmatmul.bf16.gmra.mxu0 %v7992
        %v8244 = vpop.f32.mrf.mxu0
        %v8245 = vadd.f32 %v8156, %v8244
        %v8246 = vpop.f32.mrf.mxu0
        %v8247 = vadd.f32 %v8158, %v8246
        %8248 = vmatmul.bf16.gmra.mxu0 %v7994
        %v8249 = vpop.f32.mrf.mxu0
        %v8250 = vadd.f32 %v8161, %v8249
        %v8251 = vpop.f32.mrf.mxu0
        %v8252 = vadd.f32 %v8163, %v8251
        %8253 = vmatmul.bf16.gmra.mxu0 %v7996
        %v8254 = vpop.f32.mrf.mxu0
        %v8255 = vadd.f32 %v8166, %v8254
        %v8256 = vpop.f32.mrf.mxu0
        %v8257 = vadd.f32 %v8168, %v8256
        %8258 = vmatmul.bf16.gmra.mxu0 %v7998
        %v8259 = vpop.f32.mrf.mxu0
        %v8260 = vadd.f32 %v8171, %v8259
        %v8261 = vpop.f32.mrf.mxu0
        %v8262 = vadd.f32 %v8173, %v8261
        %8263 = vmatmul.bf16.gmra.mxu0 %v8000
        %v8264 = vpop.f32.mrf.mxu0
        %v8265 = vadd.f32 %v8176, %v8264
        %v8266 = vpop.f32.mrf.mxu0
        %v8267 = vadd.f32 %v8178, %v8266
        %8268 = vmatmul.bf16.gmra.mxu0 %v8002
        %v8269 = vpop.f32.mrf.mxu0
        %v8270 = vadd.f32 %v8181, %v8269
        %v8271 = vpop.f32.mrf.mxu0
        %v8272 = vadd.f32 %v8183, %v8271
        %8273 = vmatmul.bf16.gmra.mxu0 %v8004
        %v8274 = vpop.f32.mrf.mxu0
        %v8275 = vadd.f32 %v8186, %v8274
        %v8276 = vpop.f32.mrf.mxu0
        %v8277 = vadd.f32 %v8188, %v8276
        %8278 = vdwg.mxu0
        %v8279 = vmul.f32 %v8200, %v7941
        %v8280 = vmul.f32 %v8202, %v7942
        %v8281 = vmul.f32 %v8205, %v7943
        %v8282 = vmul.f32 %v8207, %v7944
        %v8283 = vmul.f32 %v8210, %v7945
        %v8284 = vmul.f32 %v8212, %v7946
        %v8285 = vmul.f32 %v8215, %v7947
        %v8286 = vmul.f32 %v8217, %v7948
        %v8287 = vmul.f32 %v8220, %v7949
        %v8288 = vmul.f32 %v8222, %v7950
        %v8289 = vmul.f32 %v8225, %v7951
        %v8290 = vmul.f32 %v8227, %v7952
        %v8291 = vmul.f32 %v8230, %v7953
        %v8292 = vmul.f32 %v8232, %v7954
        %v8293 = vmul.f32 %v8235, %v7955
        %v8294 = vmul.f32 %v8237, %v7956
        %v8295 = vmul.f32 %v8240, %v7957
        %v8296 = vmul.f32 %v8242, %v7958
        %v8297 = vmul.f32 %v8245, %v7959
        %v8298 = vmul.f32 %v8247, %v7960
        %v8299 = vmul.f32 %v8250, %v7961
        %v8300 = vmul.f32 %v8252, %v7962
        %v8301 = vmul.f32 %v8255, %v7963
        %v8302 = vmul.f32 %v8257, %v7964
        %v8303 = vmul.f32 %v8260, %v7965
        %v8304 = vmul.f32 %v8262, %v7966
        %v8305 = vmul.f32 %v8265, %v7967
        %v8306 = vmul.f32 %v8267, %v7968
        %v8307 = vmul.f32 %v8270, %v7969
        %v8308 = vmul.f32 %v8272, %v7970
        %v8309 = vmul.f32 %v8275, %v7971
        %v8310 = vmul.f32 %v8277, %v7972
        %v8311 = vpack.c.bf16 %v8280, %v8279
        %v8312 = vpack.c.bf16 %v8282, %v8281
        %v8313 = vpack.c.bf16 %v8284, %v8283
        %v8314 = vpack.c.bf16 %v8286, %v8285
        %v8315 = vpack.c.bf16 %v8288, %v8287
        %v8316 = vpack.c.bf16 %v8290, %v8289
        %v8317 = vpack.c.bf16 %v8292, %v8291
        %v8318 = vpack.c.bf16 %v8294, %v8293
        %v8319 = vpack.c.bf16 %v8296, %v8295
        %v8320 = vpack.c.bf16 %v8298, %v8297
        %v8321 = vpack.c.bf16 %v8300, %v8299
        %v8322 = vpack.c.bf16 %v8302, %v8301
        %v8323 = vpack.c.bf16 %v8304, %v8303
        %v8324 = vpack.c.bf16 %v8306, %v8305
        %v8325 = vpack.c.bf16 %v8308, %v8307
        %v8326 = vpack.c.bf16 %v8310, %v8309
        %v8327 = vld [vmem:[#allocation15 + $0x60] sm:$0xff]
        %v8328 = vld [vmem:[#allocation15 + $0x68] sm:$0xff]
        %v8329 = vld [vmem:[#allocation15 + $0x70] sm:$0xff]
        %v8330 = vld [vmem:[#allocation15 + $0x78] sm:$0xff]
        %v8331 = vpack.c.bf16 %v8328, %v8327
        %v8332 = vpack.c.bf16 %v8330, %v8329
        %v8334 = vsel %vm2760, %v8311, 0
        %v8337 = vsel %vm2760, %v8312, 0
        %v8340 = vsel %vm2760, %v8313, 0
        %v8343 = vsel %vm2760, %v8314, 0
        %v8346 = vsel %vm2760, %v8315, 0
        %v8349 = vsel %vm2760, %v8316, 0
        %v8352 = vsel %vm2760, %v8317, 0
        %v8355 = vsel %vm2760, %v8318, 0
        %v8358 = vsel %vm2760, %v8319, 0
        %v8361 = vsel %vm2760, %v8320, 0
        %v8364 = vsel %vm2760, %v8321, 0
        %v8367 = vsel %vm2760, %v8322, 0
        %v8370 = vsel %vm2760, %v8323, 0
        %v8373 = vsel %vm2760, %v8324, 0
        %v8376 = vsel %vm2760, %v8325, 0
        %v8379 = vsel %vm2760, %v8326, 0
        %8381 = vmatpush.bf16.msra.mxu0 0
        %8382 = vmatpush.bf16.msra.mxu0 0
        %8383 = vmatpush.bf16.msra.mxu0 0
        %8384 = vmatpush.bf16.msra.mxu0 0
        %8385 = vmatpush.bf16.msra.mxu0 0
        %8386 = vmatpush.bf16.msra.mxu0 0
        %8387 = vmatpush.bf16.msra.mxu0 %v8332
        %8388 = vmatpush.bf16.msra.mxu0 %v8331
        %8389 = vmatmul.bf16.gmra.mxu0 %v8334
        %v8390 = vpop.f32.mrf.mxu0
        %v8391 = vadd.f32 0.0, %v8390
        %v8392 = vpop.f32.mrf.mxu0
        %v8393 = vadd.f32 0.0, %v8392
        %8394 = vmatmul.bf16.gmra.mxu0 %v8337
        %v8395 = vpop.f32.mrf.mxu0
        %v8396 = vadd.f32 0.0, %v8395
        %v8397 = vpop.f32.mrf.mxu0
        %v8398 = vadd.f32 0.0, %v8397
        %8399 = vmatmul.bf16.gmra.mxu0 %v8340
        %v8400 = vpop.f32.mrf.mxu0
        %v8401 = vadd.f32 0.0, %v8400
        %v8402 = vpop.f32.mrf.mxu0
        %v8403 = vadd.f32 0.0, %v8402
        %8404 = vmatmul.bf16.gmra.mxu0 %v8343
        %v8405 = vpop.f32.mrf.mxu0
        %v8406 = vadd.f32 0.0, %v8405
        %v8407 = vpop.f32.mrf.mxu0
        %v8408 = vadd.f32 0.0, %v8407
        %8409 = vmatmul.bf16.gmra.mxu0 %v8346
        %v8410 = vpop.f32.mrf.mxu0
        %v8411 = vadd.f32 0.0, %v8410
        %v8412 = vpop.f32.mrf.mxu0
        %v8413 = vadd.f32 0.0, %v8412
        %8414 = vmatmul.bf16.gmra.mxu0 %v8349
        %v8415 = vpop.f32.mrf.mxu0
        %v8416 = vadd.f32 0.0, %v8415
        %v8417 = vpop.f32.mrf.mxu0
        %v8418 = vadd.f32 0.0, %v8417
        %8419 = vmatmul.bf16.gmra.mxu0 %v8352
        %v8420 = vpop.f32.mrf.mxu0
        %v8421 = vadd.f32 0.0, %v8420
        %v8422 = vpop.f32.mrf.mxu0
        %v8423 = vadd.f32 0.0, %v8422
        %8424 = vmatmul.bf16.gmra.mxu0 %v8355
        %v8425 = vpop.f32.mrf.mxu0
        %v8426 = vadd.f32 0.0, %v8425
        %v8427 = vpop.f32.mrf.mxu0
        %v8428 = vadd.f32 0.0, %v8427
        %8429 = vmatmul.bf16.gmra.mxu0 %v8358
        %v8430 = vpop.f32.mrf.mxu0
        %v8431 = vadd.f32 0.0, %v8430
        %v8432 = vpop.f32.mrf.mxu0
        %v8433 = vadd.f32 0.0, %v8432
        %8434 = vmatmul.bf16.gmra.mxu0 %v8361
        %v8435 = vpop.f32.mrf.mxu0
        %v8436 = vadd.f32 0.0, %v8435
        %v8437 = vpop.f32.mrf.mxu0
        %v8438 = vadd.f32 0.0, %v8437
        %8439 = vmatmul.bf16.gmra.mxu0 %v8364
        %v8440 = vpop.f32.mrf.mxu0
        %v8441 = vadd.f32 0.0, %v8440
        %v8442 = vpop.f32.mrf.mxu0
        %v8443 = vadd.f32 0.0, %v8442
        %8444 = vmatmul.bf16.gmra.mxu0 %v8367
        %v8445 = vpop.f32.mrf.mxu0
        %v8446 = vadd.f32 0.0, %v8445
        %v8447 = vpop.f32.mrf.mxu0
        %v8448 = vadd.f32 0.0, %v8447
        %8449 = vmatmul.bf16.gmra.mxu0 %v8370
        %v8450 = vpop.f32.mrf.mxu0
        %v8451 = vadd.f32 0.0, %v8450
        %v8452 = vpop.f32.mrf.mxu0
        %v8453 = vadd.f32 0.0, %v8452
        %8454 = vmatmul.bf16.gmra.mxu0 %v8373
        %v8455 = vpop.f32.mrf.mxu0
        %v8456 = vadd.f32 0.0, %v8455
        %v8457 = vpop.f32.mrf.mxu0
        %v8458 = vadd.f32 0.0, %v8457
        %8459 = vmatmul.bf16.gmra.mxu0 %v8376
        %v8460 = vpop.f32.mrf.mxu0
        %v8461 = vadd.f32 0.0, %v8460
        %v8462 = vpop.f32.mrf.mxu0
        %v8463 = vadd.f32 0.0, %v8462
        %8464 = vmatmul.bf16.gmra.mxu0 %v8379
        %v8465 = vpop.f32.mrf.mxu0
        %v8466 = vadd.f32 0.0, %v8465
        %v8467 = vpop.f32.mrf.mxu0
        %v8468 = vadd.f32 0.0, %v8467
        %8469 = vdwg.mxu0
        %v8470 = vadd.f32 %v6944, %v8391
        %v8471 = vadd.f32 %v6945, %v8393
        %v8472 = vadd.f32 %v6946, %v8396
        %v8473 = vadd.f32 %v6947, %v8398
        %v8474 = vadd.f32 %v6948, %v8401
        %v8475 = vadd.f32 %v6949, %v8403
        %v8476 = vadd.f32 %v6950, %v8406
        %v8477 = vadd.f32 %v6951, %v8408
        %v8478 = vadd.f32 %v6952, %v8411
        %v8479 = vadd.f32 %v6953, %v8413
        %v8480 = vadd.f32 %v6954, %v8416
        %v8481 = vadd.f32 %v6955, %v8418
        %v8482 = vadd.f32 %v6956, %v8421
        %v8483 = vadd.f32 %v6957, %v8423
        %v8484 = vadd.f32 %v6958, %v8426
        %v8485 = vadd.f32 %v6959, %v8428
        %v8486 = vadd.f32 %v6960, %v8431
        %v8487 = vadd.f32 %v6961, %v8433
        %v8488 = vadd.f32 %v6962, %v8436
        %v8489 = vadd.f32 %v6963, %v8438
        %v8490 = vadd.f32 %v6964, %v8441
        %v8491 = vadd.f32 %v6965, %v8443
        %v8492 = vadd.f32 %v6966, %v8446
        %v8493 = vadd.f32 %v6967, %v8448
        %v8494 = vadd.f32 %v6968, %v8451
        %v8495 = vadd.f32 %v6969, %v8453
        %v8496 = vadd.f32 %v6970, %v8456
        %v8497 = vadd.f32 %v6971, %v8458
        %v8498 = vadd.f32 %v6972, %v8461
        %v8499 = vadd.f32 %v6973, %v8463
        %v8500 = vadd.f32 %v6974, %v8466
        %v8501 = vadd.f32 %v6975, %v8468
        %v8502 = vld [vmem:[%s7] sm:$0x1]
        %v8504 = vperm.slane %v8502, 0
        %v8506 = vadd.f32 %v8470, %v8504
        %v8507 = vadd.f32 %v8471, %v8504
        %v8508 = vadd.f32 %v8472, %v8504
        %v8509 = vadd.f32 %v8473, %v8504
        %v8510 = vadd.f32 %v8474, %v8504
        %v8511 = vadd.f32 %v8475, %v8504
        %v8512 = vadd.f32 %v8476, %v8504
        %v8513 = vadd.f32 %v8477, %v8504
        %v8514 = vadd.f32 %v8478, %v8504
        %v8515 = vadd.f32 %v8479, %v8504
        %v8516 = vadd.f32 %v8480, %v8504
        %v8517 = vadd.f32 %v8481, %v8504
        %v8518 = vadd.f32 %v8482, %v8504
        %v8519 = vadd.f32 %v8483, %v8504
        %v8520 = vadd.f32 %v8484, %v8504
        %v8521 = vadd.f32 %v8485, %v8504
        %v8522 = vadd.f32 %v8486, %v8504
        %v8523 = vadd.f32 %v8487, %v8504
        %v8524 = vadd.f32 %v8488, %v8504
        %v8525 = vadd.f32 %v8489, %v8504
        %v8526 = vadd.f32 %v8490, %v8504
        %v8527 = vadd.f32 %v8491, %v8504
        %v8528 = vadd.f32 %v8492, %v8504
        %v8529 = vadd.f32 %v8493, %v8504
        %v8530 = vadd.f32 %v8494, %v8504
        %v8531 = vadd.f32 %v8495, %v8504
        %v8532 = vadd.f32 %v8496, %v8504
        %v8533 = vadd.f32 %v8497, %v8504
        %v8534 = vadd.f32 %v8498, %v8504
        %v8535 = vadd.f32 %v8499, %v8504
        %v8536 = vadd.f32 %v8500, %v8504
        %v8537 = vadd.f32 %v8501, %v8504
        %v8538 = vpack.c.bf16 %v8506, %v8506
        %v8539 = vpack.c.bf16 %v8507, %v8507
        %v8540 = vpack.c.bf16 %v8508, %v8508
        %v8541 = vpack.c.bf16 %v8509, %v8509
        %v8542 = vpack.c.bf16 %v8510, %v8510
        %v8543 = vpack.c.bf16 %v8511, %v8511
        %v8544 = vpack.c.bf16 %v8512, %v8512
        %v8545 = vpack.c.bf16 %v8513, %v8513
        %v8546 = vpack.c.bf16 %v8514, %v8514
        %v8547 = vpack.c.bf16 %v8515, %v8515
        %v8548 = vpack.c.bf16 %v8516, %v8516
        %v8549 = vpack.c.bf16 %v8517, %v8517
        %v8550 = vpack.c.bf16 %v8518, %v8518
        %v8551 = vpack.c.bf16 %v8519, %v8519
        %v8552 = vpack.c.bf16 %v8520, %v8520
        %v8553 = vpack.c.bf16 %v8521, %v8521
        %v8554 = vpack.c.bf16 %v8522, %v8522
        %v8555 = vpack.c.bf16 %v8523, %v8523
        %v8556 = vpack.c.bf16 %v8524, %v8524
        %v8557 = vpack.c.bf16 %v8525, %v8525
        %v8558 = vpack.c.bf16 %v8526, %v8526
        %v8559 = vpack.c.bf16 %v8527, %v8527
        %v8560 = vpack.c.bf16 %v8528, %v8528
        %v8561 = vpack.c.bf16 %v8529, %v8529
        %v8562 = vpack.c.bf16 %v8530, %v8530
        %v8563 = vpack.c.bf16 %v8531, %v8531
        %v8564 = vpack.c.bf16 %v8532, %v8532
        %v8565 = vpack.c.bf16 %v8533, %v8533
        %v8566 = vpack.c.bf16 %v8534, %v8534
        %v8567 = vpack.c.bf16 %v8535, %v8535
        %v8568 = vpack.c.bf16 %v8536, %v8536
        %v8569 = vpack.c.bf16 %v8537, %v8537
        %8570 = vst [vmem:[%s490] sm:$0xf] %v8538
        %8571 = vst [vmem:[%s490 + $0x4] sm:$0xf] %v8539
        %8572 = vst [vmem:[%s490 + $0x8] sm:$0xf] %v8540
        %8573 = vst [vmem:[%s490 + $0xc] sm:$0xf] %v8541
        %8574 = vst [vmem:[%s490 + $0x10] sm:$0xf] %v8542
        %8575 = vst [vmem:[%s490 + $0x14] sm:$0xf] %v8543
        %8576 = vst [vmem:[%s490 + $0x18] sm:$0xf] %v8544
        %8577 = vst [vmem:[%s490 + $0x1c] sm:$0xf] %v8545
        %8578 = vst [vmem:[%s490 + $0x20] sm:$0xf] %v8546
        %8579 = vst [vmem:[%s490 + $0x24] sm:$0xf] %v8547
        %8580 = vst [vmem:[%s490 + $0x28] sm:$0xf] %v8548
        %8581 = vst [vmem:[%s490 + $0x2c] sm:$0xf] %v8549
        %8582 = vst [vmem:[%s490 + $0x30] sm:$0xf] %v8550
        %8583 = vst [vmem:[%s490 + $0x34] sm:$0xf] %v8551
        %8584 = vst [vmem:[%s490 + $0x38] sm:$0xf] %v8552
        %8585 = vst [vmem:[%s490 + $0x3c] sm:$0xf] %v8553
        %8586 = vst [vmem:[%s490 + $0x40] sm:$0xf] %v8554
        %8587 = vst [vmem:[%s490 + $0x44] sm:$0xf] %v8555
        %8588 = vst [vmem:[%s490 + $0x48] sm:$0xf] %v8556
        %8589 = vst [vmem:[%s490 + $0x4c] sm:$0xf] %v8557
        %8590 = vst [vmem:[%s490 + $0x50] sm:$0xf] %v8558
        %8591 = vst [vmem:[%s490 + $0x54] sm:$0xf] %v8559
        %8592 = vst [vmem:[%s490 + $0x58] sm:$0xf] %v8560
        %8593 = vst [vmem:[%s490 + $0x5c] sm:$0xf] %v8561
        %8594 = vst [vmem:[%s490 + $0x60] sm:$0xf] %v8562
        %8595 = vst [vmem:[%s490 + $0x64] sm:$0xf] %v8563
        %8596 = vst [vmem:[%s490 + $0x68] sm:$0xf] %v8564
        %8597 = vst [vmem:[%s490 + $0x6c] sm:$0xf] %v8565
        %8598 = vst [vmem:[%s490 + $0x70] sm:$0xf] %v8566
        %8599 = vst [vmem:[%s490 + $0x74] sm:$0xf] %v8567
        %8600 = vst [vmem:[%s490 + $0x78] sm:$0xf] %v8568
        %8601 = vst [vmem:[%s490 + $0x7c] sm:$0xf] %v8569
        %s8602 = sand.u32 %s237, 1
        %s8603 = scalar_lea.sflag [#allocation6], %s8602
        %s8604 = sand.u32 %s237, 1
        %s8605 = smul.addr %s8604, 128
        %s8606 = scalar_lea.vmem [#allocation16], %s8605
        // Predicated region
        $region85: #{mha_forward.1} parent=51 // pred_check
          %p8607 = pneg %p247
        $region86: #{mha_forward.1} parent=51 // pred_check_branch
          %8609 = sbr.rel (%p8607) target = $region88
        $region87: #{mha_forward.1} parent=51 // pred_region
          %s8610 = smul.u32 32, %s35
          %8612 = vsyncadd %s8603, 0
          %s8613 = smul.addr %s34, 32
          %s8614 = sadd.s32 %s8610, %s8613
          %s8615 = smul.addr %s8614, 4
          %s8616 = scalar_lea.hbm %s8, %s8615
          %s8617 = sshll.u32 %s8606, 4
          %s8618 = int_to_ptr.vmem [resolvable:$true] %s8617
          %s8619 = sshll.u32 %s8616, 4
          %s8620 = int_to_ptr.hbm [resolvable:$true] %s8619
          %8625 = dma.vmem_to_hbm [thread:$0]  %s8618, 2048, %s8620, %s8603, 64, 64, 4
        $region88: #{mha_forward.1} parent=51 // pred_fallthru
          _
      $region52: #{mha_forward.1} parent=5 // pred_fallthru
        _
      %p8626 = scmp.le.s32.totalorder 2, %s25
      // Predicated region
      $region89: #{mha_forward.1} parent=5 // pred_check
        %p8627 = pneg %p8626
      $region90: #{mha_forward.1} parent=5 // pred_check_branch
        %8629 = sbr.rel (%p8627) target = $region92
      $region91: #{mha_forward.1} parent=5 // pred_region
        %s8630 = ssub.s32 %s25, 2
        // Predicated region
        $region93: #{mha_forward.1} parent=91 // pred_check
          %p8631 = pneg %p253
        $region94: #{mha_forward.1} parent=91 // pred_check_branch
          %8633 = sbr.rel (%p8631) target = $region96
        $region95: #{mha_forward.1} parent=91 // pred_region
          %s8634 = sand.u32 %s238, 1
          %s8635 = scalar_lea.sflag [#allocation6], %s8634
          %s8636 = sand.u32 %s238, 1
          %s8637 = smul.addr %s8636, 128
          %s8638 = scalar_lea.vmem [#allocation16], %s8637
          %8640 = dma.done %s8635, 2048
        $region96: #{mha_forward.1} parent=91 // pred_fallthru
          _
      $region92: #{mha_forward.1} parent=5 // pred_fallthru
        _
    $region6: #{mha_forward.1} parent=1 // loop_footer
      %s29 = sadd.s32 1, %s25
    $region7: #{mha_forward.1} parent=1 // loop_footer_branch
      %24 = sbr.rel target = $region3
    $region8: #{mha_forward.1} parent=1 // loop_exit
      _
    %8641 = vsyncpa [#allocation5], 1
    %s8642 = scalar_lea.sflag [#allocation5], 1
    %8643 = vsyncpa %s8642, 1
    %8644 = vsyncpa [#allocation8], 1
    %s8645 = scalar_lea.sflag [#allocation8], 1
    %8646 = vsyncpa %s8645, 1
    %8647 = vsyncpa [#allocation11], 1
    %8648 = vsyncpa [#allocation14], 1
    %8649 = vsyncpa [#allocation6], 1
    %s8650 = scalar_lea.sflag [#allocation6], 1
    %8651 = vsyncpa %s8650, 1

</llo_original>
